<compile_context>
chip_gen: v7x
topology: tpu7x:2x2x1
jax: 0.10.0
libtpu: 0.0.40
codegen_flags: <defaults>
</compile_context>

<pallas_src>
import jax
import jax.numpy as jnp
from jax.experimental import pallas as pl
from jax.experimental.pallas import tpu as pltpu

IN_FEATURES = 3 * 48 * 48     # 6912
HIDDEN1 = 512
HIDDEN2 = 24
OUT_FEATURES = 2
LANE = 128
HIDDEN2_PAD = LANE            # 24 -> 128 (zero padded)
OUT_PAD = LANE                # 2  -> 128 (zero padded)
MAX_BATCH_TILE = 512          # rows per grid step for large batches


def _round_up(n, m):
    return (n + m - 1) // m * m


def _pick_batch_tile(B):
    """Batch-tile choice: multiple of 8 (sublane rule), >=2 grid steps when
    B >= 16 so the parallel axis can shard across both v7x TensorCores."""
    if B <= 8:
        return B                              # block == full batch dim
    half = _round_up(pl.cdiv(B, 2), 8)
    return min(MAX_BATCH_TILE, half)


def _mlp_kernel(x_ref, w1_ref, b1_ref, w2_ref, b2_ref, w3_ref, b3_ref, o_ref):
    """Whole MLP for one batch tile; all weights resident in VMEM."""
    # Cast x f32 -> bf16 on the VPU (hidden under MXU/DMA), then bf16 MXU dot
    # with f32 accumulation.
    x = x_ref[...].astype(jnp.bfloat16)
    h1 = jnp.dot(x, w1_ref[...], preferred_element_type=jnp.float32)
    h1 = jnp.maximum(h1 + b1_ref[...], 0.0)                       # ReLU (f32)
    # Layer 2 (columns zero-padded to 128 lanes), bf16 x bf16 on the MXU.
    h2 = jnp.dot(h1.astype(jnp.bfloat16), w2_ref[...],
                 preferred_element_type=jnp.float32)
    h2 = jnp.maximum(h2 + b2_ref[...], 0.0)                       # ReLU (f32)
    # Layer 3 (output zero-padded to 128 lanes; wrapper slices [:, :2]).
    logits = jnp.dot(h2.astype(jnp.bfloat16), w3_ref[...],
                     preferred_element_type=jnp.float32)
    o_ref[...] = (logits + b3_ref[...]).astype(o_ref.dtype)


def neural_network_forward(x, params):
    """x: (B, 3, 48, 48) float32 -> logits (B, 2) float32."""
    w1, b1, w2, b2, w3, b3 = params
    B = x.shape[0]
    x_flat = x.reshape(B, -1)                 # nn.Flatten order on NCHW, stays f32
    assert x_flat.shape[1] == IN_FEATURES

    tb = _pick_batch_tile(B)
    grid = (pl.cdiv(B, tb),)                  # partial last block allowed

    const = lambda i: (0, 0)                  # weight blocks: index never changes
    single = pl.Buffered(1)                   # resident weights: no double buffer

    out = pl.pallas_call(
        _mlp_kernel,
        out_shape=jax.ShapeDtypeStruct((B, OUT_PAD), jnp.float32),
        grid=grid,
        in_specs=[
            pl.BlockSpec((tb, IN_FEATURES), lambda i: (i, 0)),            # x (f32)
            pl.BlockSpec((IN_FEATURES, HIDDEN1), const,
                         pipeline_mode=single),                           # W1 bf16
            pl.BlockSpec((1, HIDDEN1), const, pipeline_mode=single),      # b1 f32
            pl.BlockSpec((HIDDEN1, HIDDEN2_PAD), const,
                         pipeline_mode=single),                           # W2 bf16
            pl.BlockSpec((1, HIDDEN2_PAD), const, pipeline_mode=single),  # b2 f32
            pl.BlockSpec((HIDDEN2_PAD, OUT_PAD), const,
                         pipeline_mode=single),                           # W3 bf16
            pl.BlockSpec((1, OUT_PAD), const, pipeline_mode=single),      # b3 f32
        ],
        out_specs=pl.BlockSpec((tb, OUT_PAD), lambda i: (i, 0)),
        compiler_params=pltpu.CompilerParams(
            dimension_semantics=("parallel",),
            vmem_limit_bytes=48 << 20,
        ),
    )(x_flat, w1, b1, w2, b2, w3, b3)

    return out[:, :OUT_FEATURES]


def init_params(key):
    """nn.Linear-style U(-1/sqrt(fan_in), 1/sqrt(fan_in)) init, kernel-ready.

    * Weights are (in_features, out_features) so the kernel computes x @ W + b
      (PyTorch stores (out, in) and does x @ W.T — transposed here once).
    * All weights are stored bf16 (MXU-native); biases stay f32.
    * Layer-2/3 weights & biases are zero-padded to 128 lanes so all matmuls
      and the output store are lane-dense.
    """
    def linear(k, fan_in, fan_out):
        kw, kb = jax.random.split(k)
        bound = 1.0 / jnp.sqrt(float(fan_in))
        w = jax.random.uniform(kw, (fan_in, fan_out), jnp.float32, -bound, bound)
        b = jax.random.uniform(kb, (1, fan_out), jnp.float32, -bound, bound)
        return w, b

    k1, k2, k3 = jax.random.split(key, 3)
    w1, b1 = linear(k1, IN_FEATURES, HIDDEN1)
    w2, b2 = linear(k2, HIDDEN1, HIDDEN2)
    w3, b3 = linear(k3, HIDDEN2, OUT_FEATURES)

    w1 = w1.astype(jnp.bfloat16)
    w2 = jnp.pad(w2, ((0, 0), (0, HIDDEN2_PAD - HIDDEN2))).astype(jnp.bfloat16)
    b2 = jnp.pad(b2, ((0, 0), (0, HIDDEN2_PAD - HIDDEN2)))
    w3 = jnp.pad(w3, ((0, HIDDEN2_PAD - HIDDEN2),
                      (0, OUT_PAD - OUT_FEATURES))).astype(jnp.bfloat16)
    b3 = jnp.pad(b3, ((0, 0), (0, OUT_PAD - OUT_FEATURES)))
    return (w1, b1, w2, b2, w3, b3)


def _reference_forward(x, params):
    """Pure-JAX reference mirroring the kernel's bf16 casts exactly."""
    w1, b1, w2, b2, w3, b3 = params
    hp = jax.lax.Precision.HIGHEST
    f32 = jnp.float32
    h = x.reshape(x.shape[0], -1).astype(jnp.bfloat16).astype(f32)
    h = jnp.maximum(jnp.dot(h, w1.astype(f32), precision=hp) + b1, 0.0)
    h = h.astype(jnp.bfloat16).astype(f32)
    h = jnp.maximum(jnp.dot(h, w2.astype(f32), precision=hp) + b2, 0.0)
    h = h.astype(jnp.bfloat16).astype(f32)
    return (jnp.dot(h, w3.astype(f32), precision=hp) + b3)[:, :OUT_FEATURES]


if __name__ == "__main__":
    key = jax.random.PRNGKey(0)
    kx, kp = jax.random.split(key)

    B = 8
    x = jax.random.normal(kx, (B, 3, 48, 48), jnp.float32)
    params = init_params(kp)

    logits = jax.block_until_ready(neural_network_forward(x, params))

    ref = _reference_forward(x, params)
    assert logits.shape == (B, OUT_FEATURES)
    assert jnp.allclose(logits, ref, atol=1e-2, rtol=1e-2), (
        float(jnp.max(jnp.abs(logits - ref))))

    print("KERNEL_OK")
</pallas_src>

<mosaic_0001>
module attributes {stable_mosaic.version = 11 : i64} {
  func.func @_mlp_kernel(%arg0: i32, %arg1: memref<8x6912xf32, #tpu.memory_space<vmem>>, %arg2: memref<6912x512xbf16, #tpu.memory_space<vmem>>, %arg3: memref<1x512xf32, #tpu.memory_space<vmem>>, %arg4: memref<512x128xbf16, #tpu.memory_space<vmem>>, %arg5: memref<1x128xf32, #tpu.memory_space<vmem>>, %arg6: memref<128x128xbf16, #tpu.memory_space<vmem>>, %arg7: memref<1x128xf32, #tpu.memory_space<vmem>>, %arg8: memref<8x128xf32, #tpu.memory_space<vmem>>) attributes {dimension_semantics = [#tpu.dimension_semantics<parallel>], iteration_bounds = array<i64: 1>, scalar_prefetch = 0 : i64, scratch_operands = 0 : i64, tpu.core_type = #tpu.core_type<tc>, window_params = [{transform_indices = @transform_0, window_bounds = array<i64: 8, 6912>}, {pipeline_mode = #tpu.pipeline_mode<synchronous>, transform_indices = @transform_1, window_bounds = array<i64: 6912, 512>}, {pipeline_mode = #tpu.pipeline_mode<synchronous>, transform_indices = @transform_2, window_bounds = array<i64: 1, 512>}, {pipeline_mode = #tpu.pipeline_mode<synchronous>, transform_indices = @transform_3, window_bounds = array<i64: 512, 128>}, {pipeline_mode = #tpu.pipeline_mode<synchronous>, transform_indices = @transform_4, window_bounds = array<i64: 1, 128>}, {pipeline_mode = #tpu.pipeline_mode<synchronous>, transform_indices = @transform_5, window_bounds = array<i64: 128, 128>}, {pipeline_mode = #tpu.pipeline_mode<synchronous>, transform_indices = @transform_6, window_bounds = array<i64: 1, 128>}, {transform_indices = @transform_7, window_bounds = array<i64: 8, 128>}]} {
    %c0 = arith.constant 0 : index
    %c0_0 = arith.constant 0 : index
    %0 = vector.load %arg1[%c0, %c0_0] : memref<8x6912xf32, #tpu.memory_space<vmem>>, vector<8x6912xf32>
    %1 = arith.truncf %0 : vector<8x6912xf32> to vector<8x6912xbf16>
    %c0_1 = arith.constant 0 : index
    %c0_2 = arith.constant 0 : index
    %2 = vector.load %arg2[%c0_1, %c0_2] : memref<6912x512xbf16, #tpu.memory_space<vmem>>, vector<6912x512xbf16>
    %cst = arith.constant dense<0.000000e+00> : vector<8x512xf32>
    %3 = tpu.matmul %1, %2, %cst {dimension_numbers = #tpu.dot_dimension_numbers<[1], [0], [0], [1], [0, 0, 1, 1], [], []>} : vector<8x6912xbf16>, vector<6912x512xbf16>, vector<8x512xf32> -> vector<8x512xf32>
    %c0_3 = arith.constant 0 : index
    %c0_4 = arith.constant 0 : index
    %4 = vector.load %arg3[%c0_3, %c0_4] : memref<1x512xf32, #tpu.memory_space<vmem>>, vector<1x512xf32>
    %5 = vector.broadcast %4 : vector<1x512xf32> to vector<8x512xf32>
    %6 = arith.addf %3, %5 : vector<8x512xf32>
    %cst_5 = arith.constant 0.000000e+00 : f32
    %7 = vector.broadcast %cst_5 : f32 to vector<8x512xf32>
    %8 = arith.maximumf %6, %7 : vector<8x512xf32>
    %9 = arith.truncf %8 : vector<8x512xf32> to vector<8x512xbf16>
    %c0_6 = arith.constant 0 : index
    %c0_7 = arith.constant 0 : index
    %10 = vector.load %arg4[%c0_6, %c0_7] : memref<512x128xbf16, #tpu.memory_space<vmem>>, vector<512x128xbf16>
    %cst_8 = arith.constant dense<0.000000e+00> : vector<8x128xf32>
    %11 = tpu.matmul %9, %10, %cst_8 {dimension_numbers = #tpu.dot_dimension_numbers<[1], [0], [0], [1], [0, 0, 1, 1], [], []>} : vector<8x512xbf16>, vector<512x128xbf16>, vector<8x128xf32> -> vector<8x128xf32>
    %c0_9 = arith.constant 0 : index
    %c0_10 = arith.constant 0 : index
    %12 = vector.load %arg5[%c0_9, %c0_10] : memref<1x128xf32, #tpu.memory_space<vmem>>, vector<1x128xf32>
    %13 = vector.broadcast %12 : vector<1x128xf32> to vector<8x128xf32>
    %14 = arith.addf %11, %13 : vector<8x128xf32>
    %cst_11 = arith.constant 0.000000e+00 : f32
    %15 = vector.broadcast %cst_11 : f32 to vector<8x128xf32>
    %16 = arith.maximumf %14, %15 : vector<8x128xf32>
    %17 = arith.truncf %16 : vector<8x128xf32> to vector<8x128xbf16>
    %c0_12 = arith.constant 0 : index
    %c0_13 = arith.constant 0 : index
    %18 = vector.load %arg6[%c0_12, %c0_13] : memref<128x128xbf16, #tpu.memory_space<vmem>>, vector<128x128xbf16>
    %cst_14 = arith.constant dense<0.000000e+00> : vector<8x128xf32>
    %19 = tpu.matmul %17, %18, %cst_14 {dimension_numbers = #tpu.dot_dimension_numbers<[1], [0], [0], [1], [0, 0, 1, 1], [], []>} : vector<8x128xbf16>, vector<128x128xbf16>, vector<8x128xf32> -> vector<8x128xf32>
    %c0_15 = arith.constant 0 : index
    %c0_16 = arith.constant 0 : index
    %20 = vector.load %arg7[%c0_15, %c0_16] : memref<1x128xf32, #tpu.memory_space<vmem>>, vector<1x128xf32>
    %21 = vector.broadcast %20 : vector<1x128xf32> to vector<8x128xf32>
    %22 = arith.addf %19, %21 : vector<8x128xf32>
    %c0_17 = arith.constant 0 : index
    %c0_18 = arith.constant 0 : index
    %23 = vector.load %arg8[%c0_17, %c0_18] : memref<8x128xf32, #tpu.memory_space<vmem>>, vector<8x128xf32>
    tpu.vector_store %arg8[%c0_17, %c0_18], %22 {strides = array<i32>} : memref<8x128xf32, #tpu.memory_space<vmem>>, vector<8x128xf32>,
    return
  }
  func.func @transform_0(%arg0: i32) -> (i32, i32) {
    %c0_i32 = arith.constant 0 : i32
    %c0_i32_0 = arith.constant 0 : i32
    return %arg0, %c0_i32 : i32, i32
  }
  func.func @transform_1(%arg0: i32) -> (i32, i32) {
    %c0_i32 = arith.constant 0 : i32
    %c0_i32_0 = arith.constant 0 : i32
    %c0_i32_1 = arith.constant 0 : i32
    return %c0_i32, %c0_i32_0 : i32, i32
  }
  func.func @transform_2(%arg0: i32) -> (i32, i32) {
    %c0_i32 = arith.constant 0 : i32
    %c0_i32_0 = arith.constant 0 : i32
    %c0_i32_1 = arith.constant 0 : i32
    return %c0_i32, %c0_i32_0 : i32, i32
  }
  func.func @transform_3(%arg0: i32) -> (i32, i32) {
    %c0_i32 = arith.constant 0 : i32
    %c0_i32_0 = arith.constant 0 : i32
    %c0_i32_1 = arith.constant 0 : i32
    return %c0_i32, %c0_i32_0 : i32, i32
  }
  func.func @transform_4(%arg0: i32) -> (i32, i32) {
    %c0_i32 = arith.constant 0 : i32
    %c0_i32_0 = arith.constant 0 : i32
    %c0_i32_1 = arith.constant 0 : i32
    return %c0_i32, %c0_i32_0 : i32, i32
  }
  func.func @transform_5(%arg0: i32) -> (i32, i32) {
    %c0_i32 = arith.constant 0 : i32
    %c0_i32_0 = arith.constant 0 : i32
    %c0_i32_1 = arith.constant 0 : i32
    return %c0_i32, %c0_i32_0 : i32, i32
  }
  func.func @transform_6(%arg0: i32) -> (i32, i32) {
    %c0_i32 = arith.constant 0 : i32
    %c0_i32_0 = arith.constant 0 : i32
    %c0_i32_1 = arith.constant 0 : i32
    return %c0_i32, %c0_i32_0 : i32, i32
  }
  func.func @transform_7(%arg0: i32) -> (i32, i32) {
    %c0_i32 = arith.constant 0 : i32
    %c0_i32_0 = arith.constant 0 : i32
    return %arg0, %c0_i32 : i32, i32
  }
}

</mosaic_0001>

<llo_original>
// kernel: tpu_custom_call.1
$region0: #{tpu_custom_call.1}
  #allocation0 [shape = 'u32[]', space=smem, size = 0x4, offset = 0x4, fixed_abs, tag = 'smem constant byte address 0x4 - core index']
  #allocation1 [shape = 'u32[144,128]{1,0:T(1,128)}', space=vmem, size = 0x12000, scoped, tag = 'internal scratch']
  %s0 = inlined_call_operand.hbm [shape: f32[8,6912], index: 0, kind: input, shape index: {}]
  %s1 = inlined_call_operand.hbm [shape: bf16[6912,512], index: 1, kind: input, shape index: {}]
  %s2 = inlined_call_operand.hbm [shape: f32[1,512], index: 2, kind: input, shape index: {}]
  %s3 = inlined_call_operand.hbm [shape: bf16[512,128], index: 3, kind: input, shape index: {}]
  %s4 = inlined_call_operand.hbm [shape: f32[1,128], index: 4, kind: input, shape index: {}]
  %s5 = inlined_call_operand.hbm [shape: bf16[128,128], index: 5, kind: input, shape index: {}]
  %s6 = inlined_call_operand.hbm [shape: f32[1,128], index: 6, kind: input, shape index: {}]
  %s7 = inlined_call_operand.hbm [shape: f32[8,128], index: 7, kind: output, shape index: {}]
  %s8 = sld [smem:[#allocation0]]
  $region66: #{tpu_custom_call.1} parent=0
    _
  %s10 = ssub.s32 1, %s8
  %s11 = scalar_select 0, %s10, %s8
  $region1: #{tpu_custom_call.1} parent=0
    #allocation2 [shape = 'u8[221184]{0}', space=vmem, size = 0x36000, scoped, tag = 'input window, operand 0, single buffered']
    #allocation3 [shape = 's32[1]{0}', space=sflag, size = 0x4, scoped, tag = 'scoped memory for tpu_custom_call.1']
    #allocation4 [shape = 's32[1]{0}', space=sflag, size = 0x4, scoped, tag = 'scoped memory for tpu_custom_call.1']
    #allocation5 [shape = 'u8[7077888]{0}', space=vmem, size = 0x6c0000, scoped, tag = 'input window, operand 1, single buffered']
    #allocation6 [shape = 's32[1]{0}', space=sflag, size = 0x4, scoped, tag = 'scoped memory for tpu_custom_call.1']
    #allocation7 [shape = 'u8[2048]{0}', space=vmem, size = 0x800, scoped, tag = 'input window, operand 2, single buffered']
    #allocation8 [shape = 'u8[131072]{0}', space=vmem, size = 0x20000, scoped, tag = 'input window, operand 3, single buffered']
    #allocation9 [shape = 's32[1]{0}', space=sflag, size = 0x4, scoped, tag = 'scoped memory for tpu_custom_call.1']
    #allocation10 [shape = 'u8[512]{0}', space=vmem, size = 0x400, scoped, tag = 'input window, operand 4, single buffered']
    #allocation11 [shape = 'u8[32768]{0}', space=vmem, size = 0x8000, scoped, tag = 'input window, operand 5, single buffered']
    #allocation12 [shape = 's32[1]{0}', space=sflag, size = 0x4, scoped, tag = 'scoped memory for tpu_custom_call.1']
    #allocation13 [shape = 'u8[512]{0}', space=vmem, size = 0x400, scoped, tag = 'input window, operand 6, single buffered']
    #allocation14 [shape = 'u8[4096]{0}', space=vmem, size = 0x1000, scoped, tag = 'output window, operand 0, single buffered']
    %12 = vsyncpa [#allocation3], 0
    %13 = vsyncpa [#allocation6], 0
    %14 = vsyncpa [#allocation9], 0
    %15 = vsyncpa [#allocation12], 0
    %16 = vsyncpa [#allocation4], 0
    // Predicated region
    $region2: #{tpu_custom_call.1} parent=1 // pred_check
      _
    $region3: #{tpu_custom_call.1} parent=1 // pred_check_branch
      %18 = sbr.rel (0) target = $region5
    $region4: #{tpu_custom_call.1} parent=1 // pred_region
      %s20 = ssub.s32 6912, 6912
      %21 = vsyncadd [#allocation3], %s20
      %s23 = sshll.u32 [#allocation2], 4
      %s24 = int_to_ptr.vmem [resolvable:$true] %s23
      %26 = dma.hbm_to_vmem [thread:$0]  %s0, 6912, %s24, [#allocation3]
    $region5: #{tpu_custom_call.1} parent=1 // pred_fallthru
      _
    // Predicated region
    $region6: #{tpu_custom_call.1} parent=1 // pred_check
      _
    $region7: #{tpu_custom_call.1} parent=1 // pred_check_branch
      %28 = sbr.rel (0) target = $region9
    $region8: #{tpu_custom_call.1} parent=1 // pred_region
      %s30 = ssub.s32 221184, 221184
      %31 = vsyncadd [#allocation6], %s30
      %s32 = sshll.u32 [#allocation5], 4
      %s33 = int_to_ptr.vmem [resolvable:$true] %s32
      %38 = dma.hbm_to_vmem [thread:$0]  %s1, 221184, %s33, [#allocation6], 256, 256, 16
    $region9: #{tpu_custom_call.1} parent=1 // pred_fallthru
      _
    // Predicated region
    $region10: #{tpu_custom_call.1} parent=1 // pred_check
      _
    $region11: #{tpu_custom_call.1} parent=1 // pred_check_branch
      %40 = sbr.rel (0) target = $region13
    $region12: #{tpu_custom_call.1} parent=1 // pred_region
      %s42 = ssub.s32 64, 64
      %43 = vsyncadd [#allocation6], %s42
      %s45 = sshll.u32 [#allocation7], 4
      %s46 = int_to_ptr.vmem [resolvable:$true] %s45
      %48 = dma.hbm_to_vmem [thread:$0]  %s2, 64, %s46, [#allocation6]
    $region13: #{tpu_custom_call.1} parent=1 // pred_fallthru
      _
    // Predicated region
    $region14: #{tpu_custom_call.1} parent=1 // pred_check
      _
    $region15: #{tpu_custom_call.1} parent=1 // pred_check_branch
      %50 = sbr.rel (0) target = $region17
    $region16: #{tpu_custom_call.1} parent=1 // pred_region
      %s52 = ssub.s32 4096, 4096
      %53 = vsyncadd [#allocation9], %s52
      %s54 = sshll.u32 [#allocation8], 4
      %s55 = int_to_ptr.vmem [resolvable:$true] %s54
      %60 = dma.hbm_to_vmem [thread:$0]  %s3, 4096, %s55, [#allocation9], 64, 64, 4
    $region17: #{tpu_custom_call.1} parent=1 // pred_fallthru
      _
    // Predicated region
    $region18: #{tpu_custom_call.1} parent=1 // pred_check
      _
    $region19: #{tpu_custom_call.1} parent=1 // pred_check_branch
      %62 = sbr.rel (0) target = $region21
    $region20: #{tpu_custom_call.1} parent=1 // pred_region
      %s64 = ssub.s32 16, 16
      %65 = vsyncadd [#allocation9], %s64
      %s67 = sshll.u32 [#allocation10], 4
      %s68 = int_to_ptr.vmem [resolvable:$true] %s67
      %70 = dma.hbm_to_vmem [thread:$0]  %s4, 16, %s68, [#allocation9]
    $region21: #{tpu_custom_call.1} parent=1 // pred_fallthru
      _
    // Predicated region
    $region22: #{tpu_custom_call.1} parent=1 // pred_check
      _
    $region23: #{tpu_custom_call.1} parent=1 // pred_check_branch
      %72 = sbr.rel (0) target = $region25
    $region24: #{tpu_custom_call.1} parent=1 // pred_region
      %s74 = ssub.s32 1024, 1024
      %75 = vsyncadd [#allocation12], %s74
      %s76 = sshll.u32 [#allocation11], 4
      %s77 = int_to_ptr.vmem [resolvable:$true] %s76
      %82 = dma.hbm_to_vmem [thread:$0]  %s5, 1024, %s77, [#allocation12], 64, 64, 4
    $region25: #{tpu_custom_call.1} parent=1 // pred_fallthru
      _
    // Predicated region
    $region26: #{tpu_custom_call.1} parent=1 // pred_check
      _
    $region27: #{tpu_custom_call.1} parent=1 // pred_check_branch
      %84 = sbr.rel (0) target = $region29
    $region28: #{tpu_custom_call.1} parent=1 // pred_region
      %s86 = ssub.s32 16, 16
      %87 = vsyncadd [#allocation12], %s86
      %s89 = sshll.u32 [#allocation13], 4
      %s90 = int_to_ptr.vmem [resolvable:$true] %s89
      %92 = dma.hbm_to_vmem [thread:$0]  %s6, 16, %s90, [#allocation12]
    $region29: #{tpu_custom_call.1} parent=1 // pred_fallthru
      _
    // Predicated region
    $region30: #{tpu_custom_call.1} parent=1 // pred_check
      _
    $region31: #{tpu_custom_call.1} parent=1 // pred_check_branch
      %94 = sbr.rel (0) target = $region33
    $region32: #{tpu_custom_call.1} parent=1 // pred_region
      %95 = dma.done [#allocation3], 6912
    $region33: #{tpu_custom_call.1} parent=1 // pred_fallthru
      _
    // Predicated region
    $region34: #{tpu_custom_call.1} parent=1 // pred_check
      _
    $region35: #{tpu_custom_call.1} parent=1 // pred_check_branch
      %97 = sbr.rel (0) target = $region37
    $region36: #{tpu_custom_call.1} parent=1 // pred_region
      %98 = dma.done [#allocation6], 221184
    $region37: #{tpu_custom_call.1} parent=1 // pred_fallthru
      _
    // Predicated region
    $region38: #{tpu_custom_call.1} parent=1 // pred_check
      _
    $region39: #{tpu_custom_call.1} parent=1 // pred_check_branch
      %100 = sbr.rel (0) target = $region41
    $region40: #{tpu_custom_call.1} parent=1 // pred_region
      %101 = dma.done [#allocation6], 64
    $region41: #{tpu_custom_call.1} parent=1 // pred_fallthru
      _
    // Predicated region
    $region42: #{tpu_custom_call.1} parent=1 // pred_check
      _
    $region43: #{tpu_custom_call.1} parent=1 // pred_check_branch
      %103 = sbr.rel (0) target = $region45
    $region44: #{tpu_custom_call.1} parent=1 // pred_region
      %104 = dma.done [#allocation9], 4096
    $region45: #{tpu_custom_call.1} parent=1 // pred_fallthru
      _
    // Predicated region
    $region46: #{tpu_custom_call.1} parent=1 // pred_check
      _
    $region47: #{tpu_custom_call.1} parent=1 // pred_check_branch
      %106 = sbr.rel (0) target = $region49
    $region48: #{tpu_custom_call.1} parent=1 // pred_region
      %107 = dma.done [#allocation9], 16
    $region49: #{tpu_custom_call.1} parent=1 // pred_fallthru
      _
    // Predicated region
    $region50: #{tpu_custom_call.1} parent=1 // pred_check
      _
    $region51: #{tpu_custom_call.1} parent=1 // pred_check_branch
      %109 = sbr.rel (0) target = $region53
    $region52: #{tpu_custom_call.1} parent=1 // pred_region
      %110 = dma.done [#allocation12], 1024
    $region53: #{tpu_custom_call.1} parent=1 // pred_fallthru
      _
    // Predicated region
    $region54: #{tpu_custom_call.1} parent=1 // pred_check
      _
    $region55: #{tpu_custom_call.1} parent=1 // pred_check_branch
      %112 = sbr.rel (0) target = $region57
    $region56: #{tpu_custom_call.1} parent=1 // pred_region
      %113 = dma.done [#allocation12], 16
    $region57: #{tpu_custom_call.1} parent=1 // pred_fallthru
      _
    %v115 = vld [vmem:[#allocation2] sm:$0xff]
    %v116 = vld [vmem:[#allocation2 + $0x8] sm:$0xff]
    %v117 = vld [vmem:[#allocation2 + $0x10] sm:$0xff]
    %v118 = vld [vmem:[#allocation2 + $0x18] sm:$0xff]
    %v119 = vld [vmem:[#allocation2 + $0x20] sm:$0xff]
    %v120 = vld [vmem:[#allocation2 + $0x28] sm:$0xff]
    %v121 = vld [vmem:[#allocation2 + $0x30] sm:$0xff]
    %v122 = vld [vmem:[#allocation2 + $0x38] sm:$0xff]
    %v123 = vld [vmem:[#allocation2 + $0x40] sm:$0xff]
    %v124 = vld [vmem:[#allocation2 + $0x48] sm:$0xff]
    %v125 = vld [vmem:[#allocation2 + $0x50] sm:$0xff]
    %v126 = vld [vmem:[#allocation2 + $0x58] sm:$0xff]
    %v127 = vld [vmem:[#allocation2 + $0x60] sm:$0xff]
    %v128 = vld [vmem:[#allocation2 + $0x68] sm:$0xff]
    %v129 = vld [vmem:[#allocation2 + $0x70] sm:$0xff]
    %v130 = vld [vmem:[#allocation2 + $0x78] sm:$0xff]
    %v131 = vld [vmem:[#allocation2 + $0x80] sm:$0xff]
    %v132 = vld [vmem:[#allocation2 + $0x88] sm:$0xff]
    %v133 = vld [vmem:[#allocation2 + $0x90] sm:$0xff]
    %v134 = vld [vmem:[#allocation2 + $0x98] sm:$0xff]
    %v135 = vld [vmem:[#allocation2 + $0xa0] sm:$0xff]
    %v136 = vld [vmem:[#allocation2 + $0xa8] sm:$0xff]
    %v137 = vld [vmem:[#allocation2 + $0xb0] sm:$0xff]
    %v138 = vld [vmem:[#allocation2 + $0xb8] sm:$0xff]
    %v139 = vld [vmem:[#allocation2 + $0xc0] sm:$0xff]
    %v140 = vld [vmem:[#allocation2 + $0xc8] sm:$0xff]
    %v141 = vld [vmem:[#allocation2 + $0xd0] sm:$0xff]
    %v142 = vld [vmem:[#allocation2 + $0xd8] sm:$0xff]
    %v143 = vld [vmem:[#allocation2 + $0xe0] sm:$0xff]
    %v144 = vld [vmem:[#allocation2 + $0xe8] sm:$0xff]
    %v145 = vld [vmem:[#allocation2 + $0xf0] sm:$0xff]
    %v146 = vld [vmem:[#allocation2 + $0xf8] sm:$0xff]
    %v147 = vld [vmem:[#allocation2 + $0x100] sm:$0xff]
    %v148 = vld [vmem:[#allocation2 + $0x108] sm:$0xff]
    %v149 = vld [vmem:[#allocation2 + $0x110] sm:$0xff]
    %v150 = vld [vmem:[#allocation2 + $0x118] sm:$0xff]
    %v151 = vld [vmem:[#allocation2 + $0x120] sm:$0xff]
    %v152 = vld [vmem:[#allocation2 + $0x128] sm:$0xff]
    %v153 = vld [vmem:[#allocation2 + $0x130] sm:$0xff]
    %v154 = vld [vmem:[#allocation2 + $0x138] sm:$0xff]
    %v155 = vld [vmem:[#allocation2 + $0x140] sm:$0xff]
    %v156 = vld [vmem:[#allocation2 + $0x148] sm:$0xff]
    %v157 = vld [vmem:[#allocation2 + $0x150] sm:$0xff]
    %v158 = vld [vmem:[#allocation2 + $0x158] sm:$0xff]
    %v159 = vld [vmem:[#allocation2 + $0x160] sm:$0xff]
    %v160 = vld [vmem:[#allocation2 + $0x168] sm:$0xff]
    %v161 = vld [vmem:[#allocation2 + $0x170] sm:$0xff]
    %v162 = vld [vmem:[#allocation2 + $0x178] sm:$0xff]
    %v163 = vld [vmem:[#allocation2 + $0x180] sm:$0xff]
    %v164 = vld [vmem:[#allocation2 + $0x188] sm:$0xff]
    %v165 = vld [vmem:[#allocation2 + $0x190] sm:$0xff]
    %v166 = vld [vmem:[#allocation2 + $0x198] sm:$0xff]
    %v167 = vld [vmem:[#allocation2 + $0x1a0] sm:$0xff]
    %v168 = vld [vmem:[#allocation2 + $0x1a8] sm:$0xff]
    %v169 = vpack.c.bf16 %v115, %v115
    %v170 = vpack.c.bf16 %v116, %v116
    %v171 = vpack.c.bf16 %v117, %v117
    %v172 = vpack.c.bf16 %v118, %v118
    %v173 = vpack.c.bf16 %v119, %v119
    %v174 = vpack.c.bf16 %v120, %v120
    %v175 = vpack.c.bf16 %v121, %v121
    %v176 = vpack.c.bf16 %v122, %v122
    %v177 = vpack.c.bf16 %v123, %v123
    %v178 = vpack.c.bf16 %v124, %v124
    %v179 = vpack.c.bf16 %v125, %v125
    %v180 = vpack.c.bf16 %v126, %v126
    %v181 = vpack.c.bf16 %v127, %v127
    %v182 = vpack.c.bf16 %v128, %v128
    %v183 = vpack.c.bf16 %v129, %v129
    %v184 = vpack.c.bf16 %v130, %v130
    %v185 = vpack.c.bf16 %v131, %v131
    %v186 = vpack.c.bf16 %v132, %v132
    %v187 = vpack.c.bf16 %v133, %v133
    %v188 = vpack.c.bf16 %v134, %v134
    %v189 = vpack.c.bf16 %v135, %v135
    %v190 = vpack.c.bf16 %v136, %v136
    %v191 = vpack.c.bf16 %v137, %v137
    %v192 = vpack.c.bf16 %v138, %v138
    %v193 = vpack.c.bf16 %v139, %v139
    %v194 = vpack.c.bf16 %v140, %v140
    %v195 = vpack.c.bf16 %v141, %v141
    %v196 = vpack.c.bf16 %v142, %v142
    %v197 = vpack.c.bf16 %v143, %v143
    %v198 = vpack.c.bf16 %v144, %v144
    %v199 = vpack.c.bf16 %v145, %v145
    %v200 = vpack.c.bf16 %v146, %v146
    %v201 = vpack.c.bf16 %v147, %v147
    %v202 = vpack.c.bf16 %v148, %v148
    %v203 = vpack.c.bf16 %v149, %v149
    %v204 = vpack.c.bf16 %v150, %v150
    %v205 = vpack.c.bf16 %v151, %v151
    %v206 = vpack.c.bf16 %v152, %v152
    %v207 = vpack.c.bf16 %v153, %v153
    %v208 = vpack.c.bf16 %v154, %v154
    %v209 = vpack.c.bf16 %v155, %v155
    %v210 = vpack.c.bf16 %v156, %v156
    %v211 = vpack.c.bf16 %v157, %v157
    %v212 = vpack.c.bf16 %v158, %v158
    %v213 = vpack.c.bf16 %v159, %v159
    %v214 = vpack.c.bf16 %v160, %v160
    %v215 = vpack.c.bf16 %v161, %v161
    %v216 = vpack.c.bf16 %v162, %v162
    %v217 = vpack.c.bf16 %v163, %v163
    %v218 = vpack.c.bf16 %v164, %v164
    %v219 = vpack.c.bf16 %v165, %v165
    %v220 = vpack.c.bf16 %v166, %v166
    %v221 = vpack.c.bf16 %v167, %v167
    %v222 = vpack.c.bf16 %v168, %v168
    %v223 = vld [vmem:[#allocation5] sm:$0xff]
    %v224 = vld [vmem:[#allocation5 + $0x8] sm:$0xff]
    %v225 = vld [vmem:[#allocation5 + $0x10] sm:$0xff]
    %v226 = vld [vmem:[#allocation5 + $0x18] sm:$0xff]
    %v227 = vld [vmem:[#allocation5 + $0x20] sm:$0xff]
    %v228 = vld [vmem:[#allocation5 + $0x28] sm:$0xff]
    %v229 = vld [vmem:[#allocation5 + $0x30] sm:$0xff]
    %v230 = vld [vmem:[#allocation5 + $0x38] sm:$0xff]
    %v231 = vld [vmem:[#allocation5 + $0x40] sm:$0xff]
    %v232 = vld [vmem:[#allocation5 + $0x48] sm:$0xff]
    %v233 = vld [vmem:[#allocation5 + $0x50] sm:$0xff]
    %v234 = vld [vmem:[#allocation5 + $0x58] sm:$0xff]
    %v235 = vld [vmem:[#allocation5 + $0x60] sm:$0xff]
    %v236 = vld [vmem:[#allocation5 + $0x68] sm:$0xff]
    %v237 = vld [vmem:[#allocation5 + $0x70] sm:$0xff]
    %v238 = vld [vmem:[#allocation5 + $0x78] sm:$0xff]
    %v239 = vld [vmem:[#allocation5 + $0x80] sm:$0xff]
    %v240 = vld [vmem:[#allocation5 + $0x88] sm:$0xff]
    %v241 = vld [vmem:[#allocation5 + $0x90] sm:$0xff]
    %v242 = vld [vmem:[#allocation5 + $0x98] sm:$0xff]
    %v243 = vld [vmem:[#allocation5 + $0xa0] sm:$0xff]
    %v244 = vld [vmem:[#allocation5 + $0xa8] sm:$0xff]
    %v245 = vld [vmem:[#allocation5 + $0xb0] sm:$0xff]
    %v246 = vld [vmem:[#allocation5 + $0xb8] sm:$0xff]
    %v247 = vld [vmem:[#allocation5 + $0xc0] sm:$0xff]
    %v248 = vld [vmem:[#allocation5 + $0xc8] sm:$0xff]
    %v249 = vld [vmem:[#allocation5 + $0xd0] sm:$0xff]
    %v250 = vld [vmem:[#allocation5 + $0xd8] sm:$0xff]
    %v251 = vld [vmem:[#allocation5 + $0xe0] sm:$0xff]
    %v252 = vld [vmem:[#allocation5 + $0xe8] sm:$0xff]
    %v253 = vld [vmem:[#allocation5 + $0xf0] sm:$0xff]
    %v254 = vld [vmem:[#allocation5 + $0xf8] sm:$0xff]
    %v255 = vld [vmem:[#allocation5 + $0x100] sm:$0xff]
    %v256 = vld [vmem:[#allocation5 + $0x108] sm:$0xff]
    %v257 = vld [vmem:[#allocation5 + $0x110] sm:$0xff]
    %v258 = vld [vmem:[#allocation5 + $0x118] sm:$0xff]
    %v259 = vld [vmem:[#allocation5 + $0x120] sm:$0xff]
    %v260 = vld [vmem:[#allocation5 + $0x128] sm:$0xff]
    %v261 = vld [vmem:[#allocation5 + $0x130] sm:$0xff]
    %v262 = vld [vmem:[#allocation5 + $0x138] sm:$0xff]
    %v263 = vld [vmem:[#allocation5 + $0x140] sm:$0xff]
    %v264 = vld [vmem:[#allocation5 + $0x148] sm:$0xff]
    %v265 = vld [vmem:[#allocation5 + $0x150] sm:$0xff]
    %v266 = vld [vmem:[#allocation5 + $0x158] sm:$0xff]
    %v267 = vld [vmem:[#allocation5 + $0x160] sm:$0xff]
    %v268 = vld [vmem:[#allocation5 + $0x168] sm:$0xff]
    %v269 = vld [vmem:[#allocation5 + $0x170] sm:$0xff]
    %v270 = vld [vmem:[#allocation5 + $0x178] sm:$0xff]
    %v271 = vld [vmem:[#allocation5 + $0x180] sm:$0xff]
    %v272 = vld [vmem:[#allocation5 + $0x188] sm:$0xff]
    %v273 = vld [vmem:[#allocation5 + $0x190] sm:$0xff]
    %v274 = vld [vmem:[#allocation5 + $0x198] sm:$0xff]
    %v275 = vld [vmem:[#allocation5 + $0x1a0] sm:$0xff]
    %v276 = vld [vmem:[#allocation5 + $0x1a8] sm:$0xff]
    %v277 = vld [vmem:[#allocation5 + $0x1b0] sm:$0xff]
    %v278 = vld [vmem:[#allocation5 + $0x1b8] sm:$0xff]
    %v279 = vld [vmem:[#allocation5 + $0x1c0] sm:$0xff]
    %v280 = vld [vmem:[#allocation5 + $0x1c8] sm:$0xff]
    %v281 = vld [vmem:[#allocation5 + $0x1d0] sm:$0xff]
    %v282 = vld [vmem:[#allocation5 + $0x1d8] sm:$0xff]
    %v283 = vld [vmem:[#allocation5 + $0x1e0] sm:$0xff]
    %v284 = vld [vmem:[#allocation5 + $0x1e8] sm:$0xff]
    %v285 = vld [vmem:[#allocation5 + $0x1f0] sm:$0xff]
    %v286 = vld [vmem:[#allocation5 + $0x1f8] sm:$0xff]
    %v287 = vld [vmem:[#allocation5 + $0x200] sm:$0xff]
    %v288 = vld [vmem:[#allocation5 + $0x208] sm:$0xff]
    %v289 = vld [vmem:[#allocation5 + $0x210] sm:$0xff]
    %v290 = vld [vmem:[#allocation5 + $0x218] sm:$0xff]
    %v291 = vld [vmem:[#allocation5 + $0x220] sm:$0xff]
    %v292 = vld [vmem:[#allocation5 + $0x228] sm:$0xff]
    %v293 = vld [vmem:[#allocation5 + $0x230] sm:$0xff]
    %v294 = vld [vmem:[#allocation5 + $0x238] sm:$0xff]
    %v295 = vld [vmem:[#allocation5 + $0x240] sm:$0xff]
    %v296 = vld [vmem:[#allocation5 + $0x248] sm:$0xff]
    %v297 = vld [vmem:[#allocation5 + $0x250] sm:$0xff]
    %v298 = vld [vmem:[#allocation5 + $0x258] sm:$0xff]
    %v299 = vld [vmem:[#allocation5 + $0x260] sm:$0xff]
    %v300 = vld [vmem:[#allocation5 + $0x268] sm:$0xff]
    %v301 = vld [vmem:[#allocation5 + $0x270] sm:$0xff]
    %v302 = vld [vmem:[#allocation5 + $0x278] sm:$0xff]
    %v303 = vld [vmem:[#allocation5 + $0x280] sm:$0xff]
    %v304 = vld [vmem:[#allocation5 + $0x288] sm:$0xff]
    %v305 = vld [vmem:[#allocation5 + $0x290] sm:$0xff]
    %v306 = vld [vmem:[#allocation5 + $0x298] sm:$0xff]
    %v307 = vld [vmem:[#allocation5 + $0x2a0] sm:$0xff]
    %v308 = vld [vmem:[#allocation5 + $0x2a8] sm:$0xff]
    %v309 = vld [vmem:[#allocation5 + $0x2b0] sm:$0xff]
    %v310 = vld [vmem:[#allocation5 + $0x2b8] sm:$0xff]
    %v311 = vld [vmem:[#allocation5 + $0x2c0] sm:$0xff]
    %v312 = vld [vmem:[#allocation5 + $0x2c8] sm:$0xff]
    %v313 = vld [vmem:[#allocation5 + $0x2d0] sm:$0xff]
    %v314 = vld [vmem:[#allocation5 + $0x2d8] sm:$0xff]
    %v315 = vld [vmem:[#allocation5 + $0x2e0] sm:$0xff]
    %v316 = vld [vmem:[#allocation5 + $0x2e8] sm:$0xff]
    %v317 = vld [vmem:[#allocation5 + $0x2f0] sm:$0xff]
    %v318 = vld [vmem:[#allocation5 + $0x2f8] sm:$0xff]
    %v319 = vld [vmem:[#allocation5 + $0x300] sm:$0xff]
    %v320 = vld [vmem:[#allocation5 + $0x308] sm:$0xff]
    %v321 = vld [vmem:[#allocation5 + $0x310] sm:$0xff]
    %v322 = vld [vmem:[#allocation5 + $0x318] sm:$0xff]
    %v323 = vld [vmem:[#allocation5 + $0x320] sm:$0xff]
    %v324 = vld [vmem:[#allocation5 + $0x328] sm:$0xff]
    %v325 = vld [vmem:[#allocation5 + $0x330] sm:$0xff]
    %v326 = vld [vmem:[#allocation5 + $0x338] sm:$0xff]
    %v327 = vld [vmem:[#allocation5 + $0x340] sm:$0xff]
    %v328 = vld [vmem:[#allocation5 + $0x348] sm:$0xff]
    %v329 = vld [vmem:[#allocation5 + $0x350] sm:$0xff]
    %v330 = vld [vmem:[#allocation5 + $0x358] sm:$0xff]
    %v331 = vld [vmem:[#allocation5 + $0x360] sm:$0xff]
    %v332 = vld [vmem:[#allocation5 + $0x368] sm:$0xff]
    %v333 = vld [vmem:[#allocation5 + $0x370] sm:$0xff]
    %v334 = vld [vmem:[#allocation5 + $0x378] sm:$0xff]
    %v335 = vld [vmem:[#allocation5 + $0x380] sm:$0xff]
    %v336 = vld [vmem:[#allocation5 + $0x388] sm:$0xff]
    %v337 = vld [vmem:[#allocation5 + $0x390] sm:$0xff]
    %v338 = vld [vmem:[#allocation5 + $0x398] sm:$0xff]
    %v339 = vld [vmem:[#allocation5 + $0x3a0] sm:$0xff]
    %v340 = vld [vmem:[#allocation5 + $0x3a8] sm:$0xff]
    %v341 = vld [vmem:[#allocation5 + $0x3b0] sm:$0xff]
    %v342 = vld [vmem:[#allocation5 + $0x3b8] sm:$0xff]
    %v343 = vld [vmem:[#allocation5 + $0x3c0] sm:$0xff]
    %v344 = vld [vmem:[#allocation5 + $0x3c8] sm:$0xff]
    %v345 = vld [vmem:[#allocation5 + $0x3d0] sm:$0xff]
    %v346 = vld [vmem:[#allocation5 + $0x3d8] sm:$0xff]
    %v347 = vld [vmem:[#allocation5 + $0x3e0] sm:$0xff]
    %v348 = vld [vmem:[#allocation5 + $0x3e8] sm:$0xff]
    %v349 = vld [vmem:[#allocation5 + $0x3f0] sm:$0xff]
    %v350 = vld [vmem:[#allocation5 + $0x3f8] sm:$0xff]
    %v351 = vld [vmem:[#allocation5 + $0x400] sm:$0xff]
    %v352 = vld [vmem:[#allocation5 + $0x408] sm:$0xff]
    %v353 = vld [vmem:[#allocation5 + $0x410] sm:$0xff]
    %v354 = vld [vmem:[#allocation5 + $0x418] sm:$0xff]
    %v355 = vld [vmem:[#allocation5 + $0x420] sm:$0xff]
    %v356 = vld [vmem:[#allocation5 + $0x428] sm:$0xff]
    %v357 = vld [vmem:[#allocation5 + $0x430] sm:$0xff]
    %v358 = vld [vmem:[#allocation5 + $0x438] sm:$0xff]
    %v359 = vld [vmem:[#allocation5 + $0x440] sm:$0xff]
    %v360 = vld [vmem:[#allocation5 + $0x448] sm:$0xff]
    %v361 = vld [vmem:[#allocation5 + $0x450] sm:$0xff]
    %v362 = vld [vmem:[#allocation5 + $0x458] sm:$0xff]
    %v363 = vld [vmem:[#allocation5 + $0x460] sm:$0xff]
    %v364 = vld [vmem:[#allocation5 + $0x468] sm:$0xff]
    %v365 = vld [vmem:[#allocation5 + $0x470] sm:$0xff]
    %v366 = vld [vmem:[#allocation5 + $0x478] sm:$0xff]
    %v367 = vld [vmem:[#allocation5 + $0x480] sm:$0xff]
    %v368 = vld [vmem:[#allocation5 + $0x488] sm:$0xff]
    %v369 = vld [vmem:[#allocation5 + $0x490] sm:$0xff]
    %v370 = vld [vmem:[#allocation5 + $0x498] sm:$0xff]
    %v371 = vld [vmem:[#allocation5 + $0x4a0] sm:$0xff]
    %v372 = vld [vmem:[#allocation5 + $0x4a8] sm:$0xff]
    %v373 = vld [vmem:[#allocation5 + $0x4b0] sm:$0xff]
    %v374 = vld [vmem:[#allocation5 + $0x4b8] sm:$0xff]
    %v375 = vld [vmem:[#allocation5 + $0x4c0] sm:$0xff]
    %v376 = vld [vmem:[#allocation5 + $0x4c8] sm:$0xff]
    %v377 = vld [vmem:[#allocation5 + $0x4d0] sm:$0xff]
    %v378 = vld [vmem:[#allocation5 + $0x4d8] sm:$0xff]
    %v379 = vld [vmem:[#allocation5 + $0x4e0] sm:$0xff]
    %v380 = vld [vmem:[#allocation5 + $0x4e8] sm:$0xff]
    %v381 = vld [vmem:[#allocation5 + $0x4f0] sm:$0xff]
    %v382 = vld [vmem:[#allocation5 + $0x4f8] sm:$0xff]
    %v383 = vld [vmem:[#allocation5 + $0x500] sm:$0xff]
    %v384 = vld [vmem:[#allocation5 + $0x508] sm:$0xff]
    %v385 = vld [vmem:[#allocation5 + $0x510] sm:$0xff]
    %v386 = vld [vmem:[#allocation5 + $0x518] sm:$0xff]
    %v387 = vld [vmem:[#allocation5 + $0x520] sm:$0xff]
    %v388 = vld [vmem:[#allocation5 + $0x528] sm:$0xff]
    %v389 = vld [vmem:[#allocation5 + $0x530] sm:$0xff]
    %v390 = vld [vmem:[#allocation5 + $0x538] sm:$0xff]
    %v391 = vld [vmem:[#allocation5 + $0x540] sm:$0xff]
    %v392 = vld [vmem:[#allocation5 + $0x548] sm:$0xff]
    %v393 = vld [vmem:[#allocation5 + $0x550] sm:$0xff]
    %v394 = vld [vmem:[#allocation5 + $0x558] sm:$0xff]
    %v395 = vld [vmem:[#allocation5 + $0x560] sm:$0xff]
    %v396 = vld [vmem:[#allocation5 + $0x568] sm:$0xff]
    %v397 = vld [vmem:[#allocation5 + $0x570] sm:$0xff]
    %v398 = vld [vmem:[#allocation5 + $0x578] sm:$0xff]
    %v399 = vld [vmem:[#allocation5 + $0x580] sm:$0xff]
    %v400 = vld [vmem:[#allocation5 + $0x588] sm:$0xff]
    %v401 = vld [vmem:[#allocation5 + $0x590] sm:$0xff]
    %v402 = vld [vmem:[#allocation5 + $0x598] sm:$0xff]
    %v403 = vld [vmem:[#allocation5 + $0x5a0] sm:$0xff]
    %v404 = vld [vmem:[#allocation5 + $0x5a8] sm:$0xff]
    %v405 = vld [vmem:[#allocation5 + $0x5b0] sm:$0xff]
    %v406 = vld [vmem:[#allocation5 + $0x5b8] sm:$0xff]
    %v407 = vld [vmem:[#allocation5 + $0x5c0] sm:$0xff]
    %v408 = vld [vmem:[#allocation5 + $0x5c8] sm:$0xff]
    %v409 = vld [vmem:[#allocation5 + $0x5d0] sm:$0xff]
    %v410 = vld [vmem:[#allocation5 + $0x5d8] sm:$0xff]
    %v411 = vld [vmem:[#allocation5 + $0x5e0] sm:$0xff]
    %v412 = vld [vmem:[#allocation5 + $0x5e8] sm:$0xff]
    %v413 = vld [vmem:[#allocation5 + $0x5f0] sm:$0xff]
    %v414 = vld [vmem:[#allocation5 + $0x5f8] sm:$0xff]
    %v415 = vld [vmem:[#allocation5 + $0x600] sm:$0xff]
    %v416 = vld [vmem:[#allocation5 + $0x608] sm:$0xff]
    %v417 = vld [vmem:[#allocation5 + $0x610] sm:$0xff]
    %v418 = vld [vmem:[#allocation5 + $0x618] sm:$0xff]
    %v419 = vld [vmem:[#allocation5 + $0x620] sm:$0xff]
    %v420 = vld [vmem:[#allocation5 + $0x628] sm:$0xff]
    %v421 = vld [vmem:[#allocation5 + $0x630] sm:$0xff]
    %v422 = vld [vmem:[#allocation5 + $0x638] sm:$0xff]
    %v423 = vld [vmem:[#allocation5 + $0x640] sm:$0xff]
    %v424 = vld [vmem:[#allocation5 + $0x648] sm:$0xff]
    %v425 = vld [vmem:[#allocation5 + $0x650] sm:$0xff]
    %v426 = vld [vmem:[#allocation5 + $0x658] sm:$0xff]
    %v427 = vld [vmem:[#allocation5 + $0x660] sm:$0xff]
    %v428 = vld [vmem:[#allocation5 + $0x668] sm:$0xff]
    %v429 = vld [vmem:[#allocation5 + $0x670] sm:$0xff]
    %v430 = vld [vmem:[#allocation5 + $0x678] sm:$0xff]
    %v431 = vld [vmem:[#allocation5 + $0x680] sm:$0xff]
    %v432 = vld [vmem:[#allocation5 + $0x688] sm:$0xff]
    %v433 = vld [vmem:[#allocation5 + $0x690] sm:$0xff]
    %v434 = vld [vmem:[#allocation5 + $0x698] sm:$0xff]
    %v435 = vld [vmem:[#allocation5 + $0x6a0] sm:$0xff]
    %v436 = vld [vmem:[#allocation5 + $0x6a8] sm:$0xff]
    %v437 = vld [vmem:[#allocation5 + $0x6b0] sm:$0xff]
    %v438 = vld [vmem:[#allocation5 + $0x6b8] sm:$0xff]
    %v439 = vld [vmem:[#allocation5 + $0x6c0] sm:$0xff]
    %v440 = vld [vmem:[#allocation5 + $0x6c8] sm:$0xff]
    %v441 = vld [vmem:[#allocation5 + $0x6d0] sm:$0xff]
    %v442 = vld [vmem:[#allocation5 + $0x6d8] sm:$0xff]
    %v443 = vld [vmem:[#allocation5 + $0x6e0] sm:$0xff]
    %v444 = vld [vmem:[#allocation5 + $0x6e8] sm:$0xff]
    %v445 = vld [vmem:[#allocation5 + $0x6f0] sm:$0xff]
    %v446 = vld [vmem:[#allocation5 + $0x6f8] sm:$0xff]
    %v447 = vld [vmem:[#allocation5 + $0x700] sm:$0xff]
    %v448 = vld [vmem:[#allocation5 + $0x708] sm:$0xff]
    %v449 = vld [vmem:[#allocation5 + $0x710] sm:$0xff]
    %v450 = vld [vmem:[#allocation5 + $0x718] sm:$0xff]
    %v451 = vld [vmem:[#allocation5 + $0x720] sm:$0xff]
    %v452 = vld [vmem:[#allocation5 + $0x728] sm:$0xff]
    %v453 = vld [vmem:[#allocation5 + $0x730] sm:$0xff]
    %v454 = vld [vmem:[#allocation5 + $0x738] sm:$0xff]
    %v455 = vld [vmem:[#allocation5 + $0x740] sm:$0xff]
    %v456 = vld [vmem:[#allocation5 + $0x748] sm:$0xff]
    %v457 = vld [vmem:[#allocation5 + $0x750] sm:$0xff]
    %v458 = vld [vmem:[#allocation5 + $0x758] sm:$0xff]
    %v459 = vld [vmem:[#allocation5 + $0x760] sm:$0xff]
    %v460 = vld [vmem:[#allocation5 + $0x768] sm:$0xff]
    %v461 = vld [vmem:[#allocation5 + $0x770] sm:$0xff]
    %v462 = vld [vmem:[#allocation5 + $0x778] sm:$0xff]
    %v463 = vld [vmem:[#allocation5 + $0x780] sm:$0xff]
    %v464 = vld [vmem:[#allocation5 + $0x788] sm:$0xff]
    %v465 = vld [vmem:[#allocation5 + $0x790] sm:$0xff]
    %v466 = vld [vmem:[#allocation5 + $0x798] sm:$0xff]
    %v467 = vld [vmem:[#allocation5 + $0x7a0] sm:$0xff]
    %v468 = vld [vmem:[#allocation5 + $0x7a8] sm:$0xff]
    %v469 = vld [vmem:[#allocation5 + $0x7b0] sm:$0xff]
    %v470 = vld [vmem:[#allocation5 + $0x7b8] sm:$0xff]
    %v471 = vld [vmem:[#allocation5 + $0x7c0] sm:$0xff]
    %v472 = vld [vmem:[#allocation5 + $0x7c8] sm:$0xff]
    %v473 = vld [vmem:[#allocation5 + $0x7d0] sm:$0xff]
    %v474 = vld [vmem:[#allocation5 + $0x7d8] sm:$0xff]
    %v475 = vld [vmem:[#allocation5 + $0x7e0] sm:$0xff]
    %v476 = vld [vmem:[#allocation5 + $0x7e8] sm:$0xff]
    %v477 = vld [vmem:[#allocation5 + $0x7f0] sm:$0xff]
    %v478 = vld [vmem:[#allocation5 + $0x7f8] sm:$0xff]
    %v479 = vld [vmem:[#allocation5 + $0x800] sm:$0xff]
    %v480 = vld [vmem:[#allocation5 + $0x808] sm:$0xff]
    %v481 = vld [vmem:[#allocation5 + $0x810] sm:$0xff]
    %v482 = vld [vmem:[#allocation5 + $0x818] sm:$0xff]
    %v483 = vld [vmem:[#allocation5 + $0x820] sm:$0xff]
    %v484 = vld [vmem:[#allocation5 + $0x828] sm:$0xff]
    %v485 = vld [vmem:[#allocation5 + $0x830] sm:$0xff]
    %v486 = vld [vmem:[#allocation5 + $0x838] sm:$0xff]
    %v487 = vld [vmem:[#allocation5 + $0x840] sm:$0xff]
    %v488 = vld [vmem:[#allocation5 + $0x848] sm:$0xff]
    %v489 = vld [vmem:[#allocation5 + $0x850] sm:$0xff]
    %v490 = vld [vmem:[#allocation5 + $0x858] sm:$0xff]
    %v491 = vld [vmem:[#allocation5 + $0x860] sm:$0xff]
    %v492 = vld [vmem:[#allocation5 + $0x868] sm:$0xff]
    %v493 = vld [vmem:[#allocation5 + $0x870] sm:$0xff]
    %v494 = vld [vmem:[#allocation5 + $0x878] sm:$0xff]
    %v495 = vld [vmem:[#allocation5 + $0x880] sm:$0xff]
    %v496 = vld [vmem:[#allocation5 + $0x888] sm:$0xff]
    %v497 = vld [vmem:[#allocation5 + $0x890] sm:$0xff]
    %v498 = vld [vmem:[#allocation5 + $0x898] sm:$0xff]
    %v499 = vld [vmem:[#allocation5 + $0x8a0] sm:$0xff]
    %v500 = vld [vmem:[#allocation5 + $0x8a8] sm:$0xff]
    %v501 = vld [vmem:[#allocation5 + $0x8b0] sm:$0xff]
    %v502 = vld [vmem:[#allocation5 + $0x8b8] sm:$0xff]
    %v503 = vld [vmem:[#allocation5 + $0x8c0] sm:$0xff]
    %v504 = vld [vmem:[#allocation5 + $0x8c8] sm:$0xff]
    %v505 = vld [vmem:[#allocation5 + $0x8d0] sm:$0xff]
    %v506 = vld [vmem:[#allocation5 + $0x8d8] sm:$0xff]
    %v507 = vld [vmem:[#allocation5 + $0x8e0] sm:$0xff]
    %v508 = vld [vmem:[#allocation5 + $0x8e8] sm:$0xff]
    %v509 = vld [vmem:[#allocation5 + $0x8f0] sm:$0xff]
    %v510 = vld [vmem:[#allocation5 + $0x8f8] sm:$0xff]
    %v511 = vld [vmem:[#allocation5 + $0x900] sm:$0xff]
    %v512 = vld [vmem:[#allocation5 + $0x908] sm:$0xff]
    %v513 = vld [vmem:[#allocation5 + $0x910] sm:$0xff]
    %v514 = vld [vmem:[#allocation5 + $0x918] sm:$0xff]
    %v515 = vld [vmem:[#allocation5 + $0x920] sm:$0xff]
    %v516 = vld [vmem:[#allocation5 + $0x928] sm:$0xff]
    %v517 = vld [vmem:[#allocation5 + $0x930] sm:$0xff]
    %v518 = vld [vmem:[#allocation5 + $0x938] sm:$0xff]
    %v519 = vld [vmem:[#allocation5 + $0x940] sm:$0xff]
    %v520 = vld [vmem:[#allocation5 + $0x948] sm:$0xff]
    %v521 = vld [vmem:[#allocation5 + $0x950] sm:$0xff]
    %v522 = vld [vmem:[#allocation5 + $0x958] sm:$0xff]
    %v523 = vld [vmem:[#allocation5 + $0x960] sm:$0xff]
    %v524 = vld [vmem:[#allocation5 + $0x968] sm:$0xff]
    %v525 = vld [vmem:[#allocation5 + $0x970] sm:$0xff]
    %v526 = vld [vmem:[#allocation5 + $0x978] sm:$0xff]
    %v527 = vld [vmem:[#allocation5 + $0x980] sm:$0xff]
    %v528 = vld [vmem:[#allocation5 + $0x988] sm:$0xff]
    %v529 = vld [vmem:[#allocation5 + $0x990] sm:$0xff]
    %v530 = vld [vmem:[#allocation5 + $0x998] sm:$0xff]
    %v531 = vld [vmem:[#allocation5 + $0x9a0] sm:$0xff]
    %v532 = vld [vmem:[#allocation5 + $0x9a8] sm:$0xff]
    %v533 = vld [vmem:[#allocation5 + $0x9b0] sm:$0xff]
    %v534 = vld [vmem:[#allocation5 + $0x9b8] sm:$0xff]
    %v535 = vld [vmem:[#allocation5 + $0x9c0] sm:$0xff]
    %v536 = vld [vmem:[#allocation5 + $0x9c8] sm:$0xff]
    %v537 = vld [vmem:[#allocation5 + $0x9d0] sm:$0xff]
    %v538 = vld [vmem:[#allocation5 + $0x9d8] sm:$0xff]
    %v539 = vld [vmem:[#allocation5 + $0x9e0] sm:$0xff]
    %v540 = vld [vmem:[#allocation5 + $0x9e8] sm:$0xff]
    %v541 = vld [vmem:[#allocation5 + $0x9f0] sm:$0xff]
    %v542 = vld [vmem:[#allocation5 + $0x9f8] sm:$0xff]
    %v543 = vld [vmem:[#allocation5 + $0xa00] sm:$0xff]
    %v544 = vld [vmem:[#allocation5 + $0xa08] sm:$0xff]
    %v545 = vld [vmem:[#allocation5 + $0xa10] sm:$0xff]
    %v546 = vld [vmem:[#allocation5 + $0xa18] sm:$0xff]
    %v547 = vld [vmem:[#allocation5 + $0xa20] sm:$0xff]
    %v548 = vld [vmem:[#allocation5 + $0xa28] sm:$0xff]
    %v549 = vld [vmem:[#allocation5 + $0xa30] sm:$0xff]
    %v550 = vld [vmem:[#allocation5 + $0xa38] sm:$0xff]
    %v551 = vld [vmem:[#allocation5 + $0xa40] sm:$0xff]
    %v552 = vld [vmem:[#allocation5 + $0xa48] sm:$0xff]
    %v553 = vld [vmem:[#allocation5 + $0xa50] sm:$0xff]
    %v554 = vld [vmem:[#allocation5 + $0xa58] sm:$0xff]
    %v555 = vld [vmem:[#allocation5 + $0xa60] sm:$0xff]
    %v556 = vld [vmem:[#allocation5 + $0xa68] sm:$0xff]
    %v557 = vld [vmem:[#allocation5 + $0xa70] sm:$0xff]
    %v558 = vld [vmem:[#allocation5 + $0xa78] sm:$0xff]
    %v559 = vld [vmem:[#allocation5 + $0xa80] sm:$0xff]
    %v560 = vld [vmem:[#allocation5 + $0xa88] sm:$0xff]
    %v561 = vld [vmem:[#allocation5 + $0xa90] sm:$0xff]
    %v562 = vld [vmem:[#allocation5 + $0xa98] sm:$0xff]
    %v563 = vld [vmem:[#allocation5 + $0xaa0] sm:$0xff]
    %v564 = vld [vmem:[#allocation5 + $0xaa8] sm:$0xff]
    %v565 = vld [vmem:[#allocation5 + $0xab0] sm:$0xff]
    %v566 = vld [vmem:[#allocation5 + $0xab8] sm:$0xff]
    %v567 = vld [vmem:[#allocation5 + $0xac0] sm:$0xff]
    %v568 = vld [vmem:[#allocation5 + $0xac8] sm:$0xff]
    %v569 = vld [vmem:[#allocation5 + $0xad0] sm:$0xff]
    %v570 = vld [vmem:[#allocation5 + $0xad8] sm:$0xff]
    %v571 = vld [vmem:[#allocation5 + $0xae0] sm:$0xff]
    %v572 = vld [vmem:[#allocation5 + $0xae8] sm:$0xff]
    %v573 = vld [vmem:[#allocation5 + $0xaf0] sm:$0xff]
    %v574 = vld [vmem:[#allocation5 + $0xaf8] sm:$0xff]
    %v575 = vld [vmem:[#allocation5 + $0xb00] sm:$0xff]
    %v576 = vld [vmem:[#allocation5 + $0xb08] sm:$0xff]
    %v577 = vld [vmem:[#allocation5 + $0xb10] sm:$0xff]
    %v578 = vld [vmem:[#allocation5 + $0xb18] sm:$0xff]
    %v579 = vld [vmem:[#allocation5 + $0xb20] sm:$0xff]
    %v580 = vld [vmem:[#allocation5 + $0xb28] sm:$0xff]
    %v581 = vld [vmem:[#allocation5 + $0xb30] sm:$0xff]
    %v582 = vld [vmem:[#allocation5 + $0xb38] sm:$0xff]
    %v583 = vld [vmem:[#allocation5 + $0xb40] sm:$0xff]
    %v584 = vld [vmem:[#allocation5 + $0xb48] sm:$0xff]
    %v585 = vld [vmem:[#allocation5 + $0xb50] sm:$0xff]
    %v586 = vld [vmem:[#allocation5 + $0xb58] sm:$0xff]
    %v587 = vld [vmem:[#allocation5 + $0xb60] sm:$0xff]
    %v588 = vld [vmem:[#allocation5 + $0xb68] sm:$0xff]
    %v589 = vld [vmem:[#allocation5 + $0xb70] sm:$0xff]
    %v590 = vld [vmem:[#allocation5 + $0xb78] sm:$0xff]
    %v591 = vld [vmem:[#allocation5 + $0xb80] sm:$0xff]
    %v592 = vld [vmem:[#allocation5 + $0xb88] sm:$0xff]
    %v593 = vld [vmem:[#allocation5 + $0xb90] sm:$0xff]
    %v594 = vld [vmem:[#allocation5 + $0xb98] sm:$0xff]
    %v595 = vld [vmem:[#allocation5 + $0xba0] sm:$0xff]
    %v596 = vld [vmem:[#allocation5 + $0xba8] sm:$0xff]
    %v597 = vld [vmem:[#allocation5 + $0xbb0] sm:$0xff]
    %v598 = vld [vmem:[#allocation5 + $0xbb8] sm:$0xff]
    %v599 = vld [vmem:[#allocation5 + $0xbc0] sm:$0xff]
    %v600 = vld [vmem:[#allocation5 + $0xbc8] sm:$0xff]
    %v601 = vld [vmem:[#allocation5 + $0xbd0] sm:$0xff]
    %v602 = vld [vmem:[#allocation5 + $0xbd8] sm:$0xff]
    %v603 = vld [vmem:[#allocation5 + $0xbe0] sm:$0xff]
    %v604 = vld [vmem:[#allocation5 + $0xbe8] sm:$0xff]
    %v605 = vld [vmem:[#allocation5 + $0xbf0] sm:$0xff]
    %v606 = vld [vmem:[#allocation5 + $0xbf8] sm:$0xff]
    %v607 = vld [vmem:[#allocation5 + $0xc00] sm:$0xff]
    %v608 = vld [vmem:[#allocation5 + $0xc08] sm:$0xff]
    %v609 = vld [vmem:[#allocation5 + $0xc10] sm:$0xff]
    %v610 = vld [vmem:[#allocation5 + $0xc18] sm:$0xff]
    %v611 = vld [vmem:[#allocation5 + $0xc20] sm:$0xff]
    %v612 = vld [vmem:[#allocation5 + $0xc28] sm:$0xff]
    %v613 = vld [vmem:[#allocation5 + $0xc30] sm:$0xff]
    %v614 = vld [vmem:[#allocation5 + $0xc38] sm:$0xff]
    %v615 = vld [vmem:[#allocation5 + $0xc40] sm:$0xff]
    %v616 = vld [vmem:[#allocation5 + $0xc48] sm:$0xff]
    %v617 = vld [vmem:[#allocation5 + $0xc50] sm:$0xff]
    %v618 = vld [vmem:[#allocation5 + $0xc58] sm:$0xff]
    %v619 = vld [vmem:[#allocation5 + $0xc60] sm:$0xff]
    %v620 = vld [vmem:[#allocation5 + $0xc68] sm:$0xff]
    %v621 = vld [vmem:[#allocation5 + $0xc70] sm:$0xff]
    %v622 = vld [vmem:[#allocation5 + $0xc78] sm:$0xff]
    %v623 = vld [vmem:[#allocation5 + $0xc80] sm:$0xff]
    %v624 = vld [vmem:[#allocation5 + $0xc88] sm:$0xff]
    %v625 = vld [vmem:[#allocation5 + $0xc90] sm:$0xff]
    %v626 = vld [vmem:[#allocation5 + $0xc98] sm:$0xff]
    %v627 = vld [vmem:[#allocation5 + $0xca0] sm:$0xff]
    %v628 = vld [vmem:[#allocation5 + $0xca8] sm:$0xff]
    %v629 = vld [vmem:[#allocation5 + $0xcb0] sm:$0xff]
    %v630 = vld [vmem:[#allocation5 + $0xcb8] sm:$0xff]
    %v631 = vld [vmem:[#allocation5 + $0xcc0] sm:$0xff]
    %v632 = vld [vmem:[#allocation5 + $0xcc8] sm:$0xff]
    %v633 = vld [vmem:[#allocation5 + $0xcd0] sm:$0xff]
    %v634 = vld [vmem:[#allocation5 + $0xcd8] sm:$0xff]
    %v635 = vld [vmem:[#allocation5 + $0xce0] sm:$0xff]
    %v636 = vld [vmem:[#allocation5 + $0xce8] sm:$0xff]
    %v637 = vld [vmem:[#allocation5 + $0xcf0] sm:$0xff]
    %v638 = vld [vmem:[#allocation5 + $0xcf8] sm:$0xff]
    %v639 = vld [vmem:[#allocation5 + $0xd00] sm:$0xff]
    %v640 = vld [vmem:[#allocation5 + $0xd08] sm:$0xff]
    %v641 = vld [vmem:[#allocation5 + $0xd10] sm:$0xff]
    %v642 = vld [vmem:[#allocation5 + $0xd18] sm:$0xff]
    %v643 = vld [vmem:[#allocation5 + $0xd20] sm:$0xff]
    %v644 = vld [vmem:[#allocation5 + $0xd28] sm:$0xff]
    %v645 = vld [vmem:[#allocation5 + $0xd30] sm:$0xff]
    %v646 = vld [vmem:[#allocation5 + $0xd38] sm:$0xff]
    %v647 = vld [vmem:[#allocation5 + $0xd40] sm:$0xff]
    %v648 = vld [vmem:[#allocation5 + $0xd48] sm:$0xff]
    %v649 = vld [vmem:[#allocation5 + $0xd50] sm:$0xff]
    %v650 = vld [vmem:[#allocation5 + $0xd58] sm:$0xff]
    %v651 = vld [vmem:[#allocation5 + $0xd60] sm:$0xff]
    %v652 = vld [vmem:[#allocation5 + $0xd68] sm:$0xff]
    %v653 = vld [vmem:[#allocation5 + $0xd70] sm:$0xff]
    %v654 = vld [vmem:[#allocation5 + $0xd78] sm:$0xff]
    %v655 = vld [vmem:[#allocation5 + $0xd80] sm:$0xff]
    %v656 = vld [vmem:[#allocation5 + $0xd88] sm:$0xff]
    %v657 = vld [vmem:[#allocation5 + $0xd90] sm:$0xff]
    %v658 = vld [vmem:[#allocation5 + $0xd98] sm:$0xff]
    %v659 = vld [vmem:[#allocation5 + $0xda0] sm:$0xff]
    %v660 = vld [vmem:[#allocation5 + $0xda8] sm:$0xff]
    %v661 = vld [vmem:[#allocation5 + $0xdb0] sm:$0xff]
    %v662 = vld [vmem:[#allocation5 + $0xdb8] sm:$0xff]
    %v663 = vld [vmem:[#allocation5 + $0xdc0] sm:$0xff]
    %v664 = vld [vmem:[#allocation5 + $0xdc8] sm:$0xff]
    %v665 = vld [vmem:[#allocation5 + $0xdd0] sm:$0xff]
    %v666 = vld [vmem:[#allocation5 + $0xdd8] sm:$0xff]
    %v667 = vld [vmem:[#allocation5 + $0xde0] sm:$0xff]
    %v668 = vld [vmem:[#allocation5 + $0xde8] sm:$0xff]
    %v669 = vld [vmem:[#allocation5 + $0xdf0] sm:$0xff]
    %v670 = vld [vmem:[#allocation5 + $0xdf8] sm:$0xff]
    %v671 = vld [vmem:[#allocation5 + $0xe00] sm:$0xff]
    %v672 = vld [vmem:[#allocation5 + $0xe08] sm:$0xff]
    %v673 = vld [vmem:[#allocation5 + $0xe10] sm:$0xff]
    %v674 = vld [vmem:[#allocation5 + $0xe18] sm:$0xff]
    %v675 = vld [vmem:[#allocation5 + $0xe20] sm:$0xff]
    %v676 = vld [vmem:[#allocation5 + $0xe28] sm:$0xff]
    %v677 = vld [vmem:[#allocation5 + $0xe30] sm:$0xff]
    %v678 = vld [vmem:[#allocation5 + $0xe38] sm:$0xff]
    %v679 = vld [vmem:[#allocation5 + $0xe40] sm:$0xff]
    %v680 = vld [vmem:[#allocation5 + $0xe48] sm:$0xff]
    %v681 = vld [vmem:[#allocation5 + $0xe50] sm:$0xff]
    %v682 = vld [vmem:[#allocation5 + $0xe58] sm:$0xff]
    %v683 = vld [vmem:[#allocation5 + $0xe60] sm:$0xff]
    %v684 = vld [vmem:[#allocation5 + $0xe68] sm:$0xff]
    %v685 = vld [vmem:[#allocation5 + $0xe70] sm:$0xff]
    %v686 = vld [vmem:[#allocation5 + $0xe78] sm:$0xff]
    %v687 = vld [vmem:[#allocation5 + $0xe80] sm:$0xff]
    %v688 = vld [vmem:[#allocation5 + $0xe88] sm:$0xff]
    %v689 = vld [vmem:[#allocation5 + $0xe90] sm:$0xff]
    %v690 = vld [vmem:[#allocation5 + $0xe98] sm:$0xff]
    %v691 = vld [vmem:[#allocation5 + $0xea0] sm:$0xff]
    %v692 = vld [vmem:[#allocation5 + $0xea8] sm:$0xff]
    %v693 = vld [vmem:[#allocation5 + $0xeb0] sm:$0xff]
    %v694 = vld [vmem:[#allocation5 + $0xeb8] sm:$0xff]
    %v695 = vld [vmem:[#allocation5 + $0xec0] sm:$0xff]
    %v696 = vld [vmem:[#allocation5 + $0xec8] sm:$0xff]
    %v697 = vld [vmem:[#allocation5 + $0xed0] sm:$0xff]
    %v698 = vld [vmem:[#allocation5 + $0xed8] sm:$0xff]
    %v699 = vld [vmem:[#allocation5 + $0xee0] sm:$0xff]
    %v700 = vld [vmem:[#allocation5 + $0xee8] sm:$0xff]
    %v701 = vld [vmem:[#allocation5 + $0xef0] sm:$0xff]
    %v702 = vld [vmem:[#allocation5 + $0xef8] sm:$0xff]
    %v703 = vld [vmem:[#allocation5 + $0xf00] sm:$0xff]
    %v704 = vld [vmem:[#allocation5 + $0xf08] sm:$0xff]
    %v705 = vld [vmem:[#allocation5 + $0xf10] sm:$0xff]
    %v706 = vld [vmem:[#allocation5 + $0xf18] sm:$0xff]
    %v707 = vld [vmem:[#allocation5 + $0xf20] sm:$0xff]
    %v708 = vld [vmem:[#allocation5 + $0xf28] sm:$0xff]
    %v709 = vld [vmem:[#allocation5 + $0xf30] sm:$0xff]
    %v710 = vld [vmem:[#allocation5 + $0xf38] sm:$0xff]
    %v711 = vld [vmem:[#allocation5 + $0xf40] sm:$0xff]
    %v712 = vld [vmem:[#allocation5 + $0xf48] sm:$0xff]
    %v713 = vld [vmem:[#allocation5 + $0xf50] sm:$0xff]
    %v714 = vld [vmem:[#allocation5 + $0xf58] sm:$0xff]
    %v715 = vld [vmem:[#allocation5 + $0xf60] sm:$0xff]
    %v716 = vld [vmem:[#allocation5 + $0xf68] sm:$0xff]
    %v717 = vld [vmem:[#allocation5 + $0xf70] sm:$0xff]
    %v718 = vld [vmem:[#allocation5 + $0xf78] sm:$0xff]
    %v719 = vld [vmem:[#allocation5 + $0xf80] sm:$0xff]
    %v720 = vld [vmem:[#allocation5 + $0xf88] sm:$0xff]
    %v721 = vld [vmem:[#allocation5 + $0xf90] sm:$0xff]
    %v722 = vld [vmem:[#allocation5 + $0xf98] sm:$0xff]
    %v723 = vld [vmem:[#allocation5 + $0xfa0] sm:$0xff]
    %v724 = vld [vmem:[#allocation5 + $0xfa8] sm:$0xff]
    %v725 = vld [vmem:[#allocation5 + $0xfb0] sm:$0xff]
    %v726 = vld [vmem:[#allocation5 + $0xfb8] sm:$0xff]
    %v727 = vld [vmem:[#allocation5 + $0xfc0] sm:$0xff]
    %v728 = vld [vmem:[#allocation5 + $0xfc8] sm:$0xff]
    %v729 = vld [vmem:[#allocation5 + $0xfd0] sm:$0xff]
    %v730 = vld [vmem:[#allocation5 + $0xfd8] sm:$0xff]
    %v731 = vld [vmem:[#allocation5 + $0xfe0] sm:$0xff]
    %v732 = vld [vmem:[#allocation5 + $0xfe8] sm:$0xff]
    %v733 = vld [vmem:[#allocation5 + $0xff0] sm:$0xff]
    %v734 = vld [vmem:[#allocation5 + $0xff8] sm:$0xff]
    %v735 = vld [vmem:[#allocation5 + $0x1000] sm:$0xff]
    %v736 = vld [vmem:[#allocation5 + $0x1008] sm:$0xff]
    %v737 = vld [vmem:[#allocation5 + $0x1010] sm:$0xff]
    %v738 = vld [vmem:[#allocation5 + $0x1018] sm:$0xff]
    %v739 = vld [vmem:[#allocation5 + $0x1020] sm:$0xff]
    %v740 = vld [vmem:[#allocation5 + $0x1028] sm:$0xff]
    %v741 = vld [vmem:[#allocation5 + $0x1030] sm:$0xff]
    %v742 = vld [vmem:[#allocation5 + $0x1038] sm:$0xff]
    %v743 = vld [vmem:[#allocation5 + $0x1040] sm:$0xff]
    %v744 = vld [vmem:[#allocation5 + $0x1048] sm:$0xff]
    %v745 = vld [vmem:[#allocation5 + $0x1050] sm:$0xff]
    %v746 = vld [vmem:[#allocation5 + $0x1058] sm:$0xff]
    %v747 = vld [vmem:[#allocation5 + $0x1060] sm:$0xff]
    %v748 = vld [vmem:[#allocation5 + $0x1068] sm:$0xff]
    %v749 = vld [vmem:[#allocation5 + $0x1070] sm:$0xff]
    %v750 = vld [vmem:[#allocation5 + $0x1078] sm:$0xff]
    %v751 = vld [vmem:[#allocation5 + $0x1080] sm:$0xff]
    %v752 = vld [vmem:[#allocation5 + $0x1088] sm:$0xff]
    %v753 = vld [vmem:[#allocation5 + $0x1090] sm:$0xff]
    %v754 = vld [vmem:[#allocation5 + $0x1098] sm:$0xff]
    %v755 = vld [vmem:[#allocation5 + $0x10a0] sm:$0xff]
    %v756 = vld [vmem:[#allocation5 + $0x10a8] sm:$0xff]
    %v757 = vld [vmem:[#allocation5 + $0x10b0] sm:$0xff]
    %v758 = vld [vmem:[#allocation5 + $0x10b8] sm:$0xff]
    %v759 = vld [vmem:[#allocation5 + $0x10c0] sm:$0xff]
    %v760 = vld [vmem:[#allocation5 + $0x10c8] sm:$0xff]
    %v761 = vld [vmem:[#allocation5 + $0x10d0] sm:$0xff]
    %v762 = vld [vmem:[#allocation5 + $0x10d8] sm:$0xff]
    %v763 = vld [vmem:[#allocation5 + $0x10e0] sm:$0xff]
    %v764 = vld [vmem:[#allocation5 + $0x10e8] sm:$0xff]
    %v765 = vld [vmem:[#allocation5 + $0x10f0] sm:$0xff]
    %v766 = vld [vmem:[#allocation5 + $0x10f8] sm:$0xff]
    %v767 = vld [vmem:[#allocation5 + $0x1100] sm:$0xff]
    %v768 = vld [vmem:[#allocation5 + $0x1108] sm:$0xff]
    %v769 = vld [vmem:[#allocation5 + $0x1110] sm:$0xff]
    %v770 = vld [vmem:[#allocation5 + $0x1118] sm:$0xff]
    %v771 = vld [vmem:[#allocation5 + $0x1120] sm:$0xff]
    %v772 = vld [vmem:[#allocation5 + $0x1128] sm:$0xff]
    %v773 = vld [vmem:[#allocation5 + $0x1130] sm:$0xff]
    %v774 = vld [vmem:[#allocation5 + $0x1138] sm:$0xff]
    %v775 = vld [vmem:[#allocation5 + $0x1140] sm:$0xff]
    %v776 = vld [vmem:[#allocation5 + $0x1148] sm:$0xff]
    %v777 = vld [vmem:[#allocation5 + $0x1150] sm:$0xff]
    %v778 = vld [vmem:[#allocation5 + $0x1158] sm:$0xff]
    %v779 = vld [vmem:[#allocation5 + $0x1160] sm:$0xff]
    %v780 = vld [vmem:[#allocation5 + $0x1168] sm:$0xff]
    %v781 = vld [vmem:[#allocation5 + $0x1170] sm:$0xff]
    %v782 = vld [vmem:[#allocation5 + $0x1178] sm:$0xff]
    %v783 = vld [vmem:[#allocation5 + $0x1180] sm:$0xff]
    %v784 = vld [vmem:[#allocation5 + $0x1188] sm:$0xff]
    %v785 = vld [vmem:[#allocation5 + $0x1190] sm:$0xff]
    %v786 = vld [vmem:[#allocation5 + $0x1198] sm:$0xff]
    %v787 = vld [vmem:[#allocation5 + $0x11a0] sm:$0xff]
    %v788 = vld [vmem:[#allocation5 + $0x11a8] sm:$0xff]
    %v789 = vld [vmem:[#allocation5 + $0x11b0] sm:$0xff]
    %v790 = vld [vmem:[#allocation5 + $0x11b8] sm:$0xff]
    %v791 = vld [vmem:[#allocation5 + $0x11c0] sm:$0xff]
    %v792 = vld [vmem:[#allocation5 + $0x11c8] sm:$0xff]
    %v793 = vld [vmem:[#allocation5 + $0x11d0] sm:$0xff]
    %v794 = vld [vmem:[#allocation5 + $0x11d8] sm:$0xff]
    %v795 = vld [vmem:[#allocation5 + $0x11e0] sm:$0xff]
    %v796 = vld [vmem:[#allocation5 + $0x11e8] sm:$0xff]
    %v797 = vld [vmem:[#allocation5 + $0x11f0] sm:$0xff]
    %v798 = vld [vmem:[#allocation5 + $0x11f8] sm:$0xff]
    %v799 = vld [vmem:[#allocation5 + $0x1200] sm:$0xff]
    %v800 = vld [vmem:[#allocation5 + $0x1208] sm:$0xff]
    %v801 = vld [vmem:[#allocation5 + $0x1210] sm:$0xff]
    %v802 = vld [vmem:[#allocation5 + $0x1218] sm:$0xff]
    %v803 = vld [vmem:[#allocation5 + $0x1220] sm:$0xff]
    %v804 = vld [vmem:[#allocation5 + $0x1228] sm:$0xff]
    %v805 = vld [vmem:[#allocation5 + $0x1230] sm:$0xff]
    %v806 = vld [vmem:[#allocation5 + $0x1238] sm:$0xff]
    %v807 = vld [vmem:[#allocation5 + $0x1240] sm:$0xff]
    %v808 = vld [vmem:[#allocation5 + $0x1248] sm:$0xff]
    %v809 = vld [vmem:[#allocation5 + $0x1250] sm:$0xff]
    %v810 = vld [vmem:[#allocation5 + $0x1258] sm:$0xff]
    %v811 = vld [vmem:[#allocation5 + $0x1260] sm:$0xff]
    %v812 = vld [vmem:[#allocation5 + $0x1268] sm:$0xff]
    %v813 = vld [vmem:[#allocation5 + $0x1270] sm:$0xff]
    %v814 = vld [vmem:[#allocation5 + $0x1278] sm:$0xff]
    %v815 = vld [vmem:[#allocation5 + $0x1280] sm:$0xff]
    %v816 = vld [vmem:[#allocation5 + $0x1288] sm:$0xff]
    %v817 = vld [vmem:[#allocation5 + $0x1290] sm:$0xff]
    %v818 = vld [vmem:[#allocation5 + $0x1298] sm:$0xff]
    %v819 = vld [vmem:[#allocation5 + $0x12a0] sm:$0xff]
    %v820 = vld [vmem:[#allocation5 + $0x12a8] sm:$0xff]
    %v821 = vld [vmem:[#allocation5 + $0x12b0] sm:$0xff]
    %v822 = vld [vmem:[#allocation5 + $0x12b8] sm:$0xff]
    %v823 = vld [vmem:[#allocation5 + $0x12c0] sm:$0xff]
    %v824 = vld [vmem:[#allocation5 + $0x12c8] sm:$0xff]
    %v825 = vld [vmem:[#allocation5 + $0x12d0] sm:$0xff]
    %v826 = vld [vmem:[#allocation5 + $0x12d8] sm:$0xff]
    %v827 = vld [vmem:[#allocation5 + $0x12e0] sm:$0xff]
    %v828 = vld [vmem:[#allocation5 + $0x12e8] sm:$0xff]
    %v829 = vld [vmem:[#allocation5 + $0x12f0] sm:$0xff]
    %v830 = vld [vmem:[#allocation5 + $0x12f8] sm:$0xff]
    %v831 = vld [vmem:[#allocation5 + $0x1300] sm:$0xff]
    %v832 = vld [vmem:[#allocation5 + $0x1308] sm:$0xff]
    %v833 = vld [vmem:[#allocation5 + $0x1310] sm:$0xff]
    %v834 = vld [vmem:[#allocation5 + $0x1318] sm:$0xff]
    %v835 = vld [vmem:[#allocation5 + $0x1320] sm:$0xff]
    %v836 = vld [vmem:[#allocation5 + $0x1328] sm:$0xff]
    %v837 = vld [vmem:[#allocation5 + $0x1330] sm:$0xff]
    %v838 = vld [vmem:[#allocation5 + $0x1338] sm:$0xff]
    %v839 = vld [vmem:[#allocation5 + $0x1340] sm:$0xff]
    %v840 = vld [vmem:[#allocation5 + $0x1348] sm:$0xff]
    %v841 = vld [vmem:[#allocation5 + $0x1350] sm:$0xff]
    %v842 = vld [vmem:[#allocation5 + $0x1358] sm:$0xff]
    %v843 = vld [vmem:[#allocation5 + $0x1360] sm:$0xff]
    %v844 = vld [vmem:[#allocation5 + $0x1368] sm:$0xff]
    %v845 = vld [vmem:[#allocation5 + $0x1370] sm:$0xff]
    %v846 = vld [vmem:[#allocation5 + $0x1378] sm:$0xff]
    %v847 = vld [vmem:[#allocation5 + $0x1380] sm:$0xff]
    %v848 = vld [vmem:[#allocation5 + $0x1388] sm:$0xff]
    %v849 = vld [vmem:[#allocation5 + $0x1390] sm:$0xff]
    %v850 = vld [vmem:[#allocation5 + $0x1398] sm:$0xff]
    %v851 = vld [vmem:[#allocation5 + $0x13a0] sm:$0xff]
    %v852 = vld [vmem:[#allocation5 + $0x13a8] sm:$0xff]
    %v853 = vld [vmem:[#allocation5 + $0x13b0] sm:$0xff]
    %v854 = vld [vmem:[#allocation5 + $0x13b8] sm:$0xff]
    %v855 = vld [vmem:[#allocation5 + $0x13c0] sm:$0xff]
    %v856 = vld [vmem:[#allocation5 + $0x13c8] sm:$0xff]
    %v857 = vld [vmem:[#allocation5 + $0x13d0] sm:$0xff]
    %v858 = vld [vmem:[#allocation5 + $0x13d8] sm:$0xff]
    %v859 = vld [vmem:[#allocation5 + $0x13e0] sm:$0xff]
    %v860 = vld [vmem:[#allocation5 + $0x13e8] sm:$0xff]
    %v861 = vld [vmem:[#allocation5 + $0x13f0] sm:$0xff]
    %v862 = vld [vmem:[#allocation5 + $0x13f8] sm:$0xff]
    %v863 = vld [vmem:[#allocation5 + $0x1400] sm:$0xff]
    %v864 = vld [vmem:[#allocation5 + $0x1408] sm:$0xff]
    %v865 = vld [vmem:[#allocation5 + $0x1410] sm:$0xff]
    %v866 = vld [vmem:[#allocation5 + $0x1418] sm:$0xff]
    %v867 = vld [vmem:[#allocation5 + $0x1420] sm:$0xff]
    %v868 = vld [vmem:[#allocation5 + $0x1428] sm:$0xff]
    %v869 = vld [vmem:[#allocation5 + $0x1430] sm:$0xff]
    %v870 = vld [vmem:[#allocation5 + $0x1438] sm:$0xff]
    %v871 = vld [vmem:[#allocation5 + $0x1440] sm:$0xff]
    %v872 = vld [vmem:[#allocation5 + $0x1448] sm:$0xff]
    %v873 = vld [vmem:[#allocation5 + $0x1450] sm:$0xff]
    %v874 = vld [vmem:[#allocation5 + $0x1458] sm:$0xff]
    %v875 = vld [vmem:[#allocation5 + $0x1460] sm:$0xff]
    %v876 = vld [vmem:[#allocation5 + $0x1468] sm:$0xff]
    %v877 = vld [vmem:[#allocation5 + $0x1470] sm:$0xff]
    %v878 = vld [vmem:[#allocation5 + $0x1478] sm:$0xff]
    %v879 = vld [vmem:[#allocation5 + $0x1480] sm:$0xff]
    %v880 = vld [vmem:[#allocation5 + $0x1488] sm:$0xff]
    %v881 = vld [vmem:[#allocation5 + $0x1490] sm:$0xff]
    %v882 = vld [vmem:[#allocation5 + $0x1498] sm:$0xff]
    %v883 = vld [vmem:[#allocation5 + $0x14a0] sm:$0xff]
    %v884 = vld [vmem:[#allocation5 + $0x14a8] sm:$0xff]
    %v885 = vld [vmem:[#allocation5 + $0x14b0] sm:$0xff]
    %v886 = vld [vmem:[#allocation5 + $0x14b8] sm:$0xff]
    %v887 = vld [vmem:[#allocation5 + $0x14c0] sm:$0xff]
    %v888 = vld [vmem:[#allocation5 + $0x14c8] sm:$0xff]
    %v889 = vld [vmem:[#allocation5 + $0x14d0] sm:$0xff]
    %v890 = vld [vmem:[#allocation5 + $0x14d8] sm:$0xff]
    %v891 = vld [vmem:[#allocation5 + $0x14e0] sm:$0xff]
    %v892 = vld [vmem:[#allocation5 + $0x14e8] sm:$0xff]
    %v893 = vld [vmem:[#allocation5 + $0x14f0] sm:$0xff]
    %v894 = vld [vmem:[#allocation5 + $0x14f8] sm:$0xff]
    %v895 = vld [vmem:[#allocation5 + $0x1500] sm:$0xff]
    %v896 = vld [vmem:[#allocation5 + $0x1508] sm:$0xff]
    %v897 = vld [vmem:[#allocation5 + $0x1510] sm:$0xff]
    %v898 = vld [vmem:[#allocation5 + $0x1518] sm:$0xff]
    %v899 = vld [vmem:[#allocation5 + $0x1520] sm:$0xff]
    %v900 = vld [vmem:[#allocation5 + $0x1528] sm:$0xff]
    %v901 = vld [vmem:[#allocation5 + $0x1530] sm:$0xff]
    %v902 = vld [vmem:[#allocation5 + $0x1538] sm:$0xff]
    %v903 = vld [vmem:[#allocation5 + $0x1540] sm:$0xff]
    %v904 = vld [vmem:[#allocation5 + $0x1548] sm:$0xff]
    %v905 = vld [vmem:[#allocation5 + $0x1550] sm:$0xff]
    %v906 = vld [vmem:[#allocation5 + $0x1558] sm:$0xff]
    %v907 = vld [vmem:[#allocation5 + $0x1560] sm:$0xff]
    %v908 = vld [vmem:[#allocation5 + $0x1568] sm:$0xff]
    %v909 = vld [vmem:[#allocation5 + $0x1570] sm:$0xff]
    %v910 = vld [vmem:[#allocation5 + $0x1578] sm:$0xff]
    %v911 = vld [vmem:[#allocation5 + $0x1580] sm:$0xff]
    %v912 = vld [vmem:[#allocation5 + $0x1588] sm:$0xff]
    %v913 = vld [vmem:[#allocation5 + $0x1590] sm:$0xff]
    %v914 = vld [vmem:[#allocation5 + $0x1598] sm:$0xff]
    %v915 = vld [vmem:[#allocation5 + $0x15a0] sm:$0xff]
    %v916 = vld [vmem:[#allocation5 + $0x15a8] sm:$0xff]
    %v917 = vld [vmem:[#allocation5 + $0x15b0] sm:$0xff]
    %v918 = vld [vmem:[#allocation5 + $0x15b8] sm:$0xff]
    %v919 = vld [vmem:[#allocation5 + $0x15c0] sm:$0xff]
    %v920 = vld [vmem:[#allocation5 + $0x15c8] sm:$0xff]
    %v921 = vld [vmem:[#allocation5 + $0x15d0] sm:$0xff]
    %v922 = vld [vmem:[#allocation5 + $0x15d8] sm:$0xff]
    %v923 = vld [vmem:[#allocation5 + $0x15e0] sm:$0xff]
    %v924 = vld [vmem:[#allocation5 + $0x15e8] sm:$0xff]
    %v925 = vld [vmem:[#allocation5 + $0x15f0] sm:$0xff]
    %v926 = vld [vmem:[#allocation5 + $0x15f8] sm:$0xff]
    %v927 = vld [vmem:[#allocation5 + $0x1600] sm:$0xff]
    %v928 = vld [vmem:[#allocation5 + $0x1608] sm:$0xff]
    %v929 = vld [vmem:[#allocation5 + $0x1610] sm:$0xff]
    %v930 = vld [vmem:[#allocation5 + $0x1618] sm:$0xff]
    %v931 = vld [vmem:[#allocation5 + $0x1620] sm:$0xff]
    %v932 = vld [vmem:[#allocation5 + $0x1628] sm:$0xff]
    %v933 = vld [vmem:[#allocation5 + $0x1630] sm:$0xff]
    %v934 = vld [vmem:[#allocation5 + $0x1638] sm:$0xff]
    %v935 = vld [vmem:[#allocation5 + $0x1640] sm:$0xff]
    %v936 = vld [vmem:[#allocation5 + $0x1648] sm:$0xff]
    %v937 = vld [vmem:[#allocation5 + $0x1650] sm:$0xff]
    %v938 = vld [vmem:[#allocation5 + $0x1658] sm:$0xff]
    %v939 = vld [vmem:[#allocation5 + $0x1660] sm:$0xff]
    %v940 = vld [vmem:[#allocation5 + $0x1668] sm:$0xff]
    %v941 = vld [vmem:[#allocation5 + $0x1670] sm:$0xff]
    %v942 = vld [vmem:[#allocation5 + $0x1678] sm:$0xff]
    %v943 = vld [vmem:[#allocation5 + $0x1680] sm:$0xff]
    %v944 = vld [vmem:[#allocation5 + $0x1688] sm:$0xff]
    %v945 = vld [vmem:[#allocation5 + $0x1690] sm:$0xff]
    %v946 = vld [vmem:[#allocation5 + $0x1698] sm:$0xff]
    %v947 = vld [vmem:[#allocation5 + $0x16a0] sm:$0xff]
    %v948 = vld [vmem:[#allocation5 + $0x16a8] sm:$0xff]
    %v949 = vld [vmem:[#allocation5 + $0x16b0] sm:$0xff]
    %v950 = vld [vmem:[#allocation5 + $0x16b8] sm:$0xff]
    %v951 = vld [vmem:[#allocation5 + $0x16c0] sm:$0xff]
    %v952 = vld [vmem:[#allocation5 + $0x16c8] sm:$0xff]
    %v953 = vld [vmem:[#allocation5 + $0x16d0] sm:$0xff]
    %v954 = vld [vmem:[#allocation5 + $0x16d8] sm:$0xff]
    %v955 = vld [vmem:[#allocation5 + $0x16e0] sm:$0xff]
    %v956 = vld [vmem:[#allocation5 + $0x16e8] sm:$0xff]
    %v957 = vld [vmem:[#allocation5 + $0x16f0] sm:$0xff]
    %v958 = vld [vmem:[#allocation5 + $0x16f8] sm:$0xff]
    %v959 = vld [vmem:[#allocation5 + $0x1700] sm:$0xff]
    %v960 = vld [vmem:[#allocation5 + $0x1708] sm:$0xff]
    %v961 = vld [vmem:[#allocation5 + $0x1710] sm:$0xff]
    %v962 = vld [vmem:[#allocation5 + $0x1718] sm:$0xff]
    %v963 = vld [vmem:[#allocation5 + $0x1720] sm:$0xff]
    %v964 = vld [vmem:[#allocation5 + $0x1728] sm:$0xff]
    %v965 = vld [vmem:[#allocation5 + $0x1730] sm:$0xff]
    %v966 = vld [vmem:[#allocation5 + $0x1738] sm:$0xff]
    %v967 = vld [vmem:[#allocation5 + $0x1740] sm:$0xff]
    %v968 = vld [vmem:[#allocation5 + $0x1748] sm:$0xff]
    %v969 = vld [vmem:[#allocation5 + $0x1750] sm:$0xff]
    %v970 = vld [vmem:[#allocation5 + $0x1758] sm:$0xff]
    %v971 = vld [vmem:[#allocation5 + $0x1760] sm:$0xff]
    %v972 = vld [vmem:[#allocation5 + $0x1768] sm:$0xff]
    %v973 = vld [vmem:[#allocation5 + $0x1770] sm:$0xff]
    %v974 = vld [vmem:[#allocation5 + $0x1778] sm:$0xff]
    %v975 = vld [vmem:[#allocation5 + $0x1780] sm:$0xff]
    %v976 = vld [vmem:[#allocation5 + $0x1788] sm:$0xff]
    %v977 = vld [vmem:[#allocation5 + $0x1790] sm:$0xff]
    %v978 = vld [vmem:[#allocation5 + $0x1798] sm:$0xff]
    %v979 = vld [vmem:[#allocation5 + $0x17a0] sm:$0xff]
    %v980 = vld [vmem:[#allocation5 + $0x17a8] sm:$0xff]
    %v981 = vld [vmem:[#allocation5 + $0x17b0] sm:$0xff]
    %v982 = vld [vmem:[#allocation5 + $0x17b8] sm:$0xff]
    %v983 = vld [vmem:[#allocation5 + $0x17c0] sm:$0xff]
    %v984 = vld [vmem:[#allocation5 + $0x17c8] sm:$0xff]
    %v985 = vld [vmem:[#allocation5 + $0x17d0] sm:$0xff]
    %v986 = vld [vmem:[#allocation5 + $0x17d8] sm:$0xff]
    %v987 = vld [vmem:[#allocation5 + $0x17e0] sm:$0xff]
    %v988 = vld [vmem:[#allocation5 + $0x17e8] sm:$0xff]
    %v989 = vld [vmem:[#allocation5 + $0x17f0] sm:$0xff]
    %v990 = vld [vmem:[#allocation5 + $0x17f8] sm:$0xff]
    %v991 = vld [vmem:[#allocation5 + $0x1800] sm:$0xff]
    %v992 = vld [vmem:[#allocation5 + $0x1808] sm:$0xff]
    %v993 = vld [vmem:[#allocation5 + $0x1810] sm:$0xff]
    %v994 = vld [vmem:[#allocation5 + $0x1818] sm:$0xff]
    %v995 = vld [vmem:[#allocation5 + $0x1820] sm:$0xff]
    %v996 = vld [vmem:[#allocation5 + $0x1828] sm:$0xff]
    %v997 = vld [vmem:[#allocation5 + $0x1830] sm:$0xff]
    %v998 = vld [vmem:[#allocation5 + $0x1838] sm:$0xff]
    %v999 = vld [vmem:[#allocation5 + $0x1840] sm:$0xff]
    %v1000 = vld [vmem:[#allocation5 + $0x1848] sm:$0xff]
    %v1001 = vld [vmem:[#allocation5 + $0x1850] sm:$0xff]
    %v1002 = vld [vmem:[#allocation5 + $0x1858] sm:$0xff]
    %v1003 = vld [vmem:[#allocation5 + $0x1860] sm:$0xff]
    %v1004 = vld [vmem:[#allocation5 + $0x1868] sm:$0xff]
    %v1005 = vld [vmem:[#allocation5 + $0x1870] sm:$0xff]
    %v1006 = vld [vmem:[#allocation5 + $0x1878] sm:$0xff]
    %v1007 = vld [vmem:[#allocation5 + $0x1880] sm:$0xff]
    %v1008 = vld [vmem:[#allocation5 + $0x1888] sm:$0xff]
    %v1009 = vld [vmem:[#allocation5 + $0x1890] sm:$0xff]
    %v1010 = vld [vmem:[#allocation5 + $0x1898] sm:$0xff]
    %v1011 = vld [vmem:[#allocation5 + $0x18a0] sm:$0xff]
    %v1012 = vld [vmem:[#allocation5 + $0x18a8] sm:$0xff]
    %v1013 = vld [vmem:[#allocation5 + $0x18b0] sm:$0xff]
    %v1014 = vld [vmem:[#allocation5 + $0x18b8] sm:$0xff]
    %v1015 = vld [vmem:[#allocation5 + $0x18c0] sm:$0xff]
    %v1016 = vld [vmem:[#allocation5 + $0x18c8] sm:$0xff]
    %v1017 = vld [vmem:[#allocation5 + $0x18d0] sm:$0xff]
    %v1018 = vld [vmem:[#allocation5 + $0x18d8] sm:$0xff]
    %v1019 = vld [vmem:[#allocation5 + $0x18e0] sm:$0xff]
    %v1020 = vld [vmem:[#allocation5 + $0x18e8] sm:$0xff]
    %v1021 = vld [vmem:[#allocation5 + $0x18f0] sm:$0xff]
    %v1022 = vld [vmem:[#allocation5 + $0x18f8] sm:$0xff]
    %v1023 = vld [vmem:[#allocation5 + $0x1900] sm:$0xff]
    %v1024 = vld [vmem:[#allocation5 + $0x1908] sm:$0xff]
    %v1025 = vld [vmem:[#allocation5 + $0x1910] sm:$0xff]
    %v1026 = vld [vmem:[#allocation5 + $0x1918] sm:$0xff]
    %v1027 = vld [vmem:[#allocation5 + $0x1920] sm:$0xff]
    %v1028 = vld [vmem:[#allocation5 + $0x1928] sm:$0xff]
    %v1029 = vld [vmem:[#allocation5 + $0x1930] sm:$0xff]
    %v1030 = vld [vmem:[#allocation5 + $0x1938] sm:$0xff]
    %v1031 = vld [vmem:[#allocation5 + $0x1940] sm:$0xff]
    %v1032 = vld [vmem:[#allocation5 + $0x1948] sm:$0xff]
    %v1033 = vld [vmem:[#allocation5 + $0x1950] sm:$0xff]
    %v1034 = vld [vmem:[#allocation5 + $0x1958] sm:$0xff]
    %v1035 = vld [vmem:[#allocation5 + $0x1960] sm:$0xff]
    %v1036 = vld [vmem:[#allocation5 + $0x1968] sm:$0xff]
    %v1037 = vld [vmem:[#allocation5 + $0x1970] sm:$0xff]
    %v1038 = vld [vmem:[#allocation5 + $0x1978] sm:$0xff]
    %v1039 = vld [vmem:[#allocation5 + $0x1980] sm:$0xff]
    %v1040 = vld [vmem:[#allocation5 + $0x1988] sm:$0xff]
    %v1041 = vld [vmem:[#allocation5 + $0x1990] sm:$0xff]
    %v1042 = vld [vmem:[#allocation5 + $0x1998] sm:$0xff]
    %v1043 = vld [vmem:[#allocation5 + $0x19a0] sm:$0xff]
    %v1044 = vld [vmem:[#allocation5 + $0x19a8] sm:$0xff]
    %v1045 = vld [vmem:[#allocation5 + $0x19b0] sm:$0xff]
    %v1046 = vld [vmem:[#allocation5 + $0x19b8] sm:$0xff]
    %v1047 = vld [vmem:[#allocation5 + $0x19c0] sm:$0xff]
    %v1048 = vld [vmem:[#allocation5 + $0x19c8] sm:$0xff]
    %v1049 = vld [vmem:[#allocation5 + $0x19d0] sm:$0xff]
    %v1050 = vld [vmem:[#allocation5 + $0x19d8] sm:$0xff]
    %v1051 = vld [vmem:[#allocation5 + $0x19e0] sm:$0xff]
    %v1052 = vld [vmem:[#allocation5 + $0x19e8] sm:$0xff]
    %v1053 = vld [vmem:[#allocation5 + $0x19f0] sm:$0xff]
    %v1054 = vld [vmem:[#allocation5 + $0x19f8] sm:$0xff]
    %v1055 = vld [vmem:[#allocation5 + $0x1a00] sm:$0xff]
    %v1056 = vld [vmem:[#allocation5 + $0x1a08] sm:$0xff]
    %v1057 = vld [vmem:[#allocation5 + $0x1a10] sm:$0xff]
    %v1058 = vld [vmem:[#allocation5 + $0x1a18] sm:$0xff]
    %v1059 = vld [vmem:[#allocation5 + $0x1a20] sm:$0xff]
    %v1060 = vld [vmem:[#allocation5 + $0x1a28] sm:$0xff]
    %v1061 = vld [vmem:[#allocation5 + $0x1a30] sm:$0xff]
    %v1062 = vld [vmem:[#allocation5 + $0x1a38] sm:$0xff]
    %v1063 = vld [vmem:[#allocation5 + $0x1a40] sm:$0xff]
    %v1064 = vld [vmem:[#allocation5 + $0x1a48] sm:$0xff]
    %v1065 = vld [vmem:[#allocation5 + $0x1a50] sm:$0xff]
    %v1066 = vld [vmem:[#allocation5 + $0x1a58] sm:$0xff]
    %v1067 = vld [vmem:[#allocation5 + $0x1a60] sm:$0xff]
    %v1068 = vld [vmem:[#allocation5 + $0x1a68] sm:$0xff]
    %v1069 = vld [vmem:[#allocation5 + $0x1a70] sm:$0xff]
    %v1070 = vld [vmem:[#allocation5 + $0x1a78] sm:$0xff]
    %v1071 = vld [vmem:[#allocation5 + $0x1a80] sm:$0xff]
    %v1072 = vld [vmem:[#allocation5 + $0x1a88] sm:$0xff]
    %v1073 = vld [vmem:[#allocation5 + $0x1a90] sm:$0xff]
    %v1074 = vld [vmem:[#allocation5 + $0x1a98] sm:$0xff]
    %v1075 = vld [vmem:[#allocation5 + $0x1aa0] sm:$0xff]
    %v1076 = vld [vmem:[#allocation5 + $0x1aa8] sm:$0xff]
    %v1077 = vld [vmem:[#allocation5 + $0x1ab0] sm:$0xff]
    %v1078 = vld [vmem:[#allocation5 + $0x1ab8] sm:$0xff]
    %v1079 = vld [vmem:[#allocation5 + $0x1ac0] sm:$0xff]
    %v1080 = vld [vmem:[#allocation5 + $0x1ac8] sm:$0xff]
    %v1081 = vld [vmem:[#allocation5 + $0x1ad0] sm:$0xff]
    %v1082 = vld [vmem:[#allocation5 + $0x1ad8] sm:$0xff]
    %v1083 = vld [vmem:[#allocation5 + $0x1ae0] sm:$0xff]
    %v1084 = vld [vmem:[#allocation5 + $0x1ae8] sm:$0xff]
    %v1085 = vld [vmem:[#allocation5 + $0x1af0] sm:$0xff]
    %v1086 = vld [vmem:[#allocation5 + $0x1af8] sm:$0xff]
    %v1087 = vld [vmem:[#allocation5 + $0x1b00] sm:$0xff]
    %v1088 = vld [vmem:[#allocation5 + $0x1b08] sm:$0xff]
    %v1089 = vld [vmem:[#allocation5 + $0x1b10] sm:$0xff]
    %v1090 = vld [vmem:[#allocation5 + $0x1b18] sm:$0xff]
    %v1091 = vld [vmem:[#allocation5 + $0x1b20] sm:$0xff]
    %v1092 = vld [vmem:[#allocation5 + $0x1b28] sm:$0xff]
    %v1093 = vld [vmem:[#allocation5 + $0x1b30] sm:$0xff]
    %v1094 = vld [vmem:[#allocation5 + $0x1b38] sm:$0xff]
    %v1095 = vld [vmem:[#allocation5 + $0x1b40] sm:$0xff]
    %v1096 = vld [vmem:[#allocation5 + $0x1b48] sm:$0xff]
    %v1097 = vld [vmem:[#allocation5 + $0x1b50] sm:$0xff]
    %v1098 = vld [vmem:[#allocation5 + $0x1b58] sm:$0xff]
    %v1099 = vld [vmem:[#allocation5 + $0x1b60] sm:$0xff]
    %v1100 = vld [vmem:[#allocation5 + $0x1b68] sm:$0xff]
    %v1101 = vld [vmem:[#allocation5 + $0x1b70] sm:$0xff]
    %v1102 = vld [vmem:[#allocation5 + $0x1b78] sm:$0xff]
    %v1103 = vld [vmem:[#allocation5 + $0x1b80] sm:$0xff]
    %v1104 = vld [vmem:[#allocation5 + $0x1b88] sm:$0xff]
    %v1105 = vld [vmem:[#allocation5 + $0x1b90] sm:$0xff]
    %v1106 = vld [vmem:[#allocation5 + $0x1b98] sm:$0xff]
    %v1107 = vld [vmem:[#allocation5 + $0x1ba0] sm:$0xff]
    %v1108 = vld [vmem:[#allocation5 + $0x1ba8] sm:$0xff]
    %v1109 = vld [vmem:[#allocation5 + $0x1bb0] sm:$0xff]
    %v1110 = vld [vmem:[#allocation5 + $0x1bb8] sm:$0xff]
    %v1111 = vld [vmem:[#allocation5 + $0x1bc0] sm:$0xff]
    %v1112 = vld [vmem:[#allocation5 + $0x1bc8] sm:$0xff]
    %v1113 = vld [vmem:[#allocation5 + $0x1bd0] sm:$0xff]
    %v1114 = vld [vmem:[#allocation5 + $0x1bd8] sm:$0xff]
    %v1115 = vld [vmem:[#allocation5 + $0x1be0] sm:$0xff]
    %v1116 = vld [vmem:[#allocation5 + $0x1be8] sm:$0xff]
    %v1117 = vld [vmem:[#allocation5 + $0x1bf0] sm:$0xff]
    %v1118 = vld [vmem:[#allocation5 + $0x1bf8] sm:$0xff]
    %v1119 = vld [vmem:[#allocation5 + $0x1c00] sm:$0xff]
    %v1120 = vld [vmem:[#allocation5 + $0x1c08] sm:$0xff]
    %v1121 = vld [vmem:[#allocation5 + $0x1c10] sm:$0xff]
    %v1122 = vld [vmem:[#allocation5 + $0x1c18] sm:$0xff]
    %v1123 = vld [vmem:[#allocation5 + $0x1c20] sm:$0xff]
    %v1124 = vld [vmem:[#allocation5 + $0x1c28] sm:$0xff]
    %v1125 = vld [vmem:[#allocation5 + $0x1c30] sm:$0xff]
    %v1126 = vld [vmem:[#allocation5 + $0x1c38] sm:$0xff]
    %v1127 = vld [vmem:[#allocation5 + $0x1c40] sm:$0xff]
    %v1128 = vld [vmem:[#allocation5 + $0x1c48] sm:$0xff]
    %v1129 = vld [vmem:[#allocation5 + $0x1c50] sm:$0xff]
    %v1130 = vld [vmem:[#allocation5 + $0x1c58] sm:$0xff]
    %v1131 = vld [vmem:[#allocation5 + $0x1c60] sm:$0xff]
    %v1132 = vld [vmem:[#allocation5 + $0x1c68] sm:$0xff]
    %v1133 = vld [vmem:[#allocation5 + $0x1c70] sm:$0xff]
    %v1134 = vld [vmem:[#allocation5 + $0x1c78] sm:$0xff]
    %v1135 = vld [vmem:[#allocation5 + $0x1c80] sm:$0xff]
    %v1136 = vld [vmem:[#allocation5 + $0x1c88] sm:$0xff]
    %v1137 = vld [vmem:[#allocation5 + $0x1c90] sm:$0xff]
    %v1138 = vld [vmem:[#allocation5 + $0x1c98] sm:$0xff]
    %v1139 = vld [vmem:[#allocation5 + $0x1ca0] sm:$0xff]
    %v1140 = vld [vmem:[#allocation5 + $0x1ca8] sm:$0xff]
    %v1141 = vld [vmem:[#allocation5 + $0x1cb0] sm:$0xff]
    %v1142 = vld [vmem:[#allocation5 + $0x1cb8] sm:$0xff]
    %v1143 = vld [vmem:[#allocation5 + $0x1cc0] sm:$0xff]
    %v1144 = vld [vmem:[#allocation5 + $0x1cc8] sm:$0xff]
    %v1145 = vld [vmem:[#allocation5 + $0x1cd0] sm:$0xff]
    %v1146 = vld [vmem:[#allocation5 + $0x1cd8] sm:$0xff]
    %v1147 = vld [vmem:[#allocation5 + $0x1ce0] sm:$0xff]
    %v1148 = vld [vmem:[#allocation5 + $0x1ce8] sm:$0xff]
    %v1149 = vld [vmem:[#allocation5 + $0x1cf0] sm:$0xff]
    %v1150 = vld [vmem:[#allocation5 + $0x1cf8] sm:$0xff]
    %v1151 = vld [vmem:[#allocation5 + $0x1d00] sm:$0xff]
    %v1152 = vld [vmem:[#allocation5 + $0x1d08] sm:$0xff]
    %v1153 = vld [vmem:[#allocation5 + $0x1d10] sm:$0xff]
    %v1154 = vld [vmem:[#allocation5 + $0x1d18] sm:$0xff]
    %v1155 = vld [vmem:[#allocation5 + $0x1d20] sm:$0xff]
    %v1156 = vld [vmem:[#allocation5 + $0x1d28] sm:$0xff]
    %v1157 = vld [vmem:[#allocation5 + $0x1d30] sm:$0xff]
    %v1158 = vld [vmem:[#allocation5 + $0x1d38] sm:$0xff]
    %v1159 = vld [vmem:[#allocation5 + $0x1d40] sm:$0xff]
    %v1160 = vld [vmem:[#allocation5 + $0x1d48] sm:$0xff]
    %v1161 = vld [vmem:[#allocation5 + $0x1d50] sm:$0xff]
    %v1162 = vld [vmem:[#allocation5 + $0x1d58] sm:$0xff]
    %v1163 = vld [vmem:[#allocation5 + $0x1d60] sm:$0xff]
    %v1164 = vld [vmem:[#allocation5 + $0x1d68] sm:$0xff]
    %v1165 = vld [vmem:[#allocation5 + $0x1d70] sm:$0xff]
    %v1166 = vld [vmem:[#allocation5 + $0x1d78] sm:$0xff]
    %v1167 = vld [vmem:[#allocation5 + $0x1d80] sm:$0xff]
    %v1168 = vld [vmem:[#allocation5 + $0x1d88] sm:$0xff]
    %v1169 = vld [vmem:[#allocation5 + $0x1d90] sm:$0xff]
    %v1170 = vld [vmem:[#allocation5 + $0x1d98] sm:$0xff]
    %v1171 = vld [vmem:[#allocation5 + $0x1da0] sm:$0xff]
    %v1172 = vld [vmem:[#allocation5 + $0x1da8] sm:$0xff]
    %v1173 = vld [vmem:[#allocation5 + $0x1db0] sm:$0xff]
    %v1174 = vld [vmem:[#allocation5 + $0x1db8] sm:$0xff]
    %v1175 = vld [vmem:[#allocation5 + $0x1dc0] sm:$0xff]
    %v1176 = vld [vmem:[#allocation5 + $0x1dc8] sm:$0xff]
    %v1177 = vld [vmem:[#allocation5 + $0x1dd0] sm:$0xff]
    %v1178 = vld [vmem:[#allocation5 + $0x1dd8] sm:$0xff]
    %v1179 = vld [vmem:[#allocation5 + $0x1de0] sm:$0xff]
    %v1180 = vld [vmem:[#allocation5 + $0x1de8] sm:$0xff]
    %v1181 = vld [vmem:[#allocation5 + $0x1df0] sm:$0xff]
    %v1182 = vld [vmem:[#allocation5 + $0x1df8] sm:$0xff]
    %v1183 = vld [vmem:[#allocation5 + $0x1e00] sm:$0xff]
    %v1184 = vld [vmem:[#allocation5 + $0x1e08] sm:$0xff]
    %v1185 = vld [vmem:[#allocation5 + $0x1e10] sm:$0xff]
    %v1186 = vld [vmem:[#allocation5 + $0x1e18] sm:$0xff]
    %v1187 = vld [vmem:[#allocation5 + $0x1e20] sm:$0xff]
    %v1188 = vld [vmem:[#allocation5 + $0x1e28] sm:$0xff]
    %v1189 = vld [vmem:[#allocation5 + $0x1e30] sm:$0xff]
    %v1190 = vld [vmem:[#allocation5 + $0x1e38] sm:$0xff]
    %v1191 = vld [vmem:[#allocation5 + $0x1e40] sm:$0xff]
    %v1192 = vld [vmem:[#allocation5 + $0x1e48] sm:$0xff]
    %v1193 = vld [vmem:[#allocation5 + $0x1e50] sm:$0xff]
    %v1194 = vld [vmem:[#allocation5 + $0x1e58] sm:$0xff]
    %v1195 = vld [vmem:[#allocation5 + $0x1e60] sm:$0xff]
    %v1196 = vld [vmem:[#allocation5 + $0x1e68] sm:$0xff]
    %v1197 = vld [vmem:[#allocation5 + $0x1e70] sm:$0xff]
    %v1198 = vld [vmem:[#allocation5 + $0x1e78] sm:$0xff]
    %v1199 = vld [vmem:[#allocation5 + $0x1e80] sm:$0xff]
    %v1200 = vld [vmem:[#allocation5 + $0x1e88] sm:$0xff]
    %v1201 = vld [vmem:[#allocation5 + $0x1e90] sm:$0xff]
    %v1202 = vld [vmem:[#allocation5 + $0x1e98] sm:$0xff]
    %v1203 = vld [vmem:[#allocation5 + $0x1ea0] sm:$0xff]
    %v1204 = vld [vmem:[#allocation5 + $0x1ea8] sm:$0xff]
    %v1205 = vld [vmem:[#allocation5 + $0x1eb0] sm:$0xff]
    %v1206 = vld [vmem:[#allocation5 + $0x1eb8] sm:$0xff]
    %v1207 = vld [vmem:[#allocation5 + $0x1ec0] sm:$0xff]
    %v1208 = vld [vmem:[#allocation5 + $0x1ec8] sm:$0xff]
    %v1209 = vld [vmem:[#allocation5 + $0x1ed0] sm:$0xff]
    %v1210 = vld [vmem:[#allocation5 + $0x1ed8] sm:$0xff]
    %v1211 = vld [vmem:[#allocation5 + $0x1ee0] sm:$0xff]
    %v1212 = vld [vmem:[#allocation5 + $0x1ee8] sm:$0xff]
    %v1213 = vld [vmem:[#allocation5 + $0x1ef0] sm:$0xff]
    %v1214 = vld [vmem:[#allocation5 + $0x1ef8] sm:$0xff]
    %v1215 = vld [vmem:[#allocation5 + $0x1f00] sm:$0xff]
    %v1216 = vld [vmem:[#allocation5 + $0x1f08] sm:$0xff]
    %v1217 = vld [vmem:[#allocation5 + $0x1f10] sm:$0xff]
    %v1218 = vld [vmem:[#allocation5 + $0x1f18] sm:$0xff]
    %v1219 = vld [vmem:[#allocation5 + $0x1f20] sm:$0xff]
    %v1220 = vld [vmem:[#allocation5 + $0x1f28] sm:$0xff]
    %v1221 = vld [vmem:[#allocation5 + $0x1f30] sm:$0xff]
    %v1222 = vld [vmem:[#allocation5 + $0x1f38] sm:$0xff]
    %v1223 = vld [vmem:[#allocation5 + $0x1f40] sm:$0xff]
    %v1224 = vld [vmem:[#allocation5 + $0x1f48] sm:$0xff]
    %v1225 = vld [vmem:[#allocation5 + $0x1f50] sm:$0xff]
    %v1226 = vld [vmem:[#allocation5 + $0x1f58] sm:$0xff]
    %v1227 = vld [vmem:[#allocation5 + $0x1f60] sm:$0xff]
    %v1228 = vld [vmem:[#allocation5 + $0x1f68] sm:$0xff]
    %v1229 = vld [vmem:[#allocation5 + $0x1f70] sm:$0xff]
    %v1230 = vld [vmem:[#allocation5 + $0x1f78] sm:$0xff]
    %v1231 = vld [vmem:[#allocation5 + $0x1f80] sm:$0xff]
    %v1232 = vld [vmem:[#allocation5 + $0x1f88] sm:$0xff]
    %v1233 = vld [vmem:[#allocation5 + $0x1f90] sm:$0xff]
    %v1234 = vld [vmem:[#allocation5 + $0x1f98] sm:$0xff]
    %v1235 = vld [vmem:[#allocation5 + $0x1fa0] sm:$0xff]
    %v1236 = vld [vmem:[#allocation5 + $0x1fa8] sm:$0xff]
    %v1237 = vld [vmem:[#allocation5 + $0x1fb0] sm:$0xff]
    %v1238 = vld [vmem:[#allocation5 + $0x1fb8] sm:$0xff]
    %v1239 = vld [vmem:[#allocation5 + $0x1fc0] sm:$0xff]
    %v1240 = vld [vmem:[#allocation5 + $0x1fc8] sm:$0xff]
    %v1241 = vld [vmem:[#allocation5 + $0x1fd0] sm:$0xff]
    %v1242 = vld [vmem:[#allocation5 + $0x1fd8] sm:$0xff]
    %v1243 = vld [vmem:[#allocation5 + $0x1fe0] sm:$0xff]
    %v1244 = vld [vmem:[#allocation5 + $0x1fe8] sm:$0xff]
    %v1245 = vld [vmem:[#allocation5 + $0x1ff0] sm:$0xff]
    %v1246 = vld [vmem:[#allocation5 + $0x1ff8] sm:$0xff]
    %v1247 = vld [vmem:[#allocation5 + $0x2000] sm:$0xff]
    %v1248 = vld [vmem:[#allocation5 + $0x2008] sm:$0xff]
    %v1249 = vld [vmem:[#allocation5 + $0x2010] sm:$0xff]
    %v1250 = vld [vmem:[#allocation5 + $0x2018] sm:$0xff]
    %v1251 = vld [vmem:[#allocation5 + $0x2020] sm:$0xff]
    %v1252 = vld [vmem:[#allocation5 + $0x2028] sm:$0xff]
    %v1253 = vld [vmem:[#allocation5 + $0x2030] sm:$0xff]
    %v1254 = vld [vmem:[#allocation5 + $0x2038] sm:$0xff]
    %v1255 = vld [vmem:[#allocation5 + $0x2040] sm:$0xff]
    %v1256 = vld [vmem:[#allocation5 + $0x2048] sm:$0xff]
    %v1257 = vld [vmem:[#allocation5 + $0x2050] sm:$0xff]
    %v1258 = vld [vmem:[#allocation5 + $0x2058] sm:$0xff]
    %v1259 = vld [vmem:[#allocation5 + $0x2060] sm:$0xff]
    %v1260 = vld [vmem:[#allocation5 + $0x2068] sm:$0xff]
    %v1261 = vld [vmem:[#allocation5 + $0x2070] sm:$0xff]
    %v1262 = vld [vmem:[#allocation5 + $0x2078] sm:$0xff]
    %v1263 = vld [vmem:[#allocation5 + $0x2080] sm:$0xff]
    %v1264 = vld [vmem:[#allocation5 + $0x2088] sm:$0xff]
    %v1265 = vld [vmem:[#allocation5 + $0x2090] sm:$0xff]
    %v1266 = vld [vmem:[#allocation5 + $0x2098] sm:$0xff]
    %v1267 = vld [vmem:[#allocation5 + $0x20a0] sm:$0xff]
    %v1268 = vld [vmem:[#allocation5 + $0x20a8] sm:$0xff]
    %v1269 = vld [vmem:[#allocation5 + $0x20b0] sm:$0xff]
    %v1270 = vld [vmem:[#allocation5 + $0x20b8] sm:$0xff]
    %v1271 = vld [vmem:[#allocation5 + $0x20c0] sm:$0xff]
    %v1272 = vld [vmem:[#allocation5 + $0x20c8] sm:$0xff]
    %v1273 = vld [vmem:[#allocation5 + $0x20d0] sm:$0xff]
    %v1274 = vld [vmem:[#allocation5 + $0x20d8] sm:$0xff]
    %v1275 = vld [vmem:[#allocation5 + $0x20e0] sm:$0xff]
    %v1276 = vld [vmem:[#allocation5 + $0x20e8] sm:$0xff]
    %v1277 = vld [vmem:[#allocation5 + $0x20f0] sm:$0xff]
    %v1278 = vld [vmem:[#allocation5 + $0x20f8] sm:$0xff]
    %v1279 = vld [vmem:[#allocation5 + $0x2100] sm:$0xff]
    %v1280 = vld [vmem:[#allocation5 + $0x2108] sm:$0xff]
    %v1281 = vld [vmem:[#allocation5 + $0x2110] sm:$0xff]
    %v1282 = vld [vmem:[#allocation5 + $0x2118] sm:$0xff]
    %v1283 = vld [vmem:[#allocation5 + $0x2120] sm:$0xff]
    %v1284 = vld [vmem:[#allocation5 + $0x2128] sm:$0xff]
    %v1285 = vld [vmem:[#allocation5 + $0x2130] sm:$0xff]
    %v1286 = vld [vmem:[#allocation5 + $0x2138] sm:$0xff]
    %v1287 = vld [vmem:[#allocation5 + $0x2140] sm:$0xff]
    %v1288 = vld [vmem:[#allocation5 + $0x2148] sm:$0xff]
    %v1289 = vld [vmem:[#allocation5 + $0x2150] sm:$0xff]
    %v1290 = vld [vmem:[#allocation5 + $0x2158] sm:$0xff]
    %v1291 = vld [vmem:[#allocation5 + $0x2160] sm:$0xff]
    %v1292 = vld [vmem:[#allocation5 + $0x2168] sm:$0xff]
    %v1293 = vld [vmem:[#allocation5 + $0x2170] sm:$0xff]
    %v1294 = vld [vmem:[#allocation5 + $0x2178] sm:$0xff]
    %v1295 = vld [vmem:[#allocation5 + $0x2180] sm:$0xff]
    %v1296 = vld [vmem:[#allocation5 + $0x2188] sm:$0xff]
    %v1297 = vld [vmem:[#allocation5 + $0x2190] sm:$0xff]
    %v1298 = vld [vmem:[#allocation5 + $0x2198] sm:$0xff]
    %v1299 = vld [vmem:[#allocation5 + $0x21a0] sm:$0xff]
    %v1300 = vld [vmem:[#allocation5 + $0x21a8] sm:$0xff]
    %v1301 = vld [vmem:[#allocation5 + $0x21b0] sm:$0xff]
    %v1302 = vld [vmem:[#allocation5 + $0x21b8] sm:$0xff]
    %v1303 = vld [vmem:[#allocation5 + $0x21c0] sm:$0xff]
    %v1304 = vld [vmem:[#allocation5 + $0x21c8] sm:$0xff]
    %v1305 = vld [vmem:[#allocation5 + $0x21d0] sm:$0xff]
    %v1306 = vld [vmem:[#allocation5 + $0x21d8] sm:$0xff]
    %v1307 = vld [vmem:[#allocation5 + $0x21e0] sm:$0xff]
    %v1308 = vld [vmem:[#allocation5 + $0x21e8] sm:$0xff]
    %v1309 = vld [vmem:[#allocation5 + $0x21f0] sm:$0xff]
    %v1310 = vld [vmem:[#allocation5 + $0x21f8] sm:$0xff]
    %v1311 = vld [vmem:[#allocation5 + $0x2200] sm:$0xff]
    %v1312 = vld [vmem:[#allocation5 + $0x2208] sm:$0xff]
    %v1313 = vld [vmem:[#allocation5 + $0x2210] sm:$0xff]
    %v1314 = vld [vmem:[#allocation5 + $0x2218] sm:$0xff]
    %v1315 = vld [vmem:[#allocation5 + $0x2220] sm:$0xff]
    %v1316 = vld [vmem:[#allocation5 + $0x2228] sm:$0xff]
    %v1317 = vld [vmem:[#allocation5 + $0x2230] sm:$0xff]
    %v1318 = vld [vmem:[#allocation5 + $0x2238] sm:$0xff]
    %v1319 = vld [vmem:[#allocation5 + $0x2240] sm:$0xff]
    %v1320 = vld [vmem:[#allocation5 + $0x2248] sm:$0xff]
    %v1321 = vld [vmem:[#allocation5 + $0x2250] sm:$0xff]
    %v1322 = vld [vmem:[#allocation5 + $0x2258] sm:$0xff]
    %v1323 = vld [vmem:[#allocation5 + $0x2260] sm:$0xff]
    %v1324 = vld [vmem:[#allocation5 + $0x2268] sm:$0xff]
    %v1325 = vld [vmem:[#allocation5 + $0x2270] sm:$0xff]
    %v1326 = vld [vmem:[#allocation5 + $0x2278] sm:$0xff]
    %v1327 = vld [vmem:[#allocation5 + $0x2280] sm:$0xff]
    %v1328 = vld [vmem:[#allocation5 + $0x2288] sm:$0xff]
    %v1329 = vld [vmem:[#allocation5 + $0x2290] sm:$0xff]
    %v1330 = vld [vmem:[#allocation5 + $0x2298] sm:$0xff]
    %v1331 = vld [vmem:[#allocation5 + $0x22a0] sm:$0xff]
    %v1332 = vld [vmem:[#allocation5 + $0x22a8] sm:$0xff]
    %v1333 = vld [vmem:[#allocation5 + $0x22b0] sm:$0xff]
    %v1334 = vld [vmem:[#allocation5 + $0x22b8] sm:$0xff]
    %v1335 = vld [vmem:[#allocation5 + $0x22c0] sm:$0xff]
    %v1336 = vld [vmem:[#allocation5 + $0x22c8] sm:$0xff]
    %v1337 = vld [vmem:[#allocation5 + $0x22d0] sm:$0xff]
    %v1338 = vld [vmem:[#allocation5 + $0x22d8] sm:$0xff]
    %v1339 = vld [vmem:[#allocation5 + $0x22e0] sm:$0xff]
    %v1340 = vld [vmem:[#allocation5 + $0x22e8] sm:$0xff]
    %v1341 = vld [vmem:[#allocation5 + $0x22f0] sm:$0xff]
    %v1342 = vld [vmem:[#allocation5 + $0x22f8] sm:$0xff]
    %v1343 = vld [vmem:[#allocation5 + $0x2300] sm:$0xff]
    %v1344 = vld [vmem:[#allocation5 + $0x2308] sm:$0xff]
    %v1345 = vld [vmem:[#allocation5 + $0x2310] sm:$0xff]
    %v1346 = vld [vmem:[#allocation5 + $0x2318] sm:$0xff]
    %v1347 = vld [vmem:[#allocation5 + $0x2320] sm:$0xff]
    %v1348 = vld [vmem:[#allocation5 + $0x2328] sm:$0xff]
    %v1349 = vld [vmem:[#allocation5 + $0x2330] sm:$0xff]
    %v1350 = vld [vmem:[#allocation5 + $0x2338] sm:$0xff]
    %v1351 = vld [vmem:[#allocation5 + $0x2340] sm:$0xff]
    %v1352 = vld [vmem:[#allocation5 + $0x2348] sm:$0xff]
    %v1353 = vld [vmem:[#allocation5 + $0x2350] sm:$0xff]
    %v1354 = vld [vmem:[#allocation5 + $0x2358] sm:$0xff]
    %v1355 = vld [vmem:[#allocation5 + $0x2360] sm:$0xff]
    %v1356 = vld [vmem:[#allocation5 + $0x2368] sm:$0xff]
    %v1357 = vld [vmem:[#allocation5 + $0x2370] sm:$0xff]
    %v1358 = vld [vmem:[#allocation5 + $0x2378] sm:$0xff]
    %v1359 = vld [vmem:[#allocation5 + $0x2380] sm:$0xff]
    %v1360 = vld [vmem:[#allocation5 + $0x2388] sm:$0xff]
    %v1361 = vld [vmem:[#allocation5 + $0x2390] sm:$0xff]
    %v1362 = vld [vmem:[#allocation5 + $0x2398] sm:$0xff]
    %v1363 = vld [vmem:[#allocation5 + $0x23a0] sm:$0xff]
    %v1364 = vld [vmem:[#allocation5 + $0x23a8] sm:$0xff]
    %v1365 = vld [vmem:[#allocation5 + $0x23b0] sm:$0xff]
    %v1366 = vld [vmem:[#allocation5 + $0x23b8] sm:$0xff]
    %v1367 = vld [vmem:[#allocation5 + $0x23c0] sm:$0xff]
    %v1368 = vld [vmem:[#allocation5 + $0x23c8] sm:$0xff]
    %v1369 = vld [vmem:[#allocation5 + $0x23d0] sm:$0xff]
    %v1370 = vld [vmem:[#allocation5 + $0x23d8] sm:$0xff]
    %v1371 = vld [vmem:[#allocation5 + $0x23e0] sm:$0xff]
    %v1372 = vld [vmem:[#allocation5 + $0x23e8] sm:$0xff]
    %v1373 = vld [vmem:[#allocation5 + $0x23f0] sm:$0xff]
    %v1374 = vld [vmem:[#allocation5 + $0x23f8] sm:$0xff]
    %v1375 = vld [vmem:[#allocation5 + $0x2400] sm:$0xff]
    %v1376 = vld [vmem:[#allocation5 + $0x2408] sm:$0xff]
    %v1377 = vld [vmem:[#allocation5 + $0x2410] sm:$0xff]
    %v1378 = vld [vmem:[#allocation5 + $0x2418] sm:$0xff]
    %v1379 = vld [vmem:[#allocation5 + $0x2420] sm:$0xff]
    %v1380 = vld [vmem:[#allocation5 + $0x2428] sm:$0xff]
    %v1381 = vld [vmem:[#allocation5 + $0x2430] sm:$0xff]
    %v1382 = vld [vmem:[#allocation5 + $0x2438] sm:$0xff]
    %v1383 = vld [vmem:[#allocation5 + $0x2440] sm:$0xff]
    %v1384 = vld [vmem:[#allocation5 + $0x2448] sm:$0xff]
    %v1385 = vld [vmem:[#allocation5 + $0x2450] sm:$0xff]
    %v1386 = vld [vmem:[#allocation5 + $0x2458] sm:$0xff]
    %v1387 = vld [vmem:[#allocation5 + $0x2460] sm:$0xff]
    %v1388 = vld [vmem:[#allocation5 + $0x2468] sm:$0xff]
    %v1389 = vld [vmem:[#allocation5 + $0x2470] sm:$0xff]
    %v1390 = vld [vmem:[#allocation5 + $0x2478] sm:$0xff]
    %v1391 = vld [vmem:[#allocation5 + $0x2480] sm:$0xff]
    %v1392 = vld [vmem:[#allocation5 + $0x2488] sm:$0xff]
    %v1393 = vld [vmem:[#allocation5 + $0x2490] sm:$0xff]
    %v1394 = vld [vmem:[#allocation5 + $0x2498] sm:$0xff]
    %v1395 = vld [vmem:[#allocation5 + $0x24a0] sm:$0xff]
    %v1396 = vld [vmem:[#allocation5 + $0x24a8] sm:$0xff]
    %v1397 = vld [vmem:[#allocation5 + $0x24b0] sm:$0xff]
    %v1398 = vld [vmem:[#allocation5 + $0x24b8] sm:$0xff]
    %v1399 = vld [vmem:[#allocation5 + $0x24c0] sm:$0xff]
    %v1400 = vld [vmem:[#allocation5 + $0x24c8] sm:$0xff]
    %v1401 = vld [vmem:[#allocation5 + $0x24d0] sm:$0xff]
    %v1402 = vld [vmem:[#allocation5 + $0x24d8] sm:$0xff]
    %v1403 = vld [vmem:[#allocation5 + $0x24e0] sm:$0xff]
    %v1404 = vld [vmem:[#allocation5 + $0x24e8] sm:$0xff]
    %v1405 = vld [vmem:[#allocation5 + $0x24f0] sm:$0xff]
    %v1406 = vld [vmem:[#allocation5 + $0x24f8] sm:$0xff]
    %v1407 = vld [vmem:[#allocation5 + $0x2500] sm:$0xff]
    %v1408 = vld [vmem:[#allocation5 + $0x2508] sm:$0xff]
    %v1409 = vld [vmem:[#allocation5 + $0x2510] sm:$0xff]
    %v1410 = vld [vmem:[#allocation5 + $0x2518] sm:$0xff]
    %v1411 = vld [vmem:[#allocation5 + $0x2520] sm:$0xff]
    %v1412 = vld [vmem:[#allocation5 + $0x2528] sm:$0xff]
    %v1413 = vld [vmem:[#allocation5 + $0x2530] sm:$0xff]
    %v1414 = vld [vmem:[#allocation5 + $0x2538] sm:$0xff]
    %v1415 = vld [vmem:[#allocation5 + $0x2540] sm:$0xff]
    %v1416 = vld [vmem:[#allocation5 + $0x2548] sm:$0xff]
    %v1417 = vld [vmem:[#allocation5 + $0x2550] sm:$0xff]
    %v1418 = vld [vmem:[#allocation5 + $0x2558] sm:$0xff]
    %v1419 = vld [vmem:[#allocation5 + $0x2560] sm:$0xff]
    %v1420 = vld [vmem:[#allocation5 + $0x2568] sm:$0xff]
    %v1421 = vld [vmem:[#allocation5 + $0x2570] sm:$0xff]
    %v1422 = vld [vmem:[#allocation5 + $0x2578] sm:$0xff]
    %v1423 = vld [vmem:[#allocation5 + $0x2580] sm:$0xff]
    %v1424 = vld [vmem:[#allocation5 + $0x2588] sm:$0xff]
    %v1425 = vld [vmem:[#allocation5 + $0x2590] sm:$0xff]
    %v1426 = vld [vmem:[#allocation5 + $0x2598] sm:$0xff]
    %v1427 = vld [vmem:[#allocation5 + $0x25a0] sm:$0xff]
    %v1428 = vld [vmem:[#allocation5 + $0x25a8] sm:$0xff]
    %v1429 = vld [vmem:[#allocation5 + $0x25b0] sm:$0xff]
    %v1430 = vld [vmem:[#allocation5 + $0x25b8] sm:$0xff]
    %v1431 = vld [vmem:[#allocation5 + $0x25c0] sm:$0xff]
    %v1432 = vld [vmem:[#allocation5 + $0x25c8] sm:$0xff]
    %v1433 = vld [vmem:[#allocation5 + $0x25d0] sm:$0xff]
    %v1434 = vld [vmem:[#allocation5 + $0x25d8] sm:$0xff]
    %v1435 = vld [vmem:[#allocation5 + $0x25e0] sm:$0xff]
    %v1436 = vld [vmem:[#allocation5 + $0x25e8] sm:$0xff]
    %v1437 = vld [vmem:[#allocation5 + $0x25f0] sm:$0xff]
    %v1438 = vld [vmem:[#allocation5 + $0x25f8] sm:$0xff]
    %v1439 = vld [vmem:[#allocation5 + $0x2600] sm:$0xff]
    %v1440 = vld [vmem:[#allocation5 + $0x2608] sm:$0xff]
    %v1441 = vld [vmem:[#allocation5 + $0x2610] sm:$0xff]
    %v1442 = vld [vmem:[#allocation5 + $0x2618] sm:$0xff]
    %v1443 = vld [vmem:[#allocation5 + $0x2620] sm:$0xff]
    %v1444 = vld [vmem:[#allocation5 + $0x2628] sm:$0xff]
    %v1445 = vld [vmem:[#allocation5 + $0x2630] sm:$0xff]
    %v1446 = vld [vmem:[#allocation5 + $0x2638] sm:$0xff]
    %v1447 = vld [vmem:[#allocation5 + $0x2640] sm:$0xff]
    %v1448 = vld [vmem:[#allocation5 + $0x2648] sm:$0xff]
    %v1449 = vld [vmem:[#allocation5 + $0x2650] sm:$0xff]
    %v1450 = vld [vmem:[#allocation5 + $0x2658] sm:$0xff]
    %v1451 = vld [vmem:[#allocation5 + $0x2660] sm:$0xff]
    %v1452 = vld [vmem:[#allocation5 + $0x2668] sm:$0xff]
    %v1453 = vld [vmem:[#allocation5 + $0x2670] sm:$0xff]
    %v1454 = vld [vmem:[#allocation5 + $0x2678] sm:$0xff]
    %v1455 = vld [vmem:[#allocation5 + $0x2680] sm:$0xff]
    %v1456 = vld [vmem:[#allocation5 + $0x2688] sm:$0xff]
    %v1457 = vld [vmem:[#allocation5 + $0x2690] sm:$0xff]
    %v1458 = vld [vmem:[#allocation5 + $0x2698] sm:$0xff]
    %v1459 = vld [vmem:[#allocation5 + $0x26a0] sm:$0xff]
    %v1460 = vld [vmem:[#allocation5 + $0x26a8] sm:$0xff]
    %v1461 = vld [vmem:[#allocation5 + $0x26b0] sm:$0xff]
    %v1462 = vld [vmem:[#allocation5 + $0x26b8] sm:$0xff]
    %v1463 = vld [vmem:[#allocation5 + $0x26c0] sm:$0xff]
    %v1464 = vld [vmem:[#allocation5 + $0x26c8] sm:$0xff]
    %v1465 = vld [vmem:[#allocation5 + $0x26d0] sm:$0xff]
    %v1466 = vld [vmem:[#allocation5 + $0x26d8] sm:$0xff]
    %v1467 = vld [vmem:[#allocation5 + $0x26e0] sm:$0xff]
    %v1468 = vld [vmem:[#allocation5 + $0x26e8] sm:$0xff]
    %v1469 = vld [vmem:[#allocation5 + $0x26f0] sm:$0xff]
    %v1470 = vld [vmem:[#allocation5 + $0x26f8] sm:$0xff]
    %v1471 = vld [vmem:[#allocation5 + $0x2700] sm:$0xff]
    %v1472 = vld [vmem:[#allocation5 + $0x2708] sm:$0xff]
    %v1473 = vld [vmem:[#allocation5 + $0x2710] sm:$0xff]
    %v1474 = vld [vmem:[#allocation5 + $0x2718] sm:$0xff]
    %v1475 = vld [vmem:[#allocation5 + $0x2720] sm:$0xff]
    %v1476 = vld [vmem:[#allocation5 + $0x2728] sm:$0xff]
    %v1477 = vld [vmem:[#allocation5 + $0x2730] sm:$0xff]
    %v1478 = vld [vmem:[#allocation5 + $0x2738] sm:$0xff]
    %v1479 = vld [vmem:[#allocation5 + $0x2740] sm:$0xff]
    %v1480 = vld [vmem:[#allocation5 + $0x2748] sm:$0xff]
    %v1481 = vld [vmem:[#allocation5 + $0x2750] sm:$0xff]
    %v1482 = vld [vmem:[#allocation5 + $0x2758] sm:$0xff]
    %v1483 = vld [vmem:[#allocation5 + $0x2760] sm:$0xff]
    %v1484 = vld [vmem:[#allocation5 + $0x2768] sm:$0xff]
    %v1485 = vld [vmem:[#allocation5 + $0x2770] sm:$0xff]
    %v1486 = vld [vmem:[#allocation5 + $0x2778] sm:$0xff]
    %v1487 = vld [vmem:[#allocation5 + $0x2780] sm:$0xff]
    %v1488 = vld [vmem:[#allocation5 + $0x2788] sm:$0xff]
    %v1489 = vld [vmem:[#allocation5 + $0x2790] sm:$0xff]
    %v1490 = vld [vmem:[#allocation5 + $0x2798] sm:$0xff]
    %v1491 = vld [vmem:[#allocation5 + $0x27a0] sm:$0xff]
    %v1492 = vld [vmem:[#allocation5 + $0x27a8] sm:$0xff]
    %v1493 = vld [vmem:[#allocation5 + $0x27b0] sm:$0xff]
    %v1494 = vld [vmem:[#allocation5 + $0x27b8] sm:$0xff]
    %v1495 = vld [vmem:[#allocation5 + $0x27c0] sm:$0xff]
    %v1496 = vld [vmem:[#allocation5 + $0x27c8] sm:$0xff]
    %v1497 = vld [vmem:[#allocation5 + $0x27d0] sm:$0xff]
    %v1498 = vld [vmem:[#allocation5 + $0x27d8] sm:$0xff]
    %v1499 = vld [vmem:[#allocation5 + $0x27e0] sm:$0xff]
    %v1500 = vld [vmem:[#allocation5 + $0x27e8] sm:$0xff]
    %v1501 = vld [vmem:[#allocation5 + $0x27f0] sm:$0xff]
    %v1502 = vld [vmem:[#allocation5 + $0x27f8] sm:$0xff]
    %v1503 = vld [vmem:[#allocation5 + $0x2800] sm:$0xff]
    %v1504 = vld [vmem:[#allocation5 + $0x2808] sm:$0xff]
    %v1505 = vld [vmem:[#allocation5 + $0x2810] sm:$0xff]
    %v1506 = vld [vmem:[#allocation5 + $0x2818] sm:$0xff]
    %v1507 = vld [vmem:[#allocation5 + $0x2820] sm:$0xff]
    %v1508 = vld [vmem:[#allocation5 + $0x2828] sm:$0xff]
    %v1509 = vld [vmem:[#allocation5 + $0x2830] sm:$0xff]
    %v1510 = vld [vmem:[#allocation5 + $0x2838] sm:$0xff]
    %v1511 = vld [vmem:[#allocation5 + $0x2840] sm:$0xff]
    %v1512 = vld [vmem:[#allocation5 + $0x2848] sm:$0xff]
    %v1513 = vld [vmem:[#allocation5 + $0x2850] sm:$0xff]
    %v1514 = vld [vmem:[#allocation5 + $0x2858] sm:$0xff]
    %v1515 = vld [vmem:[#allocation5 + $0x2860] sm:$0xff]
    %v1516 = vld [vmem:[#allocation5 + $0x2868] sm:$0xff]
    %v1517 = vld [vmem:[#allocation5 + $0x2870] sm:$0xff]
    %v1518 = vld [vmem:[#allocation5 + $0x2878] sm:$0xff]
    %v1519 = vld [vmem:[#allocation5 + $0x2880] sm:$0xff]
    %v1520 = vld [vmem:[#allocation5 + $0x2888] sm:$0xff]
    %v1521 = vld [vmem:[#allocation5 + $0x2890] sm:$0xff]
    %v1522 = vld [vmem:[#allocation5 + $0x2898] sm:$0xff]
    %v1523 = vld [vmem:[#allocation5 + $0x28a0] sm:$0xff]
    %v1524 = vld [vmem:[#allocation5 + $0x28a8] sm:$0xff]
    %v1525 = vld [vmem:[#allocation5 + $0x28b0] sm:$0xff]
    %v1526 = vld [vmem:[#allocation5 + $0x28b8] sm:$0xff]
    %v1527 = vld [vmem:[#allocation5 + $0x28c0] sm:$0xff]
    %v1528 = vld [vmem:[#allocation5 + $0x28c8] sm:$0xff]
    %v1529 = vld [vmem:[#allocation5 + $0x28d0] sm:$0xff]
    %v1530 = vld [vmem:[#allocation5 + $0x28d8] sm:$0xff]
    %v1531 = vld [vmem:[#allocation5 + $0x28e0] sm:$0xff]
    %v1532 = vld [vmem:[#allocation5 + $0x28e8] sm:$0xff]
    %v1533 = vld [vmem:[#allocation5 + $0x28f0] sm:$0xff]
    %v1534 = vld [vmem:[#allocation5 + $0x28f8] sm:$0xff]
    %v1535 = vld [vmem:[#allocation5 + $0x2900] sm:$0xff]
    %v1536 = vld [vmem:[#allocation5 + $0x2908] sm:$0xff]
    %v1537 = vld [vmem:[#allocation5 + $0x2910] sm:$0xff]
    %v1538 = vld [vmem:[#allocation5 + $0x2918] sm:$0xff]
    %v1539 = vld [vmem:[#allocation5 + $0x2920] sm:$0xff]
    %v1540 = vld [vmem:[#allocation5 + $0x2928] sm:$0xff]
    %v1541 = vld [vmem:[#allocation5 + $0x2930] sm:$0xff]
    %v1542 = vld [vmem:[#allocation5 + $0x2938] sm:$0xff]
    %v1543 = vld [vmem:[#allocation5 + $0x2940] sm:$0xff]
    %v1544 = vld [vmem:[#allocation5 + $0x2948] sm:$0xff]
    %v1545 = vld [vmem:[#allocation5 + $0x2950] sm:$0xff]
    %v1546 = vld [vmem:[#allocation5 + $0x2958] sm:$0xff]
    %v1547 = vld [vmem:[#allocation5 + $0x2960] sm:$0xff]
    %v1548 = vld [vmem:[#allocation5 + $0x2968] sm:$0xff]
    %v1549 = vld [vmem:[#allocation5 + $0x2970] sm:$0xff]
    %v1550 = vld [vmem:[#allocation5 + $0x2978] sm:$0xff]
    %v1551 = vld [vmem:[#allocation5 + $0x2980] sm:$0xff]
    %v1552 = vld [vmem:[#allocation5 + $0x2988] sm:$0xff]
    %v1553 = vld [vmem:[#allocation5 + $0x2990] sm:$0xff]
    %v1554 = vld [vmem:[#allocation5 + $0x2998] sm:$0xff]
    %v1555 = vld [vmem:[#allocation5 + $0x29a0] sm:$0xff]
    %v1556 = vld [vmem:[#allocation5 + $0x29a8] sm:$0xff]
    %v1557 = vld [vmem:[#allocation5 + $0x29b0] sm:$0xff]
    %v1558 = vld [vmem:[#allocation5 + $0x29b8] sm:$0xff]
    %v1559 = vld [vmem:[#allocation5 + $0x29c0] sm:$0xff]
    %v1560 = vld [vmem:[#allocation5 + $0x29c8] sm:$0xff]
    %v1561 = vld [vmem:[#allocation5 + $0x29d0] sm:$0xff]
    %v1562 = vld [vmem:[#allocation5 + $0x29d8] sm:$0xff]
    %v1563 = vld [vmem:[#allocation5 + $0x29e0] sm:$0xff]
    %v1564 = vld [vmem:[#allocation5 + $0x29e8] sm:$0xff]
    %v1565 = vld [vmem:[#allocation5 + $0x29f0] sm:$0xff]
    %v1566 = vld [vmem:[#allocation5 + $0x29f8] sm:$0xff]
    %v1567 = vld [vmem:[#allocation5 + $0x2a00] sm:$0xff]
    %v1568 = vld [vmem:[#allocation5 + $0x2a08] sm:$0xff]
    %v1569 = vld [vmem:[#allocation5 + $0x2a10] sm:$0xff]
    %v1570 = vld [vmem:[#allocation5 + $0x2a18] sm:$0xff]
    %v1571 = vld [vmem:[#allocation5 + $0x2a20] sm:$0xff]
    %v1572 = vld [vmem:[#allocation5 + $0x2a28] sm:$0xff]
    %v1573 = vld [vmem:[#allocation5 + $0x2a30] sm:$0xff]
    %v1574 = vld [vmem:[#allocation5 + $0x2a38] sm:$0xff]
    %v1575 = vld [vmem:[#allocation5 + $0x2a40] sm:$0xff]
    %v1576 = vld [vmem:[#allocation5 + $0x2a48] sm:$0xff]
    %v1577 = vld [vmem:[#allocation5 + $0x2a50] sm:$0xff]
    %v1578 = vld [vmem:[#allocation5 + $0x2a58] sm:$0xff]
    %v1579 = vld [vmem:[#allocation5 + $0x2a60] sm:$0xff]
    %v1580 = vld [vmem:[#allocation5 + $0x2a68] sm:$0xff]
    %v1581 = vld [vmem:[#allocation5 + $0x2a70] sm:$0xff]
    %v1582 = vld [vmem:[#allocation5 + $0x2a78] sm:$0xff]
    %v1583 = vld [vmem:[#allocation5 + $0x2a80] sm:$0xff]
    %v1584 = vld [vmem:[#allocation5 + $0x2a88] sm:$0xff]
    %v1585 = vld [vmem:[#allocation5 + $0x2a90] sm:$0xff]
    %v1586 = vld [vmem:[#allocation5 + $0x2a98] sm:$0xff]
    %v1587 = vld [vmem:[#allocation5 + $0x2aa0] sm:$0xff]
    %v1588 = vld [vmem:[#allocation5 + $0x2aa8] sm:$0xff]
    %v1589 = vld [vmem:[#allocation5 + $0x2ab0] sm:$0xff]
    %v1590 = vld [vmem:[#allocation5 + $0x2ab8] sm:$0xff]
    %v1591 = vld [vmem:[#allocation5 + $0x2ac0] sm:$0xff]
    %v1592 = vld [vmem:[#allocation5 + $0x2ac8] sm:$0xff]
    %v1593 = vld [vmem:[#allocation5 + $0x2ad0] sm:$0xff]
    %v1594 = vld [vmem:[#allocation5 + $0x2ad8] sm:$0xff]
    %v1595 = vld [vmem:[#allocation5 + $0x2ae0] sm:$0xff]
    %v1596 = vld [vmem:[#allocation5 + $0x2ae8] sm:$0xff]
    %v1597 = vld [vmem:[#allocation5 + $0x2af0] sm:$0xff]
    %v1598 = vld [vmem:[#allocation5 + $0x2af8] sm:$0xff]
    %v1599 = vld [vmem:[#allocation5 + $0x2b00] sm:$0xff]
    %v1600 = vld [vmem:[#allocation5 + $0x2b08] sm:$0xff]
    %v1601 = vld [vmem:[#allocation5 + $0x2b10] sm:$0xff]
    %v1602 = vld [vmem:[#allocation5 + $0x2b18] sm:$0xff]
    %v1603 = vld [vmem:[#allocation5 + $0x2b20] sm:$0xff]
    %v1604 = vld [vmem:[#allocation5 + $0x2b28] sm:$0xff]
    %v1605 = vld [vmem:[#allocation5 + $0x2b30] sm:$0xff]
    %v1606 = vld [vmem:[#allocation5 + $0x2b38] sm:$0xff]
    %v1607 = vld [vmem:[#allocation5 + $0x2b40] sm:$0xff]
    %v1608 = vld [vmem:[#allocation5 + $0x2b48] sm:$0xff]
    %v1609 = vld [vmem:[#allocation5 + $0x2b50] sm:$0xff]
    %v1610 = vld [vmem:[#allocation5 + $0x2b58] sm:$0xff]
    %v1611 = vld [vmem:[#allocation5 + $0x2b60] sm:$0xff]
    %v1612 = vld [vmem:[#allocation5 + $0x2b68] sm:$0xff]
    %v1613 = vld [vmem:[#allocation5 + $0x2b70] sm:$0xff]
    %v1614 = vld [vmem:[#allocation5 + $0x2b78] sm:$0xff]
    %v1615 = vld [vmem:[#allocation5 + $0x2b80] sm:$0xff]
    %v1616 = vld [vmem:[#allocation5 + $0x2b88] sm:$0xff]
    %v1617 = vld [vmem:[#allocation5 + $0x2b90] sm:$0xff]
    %v1618 = vld [vmem:[#allocation5 + $0x2b98] sm:$0xff]
    %v1619 = vld [vmem:[#allocation5 + $0x2ba0] sm:$0xff]
    %v1620 = vld [vmem:[#allocation5 + $0x2ba8] sm:$0xff]
    %v1621 = vld [vmem:[#allocation5 + $0x2bb0] sm:$0xff]
    %v1622 = vld [vmem:[#allocation5 + $0x2bb8] sm:$0xff]
    %v1623 = vld [vmem:[#allocation5 + $0x2bc0] sm:$0xff]
    %v1624 = vld [vmem:[#allocation5 + $0x2bc8] sm:$0xff]
    %v1625 = vld [vmem:[#allocation5 + $0x2bd0] sm:$0xff]
    %v1626 = vld [vmem:[#allocation5 + $0x2bd8] sm:$0xff]
    %v1627 = vld [vmem:[#allocation5 + $0x2be0] sm:$0xff]
    %v1628 = vld [vmem:[#allocation5 + $0x2be8] sm:$0xff]
    %v1629 = vld [vmem:[#allocation5 + $0x2bf0] sm:$0xff]
    %v1630 = vld [vmem:[#allocation5 + $0x2bf8] sm:$0xff]
    %v1631 = vld [vmem:[#allocation5 + $0x2c00] sm:$0xff]
    %v1632 = vld [vmem:[#allocation5 + $0x2c08] sm:$0xff]
    %v1633 = vld [vmem:[#allocation5 + $0x2c10] sm:$0xff]
    %v1634 = vld [vmem:[#allocation5 + $0x2c18] sm:$0xff]
    %v1635 = vld [vmem:[#allocation5 + $0x2c20] sm:$0xff]
    %v1636 = vld [vmem:[#allocation5 + $0x2c28] sm:$0xff]
    %v1637 = vld [vmem:[#allocation5 + $0x2c30] sm:$0xff]
    %v1638 = vld [vmem:[#allocation5 + $0x2c38] sm:$0xff]
    %v1639 = vld [vmem:[#allocation5 + $0x2c40] sm:$0xff]
    %v1640 = vld [vmem:[#allocation5 + $0x2c48] sm:$0xff]
    %v1641 = vld [vmem:[#allocation5 + $0x2c50] sm:$0xff]
    %v1642 = vld [vmem:[#allocation5 + $0x2c58] sm:$0xff]
    %v1643 = vld [vmem:[#allocation5 + $0x2c60] sm:$0xff]
    %v1644 = vld [vmem:[#allocation5 + $0x2c68] sm:$0xff]
    %v1645 = vld [vmem:[#allocation5 + $0x2c70] sm:$0xff]
    %v1646 = vld [vmem:[#allocation5 + $0x2c78] sm:$0xff]
    %v1647 = vld [vmem:[#allocation5 + $0x2c80] sm:$0xff]
    %v1648 = vld [vmem:[#allocation5 + $0x2c88] sm:$0xff]
    %v1649 = vld [vmem:[#allocation5 + $0x2c90] sm:$0xff]
    %v1650 = vld [vmem:[#allocation5 + $0x2c98] sm:$0xff]
    %v1651 = vld [vmem:[#allocation5 + $0x2ca0] sm:$0xff]
    %v1652 = vld [vmem:[#allocation5 + $0x2ca8] sm:$0xff]
    %v1653 = vld [vmem:[#allocation5 + $0x2cb0] sm:$0xff]
    %v1654 = vld [vmem:[#allocation5 + $0x2cb8] sm:$0xff]
    %v1655 = vld [vmem:[#allocation5 + $0x2cc0] sm:$0xff]
    %v1656 = vld [vmem:[#allocation5 + $0x2cc8] sm:$0xff]
    %v1657 = vld [vmem:[#allocation5 + $0x2cd0] sm:$0xff]
    %v1658 = vld [vmem:[#allocation5 + $0x2cd8] sm:$0xff]
    %v1659 = vld [vmem:[#allocation5 + $0x2ce0] sm:$0xff]
    %v1660 = vld [vmem:[#allocation5 + $0x2ce8] sm:$0xff]
    %v1661 = vld [vmem:[#allocation5 + $0x2cf0] sm:$0xff]
    %v1662 = vld [vmem:[#allocation5 + $0x2cf8] sm:$0xff]
    %v1663 = vld [vmem:[#allocation5 + $0x2d00] sm:$0xff]
    %v1664 = vld [vmem:[#allocation5 + $0x2d08] sm:$0xff]
    %v1665 = vld [vmem:[#allocation5 + $0x2d10] sm:$0xff]
    %v1666 = vld [vmem:[#allocation5 + $0x2d18] sm:$0xff]
    %v1667 = vld [vmem:[#allocation5 + $0x2d20] sm:$0xff]
    %v1668 = vld [vmem:[#allocation5 + $0x2d28] sm:$0xff]
    %v1669 = vld [vmem:[#allocation5 + $0x2d30] sm:$0xff]
    %v1670 = vld [vmem:[#allocation5 + $0x2d38] sm:$0xff]
    %v1671 = vld [vmem:[#allocation5 + $0x2d40] sm:$0xff]
    %v1672 = vld [vmem:[#allocation5 + $0x2d48] sm:$0xff]
    %v1673 = vld [vmem:[#allocation5 + $0x2d50] sm:$0xff]
    %v1674 = vld [vmem:[#allocation5 + $0x2d58] sm:$0xff]
    %v1675 = vld [vmem:[#allocation5 + $0x2d60] sm:$0xff]
    %v1676 = vld [vmem:[#allocation5 + $0x2d68] sm:$0xff]
    %v1677 = vld [vmem:[#allocation5 + $0x2d70] sm:$0xff]
    %v1678 = vld [vmem:[#allocation5 + $0x2d78] sm:$0xff]
    %v1679 = vld [vmem:[#allocation5 + $0x2d80] sm:$0xff]
    %v1680 = vld [vmem:[#allocation5 + $0x2d88] sm:$0xff]
    %v1681 = vld [vmem:[#allocation5 + $0x2d90] sm:$0xff]
    %v1682 = vld [vmem:[#allocation5 + $0x2d98] sm:$0xff]
    %v1683 = vld [vmem:[#allocation5 + $0x2da0] sm:$0xff]
    %v1684 = vld [vmem:[#allocation5 + $0x2da8] sm:$0xff]
    %v1685 = vld [vmem:[#allocation5 + $0x2db0] sm:$0xff]
    %v1686 = vld [vmem:[#allocation5 + $0x2db8] sm:$0xff]
    %v1687 = vld [vmem:[#allocation5 + $0x2dc0] sm:$0xff]
    %v1688 = vld [vmem:[#allocation5 + $0x2dc8] sm:$0xff]
    %v1689 = vld [vmem:[#allocation5 + $0x2dd0] sm:$0xff]
    %v1690 = vld [vmem:[#allocation5 + $0x2dd8] sm:$0xff]
    %v1691 = vld [vmem:[#allocation5 + $0x2de0] sm:$0xff]
    %v1692 = vld [vmem:[#allocation5 + $0x2de8] sm:$0xff]
    %v1693 = vld [vmem:[#allocation5 + $0x2df0] sm:$0xff]
    %v1694 = vld [vmem:[#allocation5 + $0x2df8] sm:$0xff]
    %v1695 = vld [vmem:[#allocation5 + $0x2e00] sm:$0xff]
    %v1696 = vld [vmem:[#allocation5 + $0x2e08] sm:$0xff]
    %v1697 = vld [vmem:[#allocation5 + $0x2e10] sm:$0xff]
    %v1698 = vld [vmem:[#allocation5 + $0x2e18] sm:$0xff]
    %v1699 = vld [vmem:[#allocation5 + $0x2e20] sm:$0xff]
    %v1700 = vld [vmem:[#allocation5 + $0x2e28] sm:$0xff]
    %v1701 = vld [vmem:[#allocation5 + $0x2e30] sm:$0xff]
    %v1702 = vld [vmem:[#allocation5 + $0x2e38] sm:$0xff]
    %v1703 = vld [vmem:[#allocation5 + $0x2e40] sm:$0xff]
    %v1704 = vld [vmem:[#allocation5 + $0x2e48] sm:$0xff]
    %v1705 = vld [vmem:[#allocation5 + $0x2e50] sm:$0xff]
    %v1706 = vld [vmem:[#allocation5 + $0x2e58] sm:$0xff]
    %v1707 = vld [vmem:[#allocation5 + $0x2e60] sm:$0xff]
    %v1708 = vld [vmem:[#allocation5 + $0x2e68] sm:$0xff]
    %v1709 = vld [vmem:[#allocation5 + $0x2e70] sm:$0xff]
    %v1710 = vld [vmem:[#allocation5 + $0x2e78] sm:$0xff]
    %v1711 = vld [vmem:[#allocation5 + $0x2e80] sm:$0xff]
    %v1712 = vld [vmem:[#allocation5 + $0x2e88] sm:$0xff]
    %v1713 = vld [vmem:[#allocation5 + $0x2e90] sm:$0xff]
    %v1714 = vld [vmem:[#allocation5 + $0x2e98] sm:$0xff]
    %v1715 = vld [vmem:[#allocation5 + $0x2ea0] sm:$0xff]
    %v1716 = vld [vmem:[#allocation5 + $0x2ea8] sm:$0xff]
    %v1717 = vld [vmem:[#allocation5 + $0x2eb0] sm:$0xff]
    %v1718 = vld [vmem:[#allocation5 + $0x2eb8] sm:$0xff]
    %v1719 = vld [vmem:[#allocation5 + $0x2ec0] sm:$0xff]
    %v1720 = vld [vmem:[#allocation5 + $0x2ec8] sm:$0xff]
    %v1721 = vld [vmem:[#allocation5 + $0x2ed0] sm:$0xff]
    %v1722 = vld [vmem:[#allocation5 + $0x2ed8] sm:$0xff]
    %v1723 = vld [vmem:[#allocation5 + $0x2ee0] sm:$0xff]
    %v1724 = vld [vmem:[#allocation5 + $0x2ee8] sm:$0xff]
    %v1725 = vld [vmem:[#allocation5 + $0x2ef0] sm:$0xff]
    %v1726 = vld [vmem:[#allocation5 + $0x2ef8] sm:$0xff]
    %v1727 = vld [vmem:[#allocation5 + $0x2f00] sm:$0xff]
    %v1728 = vld [vmem:[#allocation5 + $0x2f08] sm:$0xff]
    %v1729 = vld [vmem:[#allocation5 + $0x2f10] sm:$0xff]
    %v1730 = vld [vmem:[#allocation5 + $0x2f18] sm:$0xff]
    %v1731 = vld [vmem:[#allocation5 + $0x2f20] sm:$0xff]
    %v1732 = vld [vmem:[#allocation5 + $0x2f28] sm:$0xff]
    %v1733 = vld [vmem:[#allocation5 + $0x2f30] sm:$0xff]
    %v1734 = vld [vmem:[#allocation5 + $0x2f38] sm:$0xff]
    %v1735 = vld [vmem:[#allocation5 + $0x2f40] sm:$0xff]
    %v1736 = vld [vmem:[#allocation5 + $0x2f48] sm:$0xff]
    %v1737 = vld [vmem:[#allocation5 + $0x2f50] sm:$0xff]
    %v1738 = vld [vmem:[#allocation5 + $0x2f58] sm:$0xff]
    %v1739 = vld [vmem:[#allocation5 + $0x2f60] sm:$0xff]
    %v1740 = vld [vmem:[#allocation5 + $0x2f68] sm:$0xff]
    %v1741 = vld [vmem:[#allocation5 + $0x2f70] sm:$0xff]
    %v1742 = vld [vmem:[#allocation5 + $0x2f78] sm:$0xff]
    %v1743 = vld [vmem:[#allocation5 + $0x2f80] sm:$0xff]
    %v1744 = vld [vmem:[#allocation5 + $0x2f88] sm:$0xff]
    %v1745 = vld [vmem:[#allocation5 + $0x2f90] sm:$0xff]
    %v1746 = vld [vmem:[#allocation5 + $0x2f98] sm:$0xff]
    %v1747 = vld [vmem:[#allocation5 + $0x2fa0] sm:$0xff]
    %v1748 = vld [vmem:[#allocation5 + $0x2fa8] sm:$0xff]
    %v1749 = vld [vmem:[#allocation5 + $0x2fb0] sm:$0xff]
    %v1750 = vld [vmem:[#allocation5 + $0x2fb8] sm:$0xff]
    %v1751 = vld [vmem:[#allocation5 + $0x2fc0] sm:$0xff]
    %v1752 = vld [vmem:[#allocation5 + $0x2fc8] sm:$0xff]
    %v1753 = vld [vmem:[#allocation5 + $0x2fd0] sm:$0xff]
    %v1754 = vld [vmem:[#allocation5 + $0x2fd8] sm:$0xff]
    %v1755 = vld [vmem:[#allocation5 + $0x2fe0] sm:$0xff]
    %v1756 = vld [vmem:[#allocation5 + $0x2fe8] sm:$0xff]
    %v1757 = vld [vmem:[#allocation5 + $0x2ff0] sm:$0xff]
    %v1758 = vld [vmem:[#allocation5 + $0x2ff8] sm:$0xff]
    %v1759 = vld [vmem:[#allocation5 + $0x3000] sm:$0xff]
    %v1760 = vld [vmem:[#allocation5 + $0x3008] sm:$0xff]
    %v1761 = vld [vmem:[#allocation5 + $0x3010] sm:$0xff]
    %v1762 = vld [vmem:[#allocation5 + $0x3018] sm:$0xff]
    %v1763 = vld [vmem:[#allocation5 + $0x3020] sm:$0xff]
    %v1764 = vld [vmem:[#allocation5 + $0x3028] sm:$0xff]
    %v1765 = vld [vmem:[#allocation5 + $0x3030] sm:$0xff]
    %v1766 = vld [vmem:[#allocation5 + $0x3038] sm:$0xff]
    %v1767 = vld [vmem:[#allocation5 + $0x3040] sm:$0xff]
    %v1768 = vld [vmem:[#allocation5 + $0x3048] sm:$0xff]
    %v1769 = vld [vmem:[#allocation5 + $0x3050] sm:$0xff]
    %v1770 = vld [vmem:[#allocation5 + $0x3058] sm:$0xff]
    %v1771 = vld [vmem:[#allocation5 + $0x3060] sm:$0xff]
    %v1772 = vld [vmem:[#allocation5 + $0x3068] sm:$0xff]
    %v1773 = vld [vmem:[#allocation5 + $0x3070] sm:$0xff]
    %v1774 = vld [vmem:[#allocation5 + $0x3078] sm:$0xff]
    %v1775 = vld [vmem:[#allocation5 + $0x3080] sm:$0xff]
    %v1776 = vld [vmem:[#allocation5 + $0x3088] sm:$0xff]
    %v1777 = vld [vmem:[#allocation5 + $0x3090] sm:$0xff]
    %v1778 = vld [vmem:[#allocation5 + $0x3098] sm:$0xff]
    %v1779 = vld [vmem:[#allocation5 + $0x30a0] sm:$0xff]
    %v1780 = vld [vmem:[#allocation5 + $0x30a8] sm:$0xff]
    %v1781 = vld [vmem:[#allocation5 + $0x30b0] sm:$0xff]
    %v1782 = vld [vmem:[#allocation5 + $0x30b8] sm:$0xff]
    %v1783 = vld [vmem:[#allocation5 + $0x30c0] sm:$0xff]
    %v1784 = vld [vmem:[#allocation5 + $0x30c8] sm:$0xff]
    %v1785 = vld [vmem:[#allocation5 + $0x30d0] sm:$0xff]
    %v1786 = vld [vmem:[#allocation5 + $0x30d8] sm:$0xff]
    %v1787 = vld [vmem:[#allocation5 + $0x30e0] sm:$0xff]
    %v1788 = vld [vmem:[#allocation5 + $0x30e8] sm:$0xff]
    %v1789 = vld [vmem:[#allocation5 + $0x30f0] sm:$0xff]
    %v1790 = vld [vmem:[#allocation5 + $0x30f8] sm:$0xff]
    %v1791 = vld [vmem:[#allocation5 + $0x3100] sm:$0xff]
    %v1792 = vld [vmem:[#allocation5 + $0x3108] sm:$0xff]
    %v1793 = vld [vmem:[#allocation5 + $0x3110] sm:$0xff]
    %v1794 = vld [vmem:[#allocation5 + $0x3118] sm:$0xff]
    %v1795 = vld [vmem:[#allocation5 + $0x3120] sm:$0xff]
    %v1796 = vld [vmem:[#allocation5 + $0x3128] sm:$0xff]
    %v1797 = vld [vmem:[#allocation5 + $0x3130] sm:$0xff]
    %v1798 = vld [vmem:[#allocation5 + $0x3138] sm:$0xff]
    %v1799 = vld [vmem:[#allocation5 + $0x3140] sm:$0xff]
    %v1800 = vld [vmem:[#allocation5 + $0x3148] sm:$0xff]
    %v1801 = vld [vmem:[#allocation5 + $0x3150] sm:$0xff]
    %v1802 = vld [vmem:[#allocation5 + $0x3158] sm:$0xff]
    %v1803 = vld [vmem:[#allocation5 + $0x3160] sm:$0xff]
    %v1804 = vld [vmem:[#allocation5 + $0x3168] sm:$0xff]
    %v1805 = vld [vmem:[#allocation5 + $0x3170] sm:$0xff]
    %v1806 = vld [vmem:[#allocation5 + $0x3178] sm:$0xff]
    %v1807 = vld [vmem:[#allocation5 + $0x3180] sm:$0xff]
    %v1808 = vld [vmem:[#allocation5 + $0x3188] sm:$0xff]
    %v1809 = vld [vmem:[#allocation5 + $0x3190] sm:$0xff]
    %v1810 = vld [vmem:[#allocation5 + $0x3198] sm:$0xff]
    %v1811 = vld [vmem:[#allocation5 + $0x31a0] sm:$0xff]
    %v1812 = vld [vmem:[#allocation5 + $0x31a8] sm:$0xff]
    %v1813 = vld [vmem:[#allocation5 + $0x31b0] sm:$0xff]
    %v1814 = vld [vmem:[#allocation5 + $0x31b8] sm:$0xff]
    %v1815 = vld [vmem:[#allocation5 + $0x31c0] sm:$0xff]
    %v1816 = vld [vmem:[#allocation5 + $0x31c8] sm:$0xff]
    %v1817 = vld [vmem:[#allocation5 + $0x31d0] sm:$0xff]
    %v1818 = vld [vmem:[#allocation5 + $0x31d8] sm:$0xff]
    %v1819 = vld [vmem:[#allocation5 + $0x31e0] sm:$0xff]
    %v1820 = vld [vmem:[#allocation5 + $0x31e8] sm:$0xff]
    %v1821 = vld [vmem:[#allocation5 + $0x31f0] sm:$0xff]
    %v1822 = vld [vmem:[#allocation5 + $0x31f8] sm:$0xff]
    %v1823 = vld [vmem:[#allocation5 + $0x3200] sm:$0xff]
    %v1824 = vld [vmem:[#allocation5 + $0x3208] sm:$0xff]
    %v1825 = vld [vmem:[#allocation5 + $0x3210] sm:$0xff]
    %v1826 = vld [vmem:[#allocation5 + $0x3218] sm:$0xff]
    %v1827 = vld [vmem:[#allocation5 + $0x3220] sm:$0xff]
    %v1828 = vld [vmem:[#allocation5 + $0x3228] sm:$0xff]
    %v1829 = vld [vmem:[#allocation5 + $0x3230] sm:$0xff]
    %v1830 = vld [vmem:[#allocation5 + $0x3238] sm:$0xff]
    %v1831 = vld [vmem:[#allocation5 + $0x3240] sm:$0xff]
    %v1832 = vld [vmem:[#allocation5 + $0x3248] sm:$0xff]
    %v1833 = vld [vmem:[#allocation5 + $0x3250] sm:$0xff]
    %v1834 = vld [vmem:[#allocation5 + $0x3258] sm:$0xff]
    %v1835 = vld [vmem:[#allocation5 + $0x3260] sm:$0xff]
    %v1836 = vld [vmem:[#allocation5 + $0x3268] sm:$0xff]
    %v1837 = vld [vmem:[#allocation5 + $0x3270] sm:$0xff]
    %v1838 = vld [vmem:[#allocation5 + $0x3278] sm:$0xff]
    %v1839 = vld [vmem:[#allocation5 + $0x3280] sm:$0xff]
    %v1840 = vld [vmem:[#allocation5 + $0x3288] sm:$0xff]
    %v1841 = vld [vmem:[#allocation5 + $0x3290] sm:$0xff]
    %v1842 = vld [vmem:[#allocation5 + $0x3298] sm:$0xff]
    %v1843 = vld [vmem:[#allocation5 + $0x32a0] sm:$0xff]
    %v1844 = vld [vmem:[#allocation5 + $0x32a8] sm:$0xff]
    %v1845 = vld [vmem:[#allocation5 + $0x32b0] sm:$0xff]
    %v1846 = vld [vmem:[#allocation5 + $0x32b8] sm:$0xff]
    %v1847 = vld [vmem:[#allocation5 + $0x32c0] sm:$0xff]
    %v1848 = vld [vmem:[#allocation5 + $0x32c8] sm:$0xff]
    %v1849 = vld [vmem:[#allocation5 + $0x32d0] sm:$0xff]
    %v1850 = vld [vmem:[#allocation5 + $0x32d8] sm:$0xff]
    %v1851 = vld [vmem:[#allocation5 + $0x32e0] sm:$0xff]
    %v1852 = vld [vmem:[#allocation5 + $0x32e8] sm:$0xff]
    %v1853 = vld [vmem:[#allocation5 + $0x32f0] sm:$0xff]
    %v1854 = vld [vmem:[#allocation5 + $0x32f8] sm:$0xff]
    %v1855 = vld [vmem:[#allocation5 + $0x3300] sm:$0xff]
    %v1856 = vld [vmem:[#allocation5 + $0x3308] sm:$0xff]
    %v1857 = vld [vmem:[#allocation5 + $0x3310] sm:$0xff]
    %v1858 = vld [vmem:[#allocation5 + $0x3318] sm:$0xff]
    %v1859 = vld [vmem:[#allocation5 + $0x3320] sm:$0xff]
    %v1860 = vld [vmem:[#allocation5 + $0x3328] sm:$0xff]
    %v1861 = vld [vmem:[#allocation5 + $0x3330] sm:$0xff]
    %v1862 = vld [vmem:[#allocation5 + $0x3338] sm:$0xff]
    %v1863 = vld [vmem:[#allocation5 + $0x3340] sm:$0xff]
    %v1864 = vld [vmem:[#allocation5 + $0x3348] sm:$0xff]
    %v1865 = vld [vmem:[#allocation5 + $0x3350] sm:$0xff]
    %v1866 = vld [vmem:[#allocation5 + $0x3358] sm:$0xff]
    %v1867 = vld [vmem:[#allocation5 + $0x3360] sm:$0xff]
    %v1868 = vld [vmem:[#allocation5 + $0x3368] sm:$0xff]
    %v1869 = vld [vmem:[#allocation5 + $0x3370] sm:$0xff]
    %v1870 = vld [vmem:[#allocation5 + $0x3378] sm:$0xff]
    %v1871 = vld [vmem:[#allocation5 + $0x3380] sm:$0xff]
    %v1872 = vld [vmem:[#allocation5 + $0x3388] sm:$0xff]
    %v1873 = vld [vmem:[#allocation5 + $0x3390] sm:$0xff]
    %v1874 = vld [vmem:[#allocation5 + $0x3398] sm:$0xff]
    %v1875 = vld [vmem:[#allocation5 + $0x33a0] sm:$0xff]
    %v1876 = vld [vmem:[#allocation5 + $0x33a8] sm:$0xff]
    %v1877 = vld [vmem:[#allocation5 + $0x33b0] sm:$0xff]
    %v1878 = vld [vmem:[#allocation5 + $0x33b8] sm:$0xff]
    %v1879 = vld [vmem:[#allocation5 + $0x33c0] sm:$0xff]
    %v1880 = vld [vmem:[#allocation5 + $0x33c8] sm:$0xff]
    %v1881 = vld [vmem:[#allocation5 + $0x33d0] sm:$0xff]
    %v1882 = vld [vmem:[#allocation5 + $0x33d8] sm:$0xff]
    %v1883 = vld [vmem:[#allocation5 + $0x33e0] sm:$0xff]
    %v1884 = vld [vmem:[#allocation5 + $0x33e8] sm:$0xff]
    %v1885 = vld [vmem:[#allocation5 + $0x33f0] sm:$0xff]
    %v1886 = vld [vmem:[#allocation5 + $0x33f8] sm:$0xff]
    %v1887 = vld [vmem:[#allocation5 + $0x3400] sm:$0xff]
    %v1888 = vld [vmem:[#allocation5 + $0x3408] sm:$0xff]
    %v1889 = vld [vmem:[#allocation5 + $0x3410] sm:$0xff]
    %v1890 = vld [vmem:[#allocation5 + $0x3418] sm:$0xff]
    %v1891 = vld [vmem:[#allocation5 + $0x3420] sm:$0xff]
    %v1892 = vld [vmem:[#allocation5 + $0x3428] sm:$0xff]
    %v1893 = vld [vmem:[#allocation5 + $0x3430] sm:$0xff]
    %v1894 = vld [vmem:[#allocation5 + $0x3438] sm:$0xff]
    %v1895 = vld [vmem:[#allocation5 + $0x3440] sm:$0xff]
    %v1896 = vld [vmem:[#allocation5 + $0x3448] sm:$0xff]
    %v1897 = vld [vmem:[#allocation5 + $0x3450] sm:$0xff]
    %v1898 = vld [vmem:[#allocation5 + $0x3458] sm:$0xff]
    %v1899 = vld [vmem:[#allocation5 + $0x3460] sm:$0xff]
    %v1900 = vld [vmem:[#allocation5 + $0x3468] sm:$0xff]
    %v1901 = vld [vmem:[#allocation5 + $0x3470] sm:$0xff]
    %v1902 = vld [vmem:[#allocation5 + $0x3478] sm:$0xff]
    %v1903 = vld [vmem:[#allocation5 + $0x3480] sm:$0xff]
    %v1904 = vld [vmem:[#allocation5 + $0x3488] sm:$0xff]
    %v1905 = vld [vmem:[#allocation5 + $0x3490] sm:$0xff]
    %v1906 = vld [vmem:[#allocation5 + $0x3498] sm:$0xff]
    %v1907 = vld [vmem:[#allocation5 + $0x34a0] sm:$0xff]
    %v1908 = vld [vmem:[#allocation5 + $0x34a8] sm:$0xff]
    %v1909 = vld [vmem:[#allocation5 + $0x34b0] sm:$0xff]
    %v1910 = vld [vmem:[#allocation5 + $0x34b8] sm:$0xff]
    %v1911 = vld [vmem:[#allocation5 + $0x34c0] sm:$0xff]
    %v1912 = vld [vmem:[#allocation5 + $0x34c8] sm:$0xff]
    %v1913 = vld [vmem:[#allocation5 + $0x34d0] sm:$0xff]
    %v1914 = vld [vmem:[#allocation5 + $0x34d8] sm:$0xff]
    %v1915 = vld [vmem:[#allocation5 + $0x34e0] sm:$0xff]
    %v1916 = vld [vmem:[#allocation5 + $0x34e8] sm:$0xff]
    %v1917 = vld [vmem:[#allocation5 + $0x34f0] sm:$0xff]
    %v1918 = vld [vmem:[#allocation5 + $0x34f8] sm:$0xff]
    %v1919 = vld [vmem:[#allocation5 + $0x3500] sm:$0xff]
    %v1920 = vld [vmem:[#allocation5 + $0x3508] sm:$0xff]
    %v1921 = vld [vmem:[#allocation5 + $0x3510] sm:$0xff]
    %v1922 = vld [vmem:[#allocation5 + $0x3518] sm:$0xff]
    %v1923 = vld [vmem:[#allocation5 + $0x3520] sm:$0xff]
    %v1924 = vld [vmem:[#allocation5 + $0x3528] sm:$0xff]
    %v1925 = vld [vmem:[#allocation5 + $0x3530] sm:$0xff]
    %v1926 = vld [vmem:[#allocation5 + $0x3538] sm:$0xff]
    %v1927 = vld [vmem:[#allocation5 + $0x3540] sm:$0xff]
    %v1928 = vld [vmem:[#allocation5 + $0x3548] sm:$0xff]
    %v1929 = vld [vmem:[#allocation5 + $0x3550] sm:$0xff]
    %v1930 = vld [vmem:[#allocation5 + $0x3558] sm:$0xff]
    %v1931 = vld [vmem:[#allocation5 + $0x3560] sm:$0xff]
    %v1932 = vld [vmem:[#allocation5 + $0x3568] sm:$0xff]
    %v1933 = vld [vmem:[#allocation5 + $0x3570] sm:$0xff]
    %v1934 = vld [vmem:[#allocation5 + $0x3578] sm:$0xff]
    %v1935 = vld [vmem:[#allocation5 + $0x3580] sm:$0xff]
    %v1936 = vld [vmem:[#allocation5 + $0x3588] sm:$0xff]
    %v1937 = vld [vmem:[#allocation5 + $0x3590] sm:$0xff]
    %v1938 = vld [vmem:[#allocation5 + $0x3598] sm:$0xff]
    %v1939 = vld [vmem:[#allocation5 + $0x35a0] sm:$0xff]
    %v1940 = vld [vmem:[#allocation5 + $0x35a8] sm:$0xff]
    %v1941 = vld [vmem:[#allocation5 + $0x35b0] sm:$0xff]
    %v1942 = vld [vmem:[#allocation5 + $0x35b8] sm:$0xff]
    %v1943 = vld [vmem:[#allocation5 + $0x35c0] sm:$0xff]
    %v1944 = vld [vmem:[#allocation5 + $0x35c8] sm:$0xff]
    %v1945 = vld [vmem:[#allocation5 + $0x35d0] sm:$0xff]
    %v1946 = vld [vmem:[#allocation5 + $0x35d8] sm:$0xff]
    %v1947 = vld [vmem:[#allocation5 + $0x35e0] sm:$0xff]
    %v1948 = vld [vmem:[#allocation5 + $0x35e8] sm:$0xff]
    %v1949 = vld [vmem:[#allocation5 + $0x35f0] sm:$0xff]
    %v1950 = vld [vmem:[#allocation5 + $0x35f8] sm:$0xff]
    %v1951 = vld [vmem:[#allocation7] sm:$0xf]
    %v1953 = vlaneseq
    %v1954 = vshrl.u32 %v1953, 7
    %v1955 = vsub.s32 0, %v1954
    %v1956 = vrot.slane %v1951, %v1955
    %v1957 = vlaneseq
    %v1958 = vshrl.u32 %v1957, 7
    %v1959 = vsub.s32 1, %v1958
    %v1960 = vrot.slane %v1951, %v1959
    %v1961 = vlaneseq
    %v1962 = vshrl.u32 %v1961, 7
    %v1963 = vsub.s32 2, %v1962
    %v1964 = vrot.slane %v1951, %v1963
    %v1965 = vlaneseq
    %v1966 = vshrl.u32 %v1965, 7
    %v1967 = vsub.s32 3, %v1966
    %v1968 = vrot.slane %v1951, %v1967
    %v3701 = vunpack.c.l.b16 %v223
    %v3702 = vunpack.c.h.b16 %v223
    %v3703 = vunpack.c.l.b16 %v224
    %v3704 = vunpack.c.h.b16 %v224
    %v3705 = vunpack.c.l.b16 %v225
    %v3706 = vunpack.c.h.b16 %v225
    %v3707 = vunpack.c.l.b16 %v226
    %v3708 = vunpack.c.h.b16 %v226
    %v3709 = vunpack.c.l.b16 %v227
    %v3710 = vunpack.c.h.b16 %v227
    %v3711 = vunpack.c.l.b16 %v228
    %v3712 = vunpack.c.h.b16 %v228
    %v3713 = vunpack.c.l.b16 %v229
    %v3714 = vunpack.c.h.b16 %v229
    %v3715 = vunpack.c.l.b16 %v230
    %v3716 = vunpack.c.h.b16 %v230
    %v3717 = vunpack.c.l.b16 %v231
    %v3718 = vunpack.c.h.b16 %v231
    %v3719 = vunpack.c.l.b16 %v232
    %v3720 = vunpack.c.h.b16 %v232
    %v3721 = vunpack.c.l.b16 %v233
    %v3722 = vunpack.c.h.b16 %v233
    %v3723 = vunpack.c.l.b16 %v234
    %v3724 = vunpack.c.h.b16 %v234
    %v3725 = vunpack.c.l.b16 %v235
    %v3726 = vunpack.c.h.b16 %v235
    %v3727 = vunpack.c.l.b16 %v236
    %v3728 = vunpack.c.h.b16 %v236
    %v3729 = vunpack.c.l.b16 %v237
    %v3730 = vunpack.c.h.b16 %v237
    %v3731 = vunpack.c.l.b16 %v238
    %v3732 = vunpack.c.h.b16 %v238
    %v3733 = vunpack.c.l.b16 %v239
    %v3734 = vunpack.c.h.b16 %v239
    %v3735 = vunpack.c.l.b16 %v240
    %v3736 = vunpack.c.h.b16 %v240
    %v3737 = vunpack.c.l.b16 %v241
    %v3738 = vunpack.c.h.b16 %v241
    %v3739 = vunpack.c.l.b16 %v242
    %v3740 = vunpack.c.h.b16 %v242
    %v3741 = vunpack.c.l.b16 %v243
    %v3742 = vunpack.c.h.b16 %v243
    %v3743 = vunpack.c.l.b16 %v244
    %v3744 = vunpack.c.h.b16 %v244
    %v3745 = vunpack.c.l.b16 %v245
    %v3746 = vunpack.c.h.b16 %v245
    %v3747 = vunpack.c.l.b16 %v246
    %v3748 = vunpack.c.h.b16 %v246
    %v3749 = vunpack.c.l.b16 %v247
    %v3750 = vunpack.c.h.b16 %v247
    %v3751 = vunpack.c.l.b16 %v248
    %v3752 = vunpack.c.h.b16 %v248
    %v3753 = vunpack.c.l.b16 %v249
    %v3754 = vunpack.c.h.b16 %v249
    %v3755 = vunpack.c.l.b16 %v250
    %v3756 = vunpack.c.h.b16 %v250
    %v3757 = vunpack.c.l.b16 %v251
    %v3758 = vunpack.c.h.b16 %v251
    %v3759 = vunpack.c.l.b16 %v252
    %v3760 = vunpack.c.h.b16 %v252
    %v3761 = vunpack.c.l.b16 %v253
    %v3762 = vunpack.c.h.b16 %v253
    %v3763 = vunpack.c.l.b16 %v254
    %v3764 = vunpack.c.h.b16 %v254
    %v3765 = vunpack.c.l.b16 %v255
    %v3766 = vunpack.c.h.b16 %v255
    %v3767 = vunpack.c.l.b16 %v256
    %v3768 = vunpack.c.h.b16 %v256
    %v3769 = vunpack.c.l.b16 %v257
    %v3770 = vunpack.c.h.b16 %v257
    %v3771 = vunpack.c.l.b16 %v258
    %v3772 = vunpack.c.h.b16 %v258
    %v3773 = vunpack.c.l.b16 %v259
    %v3774 = vunpack.c.h.b16 %v259
    %v3775 = vunpack.c.l.b16 %v260
    %v3776 = vunpack.c.h.b16 %v260
    %v3777 = vunpack.c.l.b16 %v261
    %v3778 = vunpack.c.h.b16 %v261
    %v3779 = vunpack.c.l.b16 %v262
    %v3780 = vunpack.c.h.b16 %v262
    %v3781 = vunpack.c.l.b16 %v263
    %v3782 = vunpack.c.h.b16 %v263
    %v3783 = vunpack.c.l.b16 %v264
    %v3784 = vunpack.c.h.b16 %v264
    %v3785 = vunpack.c.l.b16 %v265
    %v3786 = vunpack.c.h.b16 %v265
    %v3787 = vunpack.c.l.b16 %v266
    %v3788 = vunpack.c.h.b16 %v266
    %v3789 = vunpack.c.l.b16 %v267
    %v3790 = vunpack.c.h.b16 %v267
    %v3791 = vunpack.c.l.b16 %v268
    %v3792 = vunpack.c.h.b16 %v268
    %v3793 = vunpack.c.l.b16 %v269
    %v3794 = vunpack.c.h.b16 %v269
    %v3795 = vunpack.c.l.b16 %v270
    %v3796 = vunpack.c.h.b16 %v270
    %v3797 = vunpack.c.l.b16 %v271
    %v3798 = vunpack.c.h.b16 %v271
    %v3799 = vunpack.c.l.b16 %v272
    %v3800 = vunpack.c.h.b16 %v272
    %v3801 = vunpack.c.l.b16 %v273
    %v3802 = vunpack.c.h.b16 %v273
    %v3803 = vunpack.c.l.b16 %v274
    %v3804 = vunpack.c.h.b16 %v274
    %v3805 = vunpack.c.l.b16 %v275
    %v3806 = vunpack.c.h.b16 %v275
    %v3807 = vunpack.c.l.b16 %v276
    %v3808 = vunpack.c.h.b16 %v276
    %v3809 = vunpack.c.l.b16 %v277
    %v3810 = vunpack.c.h.b16 %v277
    %v3811 = vunpack.c.l.b16 %v278
    %v3812 = vunpack.c.h.b16 %v278
    %v3813 = vunpack.c.l.b16 %v279
    %v3814 = vunpack.c.h.b16 %v279
    %v3815 = vunpack.c.l.b16 %v280
    %v3816 = vunpack.c.h.b16 %v280
    %v3817 = vunpack.c.l.b16 %v281
    %v3818 = vunpack.c.h.b16 %v281
    %v3819 = vunpack.c.l.b16 %v282
    %v3820 = vunpack.c.h.b16 %v282
    %v3821 = vunpack.c.l.b16 %v283
    %v3822 = vunpack.c.h.b16 %v283
    %v3823 = vunpack.c.l.b16 %v284
    %v3824 = vunpack.c.h.b16 %v284
    %v3825 = vunpack.c.l.b16 %v285
    %v3826 = vunpack.c.h.b16 %v285
    %v3827 = vunpack.c.l.b16 %v286
    %v3828 = vunpack.c.h.b16 %v286
    %v3829 = vunpack.c.l.b16 %v287
    %v3830 = vunpack.c.h.b16 %v287
    %v3831 = vunpack.c.l.b16 %v288
    %v3832 = vunpack.c.h.b16 %v288
    %v3833 = vunpack.c.l.b16 %v289
    %v3834 = vunpack.c.h.b16 %v289
    %v3835 = vunpack.c.l.b16 %v290
    %v3836 = vunpack.c.h.b16 %v290
    %v3837 = vunpack.c.l.b16 %v291
    %v3838 = vunpack.c.h.b16 %v291
    %v3839 = vunpack.c.l.b16 %v292
    %v3840 = vunpack.c.h.b16 %v292
    %v3841 = vunpack.c.l.b16 %v293
    %v3842 = vunpack.c.h.b16 %v293
    %v3843 = vunpack.c.l.b16 %v294
    %v3844 = vunpack.c.h.b16 %v294
    %v3845 = vunpack.c.l.b16 %v295
    %v3846 = vunpack.c.h.b16 %v295
    %v3847 = vunpack.c.l.b16 %v296
    %v3848 = vunpack.c.h.b16 %v296
    %v3849 = vunpack.c.l.b16 %v297
    %v3850 = vunpack.c.h.b16 %v297
    %v3851 = vunpack.c.l.b16 %v298
    %v3852 = vunpack.c.h.b16 %v298
    %v3853 = vunpack.c.l.b16 %v299
    %v3854 = vunpack.c.h.b16 %v299
    %v3855 = vunpack.c.l.b16 %v300
    %v3856 = vunpack.c.h.b16 %v300
    %v3857 = vunpack.c.l.b16 %v301
    %v3858 = vunpack.c.h.b16 %v301
    %v3859 = vunpack.c.l.b16 %v302
    %v3860 = vunpack.c.h.b16 %v302
    %v3861 = vunpack.c.l.b16 %v303
    %v3862 = vunpack.c.h.b16 %v303
    %v3863 = vunpack.c.l.b16 %v304
    %v3864 = vunpack.c.h.b16 %v304
    %v3865 = vunpack.c.l.b16 %v305
    %v3866 = vunpack.c.h.b16 %v305
    %v3867 = vunpack.c.l.b16 %v306
    %v3868 = vunpack.c.h.b16 %v306
    %v3869 = vunpack.c.l.b16 %v307
    %v3870 = vunpack.c.h.b16 %v307
    %v3871 = vunpack.c.l.b16 %v308
    %v3872 = vunpack.c.h.b16 %v308
    %v3873 = vunpack.c.l.b16 %v309
    %v3874 = vunpack.c.h.b16 %v309
    %v3875 = vunpack.c.l.b16 %v310
    %v3876 = vunpack.c.h.b16 %v310
    %v3877 = vunpack.c.l.b16 %v311
    %v3878 = vunpack.c.h.b16 %v311
    %v3879 = vunpack.c.l.b16 %v312
    %v3880 = vunpack.c.h.b16 %v312
    %v3881 = vunpack.c.l.b16 %v313
    %v3882 = vunpack.c.h.b16 %v313
    %v3883 = vunpack.c.l.b16 %v314
    %v3884 = vunpack.c.h.b16 %v314
    %v3885 = vunpack.c.l.b16 %v315
    %v3886 = vunpack.c.h.b16 %v315
    %v3887 = vunpack.c.l.b16 %v316
    %v3888 = vunpack.c.h.b16 %v316
    %v3889 = vunpack.c.l.b16 %v317
    %v3890 = vunpack.c.h.b16 %v317
    %v3891 = vunpack.c.l.b16 %v318
    %v3892 = vunpack.c.h.b16 %v318
    %v3893 = vunpack.c.l.b16 %v319
    %v3894 = vunpack.c.h.b16 %v319
    %v3895 = vunpack.c.l.b16 %v320
    %v3896 = vunpack.c.h.b16 %v320
    %v3897 = vunpack.c.l.b16 %v321
    %v3898 = vunpack.c.h.b16 %v321
    %v3899 = vunpack.c.l.b16 %v322
    %v3900 = vunpack.c.h.b16 %v322
    %v3901 = vunpack.c.l.b16 %v323
    %v3902 = vunpack.c.h.b16 %v323
    %v3903 = vunpack.c.l.b16 %v324
    %v3904 = vunpack.c.h.b16 %v324
    %v3905 = vunpack.c.l.b16 %v325
    %v3906 = vunpack.c.h.b16 %v325
    %v3907 = vunpack.c.l.b16 %v326
    %v3908 = vunpack.c.h.b16 %v326
    %v3909 = vunpack.c.l.b16 %v327
    %v3910 = vunpack.c.h.b16 %v327
    %v3911 = vunpack.c.l.b16 %v328
    %v3912 = vunpack.c.h.b16 %v328
    %v3913 = vunpack.c.l.b16 %v329
    %v3914 = vunpack.c.h.b16 %v329
    %v3915 = vunpack.c.l.b16 %v330
    %v3916 = vunpack.c.h.b16 %v330
    %v3917 = vunpack.c.l.b16 %v331
    %v3918 = vunpack.c.h.b16 %v331
    %v3919 = vunpack.c.l.b16 %v332
    %v3920 = vunpack.c.h.b16 %v332
    %v3921 = vunpack.c.l.b16 %v333
    %v3922 = vunpack.c.h.b16 %v333
    %v3923 = vunpack.c.l.b16 %v334
    %v3924 = vunpack.c.h.b16 %v334
    %v3925 = vunpack.c.l.b16 %v335
    %v3926 = vunpack.c.h.b16 %v335
    %v3927 = vunpack.c.l.b16 %v336
    %v3928 = vunpack.c.h.b16 %v336
    %v3929 = vunpack.c.l.b16 %v337
    %v3930 = vunpack.c.h.b16 %v337
    %v3931 = vunpack.c.l.b16 %v338
    %v3932 = vunpack.c.h.b16 %v338
    %v3933 = vunpack.c.l.b16 %v339
    %v3934 = vunpack.c.h.b16 %v339
    %v3935 = vunpack.c.l.b16 %v340
    %v3936 = vunpack.c.h.b16 %v340
    %v3937 = vunpack.c.l.b16 %v341
    %v3938 = vunpack.c.h.b16 %v341
    %v3939 = vunpack.c.l.b16 %v342
    %v3940 = vunpack.c.h.b16 %v342
    %v3941 = vunpack.c.l.b16 %v343
    %v3942 = vunpack.c.h.b16 %v343
    %v3943 = vunpack.c.l.b16 %v344
    %v3944 = vunpack.c.h.b16 %v344
    %v3945 = vunpack.c.l.b16 %v345
    %v3946 = vunpack.c.h.b16 %v345
    %v3947 = vunpack.c.l.b16 %v346
    %v3948 = vunpack.c.h.b16 %v346
    %v3949 = vunpack.c.l.b16 %v347
    %v3950 = vunpack.c.h.b16 %v347
    %v3951 = vunpack.c.l.b16 %v348
    %v3952 = vunpack.c.h.b16 %v348
    %v3953 = vunpack.c.l.b16 %v349
    %v3954 = vunpack.c.h.b16 %v349
    %v3955 = vunpack.c.l.b16 %v350
    %v3956 = vunpack.c.h.b16 %v350
    %v3957 = vunpack.c.l.b16 %v351
    %v3958 = vunpack.c.h.b16 %v351
    %v3959 = vunpack.c.l.b16 %v352
    %v3960 = vunpack.c.h.b16 %v352
    %v3961 = vunpack.c.l.b16 %v353
    %v3962 = vunpack.c.h.b16 %v353
    %v3963 = vunpack.c.l.b16 %v354
    %v3964 = vunpack.c.h.b16 %v354
    %v3965 = vunpack.c.l.b16 %v355
    %v3966 = vunpack.c.h.b16 %v355
    %v3967 = vunpack.c.l.b16 %v356
    %v3968 = vunpack.c.h.b16 %v356
    %v3969 = vunpack.c.l.b16 %v357
    %v3970 = vunpack.c.h.b16 %v357
    %v3971 = vunpack.c.l.b16 %v358
    %v3972 = vunpack.c.h.b16 %v358
    %v3973 = vunpack.c.l.b16 %v359
    %v3974 = vunpack.c.h.b16 %v359
    %v3975 = vunpack.c.l.b16 %v360
    %v3976 = vunpack.c.h.b16 %v360
    %v3977 = vunpack.c.l.b16 %v361
    %v3978 = vunpack.c.h.b16 %v361
    %v3979 = vunpack.c.l.b16 %v362
    %v3980 = vunpack.c.h.b16 %v362
    %v3981 = vunpack.c.l.b16 %v363
    %v3982 = vunpack.c.h.b16 %v363
    %v3983 = vunpack.c.l.b16 %v364
    %v3984 = vunpack.c.h.b16 %v364
    %v3985 = vunpack.c.l.b16 %v365
    %v3986 = vunpack.c.h.b16 %v365
    %v3987 = vunpack.c.l.b16 %v366
    %v3988 = vunpack.c.h.b16 %v366
    %v3989 = vunpack.c.l.b16 %v367
    %v3990 = vunpack.c.h.b16 %v367
    %v3991 = vunpack.c.l.b16 %v368
    %v3992 = vunpack.c.h.b16 %v368
    %v3993 = vunpack.c.l.b16 %v369
    %v3994 = vunpack.c.h.b16 %v369
    %v3995 = vunpack.c.l.b16 %v370
    %v3996 = vunpack.c.h.b16 %v370
    %v3997 = vunpack.c.l.b16 %v371
    %v3998 = vunpack.c.h.b16 %v371
    %v3999 = vunpack.c.l.b16 %v372
    %v4000 = vunpack.c.h.b16 %v372
    %v4001 = vunpack.c.l.b16 %v373
    %v4002 = vunpack.c.h.b16 %v373
    %v4003 = vunpack.c.l.b16 %v374
    %v4004 = vunpack.c.h.b16 %v374
    %v4005 = vunpack.c.l.b16 %v375
    %v4006 = vunpack.c.h.b16 %v375
    %v4007 = vunpack.c.l.b16 %v376
    %v4008 = vunpack.c.h.b16 %v376
    %v4009 = vunpack.c.l.b16 %v377
    %v4010 = vunpack.c.h.b16 %v377
    %v4011 = vunpack.c.l.b16 %v378
    %v4012 = vunpack.c.h.b16 %v378
    %v4013 = vunpack.c.l.b16 %v379
    %v4014 = vunpack.c.h.b16 %v379
    %v4015 = vunpack.c.l.b16 %v380
    %v4016 = vunpack.c.h.b16 %v380
    %v4017 = vunpack.c.l.b16 %v381
    %v4018 = vunpack.c.h.b16 %v381
    %v4019 = vunpack.c.l.b16 %v382
    %v4020 = vunpack.c.h.b16 %v382
    %v4021 = vunpack.c.l.b16 %v383
    %v4022 = vunpack.c.h.b16 %v383
    %v4023 = vunpack.c.l.b16 %v384
    %v4024 = vunpack.c.h.b16 %v384
    %v4025 = vunpack.c.l.b16 %v385
    %v4026 = vunpack.c.h.b16 %v385
    %v4027 = vunpack.c.l.b16 %v386
    %v4028 = vunpack.c.h.b16 %v386
    %v4029 = vunpack.c.l.b16 %v387
    %v4030 = vunpack.c.h.b16 %v387
    %v4031 = vunpack.c.l.b16 %v388
    %v4032 = vunpack.c.h.b16 %v388
    %v4033 = vunpack.c.l.b16 %v389
    %v4034 = vunpack.c.h.b16 %v389
    %v4035 = vunpack.c.l.b16 %v390
    %v4036 = vunpack.c.h.b16 %v390
    %v4037 = vunpack.c.l.b16 %v391
    %v4038 = vunpack.c.h.b16 %v391
    %v4039 = vunpack.c.l.b16 %v392
    %v4040 = vunpack.c.h.b16 %v392
    %v4041 = vunpack.c.l.b16 %v393
    %v4042 = vunpack.c.h.b16 %v393
    %v4043 = vunpack.c.l.b16 %v394
    %v4044 = vunpack.c.h.b16 %v394
    %v4045 = vunpack.c.l.b16 %v395
    %v4046 = vunpack.c.h.b16 %v395
    %v4047 = vunpack.c.l.b16 %v396
    %v4048 = vunpack.c.h.b16 %v396
    %v4049 = vunpack.c.l.b16 %v397
    %v4050 = vunpack.c.h.b16 %v397
    %v4051 = vunpack.c.l.b16 %v398
    %v4052 = vunpack.c.h.b16 %v398
    %v4053 = vunpack.c.l.b16 %v399
    %v4054 = vunpack.c.h.b16 %v399
    %v4055 = vunpack.c.l.b16 %v400
    %v4056 = vunpack.c.h.b16 %v400
    %v4057 = vunpack.c.l.b16 %v401
    %v4058 = vunpack.c.h.b16 %v401
    %v4059 = vunpack.c.l.b16 %v402
    %v4060 = vunpack.c.h.b16 %v402
    %v4061 = vunpack.c.l.b16 %v403
    %v4062 = vunpack.c.h.b16 %v403
    %v4063 = vunpack.c.l.b16 %v404
    %v4064 = vunpack.c.h.b16 %v404
    %v4065 = vunpack.c.l.b16 %v405
    %v4066 = vunpack.c.h.b16 %v405
    %v4067 = vunpack.c.l.b16 %v406
    %v4068 = vunpack.c.h.b16 %v406
    %v4069 = vunpack.c.l.b16 %v407
    %v4070 = vunpack.c.h.b16 %v407
    %v4071 = vunpack.c.l.b16 %v408
    %v4072 = vunpack.c.h.b16 %v408
    %v4073 = vunpack.c.l.b16 %v409
    %v4074 = vunpack.c.h.b16 %v409
    %v4075 = vunpack.c.l.b16 %v410
    %v4076 = vunpack.c.h.b16 %v410
    %v4077 = vunpack.c.l.b16 %v411
    %v4078 = vunpack.c.h.b16 %v411
    %v4079 = vunpack.c.l.b16 %v412
    %v4080 = vunpack.c.h.b16 %v412
    %v4081 = vunpack.c.l.b16 %v413
    %v4082 = vunpack.c.h.b16 %v413
    %v4083 = vunpack.c.l.b16 %v414
    %v4084 = vunpack.c.h.b16 %v414
    %v4085 = vunpack.c.l.b16 %v415
    %v4086 = vunpack.c.h.b16 %v415
    %v4087 = vunpack.c.l.b16 %v416
    %v4088 = vunpack.c.h.b16 %v416
    %v4089 = vunpack.c.l.b16 %v417
    %v4090 = vunpack.c.h.b16 %v417
    %v4091 = vunpack.c.l.b16 %v418
    %v4092 = vunpack.c.h.b16 %v418
    %v4093 = vunpack.c.l.b16 %v419
    %v4094 = vunpack.c.h.b16 %v419
    %v4095 = vunpack.c.l.b16 %v420
    %v4096 = vunpack.c.h.b16 %v420
    %v4097 = vunpack.c.l.b16 %v421
    %v4098 = vunpack.c.h.b16 %v421
    %v4099 = vunpack.c.l.b16 %v422
    %v4100 = vunpack.c.h.b16 %v422
    %v4101 = vunpack.c.l.b16 %v423
    %v4102 = vunpack.c.h.b16 %v423
    %v4103 = vunpack.c.l.b16 %v424
    %v4104 = vunpack.c.h.b16 %v424
    %v4105 = vunpack.c.l.b16 %v425
    %v4106 = vunpack.c.h.b16 %v425
    %v4107 = vunpack.c.l.b16 %v426
    %v4108 = vunpack.c.h.b16 %v426
    %v4109 = vunpack.c.l.b16 %v427
    %v4110 = vunpack.c.h.b16 %v427
    %v4111 = vunpack.c.l.b16 %v428
    %v4112 = vunpack.c.h.b16 %v428
    %v4113 = vunpack.c.l.b16 %v429
    %v4114 = vunpack.c.h.b16 %v429
    %v4115 = vunpack.c.l.b16 %v430
    %v4116 = vunpack.c.h.b16 %v430
    %v4117 = vunpack.c.l.b16 %v431
    %v4118 = vunpack.c.h.b16 %v431
    %v4119 = vunpack.c.l.b16 %v432
    %v4120 = vunpack.c.h.b16 %v432
    %v4121 = vunpack.c.l.b16 %v433
    %v4122 = vunpack.c.h.b16 %v433
    %v4123 = vunpack.c.l.b16 %v434
    %v4124 = vunpack.c.h.b16 %v434
    %v4125 = vunpack.c.l.b16 %v435
    %v4126 = vunpack.c.h.b16 %v435
    %v4127 = vunpack.c.l.b16 %v436
    %v4128 = vunpack.c.h.b16 %v436
    %v4129 = vunpack.c.l.b16 %v437
    %v4130 = vunpack.c.h.b16 %v437
    %v4131 = vunpack.c.l.b16 %v438
    %v4132 = vunpack.c.h.b16 %v438
    %v4133 = vunpack.c.l.b16 %v439
    %v4134 = vunpack.c.h.b16 %v439
    %v4135 = vunpack.c.l.b16 %v440
    %v4136 = vunpack.c.h.b16 %v440
    %v4137 = vunpack.c.l.b16 %v441
    %v4138 = vunpack.c.h.b16 %v441
    %v4139 = vunpack.c.l.b16 %v442
    %v4140 = vunpack.c.h.b16 %v442
    %v4141 = vunpack.c.l.b16 %v443
    %v4142 = vunpack.c.h.b16 %v443
    %v4143 = vunpack.c.l.b16 %v444
    %v4144 = vunpack.c.h.b16 %v444
    %v4145 = vunpack.c.l.b16 %v445
    %v4146 = vunpack.c.h.b16 %v445
    %v4147 = vunpack.c.l.b16 %v446
    %v4148 = vunpack.c.h.b16 %v446
    %v4149 = vunpack.c.l.b16 %v447
    %v4150 = vunpack.c.h.b16 %v447
    %v4151 = vunpack.c.l.b16 %v448
    %v4152 = vunpack.c.h.b16 %v448
    %v4153 = vunpack.c.l.b16 %v449
    %v4154 = vunpack.c.h.b16 %v449
    %v4155 = vunpack.c.l.b16 %v450
    %v4156 = vunpack.c.h.b16 %v450
    %v4157 = vunpack.c.l.b16 %v451
    %v4158 = vunpack.c.h.b16 %v451
    %v4159 = vunpack.c.l.b16 %v452
    %v4160 = vunpack.c.h.b16 %v452
    %v4161 = vunpack.c.l.b16 %v453
    %v4162 = vunpack.c.h.b16 %v453
    %v4163 = vunpack.c.l.b16 %v454
    %v4164 = vunpack.c.h.b16 %v454
    %v4165 = vunpack.c.l.b16 %v455
    %v4166 = vunpack.c.h.b16 %v455
    %v4167 = vunpack.c.l.b16 %v456
    %v4168 = vunpack.c.h.b16 %v456
    %v4169 = vunpack.c.l.b16 %v457
    %v4170 = vunpack.c.h.b16 %v457
    %v4171 = vunpack.c.l.b16 %v458
    %v4172 = vunpack.c.h.b16 %v458
    %v4173 = vunpack.c.l.b16 %v459
    %v4174 = vunpack.c.h.b16 %v459
    %v4175 = vunpack.c.l.b16 %v460
    %v4176 = vunpack.c.h.b16 %v460
    %v4177 = vunpack.c.l.b16 %v461
    %v4178 = vunpack.c.h.b16 %v461
    %v4179 = vunpack.c.l.b16 %v462
    %v4180 = vunpack.c.h.b16 %v462
    %v4181 = vunpack.c.l.b16 %v463
    %v4182 = vunpack.c.h.b16 %v463
    %v4183 = vunpack.c.l.b16 %v464
    %v4184 = vunpack.c.h.b16 %v464
    %v4185 = vunpack.c.l.b16 %v465
    %v4186 = vunpack.c.h.b16 %v465
    %v4187 = vunpack.c.l.b16 %v466
    %v4188 = vunpack.c.h.b16 %v466
    %v4189 = vunpack.c.l.b16 %v467
    %v4190 = vunpack.c.h.b16 %v467
    %v4191 = vunpack.c.l.b16 %v468
    %v4192 = vunpack.c.h.b16 %v468
    %v4193 = vunpack.c.l.b16 %v469
    %v4194 = vunpack.c.h.b16 %v469
    %v4195 = vunpack.c.l.b16 %v470
    %v4196 = vunpack.c.h.b16 %v470
    %v4197 = vunpack.c.l.b16 %v471
    %v4198 = vunpack.c.h.b16 %v471
    %v4199 = vunpack.c.l.b16 %v472
    %v4200 = vunpack.c.h.b16 %v472
    %v4201 = vunpack.c.l.b16 %v473
    %v4202 = vunpack.c.h.b16 %v473
    %v4203 = vunpack.c.l.b16 %v474
    %v4204 = vunpack.c.h.b16 %v474
    %v4205 = vunpack.c.l.b16 %v475
    %v4206 = vunpack.c.h.b16 %v475
    %v4207 = vunpack.c.l.b16 %v476
    %v4208 = vunpack.c.h.b16 %v476
    %v4209 = vunpack.c.l.b16 %v477
    %v4210 = vunpack.c.h.b16 %v477
    %v4211 = vunpack.c.l.b16 %v478
    %v4212 = vunpack.c.h.b16 %v478
    %v4213 = vunpack.c.l.b16 %v479
    %v4214 = vunpack.c.h.b16 %v479
    %v4215 = vunpack.c.l.b16 %v480
    %v4216 = vunpack.c.h.b16 %v480
    %v4217 = vunpack.c.l.b16 %v481
    %v4218 = vunpack.c.h.b16 %v481
    %v4219 = vunpack.c.l.b16 %v482
    %v4220 = vunpack.c.h.b16 %v482
    %v4221 = vunpack.c.l.b16 %v483
    %v4222 = vunpack.c.h.b16 %v483
    %v4223 = vunpack.c.l.b16 %v484
    %v4224 = vunpack.c.h.b16 %v484
    %v4225 = vunpack.c.l.b16 %v485
    %v4226 = vunpack.c.h.b16 %v485
    %v4227 = vunpack.c.l.b16 %v486
    %v4228 = vunpack.c.h.b16 %v486
    %v4229 = vunpack.c.l.b16 %v487
    %v4230 = vunpack.c.h.b16 %v487
    %v4231 = vunpack.c.l.b16 %v488
    %v4232 = vunpack.c.h.b16 %v488
    %v4233 = vunpack.c.l.b16 %v489
    %v4234 = vunpack.c.h.b16 %v489
    %v4235 = vunpack.c.l.b16 %v490
    %v4236 = vunpack.c.h.b16 %v490
    %v4237 = vunpack.c.l.b16 %v491
    %v4238 = vunpack.c.h.b16 %v491
    %v4239 = vunpack.c.l.b16 %v492
    %v4240 = vunpack.c.h.b16 %v492
    %v4241 = vunpack.c.l.b16 %v493
    %v4242 = vunpack.c.h.b16 %v493
    %v4243 = vunpack.c.l.b16 %v494
    %v4244 = vunpack.c.h.b16 %v494
    %v4245 = vunpack.c.l.b16 %v495
    %v4246 = vunpack.c.h.b16 %v495
    %v4247 = vunpack.c.l.b16 %v496
    %v4248 = vunpack.c.h.b16 %v496
    %v4249 = vunpack.c.l.b16 %v497
    %v4250 = vunpack.c.h.b16 %v497
    %v4251 = vunpack.c.l.b16 %v498
    %v4252 = vunpack.c.h.b16 %v498
    %v4253 = vunpack.c.l.b16 %v499
    %v4254 = vunpack.c.h.b16 %v499
    %v4255 = vunpack.c.l.b16 %v500
    %v4256 = vunpack.c.h.b16 %v500
    %v4257 = vunpack.c.l.b16 %v501
    %v4258 = vunpack.c.h.b16 %v501
    %v4259 = vunpack.c.l.b16 %v502
    %v4260 = vunpack.c.h.b16 %v502
    %v4261 = vunpack.c.l.b16 %v503
    %v4262 = vunpack.c.h.b16 %v503
    %v4263 = vunpack.c.l.b16 %v504
    %v4264 = vunpack.c.h.b16 %v504
    %v4265 = vunpack.c.l.b16 %v505
    %v4266 = vunpack.c.h.b16 %v505
    %v4267 = vunpack.c.l.b16 %v506
    %v4268 = vunpack.c.h.b16 %v506
    %v4269 = vunpack.c.l.b16 %v507
    %v4270 = vunpack.c.h.b16 %v507
    %v4271 = vunpack.c.l.b16 %v508
    %v4272 = vunpack.c.h.b16 %v508
    %v4273 = vunpack.c.l.b16 %v509
    %v4274 = vunpack.c.h.b16 %v509
    %v4275 = vunpack.c.l.b16 %v510
    %v4276 = vunpack.c.h.b16 %v510
    %v4277 = vunpack.c.l.b16 %v511
    %v4278 = vunpack.c.h.b16 %v511
    %v4279 = vunpack.c.l.b16 %v512
    %v4280 = vunpack.c.h.b16 %v512
    %v4281 = vunpack.c.l.b16 %v513
    %v4282 = vunpack.c.h.b16 %v513
    %v4283 = vunpack.c.l.b16 %v514
    %v4284 = vunpack.c.h.b16 %v514
    %v4285 = vunpack.c.l.b16 %v515
    %v4286 = vunpack.c.h.b16 %v515
    %v4287 = vunpack.c.l.b16 %v516
    %v4288 = vunpack.c.h.b16 %v516
    %v4289 = vunpack.c.l.b16 %v517
    %v4290 = vunpack.c.h.b16 %v517
    %v4291 = vunpack.c.l.b16 %v518
    %v4292 = vunpack.c.h.b16 %v518
    %v4293 = vunpack.c.l.b16 %v519
    %v4294 = vunpack.c.h.b16 %v519
    %v4295 = vunpack.c.l.b16 %v520
    %v4296 = vunpack.c.h.b16 %v520
    %v4297 = vunpack.c.l.b16 %v521
    %v4298 = vunpack.c.h.b16 %v521
    %v4299 = vunpack.c.l.b16 %v522
    %v4300 = vunpack.c.h.b16 %v522
    %v4301 = vunpack.c.l.b16 %v523
    %v4302 = vunpack.c.h.b16 %v523
    %v4303 = vunpack.c.l.b16 %v524
    %v4304 = vunpack.c.h.b16 %v524
    %v4305 = vunpack.c.l.b16 %v525
    %v4306 = vunpack.c.h.b16 %v525
    %v4307 = vunpack.c.l.b16 %v526
    %v4308 = vunpack.c.h.b16 %v526
    %v4309 = vunpack.c.l.b16 %v527
    %v4310 = vunpack.c.h.b16 %v527
    %v4311 = vunpack.c.l.b16 %v528
    %v4312 = vunpack.c.h.b16 %v528
    %v4313 = vunpack.c.l.b16 %v529
    %v4314 = vunpack.c.h.b16 %v529
    %v4315 = vunpack.c.l.b16 %v530
    %v4316 = vunpack.c.h.b16 %v530
    %v4317 = vunpack.c.l.b16 %v531
    %v4318 = vunpack.c.h.b16 %v531
    %v4319 = vunpack.c.l.b16 %v532
    %v4320 = vunpack.c.h.b16 %v532
    %v4321 = vunpack.c.l.b16 %v533
    %v4322 = vunpack.c.h.b16 %v533
    %v4323 = vunpack.c.l.b16 %v534
    %v4324 = vunpack.c.h.b16 %v534
    %v4325 = vunpack.c.l.b16 %v535
    %v4326 = vunpack.c.h.b16 %v535
    %v4327 = vunpack.c.l.b16 %v536
    %v4328 = vunpack.c.h.b16 %v536
    %v4329 = vunpack.c.l.b16 %v537
    %v4330 = vunpack.c.h.b16 %v537
    %v4331 = vunpack.c.l.b16 %v538
    %v4332 = vunpack.c.h.b16 %v538
    %v4333 = vunpack.c.l.b16 %v539
    %v4334 = vunpack.c.h.b16 %v539
    %v4335 = vunpack.c.l.b16 %v540
    %v4336 = vunpack.c.h.b16 %v540
    %v4337 = vunpack.c.l.b16 %v541
    %v4338 = vunpack.c.h.b16 %v541
    %v4339 = vunpack.c.l.b16 %v542
    %v4340 = vunpack.c.h.b16 %v542
    %v4341 = vunpack.c.l.b16 %v543
    %v4342 = vunpack.c.h.b16 %v543
    %v4343 = vunpack.c.l.b16 %v544
    %v4344 = vunpack.c.h.b16 %v544
    %v4345 = vunpack.c.l.b16 %v545
    %v4346 = vunpack.c.h.b16 %v545
    %v4347 = vunpack.c.l.b16 %v546
    %v4348 = vunpack.c.h.b16 %v546
    %v4349 = vunpack.c.l.b16 %v547
    %v4350 = vunpack.c.h.b16 %v547
    %v4351 = vunpack.c.l.b16 %v548
    %v4352 = vunpack.c.h.b16 %v548
    %v4353 = vunpack.c.l.b16 %v549
    %v4354 = vunpack.c.h.b16 %v549
    %v4355 = vunpack.c.l.b16 %v550
    %v4356 = vunpack.c.h.b16 %v550
    %v4357 = vunpack.c.l.b16 %v551
    %v4358 = vunpack.c.h.b16 %v551
    %v4359 = vunpack.c.l.b16 %v552
    %v4360 = vunpack.c.h.b16 %v552
    %v4361 = vunpack.c.l.b16 %v553
    %v4362 = vunpack.c.h.b16 %v553
    %v4363 = vunpack.c.l.b16 %v554
    %v4364 = vunpack.c.h.b16 %v554
    %v4365 = vunpack.c.l.b16 %v555
    %v4366 = vunpack.c.h.b16 %v555
    %v4367 = vunpack.c.l.b16 %v556
    %v4368 = vunpack.c.h.b16 %v556
    %v4369 = vunpack.c.l.b16 %v557
    %v4370 = vunpack.c.h.b16 %v557
    %v4371 = vunpack.c.l.b16 %v558
    %v4372 = vunpack.c.h.b16 %v558
    %v4373 = vunpack.c.l.b16 %v559
    %v4374 = vunpack.c.h.b16 %v559
    %v4375 = vunpack.c.l.b16 %v560
    %v4376 = vunpack.c.h.b16 %v560
    %v4377 = vunpack.c.l.b16 %v561
    %v4378 = vunpack.c.h.b16 %v561
    %v4379 = vunpack.c.l.b16 %v562
    %v4380 = vunpack.c.h.b16 %v562
    %v4381 = vunpack.c.l.b16 %v563
    %v4382 = vunpack.c.h.b16 %v563
    %v4383 = vunpack.c.l.b16 %v564
    %v4384 = vunpack.c.h.b16 %v564
    %v4385 = vunpack.c.l.b16 %v565
    %v4386 = vunpack.c.h.b16 %v565
    %v4387 = vunpack.c.l.b16 %v566
    %v4388 = vunpack.c.h.b16 %v566
    %v4389 = vunpack.c.l.b16 %v567
    %v4390 = vunpack.c.h.b16 %v567
    %v4391 = vunpack.c.l.b16 %v568
    %v4392 = vunpack.c.h.b16 %v568
    %v4393 = vunpack.c.l.b16 %v569
    %v4394 = vunpack.c.h.b16 %v569
    %v4395 = vunpack.c.l.b16 %v570
    %v4396 = vunpack.c.h.b16 %v570
    %v4397 = vunpack.c.l.b16 %v571
    %v4398 = vunpack.c.h.b16 %v571
    %v4399 = vunpack.c.l.b16 %v572
    %v4400 = vunpack.c.h.b16 %v572
    %v4401 = vunpack.c.l.b16 %v573
    %v4402 = vunpack.c.h.b16 %v573
    %v4403 = vunpack.c.l.b16 %v574
    %v4404 = vunpack.c.h.b16 %v574
    %v4405 = vunpack.c.l.b16 %v575
    %v4406 = vunpack.c.h.b16 %v575
    %v4407 = vunpack.c.l.b16 %v576
    %v4408 = vunpack.c.h.b16 %v576
    %v4409 = vunpack.c.l.b16 %v577
    %v4410 = vunpack.c.h.b16 %v577
    %v4411 = vunpack.c.l.b16 %v578
    %v4412 = vunpack.c.h.b16 %v578
    %v4413 = vunpack.c.l.b16 %v579
    %v4414 = vunpack.c.h.b16 %v579
    %v4415 = vunpack.c.l.b16 %v580
    %v4416 = vunpack.c.h.b16 %v580
    %v4417 = vunpack.c.l.b16 %v581
    %v4418 = vunpack.c.h.b16 %v581
    %v4419 = vunpack.c.l.b16 %v582
    %v4420 = vunpack.c.h.b16 %v582
    %v4421 = vunpack.c.l.b16 %v583
    %v4422 = vunpack.c.h.b16 %v583
    %v4423 = vunpack.c.l.b16 %v584
    %v4424 = vunpack.c.h.b16 %v584
    %v4425 = vunpack.c.l.b16 %v585
    %v4426 = vunpack.c.h.b16 %v585
    %v4427 = vunpack.c.l.b16 %v586
    %v4428 = vunpack.c.h.b16 %v586
    %v4429 = vunpack.c.l.b16 %v587
    %v4430 = vunpack.c.h.b16 %v587
    %v4431 = vunpack.c.l.b16 %v588
    %v4432 = vunpack.c.h.b16 %v588
    %v4433 = vunpack.c.l.b16 %v589
    %v4434 = vunpack.c.h.b16 %v589
    %v4435 = vunpack.c.l.b16 %v590
    %v4436 = vunpack.c.h.b16 %v590
    %v4437 = vunpack.c.l.b16 %v591
    %v4438 = vunpack.c.h.b16 %v591
    %v4439 = vunpack.c.l.b16 %v592
    %v4440 = vunpack.c.h.b16 %v592
    %v4441 = vunpack.c.l.b16 %v593
    %v4442 = vunpack.c.h.b16 %v593
    %v4443 = vunpack.c.l.b16 %v594
    %v4444 = vunpack.c.h.b16 %v594
    %v4445 = vunpack.c.l.b16 %v595
    %v4446 = vunpack.c.h.b16 %v595
    %v4447 = vunpack.c.l.b16 %v596
    %v4448 = vunpack.c.h.b16 %v596
    %v4449 = vunpack.c.l.b16 %v597
    %v4450 = vunpack.c.h.b16 %v597
    %v4451 = vunpack.c.l.b16 %v598
    %v4452 = vunpack.c.h.b16 %v598
    %v4453 = vunpack.c.l.b16 %v599
    %v4454 = vunpack.c.h.b16 %v599
    %v4455 = vunpack.c.l.b16 %v600
    %v4456 = vunpack.c.h.b16 %v600
    %v4457 = vunpack.c.l.b16 %v601
    %v4458 = vunpack.c.h.b16 %v601
    %v4459 = vunpack.c.l.b16 %v602
    %v4460 = vunpack.c.h.b16 %v602
    %v4461 = vunpack.c.l.b16 %v603
    %v4462 = vunpack.c.h.b16 %v603
    %v4463 = vunpack.c.l.b16 %v604
    %v4464 = vunpack.c.h.b16 %v604
    %v4465 = vunpack.c.l.b16 %v605
    %v4466 = vunpack.c.h.b16 %v605
    %v4467 = vunpack.c.l.b16 %v606
    %v4468 = vunpack.c.h.b16 %v606
    %v4469 = vunpack.c.l.b16 %v607
    %v4470 = vunpack.c.h.b16 %v607
    %v4471 = vunpack.c.l.b16 %v608
    %v4472 = vunpack.c.h.b16 %v608
    %v4473 = vunpack.c.l.b16 %v609
    %v4474 = vunpack.c.h.b16 %v609
    %v4475 = vunpack.c.l.b16 %v610
    %v4476 = vunpack.c.h.b16 %v610
    %v4477 = vunpack.c.l.b16 %v611
    %v4478 = vunpack.c.h.b16 %v611
    %v4479 = vunpack.c.l.b16 %v612
    %v4480 = vunpack.c.h.b16 %v612
    %v4481 = vunpack.c.l.b16 %v613
    %v4482 = vunpack.c.h.b16 %v613
    %v4483 = vunpack.c.l.b16 %v614
    %v4484 = vunpack.c.h.b16 %v614
    %v4485 = vunpack.c.l.b16 %v615
    %v4486 = vunpack.c.h.b16 %v615
    %v4487 = vunpack.c.l.b16 %v616
    %v4488 = vunpack.c.h.b16 %v616
    %v4489 = vunpack.c.l.b16 %v617
    %v4490 = vunpack.c.h.b16 %v617
    %v4491 = vunpack.c.l.b16 %v618
    %v4492 = vunpack.c.h.b16 %v618
    %v4493 = vunpack.c.l.b16 %v619
    %v4494 = vunpack.c.h.b16 %v619
    %v4495 = vunpack.c.l.b16 %v620
    %v4496 = vunpack.c.h.b16 %v620
    %v4497 = vunpack.c.l.b16 %v621
    %v4498 = vunpack.c.h.b16 %v621
    %v4499 = vunpack.c.l.b16 %v622
    %v4500 = vunpack.c.h.b16 %v622
    %v4501 = vunpack.c.l.b16 %v623
    %v4502 = vunpack.c.h.b16 %v623
    %v4503 = vunpack.c.l.b16 %v624
    %v4504 = vunpack.c.h.b16 %v624
    %v4505 = vunpack.c.l.b16 %v625
    %v4506 = vunpack.c.h.b16 %v625
    %v4507 = vunpack.c.l.b16 %v626
    %v4508 = vunpack.c.h.b16 %v626
    %v4509 = vunpack.c.l.b16 %v627
    %v4510 = vunpack.c.h.b16 %v627
    %v4511 = vunpack.c.l.b16 %v628
    %v4512 = vunpack.c.h.b16 %v628
    %v4513 = vunpack.c.l.b16 %v629
    %v4514 = vunpack.c.h.b16 %v629
    %v4515 = vunpack.c.l.b16 %v630
    %v4516 = vunpack.c.h.b16 %v630
    %v4517 = vunpack.c.l.b16 %v631
    %v4518 = vunpack.c.h.b16 %v631
    %v4519 = vunpack.c.l.b16 %v632
    %v4520 = vunpack.c.h.b16 %v632
    %v4521 = vunpack.c.l.b16 %v633
    %v4522 = vunpack.c.h.b16 %v633
    %v4523 = vunpack.c.l.b16 %v634
    %v4524 = vunpack.c.h.b16 %v634
    %v4525 = vunpack.c.l.b16 %v635
    %v4526 = vunpack.c.h.b16 %v635
    %v4527 = vunpack.c.l.b16 %v636
    %v4528 = vunpack.c.h.b16 %v636
    %v4529 = vunpack.c.l.b16 %v637
    %v4530 = vunpack.c.h.b16 %v637
    %v4531 = vunpack.c.l.b16 %v638
    %v4532 = vunpack.c.h.b16 %v638
    %v4533 = vunpack.c.l.b16 %v639
    %v4534 = vunpack.c.h.b16 %v639
    %v4535 = vunpack.c.l.b16 %v640
    %v4536 = vunpack.c.h.b16 %v640
    %v4537 = vunpack.c.l.b16 %v641
    %v4538 = vunpack.c.h.b16 %v641
    %v4539 = vunpack.c.l.b16 %v642
    %v4540 = vunpack.c.h.b16 %v642
    %v4541 = vunpack.c.l.b16 %v643
    %v4542 = vunpack.c.h.b16 %v643
    %v4543 = vunpack.c.l.b16 %v644
    %v4544 = vunpack.c.h.b16 %v644
    %v4545 = vunpack.c.l.b16 %v645
    %v4546 = vunpack.c.h.b16 %v645
    %v4547 = vunpack.c.l.b16 %v646
    %v4548 = vunpack.c.h.b16 %v646
    %v4549 = vunpack.c.l.b16 %v647
    %v4550 = vunpack.c.h.b16 %v647
    %v4551 = vunpack.c.l.b16 %v648
    %v4552 = vunpack.c.h.b16 %v648
    %v4553 = vunpack.c.l.b16 %v649
    %v4554 = vunpack.c.h.b16 %v649
    %v4555 = vunpack.c.l.b16 %v650
    %v4556 = vunpack.c.h.b16 %v650
    %v4557 = vunpack.c.l.b16 %v651
    %v4558 = vunpack.c.h.b16 %v651
    %v4559 = vunpack.c.l.b16 %v652
    %v4560 = vunpack.c.h.b16 %v652
    %v4561 = vunpack.c.l.b16 %v653
    %v4562 = vunpack.c.h.b16 %v653
    %v4563 = vunpack.c.l.b16 %v654
    %v4564 = vunpack.c.h.b16 %v654
    %v4565 = vunpack.c.l.b16 %v655
    %v4566 = vunpack.c.h.b16 %v655
    %v4567 = vunpack.c.l.b16 %v656
    %v4568 = vunpack.c.h.b16 %v656
    %v4569 = vunpack.c.l.b16 %v657
    %v4570 = vunpack.c.h.b16 %v657
    %v4571 = vunpack.c.l.b16 %v658
    %v4572 = vunpack.c.h.b16 %v658
    %v4573 = vunpack.c.l.b16 %v659
    %v4574 = vunpack.c.h.b16 %v659
    %v4575 = vunpack.c.l.b16 %v660
    %v4576 = vunpack.c.h.b16 %v660
    %v4577 = vunpack.c.l.b16 %v661
    %v4578 = vunpack.c.h.b16 %v661
    %v4579 = vunpack.c.l.b16 %v662
    %v4580 = vunpack.c.h.b16 %v662
    %v4581 = vunpack.c.l.b16 %v663
    %v4582 = vunpack.c.h.b16 %v663
    %v4583 = vunpack.c.l.b16 %v664
    %v4584 = vunpack.c.h.b16 %v664
    %v4585 = vunpack.c.l.b16 %v665
    %v4586 = vunpack.c.h.b16 %v665
    %v4587 = vunpack.c.l.b16 %v666
    %v4588 = vunpack.c.h.b16 %v666
    %v4589 = vunpack.c.l.b16 %v667
    %v4590 = vunpack.c.h.b16 %v667
    %v4591 = vunpack.c.l.b16 %v668
    %v4592 = vunpack.c.h.b16 %v668
    %v4593 = vunpack.c.l.b16 %v669
    %v4594 = vunpack.c.h.b16 %v669
    %v4595 = vunpack.c.l.b16 %v670
    %v4596 = vunpack.c.h.b16 %v670
    %v4597 = vunpack.c.l.b16 %v671
    %v4598 = vunpack.c.h.b16 %v671
    %v4599 = vunpack.c.l.b16 %v672
    %v4600 = vunpack.c.h.b16 %v672
    %v4601 = vunpack.c.l.b16 %v673
    %v4602 = vunpack.c.h.b16 %v673
    %v4603 = vunpack.c.l.b16 %v674
    %v4604 = vunpack.c.h.b16 %v674
    %v4605 = vunpack.c.l.b16 %v675
    %v4606 = vunpack.c.h.b16 %v675
    %v4607 = vunpack.c.l.b16 %v676
    %v4608 = vunpack.c.h.b16 %v676
    %v4609 = vunpack.c.l.b16 %v677
    %v4610 = vunpack.c.h.b16 %v677
    %v4611 = vunpack.c.l.b16 %v678
    %v4612 = vunpack.c.h.b16 %v678
    %v4613 = vunpack.c.l.b16 %v679
    %v4614 = vunpack.c.h.b16 %v679
    %v4615 = vunpack.c.l.b16 %v680
    %v4616 = vunpack.c.h.b16 %v680
    %v4617 = vunpack.c.l.b16 %v681
    %v4618 = vunpack.c.h.b16 %v681
    %v4619 = vunpack.c.l.b16 %v682
    %v4620 = vunpack.c.h.b16 %v682
    %v4621 = vunpack.c.l.b16 %v683
    %v4622 = vunpack.c.h.b16 %v683
    %v4623 = vunpack.c.l.b16 %v684
    %v4624 = vunpack.c.h.b16 %v684
    %v4625 = vunpack.c.l.b16 %v685
    %v4626 = vunpack.c.h.b16 %v685
    %v4627 = vunpack.c.l.b16 %v686
    %v4628 = vunpack.c.h.b16 %v686
    %v4629 = vunpack.c.l.b16 %v687
    %v4630 = vunpack.c.h.b16 %v687
    %v4631 = vunpack.c.l.b16 %v688
    %v4632 = vunpack.c.h.b16 %v688
    %v4633 = vunpack.c.l.b16 %v689
    %v4634 = vunpack.c.h.b16 %v689
    %v4635 = vunpack.c.l.b16 %v690
    %v4636 = vunpack.c.h.b16 %v690
    %v4637 = vunpack.c.l.b16 %v691
    %v4638 = vunpack.c.h.b16 %v691
    %v4639 = vunpack.c.l.b16 %v692
    %v4640 = vunpack.c.h.b16 %v692
    %v4641 = vunpack.c.l.b16 %v693
    %v4642 = vunpack.c.h.b16 %v693
    %v4643 = vunpack.c.l.b16 %v694
    %v4644 = vunpack.c.h.b16 %v694
    %v4645 = vunpack.c.l.b16 %v695
    %v4646 = vunpack.c.h.b16 %v695
    %v4647 = vunpack.c.l.b16 %v696
    %v4648 = vunpack.c.h.b16 %v696
    %v4649 = vunpack.c.l.b16 %v697
    %v4650 = vunpack.c.h.b16 %v697
    %v4651 = vunpack.c.l.b16 %v698
    %v4652 = vunpack.c.h.b16 %v698
    %v4653 = vunpack.c.l.b16 %v699
    %v4654 = vunpack.c.h.b16 %v699
    %v4655 = vunpack.c.l.b16 %v700
    %v4656 = vunpack.c.h.b16 %v700
    %v4657 = vunpack.c.l.b16 %v701
    %v4658 = vunpack.c.h.b16 %v701
    %v4659 = vunpack.c.l.b16 %v702
    %v4660 = vunpack.c.h.b16 %v702
    %v4661 = vunpack.c.l.b16 %v703
    %v4662 = vunpack.c.h.b16 %v703
    %v4663 = vunpack.c.l.b16 %v704
    %v4664 = vunpack.c.h.b16 %v704
    %v4665 = vunpack.c.l.b16 %v705
    %v4666 = vunpack.c.h.b16 %v705
    %v4667 = vunpack.c.l.b16 %v706
    %v4668 = vunpack.c.h.b16 %v706
    %v4669 = vunpack.c.l.b16 %v707
    %v4670 = vunpack.c.h.b16 %v707
    %v4671 = vunpack.c.l.b16 %v708
    %v4672 = vunpack.c.h.b16 %v708
    %v4673 = vunpack.c.l.b16 %v709
    %v4674 = vunpack.c.h.b16 %v709
    %v4675 = vunpack.c.l.b16 %v710
    %v4676 = vunpack.c.h.b16 %v710
    %v4677 = vunpack.c.l.b16 %v711
    %v4678 = vunpack.c.h.b16 %v711
    %v4679 = vunpack.c.l.b16 %v712
    %v4680 = vunpack.c.h.b16 %v712
    %v4681 = vunpack.c.l.b16 %v713
    %v4682 = vunpack.c.h.b16 %v713
    %v4683 = vunpack.c.l.b16 %v714
    %v4684 = vunpack.c.h.b16 %v714
    %v4685 = vunpack.c.l.b16 %v715
    %v4686 = vunpack.c.h.b16 %v715
    %v4687 = vunpack.c.l.b16 %v716
    %v4688 = vunpack.c.h.b16 %v716
    %v4689 = vunpack.c.l.b16 %v717
    %v4690 = vunpack.c.h.b16 %v717
    %v4691 = vunpack.c.l.b16 %v718
    %v4692 = vunpack.c.h.b16 %v718
    %v4693 = vunpack.c.l.b16 %v719
    %v4694 = vunpack.c.h.b16 %v719
    %v4695 = vunpack.c.l.b16 %v720
    %v4696 = vunpack.c.h.b16 %v720
    %v4697 = vunpack.c.l.b16 %v721
    %v4698 = vunpack.c.h.b16 %v721
    %v4699 = vunpack.c.l.b16 %v722
    %v4700 = vunpack.c.h.b16 %v722
    %v4701 = vunpack.c.l.b16 %v723
    %v4702 = vunpack.c.h.b16 %v723
    %v4703 = vunpack.c.l.b16 %v724
    %v4704 = vunpack.c.h.b16 %v724
    %v4705 = vunpack.c.l.b16 %v725
    %v4706 = vunpack.c.h.b16 %v725
    %v4707 = vunpack.c.l.b16 %v726
    %v4708 = vunpack.c.h.b16 %v726
    %v4709 = vunpack.c.l.b16 %v727
    %v4710 = vunpack.c.h.b16 %v727
    %v4711 = vunpack.c.l.b16 %v728
    %v4712 = vunpack.c.h.b16 %v728
    %v4713 = vunpack.c.l.b16 %v729
    %v4714 = vunpack.c.h.b16 %v729
    %v4715 = vunpack.c.l.b16 %v730
    %v4716 = vunpack.c.h.b16 %v730
    %v4717 = vunpack.c.l.b16 %v731
    %v4718 = vunpack.c.h.b16 %v731
    %v4719 = vunpack.c.l.b16 %v732
    %v4720 = vunpack.c.h.b16 %v732
    %v4721 = vunpack.c.l.b16 %v733
    %v4722 = vunpack.c.h.b16 %v733
    %v4723 = vunpack.c.l.b16 %v734
    %v4724 = vunpack.c.h.b16 %v734
    %v4725 = vunpack.c.l.b16 %v735
    %v4726 = vunpack.c.h.b16 %v735
    %v4727 = vunpack.c.l.b16 %v736
    %v4728 = vunpack.c.h.b16 %v736
    %v4729 = vunpack.c.l.b16 %v737
    %v4730 = vunpack.c.h.b16 %v737
    %v4731 = vunpack.c.l.b16 %v738
    %v4732 = vunpack.c.h.b16 %v738
    %v4733 = vunpack.c.l.b16 %v739
    %v4734 = vunpack.c.h.b16 %v739
    %v4735 = vunpack.c.l.b16 %v740
    %v4736 = vunpack.c.h.b16 %v740
    %v4737 = vunpack.c.l.b16 %v741
    %v4738 = vunpack.c.h.b16 %v741
    %v4739 = vunpack.c.l.b16 %v742
    %v4740 = vunpack.c.h.b16 %v742
    %v4741 = vunpack.c.l.b16 %v743
    %v4742 = vunpack.c.h.b16 %v743
    %v4743 = vunpack.c.l.b16 %v744
    %v4744 = vunpack.c.h.b16 %v744
    %v4745 = vunpack.c.l.b16 %v745
    %v4746 = vunpack.c.h.b16 %v745
    %v4747 = vunpack.c.l.b16 %v746
    %v4748 = vunpack.c.h.b16 %v746
    %v4749 = vunpack.c.l.b16 %v747
    %v4750 = vunpack.c.h.b16 %v747
    %v4751 = vunpack.c.l.b16 %v748
    %v4752 = vunpack.c.h.b16 %v748
    %v4753 = vunpack.c.l.b16 %v749
    %v4754 = vunpack.c.h.b16 %v749
    %v4755 = vunpack.c.l.b16 %v750
    %v4756 = vunpack.c.h.b16 %v750
    %v4757 = vunpack.c.l.b16 %v751
    %v4758 = vunpack.c.h.b16 %v751
    %v4759 = vunpack.c.l.b16 %v752
    %v4760 = vunpack.c.h.b16 %v752
    %v4761 = vunpack.c.l.b16 %v753
    %v4762 = vunpack.c.h.b16 %v753
    %v4763 = vunpack.c.l.b16 %v754
    %v4764 = vunpack.c.h.b16 %v754
    %v4765 = vunpack.c.l.b16 %v755
    %v4766 = vunpack.c.h.b16 %v755
    %v4767 = vunpack.c.l.b16 %v756
    %v4768 = vunpack.c.h.b16 %v756
    %v4769 = vunpack.c.l.b16 %v757
    %v4770 = vunpack.c.h.b16 %v757
    %v4771 = vunpack.c.l.b16 %v758
    %v4772 = vunpack.c.h.b16 %v758
    %v4773 = vunpack.c.l.b16 %v759
    %v4774 = vunpack.c.h.b16 %v759
    %v4775 = vunpack.c.l.b16 %v760
    %v4776 = vunpack.c.h.b16 %v760
    %v4777 = vunpack.c.l.b16 %v761
    %v4778 = vunpack.c.h.b16 %v761
    %v4779 = vunpack.c.l.b16 %v762
    %v4780 = vunpack.c.h.b16 %v762
    %v4781 = vunpack.c.l.b16 %v763
    %v4782 = vunpack.c.h.b16 %v763
    %v4783 = vunpack.c.l.b16 %v764
    %v4784 = vunpack.c.h.b16 %v764
    %v4785 = vunpack.c.l.b16 %v765
    %v4786 = vunpack.c.h.b16 %v765
    %v4787 = vunpack.c.l.b16 %v766
    %v4788 = vunpack.c.h.b16 %v766
    %v4789 = vunpack.c.l.b16 %v767
    %v4790 = vunpack.c.h.b16 %v767
    %v4791 = vunpack.c.l.b16 %v768
    %v4792 = vunpack.c.h.b16 %v768
    %v4793 = vunpack.c.l.b16 %v769
    %v4794 = vunpack.c.h.b16 %v769
    %v4795 = vunpack.c.l.b16 %v770
    %v4796 = vunpack.c.h.b16 %v770
    %v4797 = vunpack.c.l.b16 %v771
    %v4798 = vunpack.c.h.b16 %v771
    %v4799 = vunpack.c.l.b16 %v772
    %v4800 = vunpack.c.h.b16 %v772
    %v4801 = vunpack.c.l.b16 %v773
    %v4802 = vunpack.c.h.b16 %v773
    %v4803 = vunpack.c.l.b16 %v774
    %v4804 = vunpack.c.h.b16 %v774
    %v4805 = vunpack.c.l.b16 %v775
    %v4806 = vunpack.c.h.b16 %v775
    %v4807 = vunpack.c.l.b16 %v776
    %v4808 = vunpack.c.h.b16 %v776
    %v4809 = vunpack.c.l.b16 %v777
    %v4810 = vunpack.c.h.b16 %v777
    %v4811 = vunpack.c.l.b16 %v778
    %v4812 = vunpack.c.h.b16 %v778
    %v4813 = vunpack.c.l.b16 %v779
    %v4814 = vunpack.c.h.b16 %v779
    %v4815 = vunpack.c.l.b16 %v780
    %v4816 = vunpack.c.h.b16 %v780
    %v4817 = vunpack.c.l.b16 %v781
    %v4818 = vunpack.c.h.b16 %v781
    %v4819 = vunpack.c.l.b16 %v782
    %v4820 = vunpack.c.h.b16 %v782
    %v4821 = vunpack.c.l.b16 %v783
    %v4822 = vunpack.c.h.b16 %v783
    %v4823 = vunpack.c.l.b16 %v784
    %v4824 = vunpack.c.h.b16 %v784
    %v4825 = vunpack.c.l.b16 %v785
    %v4826 = vunpack.c.h.b16 %v785
    %v4827 = vunpack.c.l.b16 %v786
    %v4828 = vunpack.c.h.b16 %v786
    %v4829 = vunpack.c.l.b16 %v787
    %v4830 = vunpack.c.h.b16 %v787
    %v4831 = vunpack.c.l.b16 %v788
    %v4832 = vunpack.c.h.b16 %v788
    %v4833 = vunpack.c.l.b16 %v789
    %v4834 = vunpack.c.h.b16 %v789
    %v4835 = vunpack.c.l.b16 %v790
    %v4836 = vunpack.c.h.b16 %v790
    %v4837 = vunpack.c.l.b16 %v791
    %v4838 = vunpack.c.h.b16 %v791
    %v4839 = vunpack.c.l.b16 %v792
    %v4840 = vunpack.c.h.b16 %v792
    %v4841 = vunpack.c.l.b16 %v793
    %v4842 = vunpack.c.h.b16 %v793
    %v4843 = vunpack.c.l.b16 %v794
    %v4844 = vunpack.c.h.b16 %v794
    %v4845 = vunpack.c.l.b16 %v795
    %v4846 = vunpack.c.h.b16 %v795
    %v4847 = vunpack.c.l.b16 %v796
    %v4848 = vunpack.c.h.b16 %v796
    %v4849 = vunpack.c.l.b16 %v797
    %v4850 = vunpack.c.h.b16 %v797
    %v4851 = vunpack.c.l.b16 %v798
    %v4852 = vunpack.c.h.b16 %v798
    %v4853 = vunpack.c.l.b16 %v799
    %v4854 = vunpack.c.h.b16 %v799
    %v4855 = vunpack.c.l.b16 %v800
    %v4856 = vunpack.c.h.b16 %v800
    %v4857 = vunpack.c.l.b16 %v801
    %v4858 = vunpack.c.h.b16 %v801
    %v4859 = vunpack.c.l.b16 %v802
    %v4860 = vunpack.c.h.b16 %v802
    %v4861 = vunpack.c.l.b16 %v803
    %v4862 = vunpack.c.h.b16 %v803
    %v4863 = vunpack.c.l.b16 %v804
    %v4864 = vunpack.c.h.b16 %v804
    %v4865 = vunpack.c.l.b16 %v805
    %v4866 = vunpack.c.h.b16 %v805
    %v4867 = vunpack.c.l.b16 %v806
    %v4868 = vunpack.c.h.b16 %v806
    %v4869 = vunpack.c.l.b16 %v807
    %v4870 = vunpack.c.h.b16 %v807
    %v4871 = vunpack.c.l.b16 %v808
    %v4872 = vunpack.c.h.b16 %v808
    %v4873 = vunpack.c.l.b16 %v809
    %v4874 = vunpack.c.h.b16 %v809
    %v4875 = vunpack.c.l.b16 %v810
    %v4876 = vunpack.c.h.b16 %v810
    %v4877 = vunpack.c.l.b16 %v811
    %v4878 = vunpack.c.h.b16 %v811
    %v4879 = vunpack.c.l.b16 %v812
    %v4880 = vunpack.c.h.b16 %v812
    %v4881 = vunpack.c.l.b16 %v813
    %v4882 = vunpack.c.h.b16 %v813
    %v4883 = vunpack.c.l.b16 %v814
    %v4884 = vunpack.c.h.b16 %v814
    %v4885 = vunpack.c.l.b16 %v815
    %v4886 = vunpack.c.h.b16 %v815
    %v4887 = vunpack.c.l.b16 %v816
    %v4888 = vunpack.c.h.b16 %v816
    %v4889 = vunpack.c.l.b16 %v817
    %v4890 = vunpack.c.h.b16 %v817
    %v4891 = vunpack.c.l.b16 %v818
    %v4892 = vunpack.c.h.b16 %v818
    %v4893 = vunpack.c.l.b16 %v819
    %v4894 = vunpack.c.h.b16 %v819
    %v4895 = vunpack.c.l.b16 %v820
    %v4896 = vunpack.c.h.b16 %v820
    %v4897 = vunpack.c.l.b16 %v821
    %v4898 = vunpack.c.h.b16 %v821
    %v4899 = vunpack.c.l.b16 %v822
    %v4900 = vunpack.c.h.b16 %v822
    %v4901 = vunpack.c.l.b16 %v823
    %v4902 = vunpack.c.h.b16 %v823
    %v4903 = vunpack.c.l.b16 %v824
    %v4904 = vunpack.c.h.b16 %v824
    %v4905 = vunpack.c.l.b16 %v825
    %v4906 = vunpack.c.h.b16 %v825
    %v4907 = vunpack.c.l.b16 %v826
    %v4908 = vunpack.c.h.b16 %v826
    %v4909 = vunpack.c.l.b16 %v827
    %v4910 = vunpack.c.h.b16 %v827
    %v4911 = vunpack.c.l.b16 %v828
    %v4912 = vunpack.c.h.b16 %v828
    %v4913 = vunpack.c.l.b16 %v829
    %v4914 = vunpack.c.h.b16 %v829
    %v4915 = vunpack.c.l.b16 %v830
    %v4916 = vunpack.c.h.b16 %v830
    %v4917 = vunpack.c.l.b16 %v831
    %v4918 = vunpack.c.h.b16 %v831
    %v4919 = vunpack.c.l.b16 %v832
    %v4920 = vunpack.c.h.b16 %v832
    %v4921 = vunpack.c.l.b16 %v833
    %v4922 = vunpack.c.h.b16 %v833
    %v4923 = vunpack.c.l.b16 %v834
    %v4924 = vunpack.c.h.b16 %v834
    %v4925 = vunpack.c.l.b16 %v835
    %v4926 = vunpack.c.h.b16 %v835
    %v4927 = vunpack.c.l.b16 %v836
    %v4928 = vunpack.c.h.b16 %v836
    %v4929 = vunpack.c.l.b16 %v837
    %v4930 = vunpack.c.h.b16 %v837
    %v4931 = vunpack.c.l.b16 %v838
    %v4932 = vunpack.c.h.b16 %v838
    %v4933 = vunpack.c.l.b16 %v839
    %v4934 = vunpack.c.h.b16 %v839
    %v4935 = vunpack.c.l.b16 %v840
    %v4936 = vunpack.c.h.b16 %v840
    %v4937 = vunpack.c.l.b16 %v841
    %v4938 = vunpack.c.h.b16 %v841
    %v4939 = vunpack.c.l.b16 %v842
    %v4940 = vunpack.c.h.b16 %v842
    %v4941 = vunpack.c.l.b16 %v843
    %v4942 = vunpack.c.h.b16 %v843
    %v4943 = vunpack.c.l.b16 %v844
    %v4944 = vunpack.c.h.b16 %v844
    %v4945 = vunpack.c.l.b16 %v845
    %v4946 = vunpack.c.h.b16 %v845
    %v4947 = vunpack.c.l.b16 %v846
    %v4948 = vunpack.c.h.b16 %v846
    %v4949 = vunpack.c.l.b16 %v847
    %v4950 = vunpack.c.h.b16 %v847
    %v4951 = vunpack.c.l.b16 %v848
    %v4952 = vunpack.c.h.b16 %v848
    %v4953 = vunpack.c.l.b16 %v849
    %v4954 = vunpack.c.h.b16 %v849
    %v4955 = vunpack.c.l.b16 %v850
    %v4956 = vunpack.c.h.b16 %v850
    %v4957 = vunpack.c.l.b16 %v851
    %v4958 = vunpack.c.h.b16 %v851
    %v4959 = vunpack.c.l.b16 %v852
    %v4960 = vunpack.c.h.b16 %v852
    %v4961 = vunpack.c.l.b16 %v853
    %v4962 = vunpack.c.h.b16 %v853
    %v4963 = vunpack.c.l.b16 %v854
    %v4964 = vunpack.c.h.b16 %v854
    %v4965 = vunpack.c.l.b16 %v855
    %v4966 = vunpack.c.h.b16 %v855
    %v4967 = vunpack.c.l.b16 %v856
    %v4968 = vunpack.c.h.b16 %v856
    %v4969 = vunpack.c.l.b16 %v857
    %v4970 = vunpack.c.h.b16 %v857
    %v4971 = vunpack.c.l.b16 %v858
    %v4972 = vunpack.c.h.b16 %v858
    %v4973 = vunpack.c.l.b16 %v859
    %v4974 = vunpack.c.h.b16 %v859
    %v4975 = vunpack.c.l.b16 %v860
    %v4976 = vunpack.c.h.b16 %v860
    %v4977 = vunpack.c.l.b16 %v861
    %v4978 = vunpack.c.h.b16 %v861
    %v4979 = vunpack.c.l.b16 %v862
    %v4980 = vunpack.c.h.b16 %v862
    %v4981 = vunpack.c.l.b16 %v863
    %v4982 = vunpack.c.h.b16 %v863
    %v4983 = vunpack.c.l.b16 %v864
    %v4984 = vunpack.c.h.b16 %v864
    %v4985 = vunpack.c.l.b16 %v865
    %v4986 = vunpack.c.h.b16 %v865
    %v4987 = vunpack.c.l.b16 %v866
    %v4988 = vunpack.c.h.b16 %v866
    %v4989 = vunpack.c.l.b16 %v867
    %v4990 = vunpack.c.h.b16 %v867
    %v4991 = vunpack.c.l.b16 %v868
    %v4992 = vunpack.c.h.b16 %v868
    %v4993 = vunpack.c.l.b16 %v869
    %v4994 = vunpack.c.h.b16 %v869
    %v4995 = vunpack.c.l.b16 %v870
    %v4996 = vunpack.c.h.b16 %v870
    %v4997 = vunpack.c.l.b16 %v871
    %v4998 = vunpack.c.h.b16 %v871
    %v4999 = vunpack.c.l.b16 %v872
    %v5000 = vunpack.c.h.b16 %v872
    %v5001 = vunpack.c.l.b16 %v873
    %v5002 = vunpack.c.h.b16 %v873
    %v5003 = vunpack.c.l.b16 %v874
    %v5004 = vunpack.c.h.b16 %v874
    %v5005 = vunpack.c.l.b16 %v875
    %v5006 = vunpack.c.h.b16 %v875
    %v5007 = vunpack.c.l.b16 %v876
    %v5008 = vunpack.c.h.b16 %v876
    %v5009 = vunpack.c.l.b16 %v877
    %v5010 = vunpack.c.h.b16 %v877
    %v5011 = vunpack.c.l.b16 %v878
    %v5012 = vunpack.c.h.b16 %v878
    %v5013 = vunpack.c.l.b16 %v879
    %v5014 = vunpack.c.h.b16 %v879
    %v5015 = vunpack.c.l.b16 %v880
    %v5016 = vunpack.c.h.b16 %v880
    %v5017 = vunpack.c.l.b16 %v881
    %v5018 = vunpack.c.h.b16 %v881
    %v5019 = vunpack.c.l.b16 %v882
    %v5020 = vunpack.c.h.b16 %v882
    %v5021 = vunpack.c.l.b16 %v883
    %v5022 = vunpack.c.h.b16 %v883
    %v5023 = vunpack.c.l.b16 %v884
    %v5024 = vunpack.c.h.b16 %v884
    %v5025 = vunpack.c.l.b16 %v885
    %v5026 = vunpack.c.h.b16 %v885
    %v5027 = vunpack.c.l.b16 %v886
    %v5028 = vunpack.c.h.b16 %v886
    %v5029 = vunpack.c.l.b16 %v887
    %v5030 = vunpack.c.h.b16 %v887
    %v5031 = vunpack.c.l.b16 %v888
    %v5032 = vunpack.c.h.b16 %v888
    %v5033 = vunpack.c.l.b16 %v889
    %v5034 = vunpack.c.h.b16 %v889
    %v5035 = vunpack.c.l.b16 %v890
    %v5036 = vunpack.c.h.b16 %v890
    %v5037 = vunpack.c.l.b16 %v891
    %v5038 = vunpack.c.h.b16 %v891
    %v5039 = vunpack.c.l.b16 %v892
    %v5040 = vunpack.c.h.b16 %v892
    %v5041 = vunpack.c.l.b16 %v893
    %v5042 = vunpack.c.h.b16 %v893
    %v5043 = vunpack.c.l.b16 %v894
    %v5044 = vunpack.c.h.b16 %v894
    %v5045 = vunpack.c.l.b16 %v895
    %v5046 = vunpack.c.h.b16 %v895
    %v5047 = vunpack.c.l.b16 %v896
    %v5048 = vunpack.c.h.b16 %v896
    %v5049 = vunpack.c.l.b16 %v897
    %v5050 = vunpack.c.h.b16 %v897
    %v5051 = vunpack.c.l.b16 %v898
    %v5052 = vunpack.c.h.b16 %v898
    %v5053 = vunpack.c.l.b16 %v899
    %v5054 = vunpack.c.h.b16 %v899
    %v5055 = vunpack.c.l.b16 %v900
    %v5056 = vunpack.c.h.b16 %v900
    %v5057 = vunpack.c.l.b16 %v901
    %v5058 = vunpack.c.h.b16 %v901
    %v5059 = vunpack.c.l.b16 %v902
    %v5060 = vunpack.c.h.b16 %v902
    %v5061 = vunpack.c.l.b16 %v903
    %v5062 = vunpack.c.h.b16 %v903
    %v5063 = vunpack.c.l.b16 %v904
    %v5064 = vunpack.c.h.b16 %v904
    %v5065 = vunpack.c.l.b16 %v905
    %v5066 = vunpack.c.h.b16 %v905
    %v5067 = vunpack.c.l.b16 %v906
    %v5068 = vunpack.c.h.b16 %v906
    %v5069 = vunpack.c.l.b16 %v907
    %v5070 = vunpack.c.h.b16 %v907
    %v5071 = vunpack.c.l.b16 %v908
    %v5072 = vunpack.c.h.b16 %v908
    %v5073 = vunpack.c.l.b16 %v909
    %v5074 = vunpack.c.h.b16 %v909
    %v5075 = vunpack.c.l.b16 %v910
    %v5076 = vunpack.c.h.b16 %v910
    %v5077 = vunpack.c.l.b16 %v911
    %v5078 = vunpack.c.h.b16 %v911
    %v5079 = vunpack.c.l.b16 %v912
    %v5080 = vunpack.c.h.b16 %v912
    %v5081 = vunpack.c.l.b16 %v913
    %v5082 = vunpack.c.h.b16 %v913
    %v5083 = vunpack.c.l.b16 %v914
    %v5084 = vunpack.c.h.b16 %v914
    %v5085 = vunpack.c.l.b16 %v915
    %v5086 = vunpack.c.h.b16 %v915
    %v5087 = vunpack.c.l.b16 %v916
    %v5088 = vunpack.c.h.b16 %v916
    %v5089 = vunpack.c.l.b16 %v917
    %v5090 = vunpack.c.h.b16 %v917
    %v5091 = vunpack.c.l.b16 %v918
    %v5092 = vunpack.c.h.b16 %v918
    %v5093 = vunpack.c.l.b16 %v919
    %v5094 = vunpack.c.h.b16 %v919
    %v5095 = vunpack.c.l.b16 %v920
    %v5096 = vunpack.c.h.b16 %v920
    %v5097 = vunpack.c.l.b16 %v921
    %v5098 = vunpack.c.h.b16 %v921
    %v5099 = vunpack.c.l.b16 %v922
    %v5100 = vunpack.c.h.b16 %v922
    %v5101 = vunpack.c.l.b16 %v923
    %v5102 = vunpack.c.h.b16 %v923
    %v5103 = vunpack.c.l.b16 %v924
    %v5104 = vunpack.c.h.b16 %v924
    %v5105 = vunpack.c.l.b16 %v925
    %v5106 = vunpack.c.h.b16 %v925
    %v5107 = vunpack.c.l.b16 %v926
    %v5108 = vunpack.c.h.b16 %v926
    %v5109 = vunpack.c.l.b16 %v927
    %v5110 = vunpack.c.h.b16 %v927
    %v5111 = vunpack.c.l.b16 %v928
    %v5112 = vunpack.c.h.b16 %v928
    %v5113 = vunpack.c.l.b16 %v929
    %v5114 = vunpack.c.h.b16 %v929
    %v5115 = vunpack.c.l.b16 %v930
    %v5116 = vunpack.c.h.b16 %v930
    %v5117 = vunpack.c.l.b16 %v931
    %v5118 = vunpack.c.h.b16 %v931
    %v5119 = vunpack.c.l.b16 %v932
    %v5120 = vunpack.c.h.b16 %v932
    %v5121 = vunpack.c.l.b16 %v933
    %v5122 = vunpack.c.h.b16 %v933
    %v5123 = vunpack.c.l.b16 %v934
    %v5124 = vunpack.c.h.b16 %v934
    %v5125 = vunpack.c.l.b16 %v935
    %v5126 = vunpack.c.h.b16 %v935
    %v5127 = vunpack.c.l.b16 %v936
    %v5128 = vunpack.c.h.b16 %v936
    %v5129 = vunpack.c.l.b16 %v937
    %v5130 = vunpack.c.h.b16 %v937
    %v5131 = vunpack.c.l.b16 %v938
    %v5132 = vunpack.c.h.b16 %v938
    %v5133 = vunpack.c.l.b16 %v939
    %v5134 = vunpack.c.h.b16 %v939
    %v5135 = vunpack.c.l.b16 %v940
    %v5136 = vunpack.c.h.b16 %v940
    %v5137 = vunpack.c.l.b16 %v941
    %v5138 = vunpack.c.h.b16 %v941
    %v5139 = vunpack.c.l.b16 %v942
    %v5140 = vunpack.c.h.b16 %v942
    %v5141 = vunpack.c.l.b16 %v943
    %v5142 = vunpack.c.h.b16 %v943
    %v5143 = vunpack.c.l.b16 %v944
    %v5144 = vunpack.c.h.b16 %v944
    %v5145 = vunpack.c.l.b16 %v945
    %v5146 = vunpack.c.h.b16 %v945
    %v5147 = vunpack.c.l.b16 %v946
    %v5148 = vunpack.c.h.b16 %v946
    %v5149 = vunpack.c.l.b16 %v947
    %v5150 = vunpack.c.h.b16 %v947
    %v5151 = vunpack.c.l.b16 %v948
    %v5152 = vunpack.c.h.b16 %v948
    %v5153 = vunpack.c.l.b16 %v949
    %v5154 = vunpack.c.h.b16 %v949
    %v5155 = vunpack.c.l.b16 %v950
    %v5156 = vunpack.c.h.b16 %v950
    %v5157 = vunpack.c.l.b16 %v951
    %v5158 = vunpack.c.h.b16 %v951
    %v5159 = vunpack.c.l.b16 %v952
    %v5160 = vunpack.c.h.b16 %v952
    %v5161 = vunpack.c.l.b16 %v953
    %v5162 = vunpack.c.h.b16 %v953
    %v5163 = vunpack.c.l.b16 %v954
    %v5164 = vunpack.c.h.b16 %v954
    %v5165 = vunpack.c.l.b16 %v955
    %v5166 = vunpack.c.h.b16 %v955
    %v5167 = vunpack.c.l.b16 %v956
    %v5168 = vunpack.c.h.b16 %v956
    %v5169 = vunpack.c.l.b16 %v957
    %v5170 = vunpack.c.h.b16 %v957
    %v5171 = vunpack.c.l.b16 %v958
    %v5172 = vunpack.c.h.b16 %v958
    %v5173 = vunpack.c.l.b16 %v959
    %v5174 = vunpack.c.h.b16 %v959
    %v5175 = vunpack.c.l.b16 %v960
    %v5176 = vunpack.c.h.b16 %v960
    %v5177 = vunpack.c.l.b16 %v961
    %v5178 = vunpack.c.h.b16 %v961
    %v5179 = vunpack.c.l.b16 %v962
    %v5180 = vunpack.c.h.b16 %v962
    %v5181 = vunpack.c.l.b16 %v963
    %v5182 = vunpack.c.h.b16 %v963
    %v5183 = vunpack.c.l.b16 %v964
    %v5184 = vunpack.c.h.b16 %v964
    %v5185 = vunpack.c.l.b16 %v965
    %v5186 = vunpack.c.h.b16 %v965
    %v5187 = vunpack.c.l.b16 %v966
    %v5188 = vunpack.c.h.b16 %v966
    %v5189 = vunpack.c.l.b16 %v967
    %v5190 = vunpack.c.h.b16 %v967
    %v5191 = vunpack.c.l.b16 %v968
    %v5192 = vunpack.c.h.b16 %v968
    %v5193 = vunpack.c.l.b16 %v969
    %v5194 = vunpack.c.h.b16 %v969
    %v5195 = vunpack.c.l.b16 %v970
    %v5196 = vunpack.c.h.b16 %v970
    %v5197 = vunpack.c.l.b16 %v971
    %v5198 = vunpack.c.h.b16 %v971
    %v5199 = vunpack.c.l.b16 %v972
    %v5200 = vunpack.c.h.b16 %v972
    %v5201 = vunpack.c.l.b16 %v973
    %v5202 = vunpack.c.h.b16 %v973
    %v5203 = vunpack.c.l.b16 %v974
    %v5204 = vunpack.c.h.b16 %v974
    %v5205 = vunpack.c.l.b16 %v975
    %v5206 = vunpack.c.h.b16 %v975
    %v5207 = vunpack.c.l.b16 %v976
    %v5208 = vunpack.c.h.b16 %v976
    %v5209 = vunpack.c.l.b16 %v977
    %v5210 = vunpack.c.h.b16 %v977
    %v5211 = vunpack.c.l.b16 %v978
    %v5212 = vunpack.c.h.b16 %v978
    %v5213 = vunpack.c.l.b16 %v979
    %v5214 = vunpack.c.h.b16 %v979
    %v5215 = vunpack.c.l.b16 %v980
    %v5216 = vunpack.c.h.b16 %v980
    %v5217 = vunpack.c.l.b16 %v981
    %v5218 = vunpack.c.h.b16 %v981
    %v5219 = vunpack.c.l.b16 %v982
    %v5220 = vunpack.c.h.b16 %v982
    %v5221 = vunpack.c.l.b16 %v983
    %v5222 = vunpack.c.h.b16 %v983
    %v5223 = vunpack.c.l.b16 %v984
    %v5224 = vunpack.c.h.b16 %v984
    %v5225 = vunpack.c.l.b16 %v985
    %v5226 = vunpack.c.h.b16 %v985
    %v5227 = vunpack.c.l.b16 %v986
    %v5228 = vunpack.c.h.b16 %v986
    %v5229 = vunpack.c.l.b16 %v987
    %v5230 = vunpack.c.h.b16 %v987
    %v5231 = vunpack.c.l.b16 %v988
    %v5232 = vunpack.c.h.b16 %v988
    %v5233 = vunpack.c.l.b16 %v989
    %v5234 = vunpack.c.h.b16 %v989
    %v5235 = vunpack.c.l.b16 %v990
    %v5236 = vunpack.c.h.b16 %v990
    %v5237 = vunpack.c.l.b16 %v991
    %v5238 = vunpack.c.h.b16 %v991
    %v5239 = vunpack.c.l.b16 %v992
    %v5240 = vunpack.c.h.b16 %v992
    %v5241 = vunpack.c.l.b16 %v993
    %v5242 = vunpack.c.h.b16 %v993
    %v5243 = vunpack.c.l.b16 %v994
    %v5244 = vunpack.c.h.b16 %v994
    %v5245 = vunpack.c.l.b16 %v995
    %v5246 = vunpack.c.h.b16 %v995
    %v5247 = vunpack.c.l.b16 %v996
    %v5248 = vunpack.c.h.b16 %v996
    %v5249 = vunpack.c.l.b16 %v997
    %v5250 = vunpack.c.h.b16 %v997
    %v5251 = vunpack.c.l.b16 %v998
    %v5252 = vunpack.c.h.b16 %v998
    %v5253 = vunpack.c.l.b16 %v999
    %v5254 = vunpack.c.h.b16 %v999
    %v5255 = vunpack.c.l.b16 %v1000
    %v5256 = vunpack.c.h.b16 %v1000
    %v5257 = vunpack.c.l.b16 %v1001
    %v5258 = vunpack.c.h.b16 %v1001
    %v5259 = vunpack.c.l.b16 %v1002
    %v5260 = vunpack.c.h.b16 %v1002
    %v5261 = vunpack.c.l.b16 %v1003
    %v5262 = vunpack.c.h.b16 %v1003
    %v5263 = vunpack.c.l.b16 %v1004
    %v5264 = vunpack.c.h.b16 %v1004
    %v5265 = vunpack.c.l.b16 %v1005
    %v5266 = vunpack.c.h.b16 %v1005
    %v5267 = vunpack.c.l.b16 %v1006
    %v5268 = vunpack.c.h.b16 %v1006
    %v5269 = vunpack.c.l.b16 %v1007
    %v5270 = vunpack.c.h.b16 %v1007
    %v5271 = vunpack.c.l.b16 %v1008
    %v5272 = vunpack.c.h.b16 %v1008
    %v5273 = vunpack.c.l.b16 %v1009
    %v5274 = vunpack.c.h.b16 %v1009
    %v5275 = vunpack.c.l.b16 %v1010
    %v5276 = vunpack.c.h.b16 %v1010
    %v5277 = vunpack.c.l.b16 %v1011
    %v5278 = vunpack.c.h.b16 %v1011
    %v5279 = vunpack.c.l.b16 %v1012
    %v5280 = vunpack.c.h.b16 %v1012
    %v5281 = vunpack.c.l.b16 %v1013
    %v5282 = vunpack.c.h.b16 %v1013
    %v5283 = vunpack.c.l.b16 %v1014
    %v5284 = vunpack.c.h.b16 %v1014
    %v5285 = vunpack.c.l.b16 %v1015
    %v5286 = vunpack.c.h.b16 %v1015
    %v5287 = vunpack.c.l.b16 %v1016
    %v5288 = vunpack.c.h.b16 %v1016
    %v5289 = vunpack.c.l.b16 %v1017
    %v5290 = vunpack.c.h.b16 %v1017
    %v5291 = vunpack.c.l.b16 %v1018
    %v5292 = vunpack.c.h.b16 %v1018
    %v5293 = vunpack.c.l.b16 %v1019
    %v5294 = vunpack.c.h.b16 %v1019
    %v5295 = vunpack.c.l.b16 %v1020
    %v5296 = vunpack.c.h.b16 %v1020
    %v5297 = vunpack.c.l.b16 %v1021
    %v5298 = vunpack.c.h.b16 %v1021
    %v5299 = vunpack.c.l.b16 %v1022
    %v5300 = vunpack.c.h.b16 %v1022
    %v5301 = vunpack.c.l.b16 %v1023
    %v5302 = vunpack.c.h.b16 %v1023
    %v5303 = vunpack.c.l.b16 %v1024
    %v5304 = vunpack.c.h.b16 %v1024
    %v5305 = vunpack.c.l.b16 %v1025
    %v5306 = vunpack.c.h.b16 %v1025
    %v5307 = vunpack.c.l.b16 %v1026
    %v5308 = vunpack.c.h.b16 %v1026
    %v5309 = vunpack.c.l.b16 %v1027
    %v5310 = vunpack.c.h.b16 %v1027
    %v5311 = vunpack.c.l.b16 %v1028
    %v5312 = vunpack.c.h.b16 %v1028
    %v5313 = vunpack.c.l.b16 %v1029
    %v5314 = vunpack.c.h.b16 %v1029
    %v5315 = vunpack.c.l.b16 %v1030
    %v5316 = vunpack.c.h.b16 %v1030
    %v5317 = vunpack.c.l.b16 %v1031
    %v5318 = vunpack.c.h.b16 %v1031
    %v5319 = vunpack.c.l.b16 %v1032
    %v5320 = vunpack.c.h.b16 %v1032
    %v5321 = vunpack.c.l.b16 %v1033
    %v5322 = vunpack.c.h.b16 %v1033
    %v5323 = vunpack.c.l.b16 %v1034
    %v5324 = vunpack.c.h.b16 %v1034
    %v5325 = vunpack.c.l.b16 %v1035
    %v5326 = vunpack.c.h.b16 %v1035
    %v5327 = vunpack.c.l.b16 %v1036
    %v5328 = vunpack.c.h.b16 %v1036
    %v5329 = vunpack.c.l.b16 %v1037
    %v5330 = vunpack.c.h.b16 %v1037
    %v5331 = vunpack.c.l.b16 %v1038
    %v5332 = vunpack.c.h.b16 %v1038
    %v5333 = vunpack.c.l.b16 %v1039
    %v5334 = vunpack.c.h.b16 %v1039
    %v5335 = vunpack.c.l.b16 %v1040
    %v5336 = vunpack.c.h.b16 %v1040
    %v5337 = vunpack.c.l.b16 %v1041
    %v5338 = vunpack.c.h.b16 %v1041
    %v5339 = vunpack.c.l.b16 %v1042
    %v5340 = vunpack.c.h.b16 %v1042
    %v5341 = vunpack.c.l.b16 %v1043
    %v5342 = vunpack.c.h.b16 %v1043
    %v5343 = vunpack.c.l.b16 %v1044
    %v5344 = vunpack.c.h.b16 %v1044
    %v5345 = vunpack.c.l.b16 %v1045
    %v5346 = vunpack.c.h.b16 %v1045
    %v5347 = vunpack.c.l.b16 %v1046
    %v5348 = vunpack.c.h.b16 %v1046
    %v5349 = vunpack.c.l.b16 %v1047
    %v5350 = vunpack.c.h.b16 %v1047
    %v5351 = vunpack.c.l.b16 %v1048
    %v5352 = vunpack.c.h.b16 %v1048
    %v5353 = vunpack.c.l.b16 %v1049
    %v5354 = vunpack.c.h.b16 %v1049
    %v5355 = vunpack.c.l.b16 %v1050
    %v5356 = vunpack.c.h.b16 %v1050
    %v5357 = vunpack.c.l.b16 %v1051
    %v5358 = vunpack.c.h.b16 %v1051
    %v5359 = vunpack.c.l.b16 %v1052
    %v5360 = vunpack.c.h.b16 %v1052
    %v5361 = vunpack.c.l.b16 %v1053
    %v5362 = vunpack.c.h.b16 %v1053
    %v5363 = vunpack.c.l.b16 %v1054
    %v5364 = vunpack.c.h.b16 %v1054
    %v5365 = vunpack.c.l.b16 %v1055
    %v5366 = vunpack.c.h.b16 %v1055
    %v5367 = vunpack.c.l.b16 %v1056
    %v5368 = vunpack.c.h.b16 %v1056
    %v5369 = vunpack.c.l.b16 %v1057
    %v5370 = vunpack.c.h.b16 %v1057
    %v5371 = vunpack.c.l.b16 %v1058
    %v5372 = vunpack.c.h.b16 %v1058
    %v5373 = vunpack.c.l.b16 %v1059
    %v5374 = vunpack.c.h.b16 %v1059
    %v5375 = vunpack.c.l.b16 %v1060
    %v5376 = vunpack.c.h.b16 %v1060
    %v5377 = vunpack.c.l.b16 %v1061
    %v5378 = vunpack.c.h.b16 %v1061
    %v5379 = vunpack.c.l.b16 %v1062
    %v5380 = vunpack.c.h.b16 %v1062
    %v5381 = vunpack.c.l.b16 %v1063
    %v5382 = vunpack.c.h.b16 %v1063
    %v5383 = vunpack.c.l.b16 %v1064
    %v5384 = vunpack.c.h.b16 %v1064
    %v5385 = vunpack.c.l.b16 %v1065
    %v5386 = vunpack.c.h.b16 %v1065
    %v5387 = vunpack.c.l.b16 %v1066
    %v5388 = vunpack.c.h.b16 %v1066
    %v5389 = vunpack.c.l.b16 %v1067
    %v5390 = vunpack.c.h.b16 %v1067
    %v5391 = vunpack.c.l.b16 %v1068
    %v5392 = vunpack.c.h.b16 %v1068
    %v5393 = vunpack.c.l.b16 %v1069
    %v5394 = vunpack.c.h.b16 %v1069
    %v5395 = vunpack.c.l.b16 %v1070
    %v5396 = vunpack.c.h.b16 %v1070
    %v5397 = vunpack.c.l.b16 %v1071
    %v5398 = vunpack.c.h.b16 %v1071
    %v5399 = vunpack.c.l.b16 %v1072
    %v5400 = vunpack.c.h.b16 %v1072
    %v5401 = vunpack.c.l.b16 %v1073
    %v5402 = vunpack.c.h.b16 %v1073
    %v5403 = vunpack.c.l.b16 %v1074
    %v5404 = vunpack.c.h.b16 %v1074
    %v5405 = vunpack.c.l.b16 %v1075
    %v5406 = vunpack.c.h.b16 %v1075
    %v5407 = vunpack.c.l.b16 %v1076
    %v5408 = vunpack.c.h.b16 %v1076
    %v5409 = vunpack.c.l.b16 %v1077
    %v5410 = vunpack.c.h.b16 %v1077
    %v5411 = vunpack.c.l.b16 %v1078
    %v5412 = vunpack.c.h.b16 %v1078
    %v5413 = vunpack.c.l.b16 %v1079
    %v5414 = vunpack.c.h.b16 %v1079
    %v5415 = vunpack.c.l.b16 %v1080
    %v5416 = vunpack.c.h.b16 %v1080
    %v5417 = vunpack.c.l.b16 %v1081
    %v5418 = vunpack.c.h.b16 %v1081
    %v5419 = vunpack.c.l.b16 %v1082
    %v5420 = vunpack.c.h.b16 %v1082
    %v5421 = vunpack.c.l.b16 %v1083
    %v5422 = vunpack.c.h.b16 %v1083
    %v5423 = vunpack.c.l.b16 %v1084
    %v5424 = vunpack.c.h.b16 %v1084
    %v5425 = vunpack.c.l.b16 %v1085
    %v5426 = vunpack.c.h.b16 %v1085
    %v5427 = vunpack.c.l.b16 %v1086
    %v5428 = vunpack.c.h.b16 %v1086
    %v5429 = vunpack.c.l.b16 %v1087
    %v5430 = vunpack.c.h.b16 %v1087
    %v5431 = vunpack.c.l.b16 %v1088
    %v5432 = vunpack.c.h.b16 %v1088
    %v5433 = vunpack.c.l.b16 %v1089
    %v5434 = vunpack.c.h.b16 %v1089
    %v5435 = vunpack.c.l.b16 %v1090
    %v5436 = vunpack.c.h.b16 %v1090
    %v5437 = vunpack.c.l.b16 %v1091
    %v5438 = vunpack.c.h.b16 %v1091
    %v5439 = vunpack.c.l.b16 %v1092
    %v5440 = vunpack.c.h.b16 %v1092
    %v5441 = vunpack.c.l.b16 %v1093
    %v5442 = vunpack.c.h.b16 %v1093
    %v5443 = vunpack.c.l.b16 %v1094
    %v5444 = vunpack.c.h.b16 %v1094
    %v5445 = vunpack.c.l.b16 %v1095
    %v5446 = vunpack.c.h.b16 %v1095
    %v5447 = vunpack.c.l.b16 %v1096
    %v5448 = vunpack.c.h.b16 %v1096
    %v5449 = vunpack.c.l.b16 %v1097
    %v5450 = vunpack.c.h.b16 %v1097
    %v5451 = vunpack.c.l.b16 %v1098
    %v5452 = vunpack.c.h.b16 %v1098
    %v5453 = vunpack.c.l.b16 %v1099
    %v5454 = vunpack.c.h.b16 %v1099
    %v5455 = vunpack.c.l.b16 %v1100
    %v5456 = vunpack.c.h.b16 %v1100
    %v5457 = vunpack.c.l.b16 %v1101
    %v5458 = vunpack.c.h.b16 %v1101
    %v5459 = vunpack.c.l.b16 %v1102
    %v5460 = vunpack.c.h.b16 %v1102
    %v5461 = vunpack.c.l.b16 %v1103
    %v5462 = vunpack.c.h.b16 %v1103
    %v5463 = vunpack.c.l.b16 %v1104
    %v5464 = vunpack.c.h.b16 %v1104
    %v5465 = vunpack.c.l.b16 %v1105
    %v5466 = vunpack.c.h.b16 %v1105
    %v5467 = vunpack.c.l.b16 %v1106
    %v5468 = vunpack.c.h.b16 %v1106
    %v5469 = vunpack.c.l.b16 %v1107
    %v5470 = vunpack.c.h.b16 %v1107
    %v5471 = vunpack.c.l.b16 %v1108
    %v5472 = vunpack.c.h.b16 %v1108
    %v5473 = vunpack.c.l.b16 %v1109
    %v5474 = vunpack.c.h.b16 %v1109
    %v5475 = vunpack.c.l.b16 %v1110
    %v5476 = vunpack.c.h.b16 %v1110
    %v5477 = vunpack.c.l.b16 %v1111
    %v5478 = vunpack.c.h.b16 %v1111
    %v5479 = vunpack.c.l.b16 %v1112
    %v5480 = vunpack.c.h.b16 %v1112
    %v5481 = vunpack.c.l.b16 %v1113
    %v5482 = vunpack.c.h.b16 %v1113
    %v5483 = vunpack.c.l.b16 %v1114
    %v5484 = vunpack.c.h.b16 %v1114
    %v5485 = vunpack.c.l.b16 %v1115
    %v5486 = vunpack.c.h.b16 %v1115
    %v5487 = vunpack.c.l.b16 %v1116
    %v5488 = vunpack.c.h.b16 %v1116
    %v5489 = vunpack.c.l.b16 %v1117
    %v5490 = vunpack.c.h.b16 %v1117
    %v5491 = vunpack.c.l.b16 %v1118
    %v5492 = vunpack.c.h.b16 %v1118
    %v5493 = vunpack.c.l.b16 %v1119
    %v5494 = vunpack.c.h.b16 %v1119
    %v5495 = vunpack.c.l.b16 %v1120
    %v5496 = vunpack.c.h.b16 %v1120
    %v5497 = vunpack.c.l.b16 %v1121
    %v5498 = vunpack.c.h.b16 %v1121
    %v5499 = vunpack.c.l.b16 %v1122
    %v5500 = vunpack.c.h.b16 %v1122
    %v5501 = vunpack.c.l.b16 %v1123
    %v5502 = vunpack.c.h.b16 %v1123
    %v5503 = vunpack.c.l.b16 %v1124
    %v5504 = vunpack.c.h.b16 %v1124
    %v5505 = vunpack.c.l.b16 %v1125
    %v5506 = vunpack.c.h.b16 %v1125
    %v5507 = vunpack.c.l.b16 %v1126
    %v5508 = vunpack.c.h.b16 %v1126
    %v5509 = vunpack.c.l.b16 %v1127
    %v5510 = vunpack.c.h.b16 %v1127
    %v5511 = vunpack.c.l.b16 %v1128
    %v5512 = vunpack.c.h.b16 %v1128
    %v5513 = vunpack.c.l.b16 %v1129
    %v5514 = vunpack.c.h.b16 %v1129
    %v5515 = vunpack.c.l.b16 %v1130
    %v5516 = vunpack.c.h.b16 %v1130
    %v5517 = vunpack.c.l.b16 %v1131
    %v5518 = vunpack.c.h.b16 %v1131
    %v5519 = vunpack.c.l.b16 %v1132
    %v5520 = vunpack.c.h.b16 %v1132
    %v5521 = vunpack.c.l.b16 %v1133
    %v5522 = vunpack.c.h.b16 %v1133
    %v5523 = vunpack.c.l.b16 %v1134
    %v5524 = vunpack.c.h.b16 %v1134
    %v5525 = vunpack.c.l.b16 %v1135
    %v5526 = vunpack.c.h.b16 %v1135
    %v5527 = vunpack.c.l.b16 %v1136
    %v5528 = vunpack.c.h.b16 %v1136
    %v5529 = vunpack.c.l.b16 %v1137
    %v5530 = vunpack.c.h.b16 %v1137
    %v5531 = vunpack.c.l.b16 %v1138
    %v5532 = vunpack.c.h.b16 %v1138
    %v5533 = vunpack.c.l.b16 %v1139
    %v5534 = vunpack.c.h.b16 %v1139
    %v5535 = vunpack.c.l.b16 %v1140
    %v5536 = vunpack.c.h.b16 %v1140
    %v5537 = vunpack.c.l.b16 %v1141
    %v5538 = vunpack.c.h.b16 %v1141
    %v5539 = vunpack.c.l.b16 %v1142
    %v5540 = vunpack.c.h.b16 %v1142
    %v5541 = vunpack.c.l.b16 %v1143
    %v5542 = vunpack.c.h.b16 %v1143
    %v5543 = vunpack.c.l.b16 %v1144
    %v5544 = vunpack.c.h.b16 %v1144
    %v5545 = vunpack.c.l.b16 %v1145
    %v5546 = vunpack.c.h.b16 %v1145
    %v5547 = vunpack.c.l.b16 %v1146
    %v5548 = vunpack.c.h.b16 %v1146
    %v5549 = vunpack.c.l.b16 %v1147
    %v5550 = vunpack.c.h.b16 %v1147
    %v5551 = vunpack.c.l.b16 %v1148
    %v5552 = vunpack.c.h.b16 %v1148
    %v5553 = vunpack.c.l.b16 %v1149
    %v5554 = vunpack.c.h.b16 %v1149
    %v5555 = vunpack.c.l.b16 %v1150
    %v5556 = vunpack.c.h.b16 %v1150
    %v5557 = vunpack.c.l.b16 %v1151
    %v5558 = vunpack.c.h.b16 %v1151
    %v5559 = vunpack.c.l.b16 %v1152
    %v5560 = vunpack.c.h.b16 %v1152
    %v5561 = vunpack.c.l.b16 %v1153
    %v5562 = vunpack.c.h.b16 %v1153
    %v5563 = vunpack.c.l.b16 %v1154
    %v5564 = vunpack.c.h.b16 %v1154
    %v5565 = vunpack.c.l.b16 %v1155
    %v5566 = vunpack.c.h.b16 %v1155
    %v5567 = vunpack.c.l.b16 %v1156
    %v5568 = vunpack.c.h.b16 %v1156
    %v5569 = vunpack.c.l.b16 %v1157
    %v5570 = vunpack.c.h.b16 %v1157
    %v5571 = vunpack.c.l.b16 %v1158
    %v5572 = vunpack.c.h.b16 %v1158
    %v5573 = vunpack.c.l.b16 %v1159
    %v5574 = vunpack.c.h.b16 %v1159
    %v5575 = vunpack.c.l.b16 %v1160
    %v5576 = vunpack.c.h.b16 %v1160
    %v5577 = vunpack.c.l.b16 %v1161
    %v5578 = vunpack.c.h.b16 %v1161
    %v5579 = vunpack.c.l.b16 %v1162
    %v5580 = vunpack.c.h.b16 %v1162
    %v5581 = vunpack.c.l.b16 %v1163
    %v5582 = vunpack.c.h.b16 %v1163
    %v5583 = vunpack.c.l.b16 %v1164
    %v5584 = vunpack.c.h.b16 %v1164
    %v5585 = vunpack.c.l.b16 %v1165
    %v5586 = vunpack.c.h.b16 %v1165
    %v5587 = vunpack.c.l.b16 %v1166
    %v5588 = vunpack.c.h.b16 %v1166
    %v5589 = vunpack.c.l.b16 %v1167
    %v5590 = vunpack.c.h.b16 %v1167
    %v5591 = vunpack.c.l.b16 %v1168
    %v5592 = vunpack.c.h.b16 %v1168
    %v5593 = vunpack.c.l.b16 %v1169
    %v5594 = vunpack.c.h.b16 %v1169
    %v5595 = vunpack.c.l.b16 %v1170
    %v5596 = vunpack.c.h.b16 %v1170
    %v5597 = vunpack.c.l.b16 %v1171
    %v5598 = vunpack.c.h.b16 %v1171
    %v5599 = vunpack.c.l.b16 %v1172
    %v5600 = vunpack.c.h.b16 %v1172
    %v5601 = vunpack.c.l.b16 %v1173
    %v5602 = vunpack.c.h.b16 %v1173
    %v5603 = vunpack.c.l.b16 %v1174
    %v5604 = vunpack.c.h.b16 %v1174
    %v5605 = vunpack.c.l.b16 %v1175
    %v5606 = vunpack.c.h.b16 %v1175
    %v5607 = vunpack.c.l.b16 %v1176
    %v5608 = vunpack.c.h.b16 %v1176
    %v5609 = vunpack.c.l.b16 %v1177
    %v5610 = vunpack.c.h.b16 %v1177
    %v5611 = vunpack.c.l.b16 %v1178
    %v5612 = vunpack.c.h.b16 %v1178
    %v5613 = vunpack.c.l.b16 %v1179
    %v5614 = vunpack.c.h.b16 %v1179
    %v5615 = vunpack.c.l.b16 %v1180
    %v5616 = vunpack.c.h.b16 %v1180
    %v5617 = vunpack.c.l.b16 %v1181
    %v5618 = vunpack.c.h.b16 %v1181
    %v5619 = vunpack.c.l.b16 %v1182
    %v5620 = vunpack.c.h.b16 %v1182
    %v5621 = vunpack.c.l.b16 %v1183
    %v5622 = vunpack.c.h.b16 %v1183
    %v5623 = vunpack.c.l.b16 %v1184
    %v5624 = vunpack.c.h.b16 %v1184
    %v5625 = vunpack.c.l.b16 %v1185
    %v5626 = vunpack.c.h.b16 %v1185
    %v5627 = vunpack.c.l.b16 %v1186
    %v5628 = vunpack.c.h.b16 %v1186
    %v5629 = vunpack.c.l.b16 %v1187
    %v5630 = vunpack.c.h.b16 %v1187
    %v5631 = vunpack.c.l.b16 %v1188
    %v5632 = vunpack.c.h.b16 %v1188
    %v5633 = vunpack.c.l.b16 %v1189
    %v5634 = vunpack.c.h.b16 %v1189
    %v5635 = vunpack.c.l.b16 %v1190
    %v5636 = vunpack.c.h.b16 %v1190
    %v5637 = vunpack.c.l.b16 %v1191
    %v5638 = vunpack.c.h.b16 %v1191
    %v5639 = vunpack.c.l.b16 %v1192
    %v5640 = vunpack.c.h.b16 %v1192
    %v5641 = vunpack.c.l.b16 %v1193
    %v5642 = vunpack.c.h.b16 %v1193
    %v5643 = vunpack.c.l.b16 %v1194
    %v5644 = vunpack.c.h.b16 %v1194
    %v5645 = vunpack.c.l.b16 %v1195
    %v5646 = vunpack.c.h.b16 %v1195
    %v5647 = vunpack.c.l.b16 %v1196
    %v5648 = vunpack.c.h.b16 %v1196
    %v5649 = vunpack.c.l.b16 %v1197
    %v5650 = vunpack.c.h.b16 %v1197
    %v5651 = vunpack.c.l.b16 %v1198
    %v5652 = vunpack.c.h.b16 %v1198
    %v5653 = vunpack.c.l.b16 %v1199
    %v5654 = vunpack.c.h.b16 %v1199
    %v5655 = vunpack.c.l.b16 %v1200
    %v5656 = vunpack.c.h.b16 %v1200
    %v5657 = vunpack.c.l.b16 %v1201
    %v5658 = vunpack.c.h.b16 %v1201
    %v5659 = vunpack.c.l.b16 %v1202
    %v5660 = vunpack.c.h.b16 %v1202
    %v5661 = vunpack.c.l.b16 %v1203
    %v5662 = vunpack.c.h.b16 %v1203
    %v5663 = vunpack.c.l.b16 %v1204
    %v5664 = vunpack.c.h.b16 %v1204
    %v5665 = vunpack.c.l.b16 %v1205
    %v5666 = vunpack.c.h.b16 %v1205
    %v5667 = vunpack.c.l.b16 %v1206
    %v5668 = vunpack.c.h.b16 %v1206
    %v5669 = vunpack.c.l.b16 %v1207
    %v5670 = vunpack.c.h.b16 %v1207
    %v5671 = vunpack.c.l.b16 %v1208
    %v5672 = vunpack.c.h.b16 %v1208
    %v5673 = vunpack.c.l.b16 %v1209
    %v5674 = vunpack.c.h.b16 %v1209
    %v5675 = vunpack.c.l.b16 %v1210
    %v5676 = vunpack.c.h.b16 %v1210
    %v5677 = vunpack.c.l.b16 %v1211
    %v5678 = vunpack.c.h.b16 %v1211
    %v5679 = vunpack.c.l.b16 %v1212
    %v5680 = vunpack.c.h.b16 %v1212
    %v5681 = vunpack.c.l.b16 %v1213
    %v5682 = vunpack.c.h.b16 %v1213
    %v5683 = vunpack.c.l.b16 %v1214
    %v5684 = vunpack.c.h.b16 %v1214
    %v5685 = vunpack.c.l.b16 %v1215
    %v5686 = vunpack.c.h.b16 %v1215
    %v5687 = vunpack.c.l.b16 %v1216
    %v5688 = vunpack.c.h.b16 %v1216
    %v5689 = vunpack.c.l.b16 %v1217
    %v5690 = vunpack.c.h.b16 %v1217
    %v5691 = vunpack.c.l.b16 %v1218
    %v5692 = vunpack.c.h.b16 %v1218
    %v5693 = vunpack.c.l.b16 %v1219
    %v5694 = vunpack.c.h.b16 %v1219
    %v5695 = vunpack.c.l.b16 %v1220
    %v5696 = vunpack.c.h.b16 %v1220
    %v5697 = vunpack.c.l.b16 %v1221
    %v5698 = vunpack.c.h.b16 %v1221
    %v5699 = vunpack.c.l.b16 %v1222
    %v5700 = vunpack.c.h.b16 %v1222
    %v5701 = vunpack.c.l.b16 %v1223
    %v5702 = vunpack.c.h.b16 %v1223
    %v5703 = vunpack.c.l.b16 %v1224
    %v5704 = vunpack.c.h.b16 %v1224
    %v5705 = vunpack.c.l.b16 %v1225
    %v5706 = vunpack.c.h.b16 %v1225
    %v5707 = vunpack.c.l.b16 %v1226
    %v5708 = vunpack.c.h.b16 %v1226
    %v5709 = vunpack.c.l.b16 %v1227
    %v5710 = vunpack.c.h.b16 %v1227
    %v5711 = vunpack.c.l.b16 %v1228
    %v5712 = vunpack.c.h.b16 %v1228
    %v5713 = vunpack.c.l.b16 %v1229
    %v5714 = vunpack.c.h.b16 %v1229
    %v5715 = vunpack.c.l.b16 %v1230
    %v5716 = vunpack.c.h.b16 %v1230
    %v5717 = vunpack.c.l.b16 %v1231
    %v5718 = vunpack.c.h.b16 %v1231
    %v5719 = vunpack.c.l.b16 %v1232
    %v5720 = vunpack.c.h.b16 %v1232
    %v5721 = vunpack.c.l.b16 %v1233
    %v5722 = vunpack.c.h.b16 %v1233
    %v5723 = vunpack.c.l.b16 %v1234
    %v5724 = vunpack.c.h.b16 %v1234
    %v5725 = vunpack.c.l.b16 %v1235
    %v5726 = vunpack.c.h.b16 %v1235
    %v5727 = vunpack.c.l.b16 %v1236
    %v5728 = vunpack.c.h.b16 %v1236
    %v5729 = vunpack.c.l.b16 %v1237
    %v5730 = vunpack.c.h.b16 %v1237
    %v5731 = vunpack.c.l.b16 %v1238
    %v5732 = vunpack.c.h.b16 %v1238
    %v5733 = vunpack.c.l.b16 %v1239
    %v5734 = vunpack.c.h.b16 %v1239
    %v5735 = vunpack.c.l.b16 %v1240
    %v5736 = vunpack.c.h.b16 %v1240
    %v5737 = vunpack.c.l.b16 %v1241
    %v5738 = vunpack.c.h.b16 %v1241
    %v5739 = vunpack.c.l.b16 %v1242
    %v5740 = vunpack.c.h.b16 %v1242
    %v5741 = vunpack.c.l.b16 %v1243
    %v5742 = vunpack.c.h.b16 %v1243
    %v5743 = vunpack.c.l.b16 %v1244
    %v5744 = vunpack.c.h.b16 %v1244
    %v5745 = vunpack.c.l.b16 %v1245
    %v5746 = vunpack.c.h.b16 %v1245
    %v5747 = vunpack.c.l.b16 %v1246
    %v5748 = vunpack.c.h.b16 %v1246
    %v5749 = vunpack.c.l.b16 %v1247
    %v5750 = vunpack.c.h.b16 %v1247
    %v5751 = vunpack.c.l.b16 %v1248
    %v5752 = vunpack.c.h.b16 %v1248
    %v5753 = vunpack.c.l.b16 %v1249
    %v5754 = vunpack.c.h.b16 %v1249
    %v5755 = vunpack.c.l.b16 %v1250
    %v5756 = vunpack.c.h.b16 %v1250
    %v5757 = vunpack.c.l.b16 %v1251
    %v5758 = vunpack.c.h.b16 %v1251
    %v5759 = vunpack.c.l.b16 %v1252
    %v5760 = vunpack.c.h.b16 %v1252
    %v5761 = vunpack.c.l.b16 %v1253
    %v5762 = vunpack.c.h.b16 %v1253
    %v5763 = vunpack.c.l.b16 %v1254
    %v5764 = vunpack.c.h.b16 %v1254
    %v5765 = vunpack.c.l.b16 %v1255
    %v5766 = vunpack.c.h.b16 %v1255
    %v5767 = vunpack.c.l.b16 %v1256
    %v5768 = vunpack.c.h.b16 %v1256
    %v5769 = vunpack.c.l.b16 %v1257
    %v5770 = vunpack.c.h.b16 %v1257
    %v5771 = vunpack.c.l.b16 %v1258
    %v5772 = vunpack.c.h.b16 %v1258
    %v5773 = vunpack.c.l.b16 %v1259
    %v5774 = vunpack.c.h.b16 %v1259
    %v5775 = vunpack.c.l.b16 %v1260
    %v5776 = vunpack.c.h.b16 %v1260
    %v5777 = vunpack.c.l.b16 %v1261
    %v5778 = vunpack.c.h.b16 %v1261
    %v5779 = vunpack.c.l.b16 %v1262
    %v5780 = vunpack.c.h.b16 %v1262
    %v5781 = vunpack.c.l.b16 %v1263
    %v5782 = vunpack.c.h.b16 %v1263
    %v5783 = vunpack.c.l.b16 %v1264
    %v5784 = vunpack.c.h.b16 %v1264
    %v5785 = vunpack.c.l.b16 %v1265
    %v5786 = vunpack.c.h.b16 %v1265
    %v5787 = vunpack.c.l.b16 %v1266
    %v5788 = vunpack.c.h.b16 %v1266
    %v5789 = vunpack.c.l.b16 %v1267
    %v5790 = vunpack.c.h.b16 %v1267
    %v5791 = vunpack.c.l.b16 %v1268
    %v5792 = vunpack.c.h.b16 %v1268
    %v5793 = vunpack.c.l.b16 %v1269
    %v5794 = vunpack.c.h.b16 %v1269
    %v5795 = vunpack.c.l.b16 %v1270
    %v5796 = vunpack.c.h.b16 %v1270
    %v5797 = vunpack.c.l.b16 %v1271
    %v5798 = vunpack.c.h.b16 %v1271
    %v5799 = vunpack.c.l.b16 %v1272
    %v5800 = vunpack.c.h.b16 %v1272
    %v5801 = vunpack.c.l.b16 %v1273
    %v5802 = vunpack.c.h.b16 %v1273
    %v5803 = vunpack.c.l.b16 %v1274
    %v5804 = vunpack.c.h.b16 %v1274
    %v5805 = vunpack.c.l.b16 %v1275
    %v5806 = vunpack.c.h.b16 %v1275
    %v5807 = vunpack.c.l.b16 %v1276
    %v5808 = vunpack.c.h.b16 %v1276
    %v5809 = vunpack.c.l.b16 %v1277
    %v5810 = vunpack.c.h.b16 %v1277
    %v5811 = vunpack.c.l.b16 %v1278
    %v5812 = vunpack.c.h.b16 %v1278
    %v5813 = vunpack.c.l.b16 %v1279
    %v5814 = vunpack.c.h.b16 %v1279
    %v5815 = vunpack.c.l.b16 %v1280
    %v5816 = vunpack.c.h.b16 %v1280
    %v5817 = vunpack.c.l.b16 %v1281
    %v5818 = vunpack.c.h.b16 %v1281
    %v5819 = vunpack.c.l.b16 %v1282
    %v5820 = vunpack.c.h.b16 %v1282
    %v5821 = vunpack.c.l.b16 %v1283
    %v5822 = vunpack.c.h.b16 %v1283
    %v5823 = vunpack.c.l.b16 %v1284
    %v5824 = vunpack.c.h.b16 %v1284
    %v5825 = vunpack.c.l.b16 %v1285
    %v5826 = vunpack.c.h.b16 %v1285
    %v5827 = vunpack.c.l.b16 %v1286
    %v5828 = vunpack.c.h.b16 %v1286
    %v5829 = vunpack.c.l.b16 %v1287
    %v5830 = vunpack.c.h.b16 %v1287
    %v5831 = vunpack.c.l.b16 %v1288
    %v5832 = vunpack.c.h.b16 %v1288
    %v5833 = vunpack.c.l.b16 %v1289
    %v5834 = vunpack.c.h.b16 %v1289
    %v5835 = vunpack.c.l.b16 %v1290
    %v5836 = vunpack.c.h.b16 %v1290
    %v5837 = vunpack.c.l.b16 %v1291
    %v5838 = vunpack.c.h.b16 %v1291
    %v5839 = vunpack.c.l.b16 %v1292
    %v5840 = vunpack.c.h.b16 %v1292
    %v5841 = vunpack.c.l.b16 %v1293
    %v5842 = vunpack.c.h.b16 %v1293
    %v5843 = vunpack.c.l.b16 %v1294
    %v5844 = vunpack.c.h.b16 %v1294
    %v5845 = vunpack.c.l.b16 %v1295
    %v5846 = vunpack.c.h.b16 %v1295
    %v5847 = vunpack.c.l.b16 %v1296
    %v5848 = vunpack.c.h.b16 %v1296
    %v5849 = vunpack.c.l.b16 %v1297
    %v5850 = vunpack.c.h.b16 %v1297
    %v5851 = vunpack.c.l.b16 %v1298
    %v5852 = vunpack.c.h.b16 %v1298
    %v5853 = vunpack.c.l.b16 %v1299
    %v5854 = vunpack.c.h.b16 %v1299
    %v5855 = vunpack.c.l.b16 %v1300
    %v5856 = vunpack.c.h.b16 %v1300
    %v5857 = vunpack.c.l.b16 %v1301
    %v5858 = vunpack.c.h.b16 %v1301
    %v5859 = vunpack.c.l.b16 %v1302
    %v5860 = vunpack.c.h.b16 %v1302
    %v5861 = vunpack.c.l.b16 %v1303
    %v5862 = vunpack.c.h.b16 %v1303
    %v5863 = vunpack.c.l.b16 %v1304
    %v5864 = vunpack.c.h.b16 %v1304
    %v5865 = vunpack.c.l.b16 %v1305
    %v5866 = vunpack.c.h.b16 %v1305
    %v5867 = vunpack.c.l.b16 %v1306
    %v5868 = vunpack.c.h.b16 %v1306
    %v5869 = vunpack.c.l.b16 %v1307
    %v5870 = vunpack.c.h.b16 %v1307
    %v5871 = vunpack.c.l.b16 %v1308
    %v5872 = vunpack.c.h.b16 %v1308
    %v5873 = vunpack.c.l.b16 %v1309
    %v5874 = vunpack.c.h.b16 %v1309
    %v5875 = vunpack.c.l.b16 %v1310
    %v5876 = vunpack.c.h.b16 %v1310
    %v5877 = vunpack.c.l.b16 %v1311
    %v5878 = vunpack.c.h.b16 %v1311
    %v5879 = vunpack.c.l.b16 %v1312
    %v5880 = vunpack.c.h.b16 %v1312
    %v5881 = vunpack.c.l.b16 %v1313
    %v5882 = vunpack.c.h.b16 %v1313
    %v5883 = vunpack.c.l.b16 %v1314
    %v5884 = vunpack.c.h.b16 %v1314
    %v5885 = vunpack.c.l.b16 %v1315
    %v5886 = vunpack.c.h.b16 %v1315
    %v5887 = vunpack.c.l.b16 %v1316
    %v5888 = vunpack.c.h.b16 %v1316
    %v5889 = vunpack.c.l.b16 %v1317
    %v5890 = vunpack.c.h.b16 %v1317
    %v5891 = vunpack.c.l.b16 %v1318
    %v5892 = vunpack.c.h.b16 %v1318
    %v5893 = vunpack.c.l.b16 %v1319
    %v5894 = vunpack.c.h.b16 %v1319
    %v5895 = vunpack.c.l.b16 %v1320
    %v5896 = vunpack.c.h.b16 %v1320
    %v5897 = vunpack.c.l.b16 %v1321
    %v5898 = vunpack.c.h.b16 %v1321
    %v5899 = vunpack.c.l.b16 %v1322
    %v5900 = vunpack.c.h.b16 %v1322
    %v5901 = vunpack.c.l.b16 %v1323
    %v5902 = vunpack.c.h.b16 %v1323
    %v5903 = vunpack.c.l.b16 %v1324
    %v5904 = vunpack.c.h.b16 %v1324
    %v5905 = vunpack.c.l.b16 %v1325
    %v5906 = vunpack.c.h.b16 %v1325
    %v5907 = vunpack.c.l.b16 %v1326
    %v5908 = vunpack.c.h.b16 %v1326
    %v5909 = vunpack.c.l.b16 %v1327
    %v5910 = vunpack.c.h.b16 %v1327
    %v5911 = vunpack.c.l.b16 %v1328
    %v5912 = vunpack.c.h.b16 %v1328
    %v5913 = vunpack.c.l.b16 %v1329
    %v5914 = vunpack.c.h.b16 %v1329
    %v5915 = vunpack.c.l.b16 %v1330
    %v5916 = vunpack.c.h.b16 %v1330
    %v5917 = vunpack.c.l.b16 %v1331
    %v5918 = vunpack.c.h.b16 %v1331
    %v5919 = vunpack.c.l.b16 %v1332
    %v5920 = vunpack.c.h.b16 %v1332
    %v5921 = vunpack.c.l.b16 %v1333
    %v5922 = vunpack.c.h.b16 %v1333
    %v5923 = vunpack.c.l.b16 %v1334
    %v5924 = vunpack.c.h.b16 %v1334
    %v5925 = vunpack.c.l.b16 %v1335
    %v5926 = vunpack.c.h.b16 %v1335
    %v5927 = vunpack.c.l.b16 %v1336
    %v5928 = vunpack.c.h.b16 %v1336
    %v5929 = vunpack.c.l.b16 %v1337
    %v5930 = vunpack.c.h.b16 %v1337
    %v5931 = vunpack.c.l.b16 %v1338
    %v5932 = vunpack.c.h.b16 %v1338
    %v5933 = vunpack.c.l.b16 %v1339
    %v5934 = vunpack.c.h.b16 %v1339
    %v5935 = vunpack.c.l.b16 %v1340
    %v5936 = vunpack.c.h.b16 %v1340
    %v5937 = vunpack.c.l.b16 %v1341
    %v5938 = vunpack.c.h.b16 %v1341
    %v5939 = vunpack.c.l.b16 %v1342
    %v5940 = vunpack.c.h.b16 %v1342
    %v5941 = vunpack.c.l.b16 %v1343
    %v5942 = vunpack.c.h.b16 %v1343
    %v5943 = vunpack.c.l.b16 %v1344
    %v5944 = vunpack.c.h.b16 %v1344
    %v5945 = vunpack.c.l.b16 %v1345
    %v5946 = vunpack.c.h.b16 %v1345
    %v5947 = vunpack.c.l.b16 %v1346
    %v5948 = vunpack.c.h.b16 %v1346
    %v5949 = vunpack.c.l.b16 %v1347
    %v5950 = vunpack.c.h.b16 %v1347
    %v5951 = vunpack.c.l.b16 %v1348
    %v5952 = vunpack.c.h.b16 %v1348
    %v5953 = vunpack.c.l.b16 %v1349
    %v5954 = vunpack.c.h.b16 %v1349
    %v5955 = vunpack.c.l.b16 %v1350
    %v5956 = vunpack.c.h.b16 %v1350
    %v5957 = vunpack.c.l.b16 %v1351
    %v5958 = vunpack.c.h.b16 %v1351
    %v5959 = vunpack.c.l.b16 %v1352
    %v5960 = vunpack.c.h.b16 %v1352
    %v5961 = vunpack.c.l.b16 %v1353
    %v5962 = vunpack.c.h.b16 %v1353
    %v5963 = vunpack.c.l.b16 %v1354
    %v5964 = vunpack.c.h.b16 %v1354
    %v5965 = vunpack.c.l.b16 %v1355
    %v5966 = vunpack.c.h.b16 %v1355
    %v5967 = vunpack.c.l.b16 %v1356
    %v5968 = vunpack.c.h.b16 %v1356
    %v5969 = vunpack.c.l.b16 %v1357
    %v5970 = vunpack.c.h.b16 %v1357
    %v5971 = vunpack.c.l.b16 %v1358
    %v5972 = vunpack.c.h.b16 %v1358
    %v5973 = vunpack.c.l.b16 %v1359
    %v5974 = vunpack.c.h.b16 %v1359
    %v5975 = vunpack.c.l.b16 %v1360
    %v5976 = vunpack.c.h.b16 %v1360
    %v5977 = vunpack.c.l.b16 %v1361
    %v5978 = vunpack.c.h.b16 %v1361
    %v5979 = vunpack.c.l.b16 %v1362
    %v5980 = vunpack.c.h.b16 %v1362
    %v5981 = vunpack.c.l.b16 %v1363
    %v5982 = vunpack.c.h.b16 %v1363
    %v5983 = vunpack.c.l.b16 %v1364
    %v5984 = vunpack.c.h.b16 %v1364
    %v5985 = vunpack.c.l.b16 %v1365
    %v5986 = vunpack.c.h.b16 %v1365
    %v5987 = vunpack.c.l.b16 %v1366
    %v5988 = vunpack.c.h.b16 %v1366
    %v5989 = vunpack.c.l.b16 %v1367
    %v5990 = vunpack.c.h.b16 %v1367
    %v5991 = vunpack.c.l.b16 %v1368
    %v5992 = vunpack.c.h.b16 %v1368
    %v5993 = vunpack.c.l.b16 %v1369
    %v5994 = vunpack.c.h.b16 %v1369
    %v5995 = vunpack.c.l.b16 %v1370
    %v5996 = vunpack.c.h.b16 %v1370
    %v5997 = vunpack.c.l.b16 %v1371
    %v5998 = vunpack.c.h.b16 %v1371
    %v5999 = vunpack.c.l.b16 %v1372
    %v6000 = vunpack.c.h.b16 %v1372
    %v6001 = vunpack.c.l.b16 %v1373
    %v6002 = vunpack.c.h.b16 %v1373
    %v6003 = vunpack.c.l.b16 %v1374
    %v6004 = vunpack.c.h.b16 %v1374
    %v6005 = vunpack.c.l.b16 %v1375
    %v6006 = vunpack.c.h.b16 %v1375
    %v6007 = vunpack.c.l.b16 %v1376
    %v6008 = vunpack.c.h.b16 %v1376
    %v6009 = vunpack.c.l.b16 %v1377
    %v6010 = vunpack.c.h.b16 %v1377
    %v6011 = vunpack.c.l.b16 %v1378
    %v6012 = vunpack.c.h.b16 %v1378
    %v6013 = vunpack.c.l.b16 %v1379
    %v6014 = vunpack.c.h.b16 %v1379
    %v6015 = vunpack.c.l.b16 %v1380
    %v6016 = vunpack.c.h.b16 %v1380
    %v6017 = vunpack.c.l.b16 %v1381
    %v6018 = vunpack.c.h.b16 %v1381
    %v6019 = vunpack.c.l.b16 %v1382
    %v6020 = vunpack.c.h.b16 %v1382
    %v6021 = vunpack.c.l.b16 %v1383
    %v6022 = vunpack.c.h.b16 %v1383
    %v6023 = vunpack.c.l.b16 %v1384
    %v6024 = vunpack.c.h.b16 %v1384
    %v6025 = vunpack.c.l.b16 %v1385
    %v6026 = vunpack.c.h.b16 %v1385
    %v6027 = vunpack.c.l.b16 %v1386
    %v6028 = vunpack.c.h.b16 %v1386
    %v6029 = vunpack.c.l.b16 %v1387
    %v6030 = vunpack.c.h.b16 %v1387
    %v6031 = vunpack.c.l.b16 %v1388
    %v6032 = vunpack.c.h.b16 %v1388
    %v6033 = vunpack.c.l.b16 %v1389
    %v6034 = vunpack.c.h.b16 %v1389
    %v6035 = vunpack.c.l.b16 %v1390
    %v6036 = vunpack.c.h.b16 %v1390
    %v6037 = vunpack.c.l.b16 %v1391
    %v6038 = vunpack.c.h.b16 %v1391
    %v6039 = vunpack.c.l.b16 %v1392
    %v6040 = vunpack.c.h.b16 %v1392
    %v6041 = vunpack.c.l.b16 %v1393
    %v6042 = vunpack.c.h.b16 %v1393
    %v6043 = vunpack.c.l.b16 %v1394
    %v6044 = vunpack.c.h.b16 %v1394
    %v6045 = vunpack.c.l.b16 %v1395
    %v6046 = vunpack.c.h.b16 %v1395
    %v6047 = vunpack.c.l.b16 %v1396
    %v6048 = vunpack.c.h.b16 %v1396
    %v6049 = vunpack.c.l.b16 %v1397
    %v6050 = vunpack.c.h.b16 %v1397
    %v6051 = vunpack.c.l.b16 %v1398
    %v6052 = vunpack.c.h.b16 %v1398
    %v6053 = vunpack.c.l.b16 %v1399
    %v6054 = vunpack.c.h.b16 %v1399
    %v6055 = vunpack.c.l.b16 %v1400
    %v6056 = vunpack.c.h.b16 %v1400
    %v6057 = vunpack.c.l.b16 %v1401
    %v6058 = vunpack.c.h.b16 %v1401
    %v6059 = vunpack.c.l.b16 %v1402
    %v6060 = vunpack.c.h.b16 %v1402
    %v6061 = vunpack.c.l.b16 %v1403
    %v6062 = vunpack.c.h.b16 %v1403
    %v6063 = vunpack.c.l.b16 %v1404
    %v6064 = vunpack.c.h.b16 %v1404
    %v6065 = vunpack.c.l.b16 %v1405
    %v6066 = vunpack.c.h.b16 %v1405
    %v6067 = vunpack.c.l.b16 %v1406
    %v6068 = vunpack.c.h.b16 %v1406
    %v6069 = vunpack.c.l.b16 %v1407
    %v6070 = vunpack.c.h.b16 %v1407
    %v6071 = vunpack.c.l.b16 %v1408
    %v6072 = vunpack.c.h.b16 %v1408
    %v6073 = vunpack.c.l.b16 %v1409
    %v6074 = vunpack.c.h.b16 %v1409
    %v6075 = vunpack.c.l.b16 %v1410
    %v6076 = vunpack.c.h.b16 %v1410
    %v6077 = vunpack.c.l.b16 %v1411
    %v6078 = vunpack.c.h.b16 %v1411
    %v6079 = vunpack.c.l.b16 %v1412
    %v6080 = vunpack.c.h.b16 %v1412
    %v6081 = vunpack.c.l.b16 %v1413
    %v6082 = vunpack.c.h.b16 %v1413
    %v6083 = vunpack.c.l.b16 %v1414
    %v6084 = vunpack.c.h.b16 %v1414
    %v6085 = vunpack.c.l.b16 %v1415
    %v6086 = vunpack.c.h.b16 %v1415
    %v6087 = vunpack.c.l.b16 %v1416
    %v6088 = vunpack.c.h.b16 %v1416
    %v6089 = vunpack.c.l.b16 %v1417
    %v6090 = vunpack.c.h.b16 %v1417
    %v6091 = vunpack.c.l.b16 %v1418
    %v6092 = vunpack.c.h.b16 %v1418
    %v6093 = vunpack.c.l.b16 %v1419
    %v6094 = vunpack.c.h.b16 %v1419
    %v6095 = vunpack.c.l.b16 %v1420
    %v6096 = vunpack.c.h.b16 %v1420
    %v6097 = vunpack.c.l.b16 %v1421
    %v6098 = vunpack.c.h.b16 %v1421
    %v6099 = vunpack.c.l.b16 %v1422
    %v6100 = vunpack.c.h.b16 %v1422
    %v6101 = vunpack.c.l.b16 %v1423
    %v6102 = vunpack.c.h.b16 %v1423
    %v6103 = vunpack.c.l.b16 %v1424
    %v6104 = vunpack.c.h.b16 %v1424
    %v6105 = vunpack.c.l.b16 %v1425
    %v6106 = vunpack.c.h.b16 %v1425
    %v6107 = vunpack.c.l.b16 %v1426
    %v6108 = vunpack.c.h.b16 %v1426
    %v6109 = vunpack.c.l.b16 %v1427
    %v6110 = vunpack.c.h.b16 %v1427
    %v6111 = vunpack.c.l.b16 %v1428
    %v6112 = vunpack.c.h.b16 %v1428
    %v6113 = vunpack.c.l.b16 %v1429
    %v6114 = vunpack.c.h.b16 %v1429
    %v6115 = vunpack.c.l.b16 %v1430
    %v6116 = vunpack.c.h.b16 %v1430
    %v6117 = vunpack.c.l.b16 %v1431
    %v6118 = vunpack.c.h.b16 %v1431
    %v6119 = vunpack.c.l.b16 %v1432
    %v6120 = vunpack.c.h.b16 %v1432
    %v6121 = vunpack.c.l.b16 %v1433
    %v6122 = vunpack.c.h.b16 %v1433
    %v6123 = vunpack.c.l.b16 %v1434
    %v6124 = vunpack.c.h.b16 %v1434
    %v6125 = vunpack.c.l.b16 %v1435
    %v6126 = vunpack.c.h.b16 %v1435
    %v6127 = vunpack.c.l.b16 %v1436
    %v6128 = vunpack.c.h.b16 %v1436
    %v6129 = vunpack.c.l.b16 %v1437
    %v6130 = vunpack.c.h.b16 %v1437
    %v6131 = vunpack.c.l.b16 %v1438
    %v6132 = vunpack.c.h.b16 %v1438
    %v6133 = vunpack.c.l.b16 %v1439
    %v6134 = vunpack.c.h.b16 %v1439
    %v6135 = vunpack.c.l.b16 %v1440
    %v6136 = vunpack.c.h.b16 %v1440
    %v6137 = vunpack.c.l.b16 %v1441
    %v6138 = vunpack.c.h.b16 %v1441
    %v6139 = vunpack.c.l.b16 %v1442
    %v6140 = vunpack.c.h.b16 %v1442
    %v6141 = vunpack.c.l.b16 %v1443
    %v6142 = vunpack.c.h.b16 %v1443
    %v6143 = vunpack.c.l.b16 %v1444
    %v6144 = vunpack.c.h.b16 %v1444
    %v6145 = vunpack.c.l.b16 %v1445
    %v6146 = vunpack.c.h.b16 %v1445
    %v6147 = vunpack.c.l.b16 %v1446
    %v6148 = vunpack.c.h.b16 %v1446
    %v6149 = vunpack.c.l.b16 %v1447
    %v6150 = vunpack.c.h.b16 %v1447
    %v6151 = vunpack.c.l.b16 %v1448
    %v6152 = vunpack.c.h.b16 %v1448
    %v6153 = vunpack.c.l.b16 %v1449
    %v6154 = vunpack.c.h.b16 %v1449
    %v6155 = vunpack.c.l.b16 %v1450
    %v6156 = vunpack.c.h.b16 %v1450
    %v6157 = vunpack.c.l.b16 %v1451
    %v6158 = vunpack.c.h.b16 %v1451
    %v6159 = vunpack.c.l.b16 %v1452
    %v6160 = vunpack.c.h.b16 %v1452
    %v6161 = vunpack.c.l.b16 %v1453
    %v6162 = vunpack.c.h.b16 %v1453
    %v6163 = vunpack.c.l.b16 %v1454
    %v6164 = vunpack.c.h.b16 %v1454
    %v6165 = vunpack.c.l.b16 %v1455
    %v6166 = vunpack.c.h.b16 %v1455
    %v6167 = vunpack.c.l.b16 %v1456
    %v6168 = vunpack.c.h.b16 %v1456
    %v6169 = vunpack.c.l.b16 %v1457
    %v6170 = vunpack.c.h.b16 %v1457
    %v6171 = vunpack.c.l.b16 %v1458
    %v6172 = vunpack.c.h.b16 %v1458
    %v6173 = vunpack.c.l.b16 %v1459
    %v6174 = vunpack.c.h.b16 %v1459
    %v6175 = vunpack.c.l.b16 %v1460
    %v6176 = vunpack.c.h.b16 %v1460
    %v6177 = vunpack.c.l.b16 %v1461
    %v6178 = vunpack.c.h.b16 %v1461
    %v6179 = vunpack.c.l.b16 %v1462
    %v6180 = vunpack.c.h.b16 %v1462
    %v6181 = vunpack.c.l.b16 %v1463
    %v6182 = vunpack.c.h.b16 %v1463
    %v6183 = vunpack.c.l.b16 %v1464
    %v6184 = vunpack.c.h.b16 %v1464
    %v6185 = vunpack.c.l.b16 %v1465
    %v6186 = vunpack.c.h.b16 %v1465
    %v6187 = vunpack.c.l.b16 %v1466
    %v6188 = vunpack.c.h.b16 %v1466
    %v6189 = vunpack.c.l.b16 %v1467
    %v6190 = vunpack.c.h.b16 %v1467
    %v6191 = vunpack.c.l.b16 %v1468
    %v6192 = vunpack.c.h.b16 %v1468
    %v6193 = vunpack.c.l.b16 %v1469
    %v6194 = vunpack.c.h.b16 %v1469
    %v6195 = vunpack.c.l.b16 %v1470
    %v6196 = vunpack.c.h.b16 %v1470
    %v6197 = vunpack.c.l.b16 %v1471
    %v6198 = vunpack.c.h.b16 %v1471
    %v6199 = vunpack.c.l.b16 %v1472
    %v6200 = vunpack.c.h.b16 %v1472
    %v6201 = vunpack.c.l.b16 %v1473
    %v6202 = vunpack.c.h.b16 %v1473
    %v6203 = vunpack.c.l.b16 %v1474
    %v6204 = vunpack.c.h.b16 %v1474
    %v6205 = vunpack.c.l.b16 %v1475
    %v6206 = vunpack.c.h.b16 %v1475
    %v6207 = vunpack.c.l.b16 %v1476
    %v6208 = vunpack.c.h.b16 %v1476
    %v6209 = vunpack.c.l.b16 %v1477
    %v6210 = vunpack.c.h.b16 %v1477
    %v6211 = vunpack.c.l.b16 %v1478
    %v6212 = vunpack.c.h.b16 %v1478
    %v6213 = vunpack.c.l.b16 %v1479
    %v6214 = vunpack.c.h.b16 %v1479
    %v6215 = vunpack.c.l.b16 %v1480
    %v6216 = vunpack.c.h.b16 %v1480
    %v6217 = vunpack.c.l.b16 %v1481
    %v6218 = vunpack.c.h.b16 %v1481
    %v6219 = vunpack.c.l.b16 %v1482
    %v6220 = vunpack.c.h.b16 %v1482
    %v6221 = vunpack.c.l.b16 %v1483
    %v6222 = vunpack.c.h.b16 %v1483
    %v6223 = vunpack.c.l.b16 %v1484
    %v6224 = vunpack.c.h.b16 %v1484
    %v6225 = vunpack.c.l.b16 %v1485
    %v6226 = vunpack.c.h.b16 %v1485
    %v6227 = vunpack.c.l.b16 %v1486
    %v6228 = vunpack.c.h.b16 %v1486
    %v6229 = vunpack.c.l.b16 %v1487
    %v6230 = vunpack.c.h.b16 %v1487
    %v6231 = vunpack.c.l.b16 %v1488
    %v6232 = vunpack.c.h.b16 %v1488
    %v6233 = vunpack.c.l.b16 %v1489
    %v6234 = vunpack.c.h.b16 %v1489
    %v6235 = vunpack.c.l.b16 %v1490
    %v6236 = vunpack.c.h.b16 %v1490
    %v6237 = vunpack.c.l.b16 %v1491
    %v6238 = vunpack.c.h.b16 %v1491
    %v6239 = vunpack.c.l.b16 %v1492
    %v6240 = vunpack.c.h.b16 %v1492
    %v6241 = vunpack.c.l.b16 %v1493
    %v6242 = vunpack.c.h.b16 %v1493
    %v6243 = vunpack.c.l.b16 %v1494
    %v6244 = vunpack.c.h.b16 %v1494
    %v6245 = vunpack.c.l.b16 %v1495
    %v6246 = vunpack.c.h.b16 %v1495
    %v6247 = vunpack.c.l.b16 %v1496
    %v6248 = vunpack.c.h.b16 %v1496
    %v6249 = vunpack.c.l.b16 %v1497
    %v6250 = vunpack.c.h.b16 %v1497
    %v6251 = vunpack.c.l.b16 %v1498
    %v6252 = vunpack.c.h.b16 %v1498
    %v6253 = vunpack.c.l.b16 %v1499
    %v6254 = vunpack.c.h.b16 %v1499
    %v6255 = vunpack.c.l.b16 %v1500
    %v6256 = vunpack.c.h.b16 %v1500
    %v6257 = vunpack.c.l.b16 %v1501
    %v6258 = vunpack.c.h.b16 %v1501
    %v6259 = vunpack.c.l.b16 %v1502
    %v6260 = vunpack.c.h.b16 %v1502
    %v6261 = vunpack.c.l.b16 %v1503
    %v6262 = vunpack.c.h.b16 %v1503
    %v6263 = vunpack.c.l.b16 %v1504
    %v6264 = vunpack.c.h.b16 %v1504
    %v6265 = vunpack.c.l.b16 %v1505
    %v6266 = vunpack.c.h.b16 %v1505
    %v6267 = vunpack.c.l.b16 %v1506
    %v6268 = vunpack.c.h.b16 %v1506
    %v6269 = vunpack.c.l.b16 %v1507
    %v6270 = vunpack.c.h.b16 %v1507
    %v6271 = vunpack.c.l.b16 %v1508
    %v6272 = vunpack.c.h.b16 %v1508
    %v6273 = vunpack.c.l.b16 %v1509
    %v6274 = vunpack.c.h.b16 %v1509
    %v6275 = vunpack.c.l.b16 %v1510
    %v6276 = vunpack.c.h.b16 %v1510
    %v6277 = vunpack.c.l.b16 %v1511
    %v6278 = vunpack.c.h.b16 %v1511
    %v6279 = vunpack.c.l.b16 %v1512
    %v6280 = vunpack.c.h.b16 %v1512
    %v6281 = vunpack.c.l.b16 %v1513
    %v6282 = vunpack.c.h.b16 %v1513
    %v6283 = vunpack.c.l.b16 %v1514
    %v6284 = vunpack.c.h.b16 %v1514
    %v6285 = vunpack.c.l.b16 %v1515
    %v6286 = vunpack.c.h.b16 %v1515
    %v6287 = vunpack.c.l.b16 %v1516
    %v6288 = vunpack.c.h.b16 %v1516
    %v6289 = vunpack.c.l.b16 %v1517
    %v6290 = vunpack.c.h.b16 %v1517
    %v6291 = vunpack.c.l.b16 %v1518
    %v6292 = vunpack.c.h.b16 %v1518
    %v6293 = vunpack.c.l.b16 %v1519
    %v6294 = vunpack.c.h.b16 %v1519
    %v6295 = vunpack.c.l.b16 %v1520
    %v6296 = vunpack.c.h.b16 %v1520
    %v6297 = vunpack.c.l.b16 %v1521
    %v6298 = vunpack.c.h.b16 %v1521
    %v6299 = vunpack.c.l.b16 %v1522
    %v6300 = vunpack.c.h.b16 %v1522
    %v6301 = vunpack.c.l.b16 %v1523
    %v6302 = vunpack.c.h.b16 %v1523
    %v6303 = vunpack.c.l.b16 %v1524
    %v6304 = vunpack.c.h.b16 %v1524
    %v6305 = vunpack.c.l.b16 %v1525
    %v6306 = vunpack.c.h.b16 %v1525
    %v6307 = vunpack.c.l.b16 %v1526
    %v6308 = vunpack.c.h.b16 %v1526
    %v6309 = vunpack.c.l.b16 %v1527
    %v6310 = vunpack.c.h.b16 %v1527
    %v6311 = vunpack.c.l.b16 %v1528
    %v6312 = vunpack.c.h.b16 %v1528
    %v6313 = vunpack.c.l.b16 %v1529
    %v6314 = vunpack.c.h.b16 %v1529
    %v6315 = vunpack.c.l.b16 %v1530
    %v6316 = vunpack.c.h.b16 %v1530
    %v6317 = vunpack.c.l.b16 %v1531
    %v6318 = vunpack.c.h.b16 %v1531
    %v6319 = vunpack.c.l.b16 %v1532
    %v6320 = vunpack.c.h.b16 %v1532
    %v6321 = vunpack.c.l.b16 %v1533
    %v6322 = vunpack.c.h.b16 %v1533
    %v6323 = vunpack.c.l.b16 %v1534
    %v6324 = vunpack.c.h.b16 %v1534
    %v6325 = vunpack.c.l.b16 %v1535
    %v6326 = vunpack.c.h.b16 %v1535
    %v6327 = vunpack.c.l.b16 %v1536
    %v6328 = vunpack.c.h.b16 %v1536
    %v6329 = vunpack.c.l.b16 %v1537
    %v6330 = vunpack.c.h.b16 %v1537
    %v6331 = vunpack.c.l.b16 %v1538
    %v6332 = vunpack.c.h.b16 %v1538
    %v6333 = vunpack.c.l.b16 %v1539
    %v6334 = vunpack.c.h.b16 %v1539
    %v6335 = vunpack.c.l.b16 %v1540
    %v6336 = vunpack.c.h.b16 %v1540
    %v6337 = vunpack.c.l.b16 %v1541
    %v6338 = vunpack.c.h.b16 %v1541
    %v6339 = vunpack.c.l.b16 %v1542
    %v6340 = vunpack.c.h.b16 %v1542
    %v6341 = vunpack.c.l.b16 %v1543
    %v6342 = vunpack.c.h.b16 %v1543
    %v6343 = vunpack.c.l.b16 %v1544
    %v6344 = vunpack.c.h.b16 %v1544
    %v6345 = vunpack.c.l.b16 %v1545
    %v6346 = vunpack.c.h.b16 %v1545
    %v6347 = vunpack.c.l.b16 %v1546
    %v6348 = vunpack.c.h.b16 %v1546
    %v6349 = vunpack.c.l.b16 %v1547
    %v6350 = vunpack.c.h.b16 %v1547
    %v6351 = vunpack.c.l.b16 %v1548
    %v6352 = vunpack.c.h.b16 %v1548
    %v6353 = vunpack.c.l.b16 %v1549
    %v6354 = vunpack.c.h.b16 %v1549
    %v6355 = vunpack.c.l.b16 %v1550
    %v6356 = vunpack.c.h.b16 %v1550
    %v6357 = vunpack.c.l.b16 %v1551
    %v6358 = vunpack.c.h.b16 %v1551
    %v6359 = vunpack.c.l.b16 %v1552
    %v6360 = vunpack.c.h.b16 %v1552
    %v6361 = vunpack.c.l.b16 %v1553
    %v6362 = vunpack.c.h.b16 %v1553
    %v6363 = vunpack.c.l.b16 %v1554
    %v6364 = vunpack.c.h.b16 %v1554
    %v6365 = vunpack.c.l.b16 %v1555
    %v6366 = vunpack.c.h.b16 %v1555
    %v6367 = vunpack.c.l.b16 %v1556
    %v6368 = vunpack.c.h.b16 %v1556
    %v6369 = vunpack.c.l.b16 %v1557
    %v6370 = vunpack.c.h.b16 %v1557
    %v6371 = vunpack.c.l.b16 %v1558
    %v6372 = vunpack.c.h.b16 %v1558
    %v6373 = vunpack.c.l.b16 %v1559
    %v6374 = vunpack.c.h.b16 %v1559
    %v6375 = vunpack.c.l.b16 %v1560
    %v6376 = vunpack.c.h.b16 %v1560
    %v6377 = vunpack.c.l.b16 %v1561
    %v6378 = vunpack.c.h.b16 %v1561
    %v6379 = vunpack.c.l.b16 %v1562
    %v6380 = vunpack.c.h.b16 %v1562
    %v6381 = vunpack.c.l.b16 %v1563
    %v6382 = vunpack.c.h.b16 %v1563
    %v6383 = vunpack.c.l.b16 %v1564
    %v6384 = vunpack.c.h.b16 %v1564
    %v6385 = vunpack.c.l.b16 %v1565
    %v6386 = vunpack.c.h.b16 %v1565
    %v6387 = vunpack.c.l.b16 %v1566
    %v6388 = vunpack.c.h.b16 %v1566
    %v6389 = vunpack.c.l.b16 %v1567
    %v6390 = vunpack.c.h.b16 %v1567
    %v6391 = vunpack.c.l.b16 %v1568
    %v6392 = vunpack.c.h.b16 %v1568
    %v6393 = vunpack.c.l.b16 %v1569
    %v6394 = vunpack.c.h.b16 %v1569
    %v6395 = vunpack.c.l.b16 %v1570
    %v6396 = vunpack.c.h.b16 %v1570
    %v6397 = vunpack.c.l.b16 %v1571
    %v6398 = vunpack.c.h.b16 %v1571
    %v6399 = vunpack.c.l.b16 %v1572
    %v6400 = vunpack.c.h.b16 %v1572
    %v6401 = vunpack.c.l.b16 %v1573
    %v6402 = vunpack.c.h.b16 %v1573
    %v6403 = vunpack.c.l.b16 %v1574
    %v6404 = vunpack.c.h.b16 %v1574
    %v6405 = vunpack.c.l.b16 %v1575
    %v6406 = vunpack.c.h.b16 %v1575
    %v6407 = vunpack.c.l.b16 %v1576
    %v6408 = vunpack.c.h.b16 %v1576
    %v6409 = vunpack.c.l.b16 %v1577
    %v6410 = vunpack.c.h.b16 %v1577
    %v6411 = vunpack.c.l.b16 %v1578
    %v6412 = vunpack.c.h.b16 %v1578
    %v6413 = vunpack.c.l.b16 %v1579
    %v6414 = vunpack.c.h.b16 %v1579
    %v6415 = vunpack.c.l.b16 %v1580
    %v6416 = vunpack.c.h.b16 %v1580
    %v6417 = vunpack.c.l.b16 %v1581
    %v6418 = vunpack.c.h.b16 %v1581
    %v6419 = vunpack.c.l.b16 %v1582
    %v6420 = vunpack.c.h.b16 %v1582
    %v6421 = vunpack.c.l.b16 %v1583
    %v6422 = vunpack.c.h.b16 %v1583
    %v6423 = vunpack.c.l.b16 %v1584
    %v6424 = vunpack.c.h.b16 %v1584
    %v6425 = vunpack.c.l.b16 %v1585
    %v6426 = vunpack.c.h.b16 %v1585
    %v6427 = vunpack.c.l.b16 %v1586
    %v6428 = vunpack.c.h.b16 %v1586
    %v6429 = vunpack.c.l.b16 %v1587
    %v6430 = vunpack.c.h.b16 %v1587
    %v6431 = vunpack.c.l.b16 %v1588
    %v6432 = vunpack.c.h.b16 %v1588
    %v6433 = vunpack.c.l.b16 %v1589
    %v6434 = vunpack.c.h.b16 %v1589
    %v6435 = vunpack.c.l.b16 %v1590
    %v6436 = vunpack.c.h.b16 %v1590
    %v6437 = vunpack.c.l.b16 %v1591
    %v6438 = vunpack.c.h.b16 %v1591
    %v6439 = vunpack.c.l.b16 %v1592
    %v6440 = vunpack.c.h.b16 %v1592
    %v6441 = vunpack.c.l.b16 %v1593
    %v6442 = vunpack.c.h.b16 %v1593
    %v6443 = vunpack.c.l.b16 %v1594
    %v6444 = vunpack.c.h.b16 %v1594
    %v6445 = vunpack.c.l.b16 %v1595
    %v6446 = vunpack.c.h.b16 %v1595
    %v6447 = vunpack.c.l.b16 %v1596
    %v6448 = vunpack.c.h.b16 %v1596
    %v6449 = vunpack.c.l.b16 %v1597
    %v6450 = vunpack.c.h.b16 %v1597
    %v6451 = vunpack.c.l.b16 %v1598
    %v6452 = vunpack.c.h.b16 %v1598
    %v6453 = vunpack.c.l.b16 %v1599
    %v6454 = vunpack.c.h.b16 %v1599
    %v6455 = vunpack.c.l.b16 %v1600
    %v6456 = vunpack.c.h.b16 %v1600
    %v6457 = vunpack.c.l.b16 %v1601
    %v6458 = vunpack.c.h.b16 %v1601
    %v6459 = vunpack.c.l.b16 %v1602
    %v6460 = vunpack.c.h.b16 %v1602
    %v6461 = vunpack.c.l.b16 %v1603
    %v6462 = vunpack.c.h.b16 %v1603
    %v6463 = vunpack.c.l.b16 %v1604
    %v6464 = vunpack.c.h.b16 %v1604
    %v6465 = vunpack.c.l.b16 %v1605
    %v6466 = vunpack.c.h.b16 %v1605
    %v6467 = vunpack.c.l.b16 %v1606
    %v6468 = vunpack.c.h.b16 %v1606
    %v6469 = vunpack.c.l.b16 %v1607
    %v6470 = vunpack.c.h.b16 %v1607
    %v6471 = vunpack.c.l.b16 %v1608
    %v6472 = vunpack.c.h.b16 %v1608
    %v6473 = vunpack.c.l.b16 %v1609
    %v6474 = vunpack.c.h.b16 %v1609
    %v6475 = vunpack.c.l.b16 %v1610
    %v6476 = vunpack.c.h.b16 %v1610
    %v6477 = vunpack.c.l.b16 %v1611
    %v6478 = vunpack.c.h.b16 %v1611
    %v6479 = vunpack.c.l.b16 %v1612
    %v6480 = vunpack.c.h.b16 %v1612
    %v6481 = vunpack.c.l.b16 %v1613
    %v6482 = vunpack.c.h.b16 %v1613
    %v6483 = vunpack.c.l.b16 %v1614
    %v6484 = vunpack.c.h.b16 %v1614
    %v6485 = vunpack.c.l.b16 %v1615
    %v6486 = vunpack.c.h.b16 %v1615
    %v6487 = vunpack.c.l.b16 %v1616
    %v6488 = vunpack.c.h.b16 %v1616
    %v6489 = vunpack.c.l.b16 %v1617
    %v6490 = vunpack.c.h.b16 %v1617
    %v6491 = vunpack.c.l.b16 %v1618
    %v6492 = vunpack.c.h.b16 %v1618
    %v6493 = vunpack.c.l.b16 %v1619
    %v6494 = vunpack.c.h.b16 %v1619
    %v6495 = vunpack.c.l.b16 %v1620
    %v6496 = vunpack.c.h.b16 %v1620
    %v6497 = vunpack.c.l.b16 %v1621
    %v6498 = vunpack.c.h.b16 %v1621
    %v6499 = vunpack.c.l.b16 %v1622
    %v6500 = vunpack.c.h.b16 %v1622
    %v6501 = vunpack.c.l.b16 %v1623
    %v6502 = vunpack.c.h.b16 %v1623
    %v6503 = vunpack.c.l.b16 %v1624
    %v6504 = vunpack.c.h.b16 %v1624
    %v6505 = vunpack.c.l.b16 %v1625
    %v6506 = vunpack.c.h.b16 %v1625
    %v6507 = vunpack.c.l.b16 %v1626
    %v6508 = vunpack.c.h.b16 %v1626
    %v6509 = vunpack.c.l.b16 %v1627
    %v6510 = vunpack.c.h.b16 %v1627
    %v6511 = vunpack.c.l.b16 %v1628
    %v6512 = vunpack.c.h.b16 %v1628
    %v6513 = vunpack.c.l.b16 %v1629
    %v6514 = vunpack.c.h.b16 %v1629
    %v6515 = vunpack.c.l.b16 %v1630
    %v6516 = vunpack.c.h.b16 %v1630
    %v6517 = vunpack.c.l.b16 %v1631
    %v6518 = vunpack.c.h.b16 %v1631
    %v6519 = vunpack.c.l.b16 %v1632
    %v6520 = vunpack.c.h.b16 %v1632
    %v6521 = vunpack.c.l.b16 %v1633
    %v6522 = vunpack.c.h.b16 %v1633
    %v6523 = vunpack.c.l.b16 %v1634
    %v6524 = vunpack.c.h.b16 %v1634
    %v6525 = vunpack.c.l.b16 %v1635
    %v6526 = vunpack.c.h.b16 %v1635
    %v6527 = vunpack.c.l.b16 %v1636
    %v6528 = vunpack.c.h.b16 %v1636
    %v6529 = vunpack.c.l.b16 %v1637
    %v6530 = vunpack.c.h.b16 %v1637
    %v6531 = vunpack.c.l.b16 %v1638
    %v6532 = vunpack.c.h.b16 %v1638
    %v6533 = vunpack.c.l.b16 %v1639
    %v6534 = vunpack.c.h.b16 %v1639
    %v6535 = vunpack.c.l.b16 %v1640
    %v6536 = vunpack.c.h.b16 %v1640
    %v6537 = vunpack.c.l.b16 %v1641
    %v6538 = vunpack.c.h.b16 %v1641
    %v6539 = vunpack.c.l.b16 %v1642
    %v6540 = vunpack.c.h.b16 %v1642
    %v6541 = vunpack.c.l.b16 %v1643
    %v6542 = vunpack.c.h.b16 %v1643
    %v6543 = vunpack.c.l.b16 %v1644
    %v6544 = vunpack.c.h.b16 %v1644
    %v6545 = vunpack.c.l.b16 %v1645
    %v6546 = vunpack.c.h.b16 %v1645
    %v6547 = vunpack.c.l.b16 %v1646
    %v6548 = vunpack.c.h.b16 %v1646
    %v6549 = vunpack.c.l.b16 %v1647
    %v6550 = vunpack.c.h.b16 %v1647
    %v6551 = vunpack.c.l.b16 %v1648
    %v6552 = vunpack.c.h.b16 %v1648
    %v6553 = vunpack.c.l.b16 %v1649
    %v6554 = vunpack.c.h.b16 %v1649
    %v6555 = vunpack.c.l.b16 %v1650
    %v6556 = vunpack.c.h.b16 %v1650
    %v6557 = vunpack.c.l.b16 %v1651
    %v6558 = vunpack.c.h.b16 %v1651
    %v6559 = vunpack.c.l.b16 %v1652
    %v6560 = vunpack.c.h.b16 %v1652
    %v6561 = vunpack.c.l.b16 %v1653
    %v6562 = vunpack.c.h.b16 %v1653
    %v6563 = vunpack.c.l.b16 %v1654
    %v6564 = vunpack.c.h.b16 %v1654
    %v6565 = vunpack.c.l.b16 %v1655
    %v6566 = vunpack.c.h.b16 %v1655
    %v6567 = vunpack.c.l.b16 %v1656
    %v6568 = vunpack.c.h.b16 %v1656
    %v6569 = vunpack.c.l.b16 %v1657
    %v6570 = vunpack.c.h.b16 %v1657
    %v6571 = vunpack.c.l.b16 %v1658
    %v6572 = vunpack.c.h.b16 %v1658
    %v6573 = vunpack.c.l.b16 %v1659
    %v6574 = vunpack.c.h.b16 %v1659
    %v6575 = vunpack.c.l.b16 %v1660
    %v6576 = vunpack.c.h.b16 %v1660
    %v6577 = vunpack.c.l.b16 %v1661
    %v6578 = vunpack.c.h.b16 %v1661
    %v6579 = vunpack.c.l.b16 %v1662
    %v6580 = vunpack.c.h.b16 %v1662
    %v6581 = vunpack.c.l.b16 %v1663
    %v6582 = vunpack.c.h.b16 %v1663
    %v6583 = vunpack.c.l.b16 %v1664
    %v6584 = vunpack.c.h.b16 %v1664
    %v6585 = vunpack.c.l.b16 %v1665
    %v6586 = vunpack.c.h.b16 %v1665
    %v6587 = vunpack.c.l.b16 %v1666
    %v6588 = vunpack.c.h.b16 %v1666
    %v6589 = vunpack.c.l.b16 %v1667
    %v6590 = vunpack.c.h.b16 %v1667
    %v6591 = vunpack.c.l.b16 %v1668
    %v6592 = vunpack.c.h.b16 %v1668
    %v6593 = vunpack.c.l.b16 %v1669
    %v6594 = vunpack.c.h.b16 %v1669
    %v6595 = vunpack.c.l.b16 %v1670
    %v6596 = vunpack.c.h.b16 %v1670
    %v6597 = vunpack.c.l.b16 %v1671
    %v6598 = vunpack.c.h.b16 %v1671
    %v6599 = vunpack.c.l.b16 %v1672
    %v6600 = vunpack.c.h.b16 %v1672
    %v6601 = vunpack.c.l.b16 %v1673
    %v6602 = vunpack.c.h.b16 %v1673
    %v6603 = vunpack.c.l.b16 %v1674
    %v6604 = vunpack.c.h.b16 %v1674
    %v6605 = vunpack.c.l.b16 %v1675
    %v6606 = vunpack.c.h.b16 %v1675
    %v6607 = vunpack.c.l.b16 %v1676
    %v6608 = vunpack.c.h.b16 %v1676
    %v6609 = vunpack.c.l.b16 %v1677
    %v6610 = vunpack.c.h.b16 %v1677
    %v6611 = vunpack.c.l.b16 %v1678
    %v6612 = vunpack.c.h.b16 %v1678
    %v6613 = vunpack.c.l.b16 %v1679
    %v6614 = vunpack.c.h.b16 %v1679
    %v6615 = vunpack.c.l.b16 %v1680
    %v6616 = vunpack.c.h.b16 %v1680
    %v6617 = vunpack.c.l.b16 %v1681
    %v6618 = vunpack.c.h.b16 %v1681
    %v6619 = vunpack.c.l.b16 %v1682
    %v6620 = vunpack.c.h.b16 %v1682
    %v6621 = vunpack.c.l.b16 %v1683
    %v6622 = vunpack.c.h.b16 %v1683
    %v6623 = vunpack.c.l.b16 %v1684
    %v6624 = vunpack.c.h.b16 %v1684
    %v6625 = vunpack.c.l.b16 %v1685
    %v6626 = vunpack.c.h.b16 %v1685
    %v6627 = vunpack.c.l.b16 %v1686
    %v6628 = vunpack.c.h.b16 %v1686
    %v6629 = vunpack.c.l.b16 %v1687
    %v6630 = vunpack.c.h.b16 %v1687
    %v6631 = vunpack.c.l.b16 %v1688
    %v6632 = vunpack.c.h.b16 %v1688
    %v6633 = vunpack.c.l.b16 %v1689
    %v6634 = vunpack.c.h.b16 %v1689
    %v6635 = vunpack.c.l.b16 %v1690
    %v6636 = vunpack.c.h.b16 %v1690
    %v6637 = vunpack.c.l.b16 %v1691
    %v6638 = vunpack.c.h.b16 %v1691
    %v6639 = vunpack.c.l.b16 %v1692
    %v6640 = vunpack.c.h.b16 %v1692
    %v6641 = vunpack.c.l.b16 %v1693
    %v6642 = vunpack.c.h.b16 %v1693
    %v6643 = vunpack.c.l.b16 %v1694
    %v6644 = vunpack.c.h.b16 %v1694
    %v6645 = vunpack.c.l.b16 %v1695
    %v6646 = vunpack.c.h.b16 %v1695
    %v6647 = vunpack.c.l.b16 %v1696
    %v6648 = vunpack.c.h.b16 %v1696
    %v6649 = vunpack.c.l.b16 %v1697
    %v6650 = vunpack.c.h.b16 %v1697
    %v6651 = vunpack.c.l.b16 %v1698
    %v6652 = vunpack.c.h.b16 %v1698
    %v6653 = vunpack.c.l.b16 %v1699
    %v6654 = vunpack.c.h.b16 %v1699
    %v6655 = vunpack.c.l.b16 %v1700
    %v6656 = vunpack.c.h.b16 %v1700
    %v6657 = vunpack.c.l.b16 %v1701
    %v6658 = vunpack.c.h.b16 %v1701
    %v6659 = vunpack.c.l.b16 %v1702
    %v6660 = vunpack.c.h.b16 %v1702
    %v6661 = vunpack.c.l.b16 %v1703
    %v6662 = vunpack.c.h.b16 %v1703
    %v6663 = vunpack.c.l.b16 %v1704
    %v6664 = vunpack.c.h.b16 %v1704
    %v6665 = vunpack.c.l.b16 %v1705
    %v6666 = vunpack.c.h.b16 %v1705
    %v6667 = vunpack.c.l.b16 %v1706
    %v6668 = vunpack.c.h.b16 %v1706
    %v6669 = vunpack.c.l.b16 %v1707
    %v6670 = vunpack.c.h.b16 %v1707
    %v6671 = vunpack.c.l.b16 %v1708
    %v6672 = vunpack.c.h.b16 %v1708
    %v6673 = vunpack.c.l.b16 %v1709
    %v6674 = vunpack.c.h.b16 %v1709
    %v6675 = vunpack.c.l.b16 %v1710
    %v6676 = vunpack.c.h.b16 %v1710
    %v6677 = vunpack.c.l.b16 %v1711
    %v6678 = vunpack.c.h.b16 %v1711
    %v6679 = vunpack.c.l.b16 %v1712
    %v6680 = vunpack.c.h.b16 %v1712
    %v6681 = vunpack.c.l.b16 %v1713
    %v6682 = vunpack.c.h.b16 %v1713
    %v6683 = vunpack.c.l.b16 %v1714
    %v6684 = vunpack.c.h.b16 %v1714
    %v6685 = vunpack.c.l.b16 %v1715
    %v6686 = vunpack.c.h.b16 %v1715
    %v6687 = vunpack.c.l.b16 %v1716
    %v6688 = vunpack.c.h.b16 %v1716
    %v6689 = vunpack.c.l.b16 %v1717
    %v6690 = vunpack.c.h.b16 %v1717
    %v6691 = vunpack.c.l.b16 %v1718
    %v6692 = vunpack.c.h.b16 %v1718
    %v6693 = vunpack.c.l.b16 %v1719
    %v6694 = vunpack.c.h.b16 %v1719
    %v6695 = vunpack.c.l.b16 %v1720
    %v6696 = vunpack.c.h.b16 %v1720
    %v6697 = vunpack.c.l.b16 %v1721
    %v6698 = vunpack.c.h.b16 %v1721
    %v6699 = vunpack.c.l.b16 %v1722
    %v6700 = vunpack.c.h.b16 %v1722
    %v6701 = vunpack.c.l.b16 %v1723
    %v6702 = vunpack.c.h.b16 %v1723
    %v6703 = vunpack.c.l.b16 %v1724
    %v6704 = vunpack.c.h.b16 %v1724
    %v6705 = vunpack.c.l.b16 %v1725
    %v6706 = vunpack.c.h.b16 %v1725
    %v6707 = vunpack.c.l.b16 %v1726
    %v6708 = vunpack.c.h.b16 %v1726
    %v6709 = vunpack.c.l.b16 %v1727
    %v6710 = vunpack.c.h.b16 %v1727
    %v6711 = vunpack.c.l.b16 %v1728
    %v6712 = vunpack.c.h.b16 %v1728
    %v6713 = vunpack.c.l.b16 %v1729
    %v6714 = vunpack.c.h.b16 %v1729
    %v6715 = vunpack.c.l.b16 %v1730
    %v6716 = vunpack.c.h.b16 %v1730
    %v6717 = vunpack.c.l.b16 %v1731
    %v6718 = vunpack.c.h.b16 %v1731
    %v6719 = vunpack.c.l.b16 %v1732
    %v6720 = vunpack.c.h.b16 %v1732
    %v6721 = vunpack.c.l.b16 %v1733
    %v6722 = vunpack.c.h.b16 %v1733
    %v6723 = vunpack.c.l.b16 %v1734
    %v6724 = vunpack.c.h.b16 %v1734
    %v6725 = vunpack.c.l.b16 %v1735
    %v6726 = vunpack.c.h.b16 %v1735
    %v6727 = vunpack.c.l.b16 %v1736
    %v6728 = vunpack.c.h.b16 %v1736
    %v6729 = vunpack.c.l.b16 %v1737
    %v6730 = vunpack.c.h.b16 %v1737
    %v6731 = vunpack.c.l.b16 %v1738
    %v6732 = vunpack.c.h.b16 %v1738
    %v6733 = vunpack.c.l.b16 %v1739
    %v6734 = vunpack.c.h.b16 %v1739
    %v6735 = vunpack.c.l.b16 %v1740
    %v6736 = vunpack.c.h.b16 %v1740
    %v6737 = vunpack.c.l.b16 %v1741
    %v6738 = vunpack.c.h.b16 %v1741
    %v6739 = vunpack.c.l.b16 %v1742
    %v6740 = vunpack.c.h.b16 %v1742
    %v6741 = vunpack.c.l.b16 %v1743
    %v6742 = vunpack.c.h.b16 %v1743
    %v6743 = vunpack.c.l.b16 %v1744
    %v6744 = vunpack.c.h.b16 %v1744
    %v6745 = vunpack.c.l.b16 %v1745
    %v6746 = vunpack.c.h.b16 %v1745
    %v6747 = vunpack.c.l.b16 %v1746
    %v6748 = vunpack.c.h.b16 %v1746
    %v6749 = vunpack.c.l.b16 %v1747
    %v6750 = vunpack.c.h.b16 %v1747
    %v6751 = vunpack.c.l.b16 %v1748
    %v6752 = vunpack.c.h.b16 %v1748
    %v6753 = vunpack.c.l.b16 %v1749
    %v6754 = vunpack.c.h.b16 %v1749
    %v6755 = vunpack.c.l.b16 %v1750
    %v6756 = vunpack.c.h.b16 %v1750
    %v6757 = vunpack.c.l.b16 %v1751
    %v6758 = vunpack.c.h.b16 %v1751
    %v6759 = vunpack.c.l.b16 %v1752
    %v6760 = vunpack.c.h.b16 %v1752
    %v6761 = vunpack.c.l.b16 %v1753
    %v6762 = vunpack.c.h.b16 %v1753
    %v6763 = vunpack.c.l.b16 %v1754
    %v6764 = vunpack.c.h.b16 %v1754
    %v6765 = vunpack.c.l.b16 %v1755
    %v6766 = vunpack.c.h.b16 %v1755
    %v6767 = vunpack.c.l.b16 %v1756
    %v6768 = vunpack.c.h.b16 %v1756
    %v6769 = vunpack.c.l.b16 %v1757
    %v6770 = vunpack.c.h.b16 %v1757
    %v6771 = vunpack.c.l.b16 %v1758
    %v6772 = vunpack.c.h.b16 %v1758
    %v6773 = vunpack.c.l.b16 %v1759
    %v6774 = vunpack.c.h.b16 %v1759
    %v6775 = vunpack.c.l.b16 %v1760
    %v6776 = vunpack.c.h.b16 %v1760
    %v6777 = vunpack.c.l.b16 %v1761
    %v6778 = vunpack.c.h.b16 %v1761
    %v6779 = vunpack.c.l.b16 %v1762
    %v6780 = vunpack.c.h.b16 %v1762
    %v6781 = vunpack.c.l.b16 %v1763
    %v6782 = vunpack.c.h.b16 %v1763
    %v6783 = vunpack.c.l.b16 %v1764
    %v6784 = vunpack.c.h.b16 %v1764
    %v6785 = vunpack.c.l.b16 %v1765
    %v6786 = vunpack.c.h.b16 %v1765
    %v6787 = vunpack.c.l.b16 %v1766
    %v6788 = vunpack.c.h.b16 %v1766
    %v6789 = vunpack.c.l.b16 %v1767
    %v6790 = vunpack.c.h.b16 %v1767
    %v6791 = vunpack.c.l.b16 %v1768
    %v6792 = vunpack.c.h.b16 %v1768
    %v6793 = vunpack.c.l.b16 %v1769
    %v6794 = vunpack.c.h.b16 %v1769
    %v6795 = vunpack.c.l.b16 %v1770
    %v6796 = vunpack.c.h.b16 %v1770
    %v6797 = vunpack.c.l.b16 %v1771
    %v6798 = vunpack.c.h.b16 %v1771
    %v6799 = vunpack.c.l.b16 %v1772
    %v6800 = vunpack.c.h.b16 %v1772
    %v6801 = vunpack.c.l.b16 %v1773
    %v6802 = vunpack.c.h.b16 %v1773
    %v6803 = vunpack.c.l.b16 %v1774
    %v6804 = vunpack.c.h.b16 %v1774
    %v6805 = vunpack.c.l.b16 %v1775
    %v6806 = vunpack.c.h.b16 %v1775
    %v6807 = vunpack.c.l.b16 %v1776
    %v6808 = vunpack.c.h.b16 %v1776
    %v6809 = vunpack.c.l.b16 %v1777
    %v6810 = vunpack.c.h.b16 %v1777
    %v6811 = vunpack.c.l.b16 %v1778
    %v6812 = vunpack.c.h.b16 %v1778
    %v6813 = vunpack.c.l.b16 %v1779
    %v6814 = vunpack.c.h.b16 %v1779
    %v6815 = vunpack.c.l.b16 %v1780
    %v6816 = vunpack.c.h.b16 %v1780
    %v6817 = vunpack.c.l.b16 %v1781
    %v6818 = vunpack.c.h.b16 %v1781
    %v6819 = vunpack.c.l.b16 %v1782
    %v6820 = vunpack.c.h.b16 %v1782
    %v6821 = vunpack.c.l.b16 %v1783
    %v6822 = vunpack.c.h.b16 %v1783
    %v6823 = vunpack.c.l.b16 %v1784
    %v6824 = vunpack.c.h.b16 %v1784
    %v6825 = vunpack.c.l.b16 %v1785
    %v6826 = vunpack.c.h.b16 %v1785
    %v6827 = vunpack.c.l.b16 %v1786
    %v6828 = vunpack.c.h.b16 %v1786
    %v6829 = vunpack.c.l.b16 %v1787
    %v6830 = vunpack.c.h.b16 %v1787
    %v6831 = vunpack.c.l.b16 %v1788
    %v6832 = vunpack.c.h.b16 %v1788
    %v6833 = vunpack.c.l.b16 %v1789
    %v6834 = vunpack.c.h.b16 %v1789
    %v6835 = vunpack.c.l.b16 %v1790
    %v6836 = vunpack.c.h.b16 %v1790
    %v6837 = vunpack.c.l.b16 %v1791
    %v6838 = vunpack.c.h.b16 %v1791
    %v6839 = vunpack.c.l.b16 %v1792
    %v6840 = vunpack.c.h.b16 %v1792
    %v6841 = vunpack.c.l.b16 %v1793
    %v6842 = vunpack.c.h.b16 %v1793
    %v6843 = vunpack.c.l.b16 %v1794
    %v6844 = vunpack.c.h.b16 %v1794
    %v6845 = vunpack.c.l.b16 %v1795
    %v6846 = vunpack.c.h.b16 %v1795
    %v6847 = vunpack.c.l.b16 %v1796
    %v6848 = vunpack.c.h.b16 %v1796
    %v6849 = vunpack.c.l.b16 %v1797
    %v6850 = vunpack.c.h.b16 %v1797
    %v6851 = vunpack.c.l.b16 %v1798
    %v6852 = vunpack.c.h.b16 %v1798
    %v6853 = vunpack.c.l.b16 %v1799
    %v6854 = vunpack.c.h.b16 %v1799
    %v6855 = vunpack.c.l.b16 %v1800
    %v6856 = vunpack.c.h.b16 %v1800
    %v6857 = vunpack.c.l.b16 %v1801
    %v6858 = vunpack.c.h.b16 %v1801
    %v6859 = vunpack.c.l.b16 %v1802
    %v6860 = vunpack.c.h.b16 %v1802
    %v6861 = vunpack.c.l.b16 %v1803
    %v6862 = vunpack.c.h.b16 %v1803
    %v6863 = vunpack.c.l.b16 %v1804
    %v6864 = vunpack.c.h.b16 %v1804
    %v6865 = vunpack.c.l.b16 %v1805
    %v6866 = vunpack.c.h.b16 %v1805
    %v6867 = vunpack.c.l.b16 %v1806
    %v6868 = vunpack.c.h.b16 %v1806
    %v6869 = vunpack.c.l.b16 %v1807
    %v6870 = vunpack.c.h.b16 %v1807
    %v6871 = vunpack.c.l.b16 %v1808
    %v6872 = vunpack.c.h.b16 %v1808
    %v6873 = vunpack.c.l.b16 %v1809
    %v6874 = vunpack.c.h.b16 %v1809
    %v6875 = vunpack.c.l.b16 %v1810
    %v6876 = vunpack.c.h.b16 %v1810
    %v6877 = vunpack.c.l.b16 %v1811
    %v6878 = vunpack.c.h.b16 %v1811
    %v6879 = vunpack.c.l.b16 %v1812
    %v6880 = vunpack.c.h.b16 %v1812
    %v6881 = vunpack.c.l.b16 %v1813
    %v6882 = vunpack.c.h.b16 %v1813
    %v6883 = vunpack.c.l.b16 %v1814
    %v6884 = vunpack.c.h.b16 %v1814
    %v6885 = vunpack.c.l.b16 %v1815
    %v6886 = vunpack.c.h.b16 %v1815
    %v6887 = vunpack.c.l.b16 %v1816
    %v6888 = vunpack.c.h.b16 %v1816
    %v6889 = vunpack.c.l.b16 %v1817
    %v6890 = vunpack.c.h.b16 %v1817
    %v6891 = vunpack.c.l.b16 %v1818
    %v6892 = vunpack.c.h.b16 %v1818
    %v6893 = vunpack.c.l.b16 %v1819
    %v6894 = vunpack.c.h.b16 %v1819
    %v6895 = vunpack.c.l.b16 %v1820
    %v6896 = vunpack.c.h.b16 %v1820
    %v6897 = vunpack.c.l.b16 %v1821
    %v6898 = vunpack.c.h.b16 %v1821
    %v6899 = vunpack.c.l.b16 %v1822
    %v6900 = vunpack.c.h.b16 %v1822
    %v6901 = vunpack.c.l.b16 %v1823
    %v6902 = vunpack.c.h.b16 %v1823
    %v6903 = vunpack.c.l.b16 %v1824
    %v6904 = vunpack.c.h.b16 %v1824
    %v6905 = vunpack.c.l.b16 %v1825
    %v6906 = vunpack.c.h.b16 %v1825
    %v6907 = vunpack.c.l.b16 %v1826
    %v6908 = vunpack.c.h.b16 %v1826
    %v6909 = vunpack.c.l.b16 %v1827
    %v6910 = vunpack.c.h.b16 %v1827
    %v6911 = vunpack.c.l.b16 %v1828
    %v6912 = vunpack.c.h.b16 %v1828
    %v6913 = vunpack.c.l.b16 %v1829
    %v6914 = vunpack.c.h.b16 %v1829
    %v6915 = vunpack.c.l.b16 %v1830
    %v6916 = vunpack.c.h.b16 %v1830
    %v6917 = vunpack.c.l.b16 %v1831
    %v6918 = vunpack.c.h.b16 %v1831
    %v6919 = vunpack.c.l.b16 %v1832
    %v6920 = vunpack.c.h.b16 %v1832
    %v6921 = vunpack.c.l.b16 %v1833
    %v6922 = vunpack.c.h.b16 %v1833
    %v6923 = vunpack.c.l.b16 %v1834
    %v6924 = vunpack.c.h.b16 %v1834
    %v6925 = vunpack.c.l.b16 %v1835
    %v6926 = vunpack.c.h.b16 %v1835
    %v6927 = vunpack.c.l.b16 %v1836
    %v6928 = vunpack.c.h.b16 %v1836
    %v6929 = vunpack.c.l.b16 %v1837
    %v6930 = vunpack.c.h.b16 %v1837
    %v6931 = vunpack.c.l.b16 %v1838
    %v6932 = vunpack.c.h.b16 %v1838
    %v6933 = vunpack.c.l.b16 %v1839
    %v6934 = vunpack.c.h.b16 %v1839
    %v6935 = vunpack.c.l.b16 %v1840
    %v6936 = vunpack.c.h.b16 %v1840
    %v6937 = vunpack.c.l.b16 %v1841
    %v6938 = vunpack.c.h.b16 %v1841
    %v6939 = vunpack.c.l.b16 %v1842
    %v6940 = vunpack.c.h.b16 %v1842
    %v6941 = vunpack.c.l.b16 %v1843
    %v6942 = vunpack.c.h.b16 %v1843
    %v6943 = vunpack.c.l.b16 %v1844
    %v6944 = vunpack.c.h.b16 %v1844
    %v6945 = vunpack.c.l.b16 %v1845
    %v6946 = vunpack.c.h.b16 %v1845
    %v6947 = vunpack.c.l.b16 %v1846
    %v6948 = vunpack.c.h.b16 %v1846
    %v6949 = vunpack.c.l.b16 %v1847
    %v6950 = vunpack.c.h.b16 %v1847
    %v6951 = vunpack.c.l.b16 %v1848
    %v6952 = vunpack.c.h.b16 %v1848
    %v6953 = vunpack.c.l.b16 %v1849
    %v6954 = vunpack.c.h.b16 %v1849
    %v6955 = vunpack.c.l.b16 %v1850
    %v6956 = vunpack.c.h.b16 %v1850
    %v6957 = vunpack.c.l.b16 %v1851
    %v6958 = vunpack.c.h.b16 %v1851
    %v6959 = vunpack.c.l.b16 %v1852
    %v6960 = vunpack.c.h.b16 %v1852
    %v6961 = vunpack.c.l.b16 %v1853
    %v6962 = vunpack.c.h.b16 %v1853
    %v6963 = vunpack.c.l.b16 %v1854
    %v6964 = vunpack.c.h.b16 %v1854
    %v6965 = vunpack.c.l.b16 %v1855
    %v6966 = vunpack.c.h.b16 %v1855
    %v6967 = vunpack.c.l.b16 %v1856
    %v6968 = vunpack.c.h.b16 %v1856
    %v6969 = vunpack.c.l.b16 %v1857
    %v6970 = vunpack.c.h.b16 %v1857
    %v6971 = vunpack.c.l.b16 %v1858
    %v6972 = vunpack.c.h.b16 %v1858
    %v6973 = vunpack.c.l.b16 %v1859
    %v6974 = vunpack.c.h.b16 %v1859
    %v6975 = vunpack.c.l.b16 %v1860
    %v6976 = vunpack.c.h.b16 %v1860
    %v6977 = vunpack.c.l.b16 %v1861
    %v6978 = vunpack.c.h.b16 %v1861
    %v6979 = vunpack.c.l.b16 %v1862
    %v6980 = vunpack.c.h.b16 %v1862
    %v6981 = vunpack.c.l.b16 %v1863
    %v6982 = vunpack.c.h.b16 %v1863
    %v6983 = vunpack.c.l.b16 %v1864
    %v6984 = vunpack.c.h.b16 %v1864
    %v6985 = vunpack.c.l.b16 %v1865
    %v6986 = vunpack.c.h.b16 %v1865
    %v6987 = vunpack.c.l.b16 %v1866
    %v6988 = vunpack.c.h.b16 %v1866
    %v6989 = vunpack.c.l.b16 %v1867
    %v6990 = vunpack.c.h.b16 %v1867
    %v6991 = vunpack.c.l.b16 %v1868
    %v6992 = vunpack.c.h.b16 %v1868
    %v6993 = vunpack.c.l.b16 %v1869
    %v6994 = vunpack.c.h.b16 %v1869
    %v6995 = vunpack.c.l.b16 %v1870
    %v6996 = vunpack.c.h.b16 %v1870
    %v6997 = vunpack.c.l.b16 %v1871
    %v6998 = vunpack.c.h.b16 %v1871
    %v6999 = vunpack.c.l.b16 %v1872
    %v7000 = vunpack.c.h.b16 %v1872
    %v7001 = vunpack.c.l.b16 %v1873
    %v7002 = vunpack.c.h.b16 %v1873
    %v7003 = vunpack.c.l.b16 %v1874
    %v7004 = vunpack.c.h.b16 %v1874
    %v7005 = vunpack.c.l.b16 %v1875
    %v7006 = vunpack.c.h.b16 %v1875
    %v7007 = vunpack.c.l.b16 %v1876
    %v7008 = vunpack.c.h.b16 %v1876
    %v7009 = vunpack.c.l.b16 %v1877
    %v7010 = vunpack.c.h.b16 %v1877
    %v7011 = vunpack.c.l.b16 %v1878
    %v7012 = vunpack.c.h.b16 %v1878
    %v7013 = vunpack.c.l.b16 %v1879
    %v7014 = vunpack.c.h.b16 %v1879
    %v7015 = vunpack.c.l.b16 %v1880
    %v7016 = vunpack.c.h.b16 %v1880
    %v7017 = vunpack.c.l.b16 %v1881
    %v7018 = vunpack.c.h.b16 %v1881
    %v7019 = vunpack.c.l.b16 %v1882
    %v7020 = vunpack.c.h.b16 %v1882
    %v7021 = vunpack.c.l.b16 %v1883
    %v7022 = vunpack.c.h.b16 %v1883
    %v7023 = vunpack.c.l.b16 %v1884
    %v7024 = vunpack.c.h.b16 %v1884
    %v7025 = vunpack.c.l.b16 %v1885
    %v7026 = vunpack.c.h.b16 %v1885
    %v7027 = vunpack.c.l.b16 %v1886
    %v7028 = vunpack.c.h.b16 %v1886
    %v7029 = vunpack.c.l.b16 %v1887
    %v7030 = vunpack.c.h.b16 %v1887
    %v7031 = vunpack.c.l.b16 %v1888
    %v7032 = vunpack.c.h.b16 %v1888
    %v7033 = vunpack.c.l.b16 %v1889
    %v7034 = vunpack.c.h.b16 %v1889
    %v7035 = vunpack.c.l.b16 %v1890
    %v7036 = vunpack.c.h.b16 %v1890
    %v7037 = vunpack.c.l.b16 %v1891
    %v7038 = vunpack.c.h.b16 %v1891
    %v7039 = vunpack.c.l.b16 %v1892
    %v7040 = vunpack.c.h.b16 %v1892
    %v7041 = vunpack.c.l.b16 %v1893
    %v7042 = vunpack.c.h.b16 %v1893
    %v7043 = vunpack.c.l.b16 %v1894
    %v7044 = vunpack.c.h.b16 %v1894
    %v7045 = vunpack.c.l.b16 %v1895
    %v7046 = vunpack.c.h.b16 %v1895
    %v7047 = vunpack.c.l.b16 %v1896
    %v7048 = vunpack.c.h.b16 %v1896
    %v7049 = vunpack.c.l.b16 %v1897
    %v7050 = vunpack.c.h.b16 %v1897
    %v7051 = vunpack.c.l.b16 %v1898
    %v7052 = vunpack.c.h.b16 %v1898
    %v7053 = vunpack.c.l.b16 %v1899
    %v7054 = vunpack.c.h.b16 %v1899
    %v7055 = vunpack.c.l.b16 %v1900
    %v7056 = vunpack.c.h.b16 %v1900
    %v7057 = vunpack.c.l.b16 %v1901
    %v7058 = vunpack.c.h.b16 %v1901
    %v7059 = vunpack.c.l.b16 %v1902
    %v7060 = vunpack.c.h.b16 %v1902
    %v7061 = vunpack.c.l.b16 %v1903
    %v7062 = vunpack.c.h.b16 %v1903
    %v7063 = vunpack.c.l.b16 %v1904
    %v7064 = vunpack.c.h.b16 %v1904
    %v7065 = vunpack.c.l.b16 %v1905
    %v7066 = vunpack.c.h.b16 %v1905
    %v7067 = vunpack.c.l.b16 %v1906
    %v7068 = vunpack.c.h.b16 %v1906
    %v7069 = vunpack.c.l.b16 %v1907
    %v7070 = vunpack.c.h.b16 %v1907
    %v7071 = vunpack.c.l.b16 %v1908
    %v7072 = vunpack.c.h.b16 %v1908
    %v7073 = vunpack.c.l.b16 %v1909
    %v7074 = vunpack.c.h.b16 %v1909
    %v7075 = vunpack.c.l.b16 %v1910
    %v7076 = vunpack.c.h.b16 %v1910
    %v7077 = vunpack.c.l.b16 %v1911
    %v7078 = vunpack.c.h.b16 %v1911
    %v7079 = vunpack.c.l.b16 %v1912
    %v7080 = vunpack.c.h.b16 %v1912
    %v7081 = vunpack.c.l.b16 %v1913
    %v7082 = vunpack.c.h.b16 %v1913
    %v7083 = vunpack.c.l.b16 %v1914
    %v7084 = vunpack.c.h.b16 %v1914
    %v7085 = vunpack.c.l.b16 %v1915
    %v7086 = vunpack.c.h.b16 %v1915
    %v7087 = vunpack.c.l.b16 %v1916
    %v7088 = vunpack.c.h.b16 %v1916
    %v7089 = vunpack.c.l.b16 %v1917
    %v7090 = vunpack.c.h.b16 %v1917
    %v7091 = vunpack.c.l.b16 %v1918
    %v7092 = vunpack.c.h.b16 %v1918
    %v7093 = vunpack.c.l.b16 %v1919
    %v7094 = vunpack.c.h.b16 %v1919
    %v7095 = vunpack.c.l.b16 %v1920
    %v7096 = vunpack.c.h.b16 %v1920
    %v7097 = vunpack.c.l.b16 %v1921
    %v7098 = vunpack.c.h.b16 %v1921
    %v7099 = vunpack.c.l.b16 %v1922
    %v7100 = vunpack.c.h.b16 %v1922
    %v7101 = vunpack.c.l.b16 %v1923
    %v7102 = vunpack.c.h.b16 %v1923
    %v7103 = vunpack.c.l.b16 %v1924
    %v7104 = vunpack.c.h.b16 %v1924
    %v7105 = vunpack.c.l.b16 %v1925
    %v7106 = vunpack.c.h.b16 %v1925
    %v7107 = vunpack.c.l.b16 %v1926
    %v7108 = vunpack.c.h.b16 %v1926
    %v7109 = vunpack.c.l.b16 %v1927
    %v7110 = vunpack.c.h.b16 %v1927
    %v7111 = vunpack.c.l.b16 %v1928
    %v7112 = vunpack.c.h.b16 %v1928
    %v7113 = vunpack.c.l.b16 %v1929
    %v7114 = vunpack.c.h.b16 %v1929
    %v7115 = vunpack.c.l.b16 %v1930
    %v7116 = vunpack.c.h.b16 %v1930
    %v7117 = vunpack.c.l.b16 %v1931
    %v7118 = vunpack.c.h.b16 %v1931
    %v7119 = vunpack.c.l.b16 %v1932
    %v7120 = vunpack.c.h.b16 %v1932
    %v7121 = vunpack.c.l.b16 %v1933
    %v7122 = vunpack.c.h.b16 %v1933
    %v7123 = vunpack.c.l.b16 %v1934
    %v7124 = vunpack.c.h.b16 %v1934
    %v7125 = vunpack.c.l.b16 %v1935
    %v7126 = vunpack.c.h.b16 %v1935
    %v7127 = vunpack.c.l.b16 %v1936
    %v7128 = vunpack.c.h.b16 %v1936
    %v7129 = vunpack.c.l.b16 %v1937
    %v7130 = vunpack.c.h.b16 %v1937
    %v7131 = vunpack.c.l.b16 %v1938
    %v7132 = vunpack.c.h.b16 %v1938
    %v7133 = vunpack.c.l.b16 %v1939
    %v7134 = vunpack.c.h.b16 %v1939
    %v7135 = vunpack.c.l.b16 %v1940
    %v7136 = vunpack.c.h.b16 %v1940
    %v7137 = vunpack.c.l.b16 %v1941
    %v7138 = vunpack.c.h.b16 %v1941
    %v7139 = vunpack.c.l.b16 %v1942
    %v7140 = vunpack.c.h.b16 %v1942
    %v7141 = vunpack.c.l.b16 %v1943
    %v7142 = vunpack.c.h.b16 %v1943
    %v7143 = vunpack.c.l.b16 %v1944
    %v7144 = vunpack.c.h.b16 %v1944
    %v7145 = vunpack.c.l.b16 %v1945
    %v7146 = vunpack.c.h.b16 %v1945
    %v7147 = vunpack.c.l.b16 %v1946
    %v7148 = vunpack.c.h.b16 %v1946
    %v7149 = vunpack.c.l.b16 %v1947
    %v7150 = vunpack.c.h.b16 %v1947
    %v7151 = vunpack.c.l.b16 %v1948
    %v7152 = vunpack.c.h.b16 %v1948
    %v7153 = vunpack.c.l.b16 %v1949
    %v7154 = vunpack.c.h.b16 %v1949
    %v7155 = vunpack.c.l.b16 %v1950
    %v7156 = vunpack.c.h.b16 %v1950
    %v7157 = vpack.c.b16 %v3705, %v3701
    %v7158 = vpack.c.b16 %v3706, %v3702
    %v7159 = vpack.c.b16 %v3707, %v3703
    %v7160 = vpack.c.b16 %v3708, %v3704
    %v7161 = vpack.c.b16 %v3713, %v3709
    %v7162 = vpack.c.b16 %v3714, %v3710
    %v7163 = vpack.c.b16 %v3715, %v3711
    %v7164 = vpack.c.b16 %v3716, %v3712
    %v7165 = vpack.c.b16 %v3721, %v3717
    %v7166 = vpack.c.b16 %v3722, %v3718
    %v7167 = vpack.c.b16 %v3723, %v3719
    %v7168 = vpack.c.b16 %v3724, %v3720
    %v7169 = vpack.c.b16 %v3729, %v3725
    %v7170 = vpack.c.b16 %v3730, %v3726
    %v7171 = vpack.c.b16 %v3731, %v3727
    %v7172 = vpack.c.b16 %v3732, %v3728
    %v7173 = vpack.c.b16 %v3737, %v3733
    %v7174 = vpack.c.b16 %v3738, %v3734
    %v7175 = vpack.c.b16 %v3739, %v3735
    %v7176 = vpack.c.b16 %v3740, %v3736
    %v7177 = vpack.c.b16 %v3745, %v3741
    %v7178 = vpack.c.b16 %v3746, %v3742
    %v7179 = vpack.c.b16 %v3747, %v3743
    %v7180 = vpack.c.b16 %v3748, %v3744
    %v7181 = vpack.c.b16 %v3753, %v3749
    %v7182 = vpack.c.b16 %v3754, %v3750
    %v7183 = vpack.c.b16 %v3755, %v3751
    %v7184 = vpack.c.b16 %v3756, %v3752
    %v7185 = vpack.c.b16 %v3761, %v3757
    %v7186 = vpack.c.b16 %v3762, %v3758
    %v7187 = vpack.c.b16 %v3763, %v3759
    %v7188 = vpack.c.b16 %v3764, %v3760
    %v7189 = vpack.c.b16 %v3769, %v3765
    %v7190 = vpack.c.b16 %v3770, %v3766
    %v7191 = vpack.c.b16 %v3771, %v3767
    %v7192 = vpack.c.b16 %v3772, %v3768
    %v7193 = vpack.c.b16 %v3777, %v3773
    %v7194 = vpack.c.b16 %v3778, %v3774
    %v7195 = vpack.c.b16 %v3779, %v3775
    %v7196 = vpack.c.b16 %v3780, %v3776
    %v7197 = vpack.c.b16 %v3785, %v3781
    %v7198 = vpack.c.b16 %v3786, %v3782
    %v7199 = vpack.c.b16 %v3787, %v3783
    %v7200 = vpack.c.b16 %v3788, %v3784
    %v7201 = vpack.c.b16 %v3793, %v3789
    %v7202 = vpack.c.b16 %v3794, %v3790
    %v7203 = vpack.c.b16 %v3795, %v3791
    %v7204 = vpack.c.b16 %v3796, %v3792
    %v7205 = vpack.c.b16 %v3801, %v3797
    %v7206 = vpack.c.b16 %v3802, %v3798
    %v7207 = vpack.c.b16 %v3803, %v3799
    %v7208 = vpack.c.b16 %v3804, %v3800
    %v7209 = vpack.c.b16 %v3809, %v3805
    %v7210 = vpack.c.b16 %v3810, %v3806
    %v7211 = vpack.c.b16 %v3811, %v3807
    %v7212 = vpack.c.b16 %v3812, %v3808
    %v7213 = vpack.c.b16 %v3817, %v3813
    %v7214 = vpack.c.b16 %v3818, %v3814
    %v7215 = vpack.c.b16 %v3819, %v3815
    %v7216 = vpack.c.b16 %v3820, %v3816
    %v7217 = vpack.c.b16 %v3825, %v3821
    %v7218 = vpack.c.b16 %v3826, %v3822
    %v7219 = vpack.c.b16 %v3827, %v3823
    %v7220 = vpack.c.b16 %v3828, %v3824
    %v7221 = vpack.c.b16 %v3833, %v3829
    %v7222 = vpack.c.b16 %v3834, %v3830
    %v7223 = vpack.c.b16 %v3835, %v3831
    %v7224 = vpack.c.b16 %v3836, %v3832
    %v7225 = vpack.c.b16 %v3841, %v3837
    %v7226 = vpack.c.b16 %v3842, %v3838
    %v7227 = vpack.c.b16 %v3843, %v3839
    %v7228 = vpack.c.b16 %v3844, %v3840
    %v7229 = vpack.c.b16 %v3849, %v3845
    %v7230 = vpack.c.b16 %v3850, %v3846
    %v7231 = vpack.c.b16 %v3851, %v3847
    %v7232 = vpack.c.b16 %v3852, %v3848
    %v7233 = vpack.c.b16 %v3857, %v3853
    %v7234 = vpack.c.b16 %v3858, %v3854
    %v7235 = vpack.c.b16 %v3859, %v3855
    %v7236 = vpack.c.b16 %v3860, %v3856
    %v7237 = vpack.c.b16 %v3865, %v3861
    %v7238 = vpack.c.b16 %v3866, %v3862
    %v7239 = vpack.c.b16 %v3867, %v3863
    %v7240 = vpack.c.b16 %v3868, %v3864
    %v7241 = vpack.c.b16 %v3873, %v3869
    %v7242 = vpack.c.b16 %v3874, %v3870
    %v7243 = vpack.c.b16 %v3875, %v3871
    %v7244 = vpack.c.b16 %v3876, %v3872
    %v7245 = vpack.c.b16 %v3881, %v3877
    %v7246 = vpack.c.b16 %v3882, %v3878
    %v7247 = vpack.c.b16 %v3883, %v3879
    %v7248 = vpack.c.b16 %v3884, %v3880
    %v7249 = vpack.c.b16 %v3889, %v3885
    %v7250 = vpack.c.b16 %v3890, %v3886
    %v7251 = vpack.c.b16 %v3891, %v3887
    %v7252 = vpack.c.b16 %v3892, %v3888
    %v7253 = vpack.c.b16 %v3897, %v3893
    %v7254 = vpack.c.b16 %v3898, %v3894
    %v7255 = vpack.c.b16 %v3899, %v3895
    %v7256 = vpack.c.b16 %v3900, %v3896
    %v7257 = vpack.c.b16 %v3905, %v3901
    %v7258 = vpack.c.b16 %v3906, %v3902
    %v7259 = vpack.c.b16 %v3907, %v3903
    %v7260 = vpack.c.b16 %v3908, %v3904
    %v7261 = vpack.c.b16 %v3913, %v3909
    %v7262 = vpack.c.b16 %v3914, %v3910
    %v7263 = vpack.c.b16 %v3915, %v3911
    %v7264 = vpack.c.b16 %v3916, %v3912
    %v7265 = vpack.c.b16 %v3921, %v3917
    %v7266 = vpack.c.b16 %v3922, %v3918
    %v7267 = vpack.c.b16 %v3923, %v3919
    %v7268 = vpack.c.b16 %v3924, %v3920
    %v7269 = vpack.c.b16 %v3929, %v3925
    %v7270 = vpack.c.b16 %v3930, %v3926
    %v7271 = vpack.c.b16 %v3931, %v3927
    %v7272 = vpack.c.b16 %v3932, %v3928
    %v7273 = vpack.c.b16 %v3937, %v3933
    %v7274 = vpack.c.b16 %v3938, %v3934
    %v7275 = vpack.c.b16 %v3939, %v3935
    %v7276 = vpack.c.b16 %v3940, %v3936
    %v7277 = vpack.c.b16 %v3945, %v3941
    %v7278 = vpack.c.b16 %v3946, %v3942
    %v7279 = vpack.c.b16 %v3947, %v3943
    %v7280 = vpack.c.b16 %v3948, %v3944
    %v7281 = vpack.c.b16 %v3953, %v3949
    %v7282 = vpack.c.b16 %v3954, %v3950
    %v7283 = vpack.c.b16 %v3955, %v3951
    %v7284 = vpack.c.b16 %v3956, %v3952
    %v7285 = vpack.c.b16 %v3961, %v3957
    %v7286 = vpack.c.b16 %v3962, %v3958
    %v7287 = vpack.c.b16 %v3963, %v3959
    %v7288 = vpack.c.b16 %v3964, %v3960
    %v7289 = vpack.c.b16 %v3969, %v3965
    %v7290 = vpack.c.b16 %v3970, %v3966
    %v7291 = vpack.c.b16 %v3971, %v3967
    %v7292 = vpack.c.b16 %v3972, %v3968
    %v7293 = vpack.c.b16 %v3977, %v3973
    %v7294 = vpack.c.b16 %v3978, %v3974
    %v7295 = vpack.c.b16 %v3979, %v3975
    %v7296 = vpack.c.b16 %v3980, %v3976
    %v7297 = vpack.c.b16 %v3985, %v3981
    %v7298 = vpack.c.b16 %v3986, %v3982
    %v7299 = vpack.c.b16 %v3987, %v3983
    %v7300 = vpack.c.b16 %v3988, %v3984
    %v7301 = vpack.c.b16 %v3993, %v3989
    %v7302 = vpack.c.b16 %v3994, %v3990
    %v7303 = vpack.c.b16 %v3995, %v3991
    %v7304 = vpack.c.b16 %v3996, %v3992
    %v7305 = vpack.c.b16 %v4001, %v3997
    %v7306 = vpack.c.b16 %v4002, %v3998
    %v7307 = vpack.c.b16 %v4003, %v3999
    %v7308 = vpack.c.b16 %v4004, %v4000
    %v7309 = vpack.c.b16 %v4009, %v4005
    %v7310 = vpack.c.b16 %v4010, %v4006
    %v7311 = vpack.c.b16 %v4011, %v4007
    %v7312 = vpack.c.b16 %v4012, %v4008
    %v7313 = vpack.c.b16 %v4017, %v4013
    %v7314 = vpack.c.b16 %v4018, %v4014
    %v7315 = vpack.c.b16 %v4019, %v4015
    %v7316 = vpack.c.b16 %v4020, %v4016
    %v7317 = vpack.c.b16 %v4025, %v4021
    %v7318 = vpack.c.b16 %v4026, %v4022
    %v7319 = vpack.c.b16 %v4027, %v4023
    %v7320 = vpack.c.b16 %v4028, %v4024
    %v7321 = vpack.c.b16 %v4033, %v4029
    %v7322 = vpack.c.b16 %v4034, %v4030
    %v7323 = vpack.c.b16 %v4035, %v4031
    %v7324 = vpack.c.b16 %v4036, %v4032
    %v7325 = vpack.c.b16 %v4041, %v4037
    %v7326 = vpack.c.b16 %v4042, %v4038
    %v7327 = vpack.c.b16 %v4043, %v4039
    %v7328 = vpack.c.b16 %v4044, %v4040
    %v7329 = vpack.c.b16 %v4049, %v4045
    %v7330 = vpack.c.b16 %v4050, %v4046
    %v7331 = vpack.c.b16 %v4051, %v4047
    %v7332 = vpack.c.b16 %v4052, %v4048
    %v7333 = vpack.c.b16 %v4057, %v4053
    %v7334 = vpack.c.b16 %v4058, %v4054
    %v7335 = vpack.c.b16 %v4059, %v4055
    %v7336 = vpack.c.b16 %v4060, %v4056
    %v7337 = vpack.c.b16 %v4065, %v4061
    %v7338 = vpack.c.b16 %v4066, %v4062
    %v7339 = vpack.c.b16 %v4067, %v4063
    %v7340 = vpack.c.b16 %v4068, %v4064
    %v7341 = vpack.c.b16 %v4073, %v4069
    %v7342 = vpack.c.b16 %v4074, %v4070
    %v7343 = vpack.c.b16 %v4075, %v4071
    %v7344 = vpack.c.b16 %v4076, %v4072
    %v7345 = vpack.c.b16 %v4081, %v4077
    %v7346 = vpack.c.b16 %v4082, %v4078
    %v7347 = vpack.c.b16 %v4083, %v4079
    %v7348 = vpack.c.b16 %v4084, %v4080
    %v7349 = vpack.c.b16 %v4089, %v4085
    %v7350 = vpack.c.b16 %v4090, %v4086
    %v7351 = vpack.c.b16 %v4091, %v4087
    %v7352 = vpack.c.b16 %v4092, %v4088
    %v7353 = vpack.c.b16 %v4097, %v4093
    %v7354 = vpack.c.b16 %v4098, %v4094
    %v7355 = vpack.c.b16 %v4099, %v4095
    %v7356 = vpack.c.b16 %v4100, %v4096
    %v7357 = vpack.c.b16 %v4105, %v4101
    %v7358 = vpack.c.b16 %v4106, %v4102
    %v7359 = vpack.c.b16 %v4107, %v4103
    %v7360 = vpack.c.b16 %v4108, %v4104
    %v7361 = vpack.c.b16 %v4113, %v4109
    %v7362 = vpack.c.b16 %v4114, %v4110
    %v7363 = vpack.c.b16 %v4115, %v4111
    %v7364 = vpack.c.b16 %v4116, %v4112
    %v7365 = vpack.c.b16 %v4121, %v4117
    %v7366 = vpack.c.b16 %v4122, %v4118
    %v7367 = vpack.c.b16 %v4123, %v4119
    %v7368 = vpack.c.b16 %v4124, %v4120
    %v7369 = vpack.c.b16 %v4129, %v4125
    %v7370 = vpack.c.b16 %v4130, %v4126
    %v7371 = vpack.c.b16 %v4131, %v4127
    %v7372 = vpack.c.b16 %v4132, %v4128
    %v7373 = vpack.c.b16 %v4137, %v4133
    %v7374 = vpack.c.b16 %v4138, %v4134
    %v7375 = vpack.c.b16 %v4139, %v4135
    %v7376 = vpack.c.b16 %v4140, %v4136
    %v7377 = vpack.c.b16 %v4145, %v4141
    %v7378 = vpack.c.b16 %v4146, %v4142
    %v7379 = vpack.c.b16 %v4147, %v4143
    %v7380 = vpack.c.b16 %v4148, %v4144
    %v7381 = vpack.c.b16 %v4153, %v4149
    %v7382 = vpack.c.b16 %v4154, %v4150
    %v7383 = vpack.c.b16 %v4155, %v4151
    %v7384 = vpack.c.b16 %v4156, %v4152
    %v7385 = vpack.c.b16 %v4161, %v4157
    %v7386 = vpack.c.b16 %v4162, %v4158
    %v7387 = vpack.c.b16 %v4163, %v4159
    %v7388 = vpack.c.b16 %v4164, %v4160
    %v7389 = vpack.c.b16 %v4169, %v4165
    %v7390 = vpack.c.b16 %v4170, %v4166
    %v7391 = vpack.c.b16 %v4171, %v4167
    %v7392 = vpack.c.b16 %v4172, %v4168
    %v7393 = vpack.c.b16 %v4177, %v4173
    %v7394 = vpack.c.b16 %v4178, %v4174
    %v7395 = vpack.c.b16 %v4179, %v4175
    %v7396 = vpack.c.b16 %v4180, %v4176
    %v7397 = vpack.c.b16 %v4185, %v4181
    %v7398 = vpack.c.b16 %v4186, %v4182
    %v7399 = vpack.c.b16 %v4187, %v4183
    %v7400 = vpack.c.b16 %v4188, %v4184
    %v7401 = vpack.c.b16 %v4193, %v4189
    %v7402 = vpack.c.b16 %v4194, %v4190
    %v7403 = vpack.c.b16 %v4195, %v4191
    %v7404 = vpack.c.b16 %v4196, %v4192
    %v7405 = vpack.c.b16 %v4201, %v4197
    %v7406 = vpack.c.b16 %v4202, %v4198
    %v7407 = vpack.c.b16 %v4203, %v4199
    %v7408 = vpack.c.b16 %v4204, %v4200
    %v7409 = vpack.c.b16 %v4209, %v4205
    %v7410 = vpack.c.b16 %v4210, %v4206
    %v7411 = vpack.c.b16 %v4211, %v4207
    %v7412 = vpack.c.b16 %v4212, %v4208
    %v7413 = vpack.c.b16 %v4217, %v4213
    %v7414 = vpack.c.b16 %v4218, %v4214
    %v7415 = vpack.c.b16 %v4219, %v4215
    %v7416 = vpack.c.b16 %v4220, %v4216
    %v7417 = vpack.c.b16 %v4225, %v4221
    %v7418 = vpack.c.b16 %v4226, %v4222
    %v7419 = vpack.c.b16 %v4227, %v4223
    %v7420 = vpack.c.b16 %v4228, %v4224
    %v7421 = vpack.c.b16 %v4233, %v4229
    %v7422 = vpack.c.b16 %v4234, %v4230
    %v7423 = vpack.c.b16 %v4235, %v4231
    %v7424 = vpack.c.b16 %v4236, %v4232
    %v7425 = vpack.c.b16 %v4241, %v4237
    %v7426 = vpack.c.b16 %v4242, %v4238
    %v7427 = vpack.c.b16 %v4243, %v4239
    %v7428 = vpack.c.b16 %v4244, %v4240
    %v7429 = vpack.c.b16 %v4249, %v4245
    %v7430 = vpack.c.b16 %v4250, %v4246
    %v7431 = vpack.c.b16 %v4251, %v4247
    %v7432 = vpack.c.b16 %v4252, %v4248
    %v7433 = vpack.c.b16 %v4257, %v4253
    %v7434 = vpack.c.b16 %v4258, %v4254
    %v7435 = vpack.c.b16 %v4259, %v4255
    %v7436 = vpack.c.b16 %v4260, %v4256
    %v7437 = vpack.c.b16 %v4265, %v4261
    %v7438 = vpack.c.b16 %v4266, %v4262
    %v7439 = vpack.c.b16 %v4267, %v4263
    %v7440 = vpack.c.b16 %v4268, %v4264
    %v7441 = vpack.c.b16 %v4273, %v4269
    %v7442 = vpack.c.b16 %v4274, %v4270
    %v7443 = vpack.c.b16 %v4275, %v4271
    %v7444 = vpack.c.b16 %v4276, %v4272
    %v7445 = vpack.c.b16 %v4281, %v4277
    %v7446 = vpack.c.b16 %v4282, %v4278
    %v7447 = vpack.c.b16 %v4283, %v4279
    %v7448 = vpack.c.b16 %v4284, %v4280
    %v7449 = vpack.c.b16 %v4289, %v4285
    %v7450 = vpack.c.b16 %v4290, %v4286
    %v7451 = vpack.c.b16 %v4291, %v4287
    %v7452 = vpack.c.b16 %v4292, %v4288
    %v7453 = vpack.c.b16 %v4297, %v4293
    %v7454 = vpack.c.b16 %v4298, %v4294
    %v7455 = vpack.c.b16 %v4299, %v4295
    %v7456 = vpack.c.b16 %v4300, %v4296
    %v7457 = vpack.c.b16 %v4305, %v4301
    %v7458 = vpack.c.b16 %v4306, %v4302
    %v7459 = vpack.c.b16 %v4307, %v4303
    %v7460 = vpack.c.b16 %v4308, %v4304
    %v7461 = vpack.c.b16 %v4313, %v4309
    %v7462 = vpack.c.b16 %v4314, %v4310
    %v7463 = vpack.c.b16 %v4315, %v4311
    %v7464 = vpack.c.b16 %v4316, %v4312
    %v7465 = vpack.c.b16 %v4321, %v4317
    %v7466 = vpack.c.b16 %v4322, %v4318
    %v7467 = vpack.c.b16 %v4323, %v4319
    %v7468 = vpack.c.b16 %v4324, %v4320
    %v7469 = vpack.c.b16 %v4329, %v4325
    %v7470 = vpack.c.b16 %v4330, %v4326
    %v7471 = vpack.c.b16 %v4331, %v4327
    %v7472 = vpack.c.b16 %v4332, %v4328
    %v7473 = vpack.c.b16 %v4337, %v4333
    %v7474 = vpack.c.b16 %v4338, %v4334
    %v7475 = vpack.c.b16 %v4339, %v4335
    %v7476 = vpack.c.b16 %v4340, %v4336
    %v7477 = vpack.c.b16 %v4345, %v4341
    %v7478 = vpack.c.b16 %v4346, %v4342
    %v7479 = vpack.c.b16 %v4347, %v4343
    %v7480 = vpack.c.b16 %v4348, %v4344
    %v7481 = vpack.c.b16 %v4353, %v4349
    %v7482 = vpack.c.b16 %v4354, %v4350
    %v7483 = vpack.c.b16 %v4355, %v4351
    %v7484 = vpack.c.b16 %v4356, %v4352
    %v7485 = vpack.c.b16 %v4361, %v4357
    %v7486 = vpack.c.b16 %v4362, %v4358
    %v7487 = vpack.c.b16 %v4363, %v4359
    %v7488 = vpack.c.b16 %v4364, %v4360
    %v7489 = vpack.c.b16 %v4369, %v4365
    %v7490 = vpack.c.b16 %v4370, %v4366
    %v7491 = vpack.c.b16 %v4371, %v4367
    %v7492 = vpack.c.b16 %v4372, %v4368
    %v7493 = vpack.c.b16 %v4377, %v4373
    %v7494 = vpack.c.b16 %v4378, %v4374
    %v7495 = vpack.c.b16 %v4379, %v4375
    %v7496 = vpack.c.b16 %v4380, %v4376
    %v7497 = vpack.c.b16 %v4385, %v4381
    %v7498 = vpack.c.b16 %v4386, %v4382
    %v7499 = vpack.c.b16 %v4387, %v4383
    %v7500 = vpack.c.b16 %v4388, %v4384
    %v7501 = vpack.c.b16 %v4393, %v4389
    %v7502 = vpack.c.b16 %v4394, %v4390
    %v7503 = vpack.c.b16 %v4395, %v4391
    %v7504 = vpack.c.b16 %v4396, %v4392
    %v7505 = vpack.c.b16 %v4401, %v4397
    %v7506 = vpack.c.b16 %v4402, %v4398
    %v7507 = vpack.c.b16 %v4403, %v4399
    %v7508 = vpack.c.b16 %v4404, %v4400
    %v7509 = vpack.c.b16 %v4409, %v4405
    %v7510 = vpack.c.b16 %v4410, %v4406
    %v7511 = vpack.c.b16 %v4411, %v4407
    %v7512 = vpack.c.b16 %v4412, %v4408
    %v7513 = vpack.c.b16 %v4417, %v4413
    %v7514 = vpack.c.b16 %v4418, %v4414
    %v7515 = vpack.c.b16 %v4419, %v4415
    %v7516 = vpack.c.b16 %v4420, %v4416
    %v7517 = vpack.c.b16 %v4425, %v4421
    %v7518 = vpack.c.b16 %v4426, %v4422
    %v7519 = vpack.c.b16 %v4427, %v4423
    %v7520 = vpack.c.b16 %v4428, %v4424
    %v7521 = vpack.c.b16 %v4433, %v4429
    %v7522 = vpack.c.b16 %v4434, %v4430
    %v7523 = vpack.c.b16 %v4435, %v4431
    %v7524 = vpack.c.b16 %v4436, %v4432
    %v7525 = vpack.c.b16 %v4441, %v4437
    %v7526 = vpack.c.b16 %v4442, %v4438
    %v7527 = vpack.c.b16 %v4443, %v4439
    %v7528 = vpack.c.b16 %v4444, %v4440
    %v7529 = vpack.c.b16 %v4449, %v4445
    %v7530 = vpack.c.b16 %v4450, %v4446
    %v7531 = vpack.c.b16 %v4451, %v4447
    %v7532 = vpack.c.b16 %v4452, %v4448
    %v7533 = vpack.c.b16 %v4457, %v4453
    %v7534 = vpack.c.b16 %v4458, %v4454
    %v7535 = vpack.c.b16 %v4459, %v4455
    %v7536 = vpack.c.b16 %v4460, %v4456
    %v7537 = vpack.c.b16 %v4465, %v4461
    %v7538 = vpack.c.b16 %v4466, %v4462
    %v7539 = vpack.c.b16 %v4467, %v4463
    %v7540 = vpack.c.b16 %v4468, %v4464
    %v7541 = vpack.c.b16 %v4473, %v4469
    %v7542 = vpack.c.b16 %v4474, %v4470
    %v7543 = vpack.c.b16 %v4475, %v4471
    %v7544 = vpack.c.b16 %v4476, %v4472
    %v7545 = vpack.c.b16 %v4481, %v4477
    %v7546 = vpack.c.b16 %v4482, %v4478
    %v7547 = vpack.c.b16 %v4483, %v4479
    %v7548 = vpack.c.b16 %v4484, %v4480
    %v7549 = vpack.c.b16 %v4489, %v4485
    %v7550 = vpack.c.b16 %v4490, %v4486
    %v7551 = vpack.c.b16 %v4491, %v4487
    %v7552 = vpack.c.b16 %v4492, %v4488
    %v7553 = vpack.c.b16 %v4497, %v4493
    %v7554 = vpack.c.b16 %v4498, %v4494
    %v7555 = vpack.c.b16 %v4499, %v4495
    %v7556 = vpack.c.b16 %v4500, %v4496
    %v7557 = vpack.c.b16 %v4505, %v4501
    %v7558 = vpack.c.b16 %v4506, %v4502
    %v7559 = vpack.c.b16 %v4507, %v4503
    %v7560 = vpack.c.b16 %v4508, %v4504
    %v7561 = vpack.c.b16 %v4513, %v4509
    %v7562 = vpack.c.b16 %v4514, %v4510
    %v7563 = vpack.c.b16 %v4515, %v4511
    %v7564 = vpack.c.b16 %v4516, %v4512
    %v7565 = vpack.c.b16 %v4521, %v4517
    %v7566 = vpack.c.b16 %v4522, %v4518
    %v7567 = vpack.c.b16 %v4523, %v4519
    %v7568 = vpack.c.b16 %v4524, %v4520
    %v7569 = vpack.c.b16 %v4529, %v4525
    %v7570 = vpack.c.b16 %v4530, %v4526
    %v7571 = vpack.c.b16 %v4531, %v4527
    %v7572 = vpack.c.b16 %v4532, %v4528
    %v7573 = vpack.c.b16 %v4537, %v4533
    %v7574 = vpack.c.b16 %v4538, %v4534
    %v7575 = vpack.c.b16 %v4539, %v4535
    %v7576 = vpack.c.b16 %v4540, %v4536
    %v7577 = vpack.c.b16 %v4545, %v4541
    %v7578 = vpack.c.b16 %v4546, %v4542
    %v7579 = vpack.c.b16 %v4547, %v4543
    %v7580 = vpack.c.b16 %v4548, %v4544
    %v7581 = vpack.c.b16 %v4553, %v4549
    %v7582 = vpack.c.b16 %v4554, %v4550
    %v7583 = vpack.c.b16 %v4555, %v4551
    %v7584 = vpack.c.b16 %v4556, %v4552
    %v7585 = vpack.c.b16 %v4561, %v4557
    %v7586 = vpack.c.b16 %v4562, %v4558
    %v7587 = vpack.c.b16 %v4563, %v4559
    %v7588 = vpack.c.b16 %v4564, %v4560
    %v7589 = vpack.c.b16 %v4569, %v4565
    %v7590 = vpack.c.b16 %v4570, %v4566
    %v7591 = vpack.c.b16 %v4571, %v4567
    %v7592 = vpack.c.b16 %v4572, %v4568
    %v7593 = vpack.c.b16 %v4577, %v4573
    %v7594 = vpack.c.b16 %v4578, %v4574
    %v7595 = vpack.c.b16 %v4579, %v4575
    %v7596 = vpack.c.b16 %v4580, %v4576
    %v7597 = vpack.c.b16 %v4585, %v4581
    %v7598 = vpack.c.b16 %v4586, %v4582
    %v7599 = vpack.c.b16 %v4587, %v4583
    %v7600 = vpack.c.b16 %v4588, %v4584
    %v7601 = vpack.c.b16 %v4593, %v4589
    %v7602 = vpack.c.b16 %v4594, %v4590
    %v7603 = vpack.c.b16 %v4595, %v4591
    %v7604 = vpack.c.b16 %v4596, %v4592
    %v7605 = vpack.c.b16 %v4601, %v4597
    %v7606 = vpack.c.b16 %v4602, %v4598
    %v7607 = vpack.c.b16 %v4603, %v4599
    %v7608 = vpack.c.b16 %v4604, %v4600
    %v7609 = vpack.c.b16 %v4609, %v4605
    %v7610 = vpack.c.b16 %v4610, %v4606
    %v7611 = vpack.c.b16 %v4611, %v4607
    %v7612 = vpack.c.b16 %v4612, %v4608
    %v7613 = vpack.c.b16 %v4617, %v4613
    %v7614 = vpack.c.b16 %v4618, %v4614
    %v7615 = vpack.c.b16 %v4619, %v4615
    %v7616 = vpack.c.b16 %v4620, %v4616
    %v7617 = vpack.c.b16 %v4625, %v4621
    %v7618 = vpack.c.b16 %v4626, %v4622
    %v7619 = vpack.c.b16 %v4627, %v4623
    %v7620 = vpack.c.b16 %v4628, %v4624
    %v7621 = vpack.c.b16 %v4633, %v4629
    %v7622 = vpack.c.b16 %v4634, %v4630
    %v7623 = vpack.c.b16 %v4635, %v4631
    %v7624 = vpack.c.b16 %v4636, %v4632
    %v7625 = vpack.c.b16 %v4641, %v4637
    %v7626 = vpack.c.b16 %v4642, %v4638
    %v7627 = vpack.c.b16 %v4643, %v4639
    %v7628 = vpack.c.b16 %v4644, %v4640
    %v7629 = vpack.c.b16 %v4649, %v4645
    %v7630 = vpack.c.b16 %v4650, %v4646
    %v7631 = vpack.c.b16 %v4651, %v4647
    %v7632 = vpack.c.b16 %v4652, %v4648
    %v7633 = vpack.c.b16 %v4657, %v4653
    %v7634 = vpack.c.b16 %v4658, %v4654
    %v7635 = vpack.c.b16 %v4659, %v4655
    %v7636 = vpack.c.b16 %v4660, %v4656
    %v7637 = vpack.c.b16 %v4665, %v4661
    %v7638 = vpack.c.b16 %v4666, %v4662
    %v7639 = vpack.c.b16 %v4667, %v4663
    %v7640 = vpack.c.b16 %v4668, %v4664
    %v7641 = vpack.c.b16 %v4673, %v4669
    %v7642 = vpack.c.b16 %v4674, %v4670
    %v7643 = vpack.c.b16 %v4675, %v4671
    %v7644 = vpack.c.b16 %v4676, %v4672
    %v7645 = vpack.c.b16 %v4681, %v4677
    %v7646 = vpack.c.b16 %v4682, %v4678
    %v7647 = vpack.c.b16 %v4683, %v4679
    %v7648 = vpack.c.b16 %v4684, %v4680
    %v7649 = vpack.c.b16 %v4689, %v4685
    %v7650 = vpack.c.b16 %v4690, %v4686
    %v7651 = vpack.c.b16 %v4691, %v4687
    %v7652 = vpack.c.b16 %v4692, %v4688
    %v7653 = vpack.c.b16 %v4697, %v4693
    %v7654 = vpack.c.b16 %v4698, %v4694
    %v7655 = vpack.c.b16 %v4699, %v4695
    %v7656 = vpack.c.b16 %v4700, %v4696
    %v7657 = vpack.c.b16 %v4705, %v4701
    %v7658 = vpack.c.b16 %v4706, %v4702
    %v7659 = vpack.c.b16 %v4707, %v4703
    %v7660 = vpack.c.b16 %v4708, %v4704
    %v7661 = vpack.c.b16 %v4713, %v4709
    %v7662 = vpack.c.b16 %v4714, %v4710
    %v7663 = vpack.c.b16 %v4715, %v4711
    %v7664 = vpack.c.b16 %v4716, %v4712
    %v7665 = vpack.c.b16 %v4721, %v4717
    %v7666 = vpack.c.b16 %v4722, %v4718
    %v7667 = vpack.c.b16 %v4723, %v4719
    %v7668 = vpack.c.b16 %v4724, %v4720
    %v7669 = vpack.c.b16 %v4729, %v4725
    %v7670 = vpack.c.b16 %v4730, %v4726
    %v7671 = vpack.c.b16 %v4731, %v4727
    %v7672 = vpack.c.b16 %v4732, %v4728
    %v7673 = vpack.c.b16 %v4737, %v4733
    %v7674 = vpack.c.b16 %v4738, %v4734
    %v7675 = vpack.c.b16 %v4739, %v4735
    %v7676 = vpack.c.b16 %v4740, %v4736
    %v7677 = vpack.c.b16 %v4745, %v4741
    %v7678 = vpack.c.b16 %v4746, %v4742
    %v7679 = vpack.c.b16 %v4747, %v4743
    %v7680 = vpack.c.b16 %v4748, %v4744
    %v7681 = vpack.c.b16 %v4753, %v4749
    %v7682 = vpack.c.b16 %v4754, %v4750
    %v7683 = vpack.c.b16 %v4755, %v4751
    %v7684 = vpack.c.b16 %v4756, %v4752
    %v7685 = vpack.c.b16 %v4761, %v4757
    %v7686 = vpack.c.b16 %v4762, %v4758
    %v7687 = vpack.c.b16 %v4763, %v4759
    %v7688 = vpack.c.b16 %v4764, %v4760
    %v7689 = vpack.c.b16 %v4769, %v4765
    %v7690 = vpack.c.b16 %v4770, %v4766
    %v7691 = vpack.c.b16 %v4771, %v4767
    %v7692 = vpack.c.b16 %v4772, %v4768
    %v7693 = vpack.c.b16 %v4777, %v4773
    %v7694 = vpack.c.b16 %v4778, %v4774
    %v7695 = vpack.c.b16 %v4779, %v4775
    %v7696 = vpack.c.b16 %v4780, %v4776
    %v7697 = vpack.c.b16 %v4785, %v4781
    %v7698 = vpack.c.b16 %v4786, %v4782
    %v7699 = vpack.c.b16 %v4787, %v4783
    %v7700 = vpack.c.b16 %v4788, %v4784
    %v7701 = vpack.c.b16 %v4793, %v4789
    %v7702 = vpack.c.b16 %v4794, %v4790
    %v7703 = vpack.c.b16 %v4795, %v4791
    %v7704 = vpack.c.b16 %v4796, %v4792
    %v7705 = vpack.c.b16 %v4801, %v4797
    %v7706 = vpack.c.b16 %v4802, %v4798
    %v7707 = vpack.c.b16 %v4803, %v4799
    %v7708 = vpack.c.b16 %v4804, %v4800
    %v7709 = vpack.c.b16 %v4809, %v4805
    %v7710 = vpack.c.b16 %v4810, %v4806
    %v7711 = vpack.c.b16 %v4811, %v4807
    %v7712 = vpack.c.b16 %v4812, %v4808
    %v7713 = vpack.c.b16 %v4817, %v4813
    %v7714 = vpack.c.b16 %v4818, %v4814
    %v7715 = vpack.c.b16 %v4819, %v4815
    %v7716 = vpack.c.b16 %v4820, %v4816
    %v7717 = vpack.c.b16 %v4825, %v4821
    %v7718 = vpack.c.b16 %v4826, %v4822
    %v7719 = vpack.c.b16 %v4827, %v4823
    %v7720 = vpack.c.b16 %v4828, %v4824
    %v7721 = vpack.c.b16 %v4833, %v4829
    %v7722 = vpack.c.b16 %v4834, %v4830
    %v7723 = vpack.c.b16 %v4835, %v4831
    %v7724 = vpack.c.b16 %v4836, %v4832
    %v7725 = vpack.c.b16 %v4841, %v4837
    %v7726 = vpack.c.b16 %v4842, %v4838
    %v7727 = vpack.c.b16 %v4843, %v4839
    %v7728 = vpack.c.b16 %v4844, %v4840
    %v7729 = vpack.c.b16 %v4849, %v4845
    %v7730 = vpack.c.b16 %v4850, %v4846
    %v7731 = vpack.c.b16 %v4851, %v4847
    %v7732 = vpack.c.b16 %v4852, %v4848
    %v7733 = vpack.c.b16 %v4857, %v4853
    %v7734 = vpack.c.b16 %v4858, %v4854
    %v7735 = vpack.c.b16 %v4859, %v4855
    %v7736 = vpack.c.b16 %v4860, %v4856
    %v7737 = vpack.c.b16 %v4865, %v4861
    %v7738 = vpack.c.b16 %v4866, %v4862
    %v7739 = vpack.c.b16 %v4867, %v4863
    %v7740 = vpack.c.b16 %v4868, %v4864
    %v7741 = vpack.c.b16 %v4873, %v4869
    %v7742 = vpack.c.b16 %v4874, %v4870
    %v7743 = vpack.c.b16 %v4875, %v4871
    %v7744 = vpack.c.b16 %v4876, %v4872
    %v7745 = vpack.c.b16 %v4881, %v4877
    %v7746 = vpack.c.b16 %v4882, %v4878
    %v7747 = vpack.c.b16 %v4883, %v4879
    %v7748 = vpack.c.b16 %v4884, %v4880
    %v7749 = vpack.c.b16 %v4889, %v4885
    %v7750 = vpack.c.b16 %v4890, %v4886
    %v7751 = vpack.c.b16 %v4891, %v4887
    %v7752 = vpack.c.b16 %v4892, %v4888
    %v7753 = vpack.c.b16 %v4897, %v4893
    %v7754 = vpack.c.b16 %v4898, %v4894
    %v7755 = vpack.c.b16 %v4899, %v4895
    %v7756 = vpack.c.b16 %v4900, %v4896
    %v7757 = vpack.c.b16 %v4905, %v4901
    %v7758 = vpack.c.b16 %v4906, %v4902
    %v7759 = vpack.c.b16 %v4907, %v4903
    %v7760 = vpack.c.b16 %v4908, %v4904
    %v7761 = vpack.c.b16 %v4913, %v4909
    %v7762 = vpack.c.b16 %v4914, %v4910
    %v7763 = vpack.c.b16 %v4915, %v4911
    %v7764 = vpack.c.b16 %v4916, %v4912
    %v7765 = vpack.c.b16 %v4921, %v4917
    %v7766 = vpack.c.b16 %v4922, %v4918
    %v7767 = vpack.c.b16 %v4923, %v4919
    %v7768 = vpack.c.b16 %v4924, %v4920
    %v7769 = vpack.c.b16 %v4929, %v4925
    %v7770 = vpack.c.b16 %v4930, %v4926
    %v7771 = vpack.c.b16 %v4931, %v4927
    %v7772 = vpack.c.b16 %v4932, %v4928
    %v7773 = vpack.c.b16 %v4937, %v4933
    %v7774 = vpack.c.b16 %v4938, %v4934
    %v7775 = vpack.c.b16 %v4939, %v4935
    %v7776 = vpack.c.b16 %v4940, %v4936
    %v7777 = vpack.c.b16 %v4945, %v4941
    %v7778 = vpack.c.b16 %v4946, %v4942
    %v7779 = vpack.c.b16 %v4947, %v4943
    %v7780 = vpack.c.b16 %v4948, %v4944
    %v7781 = vpack.c.b16 %v4953, %v4949
    %v7782 = vpack.c.b16 %v4954, %v4950
    %v7783 = vpack.c.b16 %v4955, %v4951
    %v7784 = vpack.c.b16 %v4956, %v4952
    %v7785 = vpack.c.b16 %v4961, %v4957
    %v7786 = vpack.c.b16 %v4962, %v4958
    %v7787 = vpack.c.b16 %v4963, %v4959
    %v7788 = vpack.c.b16 %v4964, %v4960
    %v7789 = vpack.c.b16 %v4969, %v4965
    %v7790 = vpack.c.b16 %v4970, %v4966
    %v7791 = vpack.c.b16 %v4971, %v4967
    %v7792 = vpack.c.b16 %v4972, %v4968
    %v7793 = vpack.c.b16 %v4977, %v4973
    %v7794 = vpack.c.b16 %v4978, %v4974
    %v7795 = vpack.c.b16 %v4979, %v4975
    %v7796 = vpack.c.b16 %v4980, %v4976
    %v7797 = vpack.c.b16 %v4985, %v4981
    %v7798 = vpack.c.b16 %v4986, %v4982
    %v7799 = vpack.c.b16 %v4987, %v4983
    %v7800 = vpack.c.b16 %v4988, %v4984
    %v7801 = vpack.c.b16 %v4993, %v4989
    %v7802 = vpack.c.b16 %v4994, %v4990
    %v7803 = vpack.c.b16 %v4995, %v4991
    %v7804 = vpack.c.b16 %v4996, %v4992
    %v7805 = vpack.c.b16 %v5001, %v4997
    %v7806 = vpack.c.b16 %v5002, %v4998
    %v7807 = vpack.c.b16 %v5003, %v4999
    %v7808 = vpack.c.b16 %v5004, %v5000
    %v7809 = vpack.c.b16 %v5009, %v5005
    %v7810 = vpack.c.b16 %v5010, %v5006
    %v7811 = vpack.c.b16 %v5011, %v5007
    %v7812 = vpack.c.b16 %v5012, %v5008
    %v7813 = vpack.c.b16 %v5017, %v5013
    %v7814 = vpack.c.b16 %v5018, %v5014
    %v7815 = vpack.c.b16 %v5019, %v5015
    %v7816 = vpack.c.b16 %v5020, %v5016
    %v7817 = vpack.c.b16 %v5025, %v5021
    %v7818 = vpack.c.b16 %v5026, %v5022
    %v7819 = vpack.c.b16 %v5027, %v5023
    %v7820 = vpack.c.b16 %v5028, %v5024
    %v7821 = vpack.c.b16 %v5033, %v5029
    %v7822 = vpack.c.b16 %v5034, %v5030
    %v7823 = vpack.c.b16 %v5035, %v5031
    %v7824 = vpack.c.b16 %v5036, %v5032
    %v7825 = vpack.c.b16 %v5041, %v5037
    %v7826 = vpack.c.b16 %v5042, %v5038
    %v7827 = vpack.c.b16 %v5043, %v5039
    %v7828 = vpack.c.b16 %v5044, %v5040
    %v7829 = vpack.c.b16 %v5049, %v5045
    %v7830 = vpack.c.b16 %v5050, %v5046
    %v7831 = vpack.c.b16 %v5051, %v5047
    %v7832 = vpack.c.b16 %v5052, %v5048
    %v7833 = vpack.c.b16 %v5057, %v5053
    %v7834 = vpack.c.b16 %v5058, %v5054
    %v7835 = vpack.c.b16 %v5059, %v5055
    %v7836 = vpack.c.b16 %v5060, %v5056
    %v7837 = vpack.c.b16 %v5065, %v5061
    %v7838 = vpack.c.b16 %v5066, %v5062
    %v7839 = vpack.c.b16 %v5067, %v5063
    %v7840 = vpack.c.b16 %v5068, %v5064
    %v7841 = vpack.c.b16 %v5073, %v5069
    %v7842 = vpack.c.b16 %v5074, %v5070
    %v7843 = vpack.c.b16 %v5075, %v5071
    %v7844 = vpack.c.b16 %v5076, %v5072
    %v7845 = vpack.c.b16 %v5081, %v5077
    %v7846 = vpack.c.b16 %v5082, %v5078
    %v7847 = vpack.c.b16 %v5083, %v5079
    %v7848 = vpack.c.b16 %v5084, %v5080
    %v7849 = vpack.c.b16 %v5089, %v5085
    %v7850 = vpack.c.b16 %v5090, %v5086
    %v7851 = vpack.c.b16 %v5091, %v5087
    %v7852 = vpack.c.b16 %v5092, %v5088
    %v7853 = vpack.c.b16 %v5097, %v5093
    %v7854 = vpack.c.b16 %v5098, %v5094
    %v7855 = vpack.c.b16 %v5099, %v5095
    %v7856 = vpack.c.b16 %v5100, %v5096
    %v7857 = vpack.c.b16 %v5105, %v5101
    %v7858 = vpack.c.b16 %v5106, %v5102
    %v7859 = vpack.c.b16 %v5107, %v5103
    %v7860 = vpack.c.b16 %v5108, %v5104
    %v7861 = vpack.c.b16 %v5113, %v5109
    %v7862 = vpack.c.b16 %v5114, %v5110
    %v7863 = vpack.c.b16 %v5115, %v5111
    %v7864 = vpack.c.b16 %v5116, %v5112
    %v7865 = vpack.c.b16 %v5121, %v5117
    %v7866 = vpack.c.b16 %v5122, %v5118
    %v7867 = vpack.c.b16 %v5123, %v5119
    %v7868 = vpack.c.b16 %v5124, %v5120
    %v7869 = vpack.c.b16 %v5129, %v5125
    %v7870 = vpack.c.b16 %v5130, %v5126
    %v7871 = vpack.c.b16 %v5131, %v5127
    %v7872 = vpack.c.b16 %v5132, %v5128
    %v7873 = vpack.c.b16 %v5137, %v5133
    %v7874 = vpack.c.b16 %v5138, %v5134
    %v7875 = vpack.c.b16 %v5139, %v5135
    %v7876 = vpack.c.b16 %v5140, %v5136
    %v7877 = vpack.c.b16 %v5145, %v5141
    %v7878 = vpack.c.b16 %v5146, %v5142
    %v7879 = vpack.c.b16 %v5147, %v5143
    %v7880 = vpack.c.b16 %v5148, %v5144
    %v7881 = vpack.c.b16 %v5153, %v5149
    %v7882 = vpack.c.b16 %v5154, %v5150
    %v7883 = vpack.c.b16 %v5155, %v5151
    %v7884 = vpack.c.b16 %v5156, %v5152
    %v7885 = vpack.c.b16 %v5161, %v5157
    %v7886 = vpack.c.b16 %v5162, %v5158
    %v7887 = vpack.c.b16 %v5163, %v5159
    %v7888 = vpack.c.b16 %v5164, %v5160
    %v7889 = vpack.c.b16 %v5169, %v5165
    %v7890 = vpack.c.b16 %v5170, %v5166
    %v7891 = vpack.c.b16 %v5171, %v5167
    %v7892 = vpack.c.b16 %v5172, %v5168
    %v7893 = vpack.c.b16 %v5177, %v5173
    %v7894 = vpack.c.b16 %v5178, %v5174
    %v7895 = vpack.c.b16 %v5179, %v5175
    %v7896 = vpack.c.b16 %v5180, %v5176
    %v7897 = vpack.c.b16 %v5185, %v5181
    %v7898 = vpack.c.b16 %v5186, %v5182
    %v7899 = vpack.c.b16 %v5187, %v5183
    %v7900 = vpack.c.b16 %v5188, %v5184
    %v7901 = vpack.c.b16 %v5193, %v5189
    %v7902 = vpack.c.b16 %v5194, %v5190
    %v7903 = vpack.c.b16 %v5195, %v5191
    %v7904 = vpack.c.b16 %v5196, %v5192
    %v7905 = vpack.c.b16 %v5201, %v5197
    %v7906 = vpack.c.b16 %v5202, %v5198
    %v7907 = vpack.c.b16 %v5203, %v5199
    %v7908 = vpack.c.b16 %v5204, %v5200
    %v7909 = vpack.c.b16 %v5209, %v5205
    %v7910 = vpack.c.b16 %v5210, %v5206
    %v7911 = vpack.c.b16 %v5211, %v5207
    %v7912 = vpack.c.b16 %v5212, %v5208
    %v7913 = vpack.c.b16 %v5217, %v5213
    %v7914 = vpack.c.b16 %v5218, %v5214
    %v7915 = vpack.c.b16 %v5219, %v5215
    %v7916 = vpack.c.b16 %v5220, %v5216
    %v7917 = vpack.c.b16 %v5225, %v5221
    %v7918 = vpack.c.b16 %v5226, %v5222
    %v7919 = vpack.c.b16 %v5227, %v5223
    %v7920 = vpack.c.b16 %v5228, %v5224
    %v7921 = vpack.c.b16 %v5233, %v5229
    %v7922 = vpack.c.b16 %v5234, %v5230
    %v7923 = vpack.c.b16 %v5235, %v5231
    %v7924 = vpack.c.b16 %v5236, %v5232
    %v7925 = vpack.c.b16 %v5241, %v5237
    %v7926 = vpack.c.b16 %v5242, %v5238
    %v7927 = vpack.c.b16 %v5243, %v5239
    %v7928 = vpack.c.b16 %v5244, %v5240
    %v7929 = vpack.c.b16 %v5249, %v5245
    %v7930 = vpack.c.b16 %v5250, %v5246
    %v7931 = vpack.c.b16 %v5251, %v5247
    %v7932 = vpack.c.b16 %v5252, %v5248
    %v7933 = vpack.c.b16 %v5257, %v5253
    %v7934 = vpack.c.b16 %v5258, %v5254
    %v7935 = vpack.c.b16 %v5259, %v5255
    %v7936 = vpack.c.b16 %v5260, %v5256
    %v7937 = vpack.c.b16 %v5265, %v5261
    %v7938 = vpack.c.b16 %v5266, %v5262
    %v7939 = vpack.c.b16 %v5267, %v5263
    %v7940 = vpack.c.b16 %v5268, %v5264
    %v7941 = vpack.c.b16 %v5273, %v5269
    %v7942 = vpack.c.b16 %v5274, %v5270
    %v7943 = vpack.c.b16 %v5275, %v5271
    %v7944 = vpack.c.b16 %v5276, %v5272
    %v7945 = vpack.c.b16 %v5281, %v5277
    %v7946 = vpack.c.b16 %v5282, %v5278
    %v7947 = vpack.c.b16 %v5283, %v5279
    %v7948 = vpack.c.b16 %v5284, %v5280
    %v7949 = vpack.c.b16 %v5289, %v5285
    %v7950 = vpack.c.b16 %v5290, %v5286
    %v7951 = vpack.c.b16 %v5291, %v5287
    %v7952 = vpack.c.b16 %v5292, %v5288
    %v7953 = vpack.c.b16 %v5297, %v5293
    %v7954 = vpack.c.b16 %v5298, %v5294
    %v7955 = vpack.c.b16 %v5299, %v5295
    %v7956 = vpack.c.b16 %v5300, %v5296
    %v7957 = vpack.c.b16 %v5305, %v5301
    %v7958 = vpack.c.b16 %v5306, %v5302
    %v7959 = vpack.c.b16 %v5307, %v5303
    %v7960 = vpack.c.b16 %v5308, %v5304
    %v7961 = vpack.c.b16 %v5313, %v5309
    %v7962 = vpack.c.b16 %v5314, %v5310
    %v7963 = vpack.c.b16 %v5315, %v5311
    %v7964 = vpack.c.b16 %v5316, %v5312
    %v7965 = vpack.c.b16 %v5321, %v5317
    %v7966 = vpack.c.b16 %v5322, %v5318
    %v7967 = vpack.c.b16 %v5323, %v5319
    %v7968 = vpack.c.b16 %v5324, %v5320
    %v7969 = vpack.c.b16 %v5329, %v5325
    %v7970 = vpack.c.b16 %v5330, %v5326
    %v7971 = vpack.c.b16 %v5331, %v5327
    %v7972 = vpack.c.b16 %v5332, %v5328
    %v7973 = vpack.c.b16 %v5337, %v5333
    %v7974 = vpack.c.b16 %v5338, %v5334
    %v7975 = vpack.c.b16 %v5339, %v5335
    %v7976 = vpack.c.b16 %v5340, %v5336
    %v7977 = vpack.c.b16 %v5345, %v5341
    %v7978 = vpack.c.b16 %v5346, %v5342
    %v7979 = vpack.c.b16 %v5347, %v5343
    %v7980 = vpack.c.b16 %v5348, %v5344
    %v7981 = vpack.c.b16 %v5353, %v5349
    %v7982 = vpack.c.b16 %v5354, %v5350
    %v7983 = vpack.c.b16 %v5355, %v5351
    %v7984 = vpack.c.b16 %v5356, %v5352
    %v7985 = vpack.c.b16 %v5361, %v5357
    %v7986 = vpack.c.b16 %v5362, %v5358
    %v7987 = vpack.c.b16 %v5363, %v5359
    %v7988 = vpack.c.b16 %v5364, %v5360
    %v7989 = vpack.c.b16 %v5369, %v5365
    %v7990 = vpack.c.b16 %v5370, %v5366
    %v7991 = vpack.c.b16 %v5371, %v5367
    %v7992 = vpack.c.b16 %v5372, %v5368
    %v7993 = vpack.c.b16 %v5377, %v5373
    %v7994 = vpack.c.b16 %v5378, %v5374
    %v7995 = vpack.c.b16 %v5379, %v5375
    %v7996 = vpack.c.b16 %v5380, %v5376
    %v7997 = vpack.c.b16 %v5385, %v5381
    %v7998 = vpack.c.b16 %v5386, %v5382
    %v7999 = vpack.c.b16 %v5387, %v5383
    %v8000 = vpack.c.b16 %v5388, %v5384
    %v8001 = vpack.c.b16 %v5393, %v5389
    %v8002 = vpack.c.b16 %v5394, %v5390
    %v8003 = vpack.c.b16 %v5395, %v5391
    %v8004 = vpack.c.b16 %v5396, %v5392
    %v8005 = vpack.c.b16 %v5401, %v5397
    %v8006 = vpack.c.b16 %v5402, %v5398
    %v8007 = vpack.c.b16 %v5403, %v5399
    %v8008 = vpack.c.b16 %v5404, %v5400
    %v8009 = vpack.c.b16 %v5409, %v5405
    %v8010 = vpack.c.b16 %v5410, %v5406
    %v8011 = vpack.c.b16 %v5411, %v5407
    %v8012 = vpack.c.b16 %v5412, %v5408
    %v8013 = vpack.c.b16 %v5417, %v5413
    %v8014 = vpack.c.b16 %v5418, %v5414
    %v8015 = vpack.c.b16 %v5419, %v5415
    %v8016 = vpack.c.b16 %v5420, %v5416
    %v8017 = vpack.c.b16 %v5425, %v5421
    %v8018 = vpack.c.b16 %v5426, %v5422
    %v8019 = vpack.c.b16 %v5427, %v5423
    %v8020 = vpack.c.b16 %v5428, %v5424
    %v8021 = vpack.c.b16 %v5433, %v5429
    %v8022 = vpack.c.b16 %v5434, %v5430
    %v8023 = vpack.c.b16 %v5435, %v5431
    %v8024 = vpack.c.b16 %v5436, %v5432
    %v8025 = vpack.c.b16 %v5441, %v5437
    %v8026 = vpack.c.b16 %v5442, %v5438
    %v8027 = vpack.c.b16 %v5443, %v5439
    %v8028 = vpack.c.b16 %v5444, %v5440
    %v8029 = vpack.c.b16 %v5449, %v5445
    %v8030 = vpack.c.b16 %v5450, %v5446
    %v8031 = vpack.c.b16 %v5451, %v5447
    %v8032 = vpack.c.b16 %v5452, %v5448
    %v8033 = vpack.c.b16 %v5457, %v5453
    %v8034 = vpack.c.b16 %v5458, %v5454
    %v8035 = vpack.c.b16 %v5459, %v5455
    %v8036 = vpack.c.b16 %v5460, %v5456
    %v8037 = vpack.c.b16 %v5465, %v5461
    %v8038 = vpack.c.b16 %v5466, %v5462
    %v8039 = vpack.c.b16 %v5467, %v5463
    %v8040 = vpack.c.b16 %v5468, %v5464
    %v8041 = vpack.c.b16 %v5473, %v5469
    %v8042 = vpack.c.b16 %v5474, %v5470
    %v8043 = vpack.c.b16 %v5475, %v5471
    %v8044 = vpack.c.b16 %v5476, %v5472
    %v8045 = vpack.c.b16 %v5481, %v5477
    %v8046 = vpack.c.b16 %v5482, %v5478
    %v8047 = vpack.c.b16 %v5483, %v5479
    %v8048 = vpack.c.b16 %v5484, %v5480
    %v8049 = vpack.c.b16 %v5489, %v5485
    %v8050 = vpack.c.b16 %v5490, %v5486
    %v8051 = vpack.c.b16 %v5491, %v5487
    %v8052 = vpack.c.b16 %v5492, %v5488
    %v8053 = vpack.c.b16 %v5497, %v5493
    %v8054 = vpack.c.b16 %v5498, %v5494
    %v8055 = vpack.c.b16 %v5499, %v5495
    %v8056 = vpack.c.b16 %v5500, %v5496
    %v8057 = vpack.c.b16 %v5505, %v5501
    %v8058 = vpack.c.b16 %v5506, %v5502
    %v8059 = vpack.c.b16 %v5507, %v5503
    %v8060 = vpack.c.b16 %v5508, %v5504
    %v8061 = vpack.c.b16 %v5513, %v5509
    %v8062 = vpack.c.b16 %v5514, %v5510
    %v8063 = vpack.c.b16 %v5515, %v5511
    %v8064 = vpack.c.b16 %v5516, %v5512
    %v8065 = vpack.c.b16 %v5521, %v5517
    %v8066 = vpack.c.b16 %v5522, %v5518
    %v8067 = vpack.c.b16 %v5523, %v5519
    %v8068 = vpack.c.b16 %v5524, %v5520
    %v8069 = vpack.c.b16 %v5529, %v5525
    %v8070 = vpack.c.b16 %v5530, %v5526
    %v8071 = vpack.c.b16 %v5531, %v5527
    %v8072 = vpack.c.b16 %v5532, %v5528
    %v8073 = vpack.c.b16 %v5537, %v5533
    %v8074 = vpack.c.b16 %v5538, %v5534
    %v8075 = vpack.c.b16 %v5539, %v5535
    %v8076 = vpack.c.b16 %v5540, %v5536
    %v8077 = vpack.c.b16 %v5545, %v5541
    %v8078 = vpack.c.b16 %v5546, %v5542
    %v8079 = vpack.c.b16 %v5547, %v5543
    %v8080 = vpack.c.b16 %v5548, %v5544
    %v8081 = vpack.c.b16 %v5553, %v5549
    %v8082 = vpack.c.b16 %v5554, %v5550
    %v8083 = vpack.c.b16 %v5555, %v5551
    %v8084 = vpack.c.b16 %v5556, %v5552
    %v8085 = vpack.c.b16 %v5561, %v5557
    %v8086 = vpack.c.b16 %v5562, %v5558
    %v8087 = vpack.c.b16 %v5563, %v5559
    %v8088 = vpack.c.b16 %v5564, %v5560
    %v8089 = vpack.c.b16 %v5569, %v5565
    %v8090 = vpack.c.b16 %v5570, %v5566
    %v8091 = vpack.c.b16 %v5571, %v5567
    %v8092 = vpack.c.b16 %v5572, %v5568
    %v8093 = vpack.c.b16 %v5577, %v5573
    %v8094 = vpack.c.b16 %v5578, %v5574
    %v8095 = vpack.c.b16 %v5579, %v5575
    %v8096 = vpack.c.b16 %v5580, %v5576
    %v8097 = vpack.c.b16 %v5585, %v5581
    %v8098 = vpack.c.b16 %v5586, %v5582
    %v8099 = vpack.c.b16 %v5587, %v5583
    %v8100 = vpack.c.b16 %v5588, %v5584
    %v8101 = vpack.c.b16 %v5593, %v5589
    %v8102 = vpack.c.b16 %v5594, %v5590
    %v8103 = vpack.c.b16 %v5595, %v5591
    %v8104 = vpack.c.b16 %v5596, %v5592
    %v8105 = vpack.c.b16 %v5601, %v5597
    %v8106 = vpack.c.b16 %v5602, %v5598
    %v8107 = vpack.c.b16 %v5603, %v5599
    %v8108 = vpack.c.b16 %v5604, %v5600
    %v8109 = vpack.c.b16 %v5609, %v5605
    %v8110 = vpack.c.b16 %v5610, %v5606
    %v8111 = vpack.c.b16 %v5611, %v5607
    %v8112 = vpack.c.b16 %v5612, %v5608
    %v8113 = vpack.c.b16 %v5617, %v5613
    %v8114 = vpack.c.b16 %v5618, %v5614
    %v8115 = vpack.c.b16 %v5619, %v5615
    %v8116 = vpack.c.b16 %v5620, %v5616
    %v8117 = vpack.c.b16 %v5625, %v5621
    %v8118 = vpack.c.b16 %v5626, %v5622
    %v8119 = vpack.c.b16 %v5627, %v5623
    %v8120 = vpack.c.b16 %v5628, %v5624
    %v8121 = vpack.c.b16 %v5633, %v5629
    %v8122 = vpack.c.b16 %v5634, %v5630
    %v8123 = vpack.c.b16 %v5635, %v5631
    %v8124 = vpack.c.b16 %v5636, %v5632
    %v8125 = vpack.c.b16 %v5641, %v5637
    %v8126 = vpack.c.b16 %v5642, %v5638
    %v8127 = vpack.c.b16 %v5643, %v5639
    %v8128 = vpack.c.b16 %v5644, %v5640
    %v8129 = vpack.c.b16 %v5649, %v5645
    %v8130 = vpack.c.b16 %v5650, %v5646
    %v8131 = vpack.c.b16 %v5651, %v5647
    %v8132 = vpack.c.b16 %v5652, %v5648
    %v8133 = vpack.c.b16 %v5657, %v5653
    %v8134 = vpack.c.b16 %v5658, %v5654
    %v8135 = vpack.c.b16 %v5659, %v5655
    %v8136 = vpack.c.b16 %v5660, %v5656
    %v8137 = vpack.c.b16 %v5665, %v5661
    %v8138 = vpack.c.b16 %v5666, %v5662
    %v8139 = vpack.c.b16 %v5667, %v5663
    %v8140 = vpack.c.b16 %v5668, %v5664
    %v8141 = vpack.c.b16 %v5673, %v5669
    %v8142 = vpack.c.b16 %v5674, %v5670
    %v8143 = vpack.c.b16 %v5675, %v5671
    %v8144 = vpack.c.b16 %v5676, %v5672
    %v8145 = vpack.c.b16 %v5681, %v5677
    %v8146 = vpack.c.b16 %v5682, %v5678
    %v8147 = vpack.c.b16 %v5683, %v5679
    %v8148 = vpack.c.b16 %v5684, %v5680
    %v8149 = vpack.c.b16 %v5689, %v5685
    %v8150 = vpack.c.b16 %v5690, %v5686
    %v8151 = vpack.c.b16 %v5691, %v5687
    %v8152 = vpack.c.b16 %v5692, %v5688
    %v8153 = vpack.c.b16 %v5697, %v5693
    %v8154 = vpack.c.b16 %v5698, %v5694
    %v8155 = vpack.c.b16 %v5699, %v5695
    %v8156 = vpack.c.b16 %v5700, %v5696
    %v8157 = vpack.c.b16 %v5705, %v5701
    %v8158 = vpack.c.b16 %v5706, %v5702
    %v8159 = vpack.c.b16 %v5707, %v5703
    %v8160 = vpack.c.b16 %v5708, %v5704
    %v8161 = vpack.c.b16 %v5713, %v5709
    %v8162 = vpack.c.b16 %v5714, %v5710
    %v8163 = vpack.c.b16 %v5715, %v5711
    %v8164 = vpack.c.b16 %v5716, %v5712
    %v8165 = vpack.c.b16 %v5721, %v5717
    %v8166 = vpack.c.b16 %v5722, %v5718
    %v8167 = vpack.c.b16 %v5723, %v5719
    %v8168 = vpack.c.b16 %v5724, %v5720
    %v8169 = vpack.c.b16 %v5729, %v5725
    %v8170 = vpack.c.b16 %v5730, %v5726
    %v8171 = vpack.c.b16 %v5731, %v5727
    %v8172 = vpack.c.b16 %v5732, %v5728
    %v8173 = vpack.c.b16 %v5737, %v5733
    %v8174 = vpack.c.b16 %v5738, %v5734
    %v8175 = vpack.c.b16 %v5739, %v5735
    %v8176 = vpack.c.b16 %v5740, %v5736
    %v8177 = vpack.c.b16 %v5745, %v5741
    %v8178 = vpack.c.b16 %v5746, %v5742
    %v8179 = vpack.c.b16 %v5747, %v5743
    %v8180 = vpack.c.b16 %v5748, %v5744
    %v8181 = vpack.c.b16 %v5753, %v5749
    %v8182 = vpack.c.b16 %v5754, %v5750
    %v8183 = vpack.c.b16 %v5755, %v5751
    %v8184 = vpack.c.b16 %v5756, %v5752
    %v8185 = vpack.c.b16 %v5761, %v5757
    %v8186 = vpack.c.b16 %v5762, %v5758
    %v8187 = vpack.c.b16 %v5763, %v5759
    %v8188 = vpack.c.b16 %v5764, %v5760
    %v8189 = vpack.c.b16 %v5769, %v5765
    %v8190 = vpack.c.b16 %v5770, %v5766
    %v8191 = vpack.c.b16 %v5771, %v5767
    %v8192 = vpack.c.b16 %v5772, %v5768
    %v8193 = vpack.c.b16 %v5777, %v5773
    %v8194 = vpack.c.b16 %v5778, %v5774
    %v8195 = vpack.c.b16 %v5779, %v5775
    %v8196 = vpack.c.b16 %v5780, %v5776
    %v8197 = vpack.c.b16 %v5785, %v5781
    %v8198 = vpack.c.b16 %v5786, %v5782
    %v8199 = vpack.c.b16 %v5787, %v5783
    %v8200 = vpack.c.b16 %v5788, %v5784
    %v8201 = vpack.c.b16 %v5793, %v5789
    %v8202 = vpack.c.b16 %v5794, %v5790
    %v8203 = vpack.c.b16 %v5795, %v5791
    %v8204 = vpack.c.b16 %v5796, %v5792
    %v8205 = vpack.c.b16 %v5801, %v5797
    %v8206 = vpack.c.b16 %v5802, %v5798
    %v8207 = vpack.c.b16 %v5803, %v5799
    %v8208 = vpack.c.b16 %v5804, %v5800
    %v8209 = vpack.c.b16 %v5809, %v5805
    %v8210 = vpack.c.b16 %v5810, %v5806
    %v8211 = vpack.c.b16 %v5811, %v5807
    %v8212 = vpack.c.b16 %v5812, %v5808
    %v8213 = vpack.c.b16 %v5817, %v5813
    %v8214 = vpack.c.b16 %v5818, %v5814
    %v8215 = vpack.c.b16 %v5819, %v5815
    %v8216 = vpack.c.b16 %v5820, %v5816
    %v8217 = vpack.c.b16 %v5825, %v5821
    %v8218 = vpack.c.b16 %v5826, %v5822
    %v8219 = vpack.c.b16 %v5827, %v5823
    %v8220 = vpack.c.b16 %v5828, %v5824
    %v8221 = vpack.c.b16 %v5833, %v5829
    %v8222 = vpack.c.b16 %v5834, %v5830
    %v8223 = vpack.c.b16 %v5835, %v5831
    %v8224 = vpack.c.b16 %v5836, %v5832
    %v8225 = vpack.c.b16 %v5841, %v5837
    %v8226 = vpack.c.b16 %v5842, %v5838
    %v8227 = vpack.c.b16 %v5843, %v5839
    %v8228 = vpack.c.b16 %v5844, %v5840
    %v8229 = vpack.c.b16 %v5849, %v5845
    %v8230 = vpack.c.b16 %v5850, %v5846
    %v8231 = vpack.c.b16 %v5851, %v5847
    %v8232 = vpack.c.b16 %v5852, %v5848
    %v8233 = vpack.c.b16 %v5857, %v5853
    %v8234 = vpack.c.b16 %v5858, %v5854
    %v8235 = vpack.c.b16 %v5859, %v5855
    %v8236 = vpack.c.b16 %v5860, %v5856
    %v8237 = vpack.c.b16 %v5865, %v5861
    %v8238 = vpack.c.b16 %v5866, %v5862
    %v8239 = vpack.c.b16 %v5867, %v5863
    %v8240 = vpack.c.b16 %v5868, %v5864
    %v8241 = vpack.c.b16 %v5873, %v5869
    %v8242 = vpack.c.b16 %v5874, %v5870
    %v8243 = vpack.c.b16 %v5875, %v5871
    %v8244 = vpack.c.b16 %v5876, %v5872
    %v8245 = vpack.c.b16 %v5881, %v5877
    %v8246 = vpack.c.b16 %v5882, %v5878
    %v8247 = vpack.c.b16 %v5883, %v5879
    %v8248 = vpack.c.b16 %v5884, %v5880
    %v8249 = vpack.c.b16 %v5889, %v5885
    %v8250 = vpack.c.b16 %v5890, %v5886
    %v8251 = vpack.c.b16 %v5891, %v5887
    %v8252 = vpack.c.b16 %v5892, %v5888
    %v8253 = vpack.c.b16 %v5897, %v5893
    %v8254 = vpack.c.b16 %v5898, %v5894
    %v8255 = vpack.c.b16 %v5899, %v5895
    %v8256 = vpack.c.b16 %v5900, %v5896
    %v8257 = vpack.c.b16 %v5905, %v5901
    %v8258 = vpack.c.b16 %v5906, %v5902
    %v8259 = vpack.c.b16 %v5907, %v5903
    %v8260 = vpack.c.b16 %v5908, %v5904
    %v8261 = vpack.c.b16 %v5913, %v5909
    %v8262 = vpack.c.b16 %v5914, %v5910
    %v8263 = vpack.c.b16 %v5915, %v5911
    %v8264 = vpack.c.b16 %v5916, %v5912
    %v8265 = vpack.c.b16 %v5921, %v5917
    %v8266 = vpack.c.b16 %v5922, %v5918
    %v8267 = vpack.c.b16 %v5923, %v5919
    %v8268 = vpack.c.b16 %v5924, %v5920
    %v8269 = vpack.c.b16 %v5929, %v5925
    %v8270 = vpack.c.b16 %v5930, %v5926
    %v8271 = vpack.c.b16 %v5931, %v5927
    %v8272 = vpack.c.b16 %v5932, %v5928
    %v8273 = vpack.c.b16 %v5937, %v5933
    %v8274 = vpack.c.b16 %v5938, %v5934
    %v8275 = vpack.c.b16 %v5939, %v5935
    %v8276 = vpack.c.b16 %v5940, %v5936
    %v8277 = vpack.c.b16 %v5945, %v5941
    %v8278 = vpack.c.b16 %v5946, %v5942
    %v8279 = vpack.c.b16 %v5947, %v5943
    %v8280 = vpack.c.b16 %v5948, %v5944
    %v8281 = vpack.c.b16 %v5953, %v5949
    %v8282 = vpack.c.b16 %v5954, %v5950
    %v8283 = vpack.c.b16 %v5955, %v5951
    %v8284 = vpack.c.b16 %v5956, %v5952
    %v8285 = vpack.c.b16 %v5961, %v5957
    %v8286 = vpack.c.b16 %v5962, %v5958
    %v8287 = vpack.c.b16 %v5963, %v5959
    %v8288 = vpack.c.b16 %v5964, %v5960
    %v8289 = vpack.c.b16 %v5969, %v5965
    %v8290 = vpack.c.b16 %v5970, %v5966
    %v8291 = vpack.c.b16 %v5971, %v5967
    %v8292 = vpack.c.b16 %v5972, %v5968
    %v8293 = vpack.c.b16 %v5977, %v5973
    %v8294 = vpack.c.b16 %v5978, %v5974
    %v8295 = vpack.c.b16 %v5979, %v5975
    %v8296 = vpack.c.b16 %v5980, %v5976
    %v8297 = vpack.c.b16 %v5985, %v5981
    %v8298 = vpack.c.b16 %v5986, %v5982
    %v8299 = vpack.c.b16 %v5987, %v5983
    %v8300 = vpack.c.b16 %v5988, %v5984
    %v8301 = vpack.c.b16 %v5993, %v5989
    %v8302 = vpack.c.b16 %v5994, %v5990
    %v8303 = vpack.c.b16 %v5995, %v5991
    %v8304 = vpack.c.b16 %v5996, %v5992
    %v8305 = vpack.c.b16 %v6001, %v5997
    %v8306 = vpack.c.b16 %v6002, %v5998
    %v8307 = vpack.c.b16 %v6003, %v5999
    %v8308 = vpack.c.b16 %v6004, %v6000
    %v8309 = vpack.c.b16 %v6009, %v6005
    %v8310 = vpack.c.b16 %v6010, %v6006
    %v8311 = vpack.c.b16 %v6011, %v6007
    %v8312 = vpack.c.b16 %v6012, %v6008
    %v8313 = vpack.c.b16 %v6017, %v6013
    %v8314 = vpack.c.b16 %v6018, %v6014
    %v8315 = vpack.c.b16 %v6019, %v6015
    %v8316 = vpack.c.b16 %v6020, %v6016
    %v8317 = vpack.c.b16 %v6025, %v6021
    %v8318 = vpack.c.b16 %v6026, %v6022
    %v8319 = vpack.c.b16 %v6027, %v6023
    %v8320 = vpack.c.b16 %v6028, %v6024
    %v8321 = vpack.c.b16 %v6033, %v6029
    %v8322 = vpack.c.b16 %v6034, %v6030
    %v8323 = vpack.c.b16 %v6035, %v6031
    %v8324 = vpack.c.b16 %v6036, %v6032
    %v8325 = vpack.c.b16 %v6041, %v6037
    %v8326 = vpack.c.b16 %v6042, %v6038
    %v8327 = vpack.c.b16 %v6043, %v6039
    %v8328 = vpack.c.b16 %v6044, %v6040
    %v8329 = vpack.c.b16 %v6049, %v6045
    %v8330 = vpack.c.b16 %v6050, %v6046
    %v8331 = vpack.c.b16 %v6051, %v6047
    %v8332 = vpack.c.b16 %v6052, %v6048
    %v8333 = vpack.c.b16 %v6057, %v6053
    %v8334 = vpack.c.b16 %v6058, %v6054
    %v8335 = vpack.c.b16 %v6059, %v6055
    %v8336 = vpack.c.b16 %v6060, %v6056
    %v8337 = vpack.c.b16 %v6065, %v6061
    %v8338 = vpack.c.b16 %v6066, %v6062
    %v8339 = vpack.c.b16 %v6067, %v6063
    %v8340 = vpack.c.b16 %v6068, %v6064
    %v8341 = vpack.c.b16 %v6073, %v6069
    %v8342 = vpack.c.b16 %v6074, %v6070
    %v8343 = vpack.c.b16 %v6075, %v6071
    %v8344 = vpack.c.b16 %v6076, %v6072
    %v8345 = vpack.c.b16 %v6081, %v6077
    %v8346 = vpack.c.b16 %v6082, %v6078
    %v8347 = vpack.c.b16 %v6083, %v6079
    %v8348 = vpack.c.b16 %v6084, %v6080
    %v8349 = vpack.c.b16 %v6089, %v6085
    %v8350 = vpack.c.b16 %v6090, %v6086
    %v8351 = vpack.c.b16 %v6091, %v6087
    %v8352 = vpack.c.b16 %v6092, %v6088
    %v8353 = vpack.c.b16 %v6097, %v6093
    %v8354 = vpack.c.b16 %v6098, %v6094
    %v8355 = vpack.c.b16 %v6099, %v6095
    %v8356 = vpack.c.b16 %v6100, %v6096
    %v8357 = vpack.c.b16 %v6105, %v6101
    %v8358 = vpack.c.b16 %v6106, %v6102
    %v8359 = vpack.c.b16 %v6107, %v6103
    %v8360 = vpack.c.b16 %v6108, %v6104
    %v8361 = vpack.c.b16 %v6113, %v6109
    %v8362 = vpack.c.b16 %v6114, %v6110
    %v8363 = vpack.c.b16 %v6115, %v6111
    %v8364 = vpack.c.b16 %v6116, %v6112
    %v8365 = vpack.c.b16 %v6121, %v6117
    %v8366 = vpack.c.b16 %v6122, %v6118
    %v8367 = vpack.c.b16 %v6123, %v6119
    %v8368 = vpack.c.b16 %v6124, %v6120
    %v8369 = vpack.c.b16 %v6129, %v6125
    %v8370 = vpack.c.b16 %v6130, %v6126
    %v8371 = vpack.c.b16 %v6131, %v6127
    %v8372 = vpack.c.b16 %v6132, %v6128
    %v8373 = vpack.c.b16 %v6137, %v6133
    %v8374 = vpack.c.b16 %v6138, %v6134
    %v8375 = vpack.c.b16 %v6139, %v6135
    %v8376 = vpack.c.b16 %v6140, %v6136
    %v8377 = vpack.c.b16 %v6145, %v6141
    %v8378 = vpack.c.b16 %v6146, %v6142
    %v8379 = vpack.c.b16 %v6147, %v6143
    %v8380 = vpack.c.b16 %v6148, %v6144
    %v8381 = vpack.c.b16 %v6153, %v6149
    %v8382 = vpack.c.b16 %v6154, %v6150
    %v8383 = vpack.c.b16 %v6155, %v6151
    %v8384 = vpack.c.b16 %v6156, %v6152
    %v8385 = vpack.c.b16 %v6161, %v6157
    %v8386 = vpack.c.b16 %v6162, %v6158
    %v8387 = vpack.c.b16 %v6163, %v6159
    %v8388 = vpack.c.b16 %v6164, %v6160
    %v8389 = vpack.c.b16 %v6169, %v6165
    %v8390 = vpack.c.b16 %v6170, %v6166
    %v8391 = vpack.c.b16 %v6171, %v6167
    %v8392 = vpack.c.b16 %v6172, %v6168
    %v8393 = vpack.c.b16 %v6177, %v6173
    %v8394 = vpack.c.b16 %v6178, %v6174
    %v8395 = vpack.c.b16 %v6179, %v6175
    %v8396 = vpack.c.b16 %v6180, %v6176
    %v8397 = vpack.c.b16 %v6185, %v6181
    %v8398 = vpack.c.b16 %v6186, %v6182
    %v8399 = vpack.c.b16 %v6187, %v6183
    %v8400 = vpack.c.b16 %v6188, %v6184
    %v8401 = vpack.c.b16 %v6193, %v6189
    %v8402 = vpack.c.b16 %v6194, %v6190
    %v8403 = vpack.c.b16 %v6195, %v6191
    %v8404 = vpack.c.b16 %v6196, %v6192
    %v8405 = vpack.c.b16 %v6201, %v6197
    %v8406 = vpack.c.b16 %v6202, %v6198
    %v8407 = vpack.c.b16 %v6203, %v6199
    %v8408 = vpack.c.b16 %v6204, %v6200
    %v8409 = vpack.c.b16 %v6209, %v6205
    %v8410 = vpack.c.b16 %v6210, %v6206
    %v8411 = vpack.c.b16 %v6211, %v6207
    %v8412 = vpack.c.b16 %v6212, %v6208
    %v8413 = vpack.c.b16 %v6217, %v6213
    %v8414 = vpack.c.b16 %v6218, %v6214
    %v8415 = vpack.c.b16 %v6219, %v6215
    %v8416 = vpack.c.b16 %v6220, %v6216
    %v8417 = vpack.c.b16 %v6225, %v6221
    %v8418 = vpack.c.b16 %v6226, %v6222
    %v8419 = vpack.c.b16 %v6227, %v6223
    %v8420 = vpack.c.b16 %v6228, %v6224
    %v8421 = vpack.c.b16 %v6233, %v6229
    %v8422 = vpack.c.b16 %v6234, %v6230
    %v8423 = vpack.c.b16 %v6235, %v6231
    %v8424 = vpack.c.b16 %v6236, %v6232
    %v8425 = vpack.c.b16 %v6241, %v6237
    %v8426 = vpack.c.b16 %v6242, %v6238
    %v8427 = vpack.c.b16 %v6243, %v6239
    %v8428 = vpack.c.b16 %v6244, %v6240
    %v8429 = vpack.c.b16 %v6249, %v6245
    %v8430 = vpack.c.b16 %v6250, %v6246
    %v8431 = vpack.c.b16 %v6251, %v6247
    %v8432 = vpack.c.b16 %v6252, %v6248
    %v8433 = vpack.c.b16 %v6257, %v6253
    %v8434 = vpack.c.b16 %v6258, %v6254
    %v8435 = vpack.c.b16 %v6259, %v6255
    %v8436 = vpack.c.b16 %v6260, %v6256
    %v8437 = vpack.c.b16 %v6265, %v6261
    %v8438 = vpack.c.b16 %v6266, %v6262
    %v8439 = vpack.c.b16 %v6267, %v6263
    %v8440 = vpack.c.b16 %v6268, %v6264
    %v8441 = vpack.c.b16 %v6273, %v6269
    %v8442 = vpack.c.b16 %v6274, %v6270
    %v8443 = vpack.c.b16 %v6275, %v6271
    %v8444 = vpack.c.b16 %v6276, %v6272
    %v8445 = vpack.c.b16 %v6281, %v6277
    %v8446 = vpack.c.b16 %v6282, %v6278
    %v8447 = vpack.c.b16 %v6283, %v6279
    %v8448 = vpack.c.b16 %v6284, %v6280
    %v8449 = vpack.c.b16 %v6289, %v6285
    %v8450 = vpack.c.b16 %v6290, %v6286
    %v8451 = vpack.c.b16 %v6291, %v6287
    %v8452 = vpack.c.b16 %v6292, %v6288
    %v8453 = vpack.c.b16 %v6297, %v6293
    %v8454 = vpack.c.b16 %v6298, %v6294
    %v8455 = vpack.c.b16 %v6299, %v6295
    %v8456 = vpack.c.b16 %v6300, %v6296
    %v8457 = vpack.c.b16 %v6305, %v6301
    %v8458 = vpack.c.b16 %v6306, %v6302
    %v8459 = vpack.c.b16 %v6307, %v6303
    %v8460 = vpack.c.b16 %v6308, %v6304
    %v8461 = vpack.c.b16 %v6313, %v6309
    %v8462 = vpack.c.b16 %v6314, %v6310
    %v8463 = vpack.c.b16 %v6315, %v6311
    %v8464 = vpack.c.b16 %v6316, %v6312
    %v8465 = vpack.c.b16 %v6321, %v6317
    %v8466 = vpack.c.b16 %v6322, %v6318
    %v8467 = vpack.c.b16 %v6323, %v6319
    %v8468 = vpack.c.b16 %v6324, %v6320
    %v8469 = vpack.c.b16 %v6329, %v6325
    %v8470 = vpack.c.b16 %v6330, %v6326
    %v8471 = vpack.c.b16 %v6331, %v6327
    %v8472 = vpack.c.b16 %v6332, %v6328
    %v8473 = vpack.c.b16 %v6337, %v6333
    %v8474 = vpack.c.b16 %v6338, %v6334
    %v8475 = vpack.c.b16 %v6339, %v6335
    %v8476 = vpack.c.b16 %v6340, %v6336
    %v8477 = vpack.c.b16 %v6345, %v6341
    %v8478 = vpack.c.b16 %v6346, %v6342
    %v8479 = vpack.c.b16 %v6347, %v6343
    %v8480 = vpack.c.b16 %v6348, %v6344
    %v8481 = vpack.c.b16 %v6353, %v6349
    %v8482 = vpack.c.b16 %v6354, %v6350
    %v8483 = vpack.c.b16 %v6355, %v6351
    %v8484 = vpack.c.b16 %v6356, %v6352
    %v8485 = vpack.c.b16 %v6361, %v6357
    %v8486 = vpack.c.b16 %v6362, %v6358
    %v8487 = vpack.c.b16 %v6363, %v6359
    %v8488 = vpack.c.b16 %v6364, %v6360
    %v8489 = vpack.c.b16 %v6369, %v6365
    %v8490 = vpack.c.b16 %v6370, %v6366
    %v8491 = vpack.c.b16 %v6371, %v6367
    %v8492 = vpack.c.b16 %v6372, %v6368
    %v8493 = vpack.c.b16 %v6377, %v6373
    %v8494 = vpack.c.b16 %v6378, %v6374
    %v8495 = vpack.c.b16 %v6379, %v6375
    %v8496 = vpack.c.b16 %v6380, %v6376
    %v8497 = vpack.c.b16 %v6385, %v6381
    %v8498 = vpack.c.b16 %v6386, %v6382
    %v8499 = vpack.c.b16 %v6387, %v6383
    %v8500 = vpack.c.b16 %v6388, %v6384
    %v8501 = vpack.c.b16 %v6393, %v6389
    %v8502 = vpack.c.b16 %v6394, %v6390
    %v8503 = vpack.c.b16 %v6395, %v6391
    %v8504 = vpack.c.b16 %v6396, %v6392
    %v8505 = vpack.c.b16 %v6401, %v6397
    %v8506 = vpack.c.b16 %v6402, %v6398
    %v8507 = vpack.c.b16 %v6403, %v6399
    %v8508 = vpack.c.b16 %v6404, %v6400
    %v8509 = vpack.c.b16 %v6409, %v6405
    %v8510 = vpack.c.b16 %v6410, %v6406
    %v8511 = vpack.c.b16 %v6411, %v6407
    %v8512 = vpack.c.b16 %v6412, %v6408
    %v8513 = vpack.c.b16 %v6417, %v6413
    %v8514 = vpack.c.b16 %v6418, %v6414
    %v8515 = vpack.c.b16 %v6419, %v6415
    %v8516 = vpack.c.b16 %v6420, %v6416
    %v8517 = vpack.c.b16 %v6425, %v6421
    %v8518 = vpack.c.b16 %v6426, %v6422
    %v8519 = vpack.c.b16 %v6427, %v6423
    %v8520 = vpack.c.b16 %v6428, %v6424
    %v8521 = vpack.c.b16 %v6433, %v6429
    %v8522 = vpack.c.b16 %v6434, %v6430
    %v8523 = vpack.c.b16 %v6435, %v6431
    %v8524 = vpack.c.b16 %v6436, %v6432
    %v8525 = vpack.c.b16 %v6441, %v6437
    %v8526 = vpack.c.b16 %v6442, %v6438
    %v8527 = vpack.c.b16 %v6443, %v6439
    %v8528 = vpack.c.b16 %v6444, %v6440
    %v8529 = vpack.c.b16 %v6449, %v6445
    %v8530 = vpack.c.b16 %v6450, %v6446
    %v8531 = vpack.c.b16 %v6451, %v6447
    %v8532 = vpack.c.b16 %v6452, %v6448
    %v8533 = vpack.c.b16 %v6457, %v6453
    %v8534 = vpack.c.b16 %v6458, %v6454
    %v8535 = vpack.c.b16 %v6459, %v6455
    %v8536 = vpack.c.b16 %v6460, %v6456
    %v8537 = vpack.c.b16 %v6465, %v6461
    %v8538 = vpack.c.b16 %v6466, %v6462
    %v8539 = vpack.c.b16 %v6467, %v6463
    %v8540 = vpack.c.b16 %v6468, %v6464
    %v8541 = vpack.c.b16 %v6473, %v6469
    %v8542 = vpack.c.b16 %v6474, %v6470
    %v8543 = vpack.c.b16 %v6475, %v6471
    %v8544 = vpack.c.b16 %v6476, %v6472
    %v8545 = vpack.c.b16 %v6481, %v6477
    %v8546 = vpack.c.b16 %v6482, %v6478
    %v8547 = vpack.c.b16 %v6483, %v6479
    %v8548 = vpack.c.b16 %v6484, %v6480
    %v8549 = vpack.c.b16 %v6489, %v6485
    %v8550 = vpack.c.b16 %v6490, %v6486
    %v8551 = vpack.c.b16 %v6491, %v6487
    %v8552 = vpack.c.b16 %v6492, %v6488
    %v8553 = vpack.c.b16 %v6497, %v6493
    %v8554 = vpack.c.b16 %v6498, %v6494
    %v8555 = vpack.c.b16 %v6499, %v6495
    %v8556 = vpack.c.b16 %v6500, %v6496
    %v8557 = vpack.c.b16 %v6505, %v6501
    %v8558 = vpack.c.b16 %v6506, %v6502
    %v8559 = vpack.c.b16 %v6507, %v6503
    %v8560 = vpack.c.b16 %v6508, %v6504
    %v8561 = vpack.c.b16 %v6513, %v6509
    %v8562 = vpack.c.b16 %v6514, %v6510
    %v8563 = vpack.c.b16 %v6515, %v6511
    %v8564 = vpack.c.b16 %v6516, %v6512
    %v8565 = vpack.c.b16 %v6521, %v6517
    %v8566 = vpack.c.b16 %v6522, %v6518
    %v8567 = vpack.c.b16 %v6523, %v6519
    %v8568 = vpack.c.b16 %v6524, %v6520
    %v8569 = vpack.c.b16 %v6529, %v6525
    %v8570 = vpack.c.b16 %v6530, %v6526
    %v8571 = vpack.c.b16 %v6531, %v6527
    %v8572 = vpack.c.b16 %v6532, %v6528
    %v8573 = vpack.c.b16 %v6537, %v6533
    %v8574 = vpack.c.b16 %v6538, %v6534
    %v8575 = vpack.c.b16 %v6539, %v6535
    %v8576 = vpack.c.b16 %v6540, %v6536
    %v8577 = vpack.c.b16 %v6545, %v6541
    %v8578 = vpack.c.b16 %v6546, %v6542
    %v8579 = vpack.c.b16 %v6547, %v6543
    %v8580 = vpack.c.b16 %v6548, %v6544
    %v8581 = vpack.c.b16 %v6553, %v6549
    %v8582 = vpack.c.b16 %v6554, %v6550
    %v8583 = vpack.c.b16 %v6555, %v6551
    %v8584 = vpack.c.b16 %v6556, %v6552
    %v8585 = vpack.c.b16 %v6561, %v6557
    %v8586 = vpack.c.b16 %v6562, %v6558
    %v8587 = vpack.c.b16 %v6563, %v6559
    %v8588 = vpack.c.b16 %v6564, %v6560
    %v8589 = vpack.c.b16 %v6569, %v6565
    %v8590 = vpack.c.b16 %v6570, %v6566
    %v8591 = vpack.c.b16 %v6571, %v6567
    %v8592 = vpack.c.b16 %v6572, %v6568
    %v8593 = vpack.c.b16 %v6577, %v6573
    %v8594 = vpack.c.b16 %v6578, %v6574
    %v8595 = vpack.c.b16 %v6579, %v6575
    %v8596 = vpack.c.b16 %v6580, %v6576
    %v8597 = vpack.c.b16 %v6585, %v6581
    %v8598 = vpack.c.b16 %v6586, %v6582
    %v8599 = vpack.c.b16 %v6587, %v6583
    %v8600 = vpack.c.b16 %v6588, %v6584
    %v8601 = vpack.c.b16 %v6593, %v6589
    %v8602 = vpack.c.b16 %v6594, %v6590
    %v8603 = vpack.c.b16 %v6595, %v6591
    %v8604 = vpack.c.b16 %v6596, %v6592
    %v8605 = vpack.c.b16 %v6601, %v6597
    %v8606 = vpack.c.b16 %v6602, %v6598
    %v8607 = vpack.c.b16 %v6603, %v6599
    %v8608 = vpack.c.b16 %v6604, %v6600
    %v8609 = vpack.c.b16 %v6609, %v6605
    %v8610 = vpack.c.b16 %v6610, %v6606
    %v8611 = vpack.c.b16 %v6611, %v6607
    %v8612 = vpack.c.b16 %v6612, %v6608
    %v8613 = vpack.c.b16 %v6617, %v6613
    %v8614 = vpack.c.b16 %v6618, %v6614
    %v8615 = vpack.c.b16 %v6619, %v6615
    %v8616 = vpack.c.b16 %v6620, %v6616
    %v8617 = vpack.c.b16 %v6625, %v6621
    %v8618 = vpack.c.b16 %v6626, %v6622
    %v8619 = vpack.c.b16 %v6627, %v6623
    %v8620 = vpack.c.b16 %v6628, %v6624
    %v8621 = vpack.c.b16 %v6633, %v6629
    %v8622 = vpack.c.b16 %v6634, %v6630
    %v8623 = vpack.c.b16 %v6635, %v6631
    %v8624 = vpack.c.b16 %v6636, %v6632
    %v8625 = vpack.c.b16 %v6641, %v6637
    %v8626 = vpack.c.b16 %v6642, %v6638
    %v8627 = vpack.c.b16 %v6643, %v6639
    %v8628 = vpack.c.b16 %v6644, %v6640
    %v8629 = vpack.c.b16 %v6649, %v6645
    %v8630 = vpack.c.b16 %v6650, %v6646
    %v8631 = vpack.c.b16 %v6651, %v6647
    %v8632 = vpack.c.b16 %v6652, %v6648
    %v8633 = vpack.c.b16 %v6657, %v6653
    %v8634 = vpack.c.b16 %v6658, %v6654
    %v8635 = vpack.c.b16 %v6659, %v6655
    %v8636 = vpack.c.b16 %v6660, %v6656
    %v8637 = vpack.c.b16 %v6665, %v6661
    %v8638 = vpack.c.b16 %v6666, %v6662
    %v8639 = vpack.c.b16 %v6667, %v6663
    %v8640 = vpack.c.b16 %v6668, %v6664
    %v8641 = vpack.c.b16 %v6673, %v6669
    %v8642 = vpack.c.b16 %v6674, %v6670
    %v8643 = vpack.c.b16 %v6675, %v6671
    %v8644 = vpack.c.b16 %v6676, %v6672
    %v8645 = vpack.c.b16 %v6681, %v6677
    %v8646 = vpack.c.b16 %v6682, %v6678
    %v8647 = vpack.c.b16 %v6683, %v6679
    %v8648 = vpack.c.b16 %v6684, %v6680
    %v8649 = vpack.c.b16 %v6689, %v6685
    %v8650 = vpack.c.b16 %v6690, %v6686
    %v8651 = vpack.c.b16 %v6691, %v6687
    %v8652 = vpack.c.b16 %v6692, %v6688
    %v8653 = vpack.c.b16 %v6697, %v6693
    %v8654 = vpack.c.b16 %v6698, %v6694
    %v8655 = vpack.c.b16 %v6699, %v6695
    %v8656 = vpack.c.b16 %v6700, %v6696
    %v8657 = vpack.c.b16 %v6705, %v6701
    %v8658 = vpack.c.b16 %v6706, %v6702
    %v8659 = vpack.c.b16 %v6707, %v6703
    %v8660 = vpack.c.b16 %v6708, %v6704
    %v8661 = vpack.c.b16 %v6713, %v6709
    %v8662 = vpack.c.b16 %v6714, %v6710
    %v8663 = vpack.c.b16 %v6715, %v6711
    %v8664 = vpack.c.b16 %v6716, %v6712
    %v8665 = vpack.c.b16 %v6721, %v6717
    %v8666 = vpack.c.b16 %v6722, %v6718
    %v8667 = vpack.c.b16 %v6723, %v6719
    %v8668 = vpack.c.b16 %v6724, %v6720
    %v8669 = vpack.c.b16 %v6729, %v6725
    %v8670 = vpack.c.b16 %v6730, %v6726
    %v8671 = vpack.c.b16 %v6731, %v6727
    %v8672 = vpack.c.b16 %v6732, %v6728
    %v8673 = vpack.c.b16 %v6737, %v6733
    %v8674 = vpack.c.b16 %v6738, %v6734
    %v8675 = vpack.c.b16 %v6739, %v6735
    %v8676 = vpack.c.b16 %v6740, %v6736
    %v8677 = vpack.c.b16 %v6745, %v6741
    %v8678 = vpack.c.b16 %v6746, %v6742
    %v8679 = vpack.c.b16 %v6747, %v6743
    %v8680 = vpack.c.b16 %v6748, %v6744
    %v8681 = vpack.c.b16 %v6753, %v6749
    %v8682 = vpack.c.b16 %v6754, %v6750
    %v8683 = vpack.c.b16 %v6755, %v6751
    %v8684 = vpack.c.b16 %v6756, %v6752
    %v8685 = vpack.c.b16 %v6761, %v6757
    %v8686 = vpack.c.b16 %v6762, %v6758
    %v8687 = vpack.c.b16 %v6763, %v6759
    %v8688 = vpack.c.b16 %v6764, %v6760
    %v8689 = vpack.c.b16 %v6769, %v6765
    %v8690 = vpack.c.b16 %v6770, %v6766
    %v8691 = vpack.c.b16 %v6771, %v6767
    %v8692 = vpack.c.b16 %v6772, %v6768
    %v8693 = vpack.c.b16 %v6777, %v6773
    %v8694 = vpack.c.b16 %v6778, %v6774
    %v8695 = vpack.c.b16 %v6779, %v6775
    %v8696 = vpack.c.b16 %v6780, %v6776
    %v8697 = vpack.c.b16 %v6785, %v6781
    %v8698 = vpack.c.b16 %v6786, %v6782
    %v8699 = vpack.c.b16 %v6787, %v6783
    %v8700 = vpack.c.b16 %v6788, %v6784
    %v8701 = vpack.c.b16 %v6793, %v6789
    %v8702 = vpack.c.b16 %v6794, %v6790
    %v8703 = vpack.c.b16 %v6795, %v6791
    %v8704 = vpack.c.b16 %v6796, %v6792
    %v8705 = vpack.c.b16 %v6801, %v6797
    %v8706 = vpack.c.b16 %v6802, %v6798
    %v8707 = vpack.c.b16 %v6803, %v6799
    %v8708 = vpack.c.b16 %v6804, %v6800
    %v8709 = vpack.c.b16 %v6809, %v6805
    %v8710 = vpack.c.b16 %v6810, %v6806
    %v8711 = vpack.c.b16 %v6811, %v6807
    %v8712 = vpack.c.b16 %v6812, %v6808
    %v8713 = vpack.c.b16 %v6817, %v6813
    %v8714 = vpack.c.b16 %v6818, %v6814
    %v8715 = vpack.c.b16 %v6819, %v6815
    %v8716 = vpack.c.b16 %v6820, %v6816
    %v8717 = vpack.c.b16 %v6825, %v6821
    %v8718 = vpack.c.b16 %v6826, %v6822
    %v8719 = vpack.c.b16 %v6827, %v6823
    %v8720 = vpack.c.b16 %v6828, %v6824
    %v8721 = vpack.c.b16 %v6833, %v6829
    %v8722 = vpack.c.b16 %v6834, %v6830
    %v8723 = vpack.c.b16 %v6835, %v6831
    %v8724 = vpack.c.b16 %v6836, %v6832
    %v8725 = vpack.c.b16 %v6841, %v6837
    %v8726 = vpack.c.b16 %v6842, %v6838
    %v8727 = vpack.c.b16 %v6843, %v6839
    %v8728 = vpack.c.b16 %v6844, %v6840
    %v8729 = vpack.c.b16 %v6849, %v6845
    %v8730 = vpack.c.b16 %v6850, %v6846
    %v8731 = vpack.c.b16 %v6851, %v6847
    %v8732 = vpack.c.b16 %v6852, %v6848
    %v8733 = vpack.c.b16 %v6857, %v6853
    %v8734 = vpack.c.b16 %v6858, %v6854
    %v8735 = vpack.c.b16 %v6859, %v6855
    %v8736 = vpack.c.b16 %v6860, %v6856
    %v8737 = vpack.c.b16 %v6865, %v6861
    %v8738 = vpack.c.b16 %v6866, %v6862
    %v8739 = vpack.c.b16 %v6867, %v6863
    %v8740 = vpack.c.b16 %v6868, %v6864
    %v8741 = vpack.c.b16 %v6873, %v6869
    %v8742 = vpack.c.b16 %v6874, %v6870
    %v8743 = vpack.c.b16 %v6875, %v6871
    %v8744 = vpack.c.b16 %v6876, %v6872
    %v8745 = vpack.c.b16 %v6881, %v6877
    %v8746 = vpack.c.b16 %v6882, %v6878
    %v8747 = vpack.c.b16 %v6883, %v6879
    %v8748 = vpack.c.b16 %v6884, %v6880
    %v8749 = vpack.c.b16 %v6889, %v6885
    %v8750 = vpack.c.b16 %v6890, %v6886
    %v8751 = vpack.c.b16 %v6891, %v6887
    %v8752 = vpack.c.b16 %v6892, %v6888
    %v8753 = vpack.c.b16 %v6897, %v6893
    %v8754 = vpack.c.b16 %v6898, %v6894
    %v8755 = vpack.c.b16 %v6899, %v6895
    %v8756 = vpack.c.b16 %v6900, %v6896
    %v8757 = vpack.c.b16 %v6905, %v6901
    %v8758 = vpack.c.b16 %v6906, %v6902
    %v8759 = vpack.c.b16 %v6907, %v6903
    %v8760 = vpack.c.b16 %v6908, %v6904
    %v8761 = vpack.c.b16 %v6913, %v6909
    %v8762 = vpack.c.b16 %v6914, %v6910
    %v8763 = vpack.c.b16 %v6915, %v6911
    %v8764 = vpack.c.b16 %v6916, %v6912
    %v8765 = vpack.c.b16 %v6921, %v6917
    %v8766 = vpack.c.b16 %v6922, %v6918
    %v8767 = vpack.c.b16 %v6923, %v6919
    %v8768 = vpack.c.b16 %v6924, %v6920
    %v8769 = vpack.c.b16 %v6929, %v6925
    %v8770 = vpack.c.b16 %v6930, %v6926
    %v8771 = vpack.c.b16 %v6931, %v6927
    %v8772 = vpack.c.b16 %v6932, %v6928
    %v8773 = vpack.c.b16 %v6937, %v6933
    %v8774 = vpack.c.b16 %v6938, %v6934
    %v8775 = vpack.c.b16 %v6939, %v6935
    %v8776 = vpack.c.b16 %v6940, %v6936
    %v8777 = vpack.c.b16 %v6945, %v6941
    %v8778 = vpack.c.b16 %v6946, %v6942
    %v8779 = vpack.c.b16 %v6947, %v6943
    %v8780 = vpack.c.b16 %v6948, %v6944
    %v8781 = vpack.c.b16 %v6953, %v6949
    %v8782 = vpack.c.b16 %v6954, %v6950
    %v8783 = vpack.c.b16 %v6955, %v6951
    %v8784 = vpack.c.b16 %v6956, %v6952
    %v8785 = vpack.c.b16 %v6961, %v6957
    %v8786 = vpack.c.b16 %v6962, %v6958
    %v8787 = vpack.c.b16 %v6963, %v6959
    %v8788 = vpack.c.b16 %v6964, %v6960
    %v8789 = vpack.c.b16 %v6969, %v6965
    %v8790 = vpack.c.b16 %v6970, %v6966
    %v8791 = vpack.c.b16 %v6971, %v6967
    %v8792 = vpack.c.b16 %v6972, %v6968
    %v8793 = vpack.c.b16 %v6977, %v6973
    %v8794 = vpack.c.b16 %v6978, %v6974
    %v8795 = vpack.c.b16 %v6979, %v6975
    %v8796 = vpack.c.b16 %v6980, %v6976
    %v8797 = vpack.c.b16 %v6985, %v6981
    %v8798 = vpack.c.b16 %v6986, %v6982
    %v8799 = vpack.c.b16 %v6987, %v6983
    %v8800 = vpack.c.b16 %v6988, %v6984
    %v8801 = vpack.c.b16 %v6993, %v6989
    %v8802 = vpack.c.b16 %v6994, %v6990
    %v8803 = vpack.c.b16 %v6995, %v6991
    %v8804 = vpack.c.b16 %v6996, %v6992
    %v8805 = vpack.c.b16 %v7001, %v6997
    %v8806 = vpack.c.b16 %v7002, %v6998
    %v8807 = vpack.c.b16 %v7003, %v6999
    %v8808 = vpack.c.b16 %v7004, %v7000
    %v8809 = vpack.c.b16 %v7009, %v7005
    %v8810 = vpack.c.b16 %v7010, %v7006
    %v8811 = vpack.c.b16 %v7011, %v7007
    %v8812 = vpack.c.b16 %v7012, %v7008
    %v8813 = vpack.c.b16 %v7017, %v7013
    %v8814 = vpack.c.b16 %v7018, %v7014
    %v8815 = vpack.c.b16 %v7019, %v7015
    %v8816 = vpack.c.b16 %v7020, %v7016
    %v8817 = vpack.c.b16 %v7025, %v7021
    %v8818 = vpack.c.b16 %v7026, %v7022
    %v8819 = vpack.c.b16 %v7027, %v7023
    %v8820 = vpack.c.b16 %v7028, %v7024
    %v8821 = vpack.c.b16 %v7033, %v7029
    %v8822 = vpack.c.b16 %v7034, %v7030
    %v8823 = vpack.c.b16 %v7035, %v7031
    %v8824 = vpack.c.b16 %v7036, %v7032
    %v8825 = vpack.c.b16 %v7041, %v7037
    %v8826 = vpack.c.b16 %v7042, %v7038
    %v8827 = vpack.c.b16 %v7043, %v7039
    %v8828 = vpack.c.b16 %v7044, %v7040
    %v8829 = vpack.c.b16 %v7049, %v7045
    %v8830 = vpack.c.b16 %v7050, %v7046
    %v8831 = vpack.c.b16 %v7051, %v7047
    %v8832 = vpack.c.b16 %v7052, %v7048
    %v8833 = vpack.c.b16 %v7057, %v7053
    %v8834 = vpack.c.b16 %v7058, %v7054
    %v8835 = vpack.c.b16 %v7059, %v7055
    %v8836 = vpack.c.b16 %v7060, %v7056
    %v8837 = vpack.c.b16 %v7065, %v7061
    %v8838 = vpack.c.b16 %v7066, %v7062
    %v8839 = vpack.c.b16 %v7067, %v7063
    %v8840 = vpack.c.b16 %v7068, %v7064
    %v8841 = vpack.c.b16 %v7073, %v7069
    %v8842 = vpack.c.b16 %v7074, %v7070
    %v8843 = vpack.c.b16 %v7075, %v7071
    %v8844 = vpack.c.b16 %v7076, %v7072
    %v8845 = vpack.c.b16 %v7081, %v7077
    %v8846 = vpack.c.b16 %v7082, %v7078
    %v8847 = vpack.c.b16 %v7083, %v7079
    %v8848 = vpack.c.b16 %v7084, %v7080
    %v8849 = vpack.c.b16 %v7089, %v7085
    %v8850 = vpack.c.b16 %v7090, %v7086
    %v8851 = vpack.c.b16 %v7091, %v7087
    %v8852 = vpack.c.b16 %v7092, %v7088
    %v8853 = vpack.c.b16 %v7097, %v7093
    %v8854 = vpack.c.b16 %v7098, %v7094
    %v8855 = vpack.c.b16 %v7099, %v7095
    %v8856 = vpack.c.b16 %v7100, %v7096
    %v8857 = vpack.c.b16 %v7105, %v7101
    %v8858 = vpack.c.b16 %v7106, %v7102
    %v8859 = vpack.c.b16 %v7107, %v7103
    %v8860 = vpack.c.b16 %v7108, %v7104
    %v8861 = vpack.c.b16 %v7113, %v7109
    %v8862 = vpack.c.b16 %v7114, %v7110
    %v8863 = vpack.c.b16 %v7115, %v7111
    %v8864 = vpack.c.b16 %v7116, %v7112
    %v8865 = vpack.c.b16 %v7121, %v7117
    %v8866 = vpack.c.b16 %v7122, %v7118
    %v8867 = vpack.c.b16 %v7123, %v7119
    %v8868 = vpack.c.b16 %v7124, %v7120
    %v8869 = vpack.c.b16 %v7129, %v7125
    %v8870 = vpack.c.b16 %v7130, %v7126
    %v8871 = vpack.c.b16 %v7131, %v7127
    %v8872 = vpack.c.b16 %v7132, %v7128
    %v8873 = vpack.c.b16 %v7137, %v7133
    %v8874 = vpack.c.b16 %v7138, %v7134
    %v8875 = vpack.c.b16 %v7139, %v7135
    %v8876 = vpack.c.b16 %v7140, %v7136
    %v8877 = vpack.c.b16 %v7145, %v7141
    %v8878 = vpack.c.b16 %v7146, %v7142
    %v8879 = vpack.c.b16 %v7147, %v7143
    %v8880 = vpack.c.b16 %v7148, %v7144
    %v8881 = vpack.c.b16 %v7153, %v7149
    %v8882 = vpack.c.b16 %v7154, %v7150
    %v8883 = vpack.c.b16 %v7155, %v7151
    %v8884 = vpack.c.b16 %v7156, %v7152
    %10613 = vmatprep.subr.bf16.mxu0 %v7158
    %10614 = vmatpush1.bf16.msra.mxu0 %v7157
    %10615 = vmatprep.subr.bf16.mxu0 %v7162
    %10616 = vmatpush1.bf16.msra.mxu0 %v7161
    %10617 = vmatprep.subr.bf16.mxu0 %v7166
    %10618 = vmatpush1.bf16.msra.mxu0 %v7165
    %10619 = vmatprep.subr.bf16.mxu0 %v7170
    %10620 = vmatpush1.bf16.msra.mxu0 %v7169
    %10621 = vmatprep.subr.bf16.mxu0 %v7174
    %10622 = vmatpush1.bf16.msra.mxu0 %v7173
    %10623 = vmatprep.subr.bf16.mxu0 %v7178
    %10624 = vmatpush1.bf16.msra.mxu0 %v7177
    %10625 = vmatprep.subr.bf16.mxu0 %v7182
    %10626 = vmatpush1.bf16.msra.mxu0 %v7181
    %10627 = vmatprep.subr.bf16.mxu0 %v7186
    %10628 = vmatpush1.bf16.msra.mxu0 %v7185
    %10629 = vmatprep.subr.bf16.mxu0 %v7190
    %10630 = vmatpush1.bf16.msra.mxu0 %v7189
    %10631 = vmatprep.subr.bf16.mxu0 %v7194
    %10632 = vmatpush1.bf16.msra.mxu0 %v7193
    %10633 = vmatprep.subr.bf16.mxu0 %v7198
    %10634 = vmatpush1.bf16.msra.mxu0 %v7197
    %10635 = vmatprep.subr.bf16.mxu0 %v7202
    %10636 = vmatpush1.bf16.msra.mxu0 %v7201
    %10637 = vmatprep.subr.bf16.mxu0 %v7206
    %10638 = vmatpush1.bf16.msra.mxu0 %v7205
    %10639 = vmatprep.subr.bf16.mxu0 %v7210
    %10640 = vmatpush1.bf16.msra.mxu0 %v7209
    %10641 = vmatprep.subr.bf16.mxu0 %v7214
    %10642 = vmatpush1.bf16.msra.mxu0 %v7213
    %10643 = vmatprep.subr.bf16.mxu0 %v7218
    %10644 = vmatpush1.bf16.msra.mxu0 %v7217
    %10645 = vmatprep.mubr.bf16.mxu0 %v170
    %10646 = vmatmul.mubr.bf16.gmra.mrb[0].mxu0 %v169
    %v10647 = vpop.f32.mrb[0].mxu0
    %v10648 = vadd.f32 %v1956, %v10647
    %v10649 = vpop.f32.mrb[0].mxu0
    %v10650 = vadd.f32 %v1960, %v10649
    %v10651 = vpop.f32.mrb[0].mxu0
    %v10652 = vpop.f32.mrb[0].mxu0
    %10653 = vdwg.mxu0
    %10654 = vmatprep.subr.bf16.mxu0 %v7222
    %10655 = vmatpush1.bf16.msra.mxu0 %v7221
    %10656 = vmatprep.subr.bf16.mxu0 %v7226
    %10657 = vmatpush1.bf16.msra.mxu0 %v7225
    %10658 = vmatprep.subr.bf16.mxu0 %v7230
    %10659 = vmatpush1.bf16.msra.mxu0 %v7229
    %10660 = vmatprep.subr.bf16.mxu0 %v7234
    %10661 = vmatpush1.bf16.msra.mxu0 %v7233
    %10662 = vmatprep.subr.bf16.mxu0 %v7238
    %10663 = vmatpush1.bf16.msra.mxu0 %v7237
    %10664 = vmatprep.subr.bf16.mxu0 %v7242
    %10665 = vmatpush1.bf16.msra.mxu0 %v7241
    %10666 = vmatprep.subr.bf16.mxu0 %v7246
    %10667 = vmatpush1.bf16.msra.mxu0 %v7245
    %10668 = vmatprep.subr.bf16.mxu0 %v7250
    %10669 = vmatpush1.bf16.msra.mxu0 %v7249
    %10670 = vmatprep.subr.bf16.mxu0 %v7254
    %10671 = vmatpush1.bf16.msra.mxu0 %v7253
    %10672 = vmatprep.subr.bf16.mxu0 %v7258
    %10673 = vmatpush1.bf16.msra.mxu0 %v7257
    %10674 = vmatprep.subr.bf16.mxu0 %v7262
    %10675 = vmatpush1.bf16.msra.mxu0 %v7261
    %10676 = vmatprep.subr.bf16.mxu0 %v7266
    %10677 = vmatpush1.bf16.msra.mxu0 %v7265
    %10678 = vmatprep.subr.bf16.mxu0 %v7270
    %10679 = vmatpush1.bf16.msra.mxu0 %v7269
    %10680 = vmatprep.subr.bf16.mxu0 %v7274
    %10681 = vmatpush1.bf16.msra.mxu0 %v7273
    %10682 = vmatprep.subr.bf16.mxu0 %v7278
    %10683 = vmatpush1.bf16.msra.mxu0 %v7277
    %10684 = vmatprep.subr.bf16.mxu0 %v7282
    %10685 = vmatpush1.bf16.msra.mxu0 %v7281
    %10686 = vmatprep.mubr.bf16.mxu0 %v172
    %10687 = vmatmul.mubr.bf16.gmra.mrb[0].mxu0 %v171
    %v10688 = vpop.f32.mrb[0].mxu0
    %v10689 = vadd.f32 %v10648, %v10688
    %v10690 = vpop.f32.mrb[0].mxu0
    %v10691 = vadd.f32 %v10650, %v10690
    %v10692 = vpop.f32.mrb[0].mxu0
    %v10693 = vpop.f32.mrb[0].mxu0
    %10694 = vdwg.mxu0
    %10695 = vmatprep.subr.bf16.mxu0 %v7286
    %10696 = vmatpush1.bf16.msra.mxu0 %v7285
    %10697 = vmatprep.subr.bf16.mxu0 %v7290
    %10698 = vmatpush1.bf16.msra.mxu0 %v7289
    %10699 = vmatprep.subr.bf16.mxu0 %v7294
    %10700 = vmatpush1.bf16.msra.mxu0 %v7293
    %10701 = vmatprep.subr.bf16.mxu0 %v7298
    %10702 = vmatpush1.bf16.msra.mxu0 %v7297
    %10703 = vmatprep.subr.bf16.mxu0 %v7302
    %10704 = vmatpush1.bf16.msra.mxu0 %v7301
    %10705 = vmatprep.subr.bf16.mxu0 %v7306
    %10706 = vmatpush1.bf16.msra.mxu0 %v7305
    %10707 = vmatprep.subr.bf16.mxu0 %v7310
    %10708 = vmatpush1.bf16.msra.mxu0 %v7309
    %10709 = vmatprep.subr.bf16.mxu0 %v7314
    %10710 = vmatpush1.bf16.msra.mxu0 %v7313
    %10711 = vmatprep.subr.bf16.mxu0 %v7318
    %10712 = vmatpush1.bf16.msra.mxu0 %v7317
    %10713 = vmatprep.subr.bf16.mxu0 %v7322
    %10714 = vmatpush1.bf16.msra.mxu0 %v7321
    %10715 = vmatprep.subr.bf16.mxu0 %v7326
    %10716 = vmatpush1.bf16.msra.mxu0 %v7325
    %10717 = vmatprep.subr.bf16.mxu0 %v7330
    %10718 = vmatpush1.bf16.msra.mxu0 %v7329
    %10719 = vmatprep.subr.bf16.mxu0 %v7334
    %10720 = vmatpush1.bf16.msra.mxu0 %v7333
    %10721 = vmatprep.subr.bf16.mxu0 %v7338
    %10722 = vmatpush1.bf16.msra.mxu0 %v7337
    %10723 = vmatprep.subr.bf16.mxu0 %v7342
    %10724 = vmatpush1.bf16.msra.mxu0 %v7341
    %10725 = vmatprep.subr.bf16.mxu0 %v7346
    %10726 = vmatpush1.bf16.msra.mxu0 %v7345
    %10727 = vmatprep.mubr.bf16.mxu0 %v174
    %10728 = vmatmul.mubr.bf16.gmra.mrb[0].mxu0 %v173
    %v10729 = vpop.f32.mrb[0].mxu0
    %v10730 = vadd.f32 %v10689, %v10729
    %v10731 = vpop.f32.mrb[0].mxu0
    %v10732 = vadd.f32 %v10691, %v10731
    %v10733 = vpop.f32.mrb[0].mxu0
    %v10734 = vpop.f32.mrb[0].mxu0
    %10735 = vdwg.mxu0
    %10736 = vmatprep.subr.bf16.mxu0 %v7350
    %10737 = vmatpush1.bf16.msra.mxu0 %v7349
    %10738 = vmatprep.subr.bf16.mxu0 %v7354
    %10739 = vmatpush1.bf16.msra.mxu0 %v7353
    %10740 = vmatprep.subr.bf16.mxu0 %v7358
    %10741 = vmatpush1.bf16.msra.mxu0 %v7357
    %10742 = vmatprep.subr.bf16.mxu0 %v7362
    %10743 = vmatpush1.bf16.msra.mxu0 %v7361
    %10744 = vmatprep.subr.bf16.mxu0 %v7366
    %10745 = vmatpush1.bf16.msra.mxu0 %v7365
    %10746 = vmatprep.subr.bf16.mxu0 %v7370
    %10747 = vmatpush1.bf16.msra.mxu0 %v7369
    %10748 = vmatprep.subr.bf16.mxu0 %v7374
    %10749 = vmatpush1.bf16.msra.mxu0 %v7373
    %10750 = vmatprep.subr.bf16.mxu0 %v7378
    %10751 = vmatpush1.bf16.msra.mxu0 %v7377
    %10752 = vmatprep.subr.bf16.mxu0 %v7382
    %10753 = vmatpush1.bf16.msra.mxu0 %v7381
    %10754 = vmatprep.subr.bf16.mxu0 %v7386
    %10755 = vmatpush1.bf16.msra.mxu0 %v7385
    %10756 = vmatprep.subr.bf16.mxu0 %v7390
    %10757 = vmatpush1.bf16.msra.mxu0 %v7389
    %10758 = vmatprep.subr.bf16.mxu0 %v7394
    %10759 = vmatpush1.bf16.msra.mxu0 %v7393
    %10760 = vmatprep.subr.bf16.mxu0 %v7398
    %10761 = vmatpush1.bf16.msra.mxu0 %v7397
    %10762 = vmatprep.subr.bf16.mxu0 %v7402
    %10763 = vmatpush1.bf16.msra.mxu0 %v7401
    %10764 = vmatprep.subr.bf16.mxu0 %v7406
    %10765 = vmatpush1.bf16.msra.mxu0 %v7405
    %10766 = vmatprep.subr.bf16.mxu0 %v7410
    %10767 = vmatpush1.bf16.msra.mxu0 %v7409
    %10768 = vmatprep.mubr.bf16.mxu0 %v176
    %10769 = vmatmul.mubr.bf16.gmra.mrb[0].mxu0 %v175
    %v10770 = vpop.f32.mrb[0].mxu0
    %v10771 = vadd.f32 %v10730, %v10770
    %v10772 = vpop.f32.mrb[0].mxu0
    %v10773 = vadd.f32 %v10732, %v10772
    %v10774 = vpop.f32.mrb[0].mxu0
    %v10775 = vpop.f32.mrb[0].mxu0
    %10776 = vdwg.mxu0
    %10777 = vmatprep.subr.bf16.mxu0 %v7414
    %10778 = vmatpush1.bf16.msra.mxu0 %v7413
    %10779 = vmatprep.subr.bf16.mxu0 %v7418
    %10780 = vmatpush1.bf16.msra.mxu0 %v7417
    %10781 = vmatprep.subr.bf16.mxu0 %v7422
    %10782 = vmatpush1.bf16.msra.mxu0 %v7421
    %10783 = vmatprep.subr.bf16.mxu0 %v7426
    %10784 = vmatpush1.bf16.msra.mxu0 %v7425
    %10785 = vmatprep.subr.bf16.mxu0 %v7430
    %10786 = vmatpush1.bf16.msra.mxu0 %v7429
    %10787 = vmatprep.subr.bf16.mxu0 %v7434
    %10788 = vmatpush1.bf16.msra.mxu0 %v7433
    %10789 = vmatprep.subr.bf16.mxu0 %v7438
    %10790 = vmatpush1.bf16.msra.mxu0 %v7437
    %10791 = vmatprep.subr.bf16.mxu0 %v7442
    %10792 = vmatpush1.bf16.msra.mxu0 %v7441
    %10793 = vmatprep.subr.bf16.mxu0 %v7446
    %10794 = vmatpush1.bf16.msra.mxu0 %v7445
    %10795 = vmatprep.subr.bf16.mxu0 %v7450
    %10796 = vmatpush1.bf16.msra.mxu0 %v7449
    %10797 = vmatprep.subr.bf16.mxu0 %v7454
    %10798 = vmatpush1.bf16.msra.mxu0 %v7453
    %10799 = vmatprep.subr.bf16.mxu0 %v7458
    %10800 = vmatpush1.bf16.msra.mxu0 %v7457
    %10801 = vmatprep.subr.bf16.mxu0 %v7462
    %10802 = vmatpush1.bf16.msra.mxu0 %v7461
    %10803 = vmatprep.subr.bf16.mxu0 %v7466
    %10804 = vmatpush1.bf16.msra.mxu0 %v7465
    %10805 = vmatprep.subr.bf16.mxu0 %v7470
    %10806 = vmatpush1.bf16.msra.mxu0 %v7469
    %10807 = vmatprep.subr.bf16.mxu0 %v7474
    %10808 = vmatpush1.bf16.msra.mxu0 %v7473
    %10809 = vmatprep.mubr.bf16.mxu0 %v178
    %10810 = vmatmul.mubr.bf16.gmra.mrb[0].mxu0 %v177
    %v10811 = vpop.f32.mrb[0].mxu0
    %v10812 = vadd.f32 %v10771, %v10811
    %v10813 = vpop.f32.mrb[0].mxu0
    %v10814 = vadd.f32 %v10773, %v10813
    %v10815 = vpop.f32.mrb[0].mxu0
    %v10816 = vpop.f32.mrb[0].mxu0
    %10817 = vdwg.mxu0
    %10818 = vmatprep.subr.bf16.mxu0 %v7478
    %10819 = vmatpush1.bf16.msra.mxu0 %v7477
    %10820 = vmatprep.subr.bf16.mxu0 %v7482
    %10821 = vmatpush1.bf16.msra.mxu0 %v7481
    %10822 = vmatprep.subr.bf16.mxu0 %v7486
    %10823 = vmatpush1.bf16.msra.mxu0 %v7485
    %10824 = vmatprep.subr.bf16.mxu0 %v7490
    %10825 = vmatpush1.bf16.msra.mxu0 %v7489
    %10826 = vmatprep.subr.bf16.mxu0 %v7494
    %10827 = vmatpush1.bf16.msra.mxu0 %v7493
    %10828 = vmatprep.subr.bf16.mxu0 %v7498
    %10829 = vmatpush1.bf16.msra.mxu0 %v7497
    %10830 = vmatprep.subr.bf16.mxu0 %v7502
    %10831 = vmatpush1.bf16.msra.mxu0 %v7501
    %10832 = vmatprep.subr.bf16.mxu0 %v7506
    %10833 = vmatpush1.bf16.msra.mxu0 %v7505
    %10834 = vmatprep.subr.bf16.mxu0 %v7510
    %10835 = vmatpush1.bf16.msra.mxu0 %v7509
    %10836 = vmatprep.subr.bf16.mxu0 %v7514
    %10837 = vmatpush1.bf16.msra.mxu0 %v7513
    %10838 = vmatprep.subr.bf16.mxu0 %v7518
    %10839 = vmatpush1.bf16.msra.mxu0 %v7517
    %10840 = vmatprep.subr.bf16.mxu0 %v7522
    %10841 = vmatpush1.bf16.msra.mxu0 %v7521
    %10842 = vmatprep.subr.bf16.mxu0 %v7526
    %10843 = vmatpush1.bf16.msra.mxu0 %v7525
    %10844 = vmatprep.subr.bf16.mxu0 %v7530
    %10845 = vmatpush1.bf16.msra.mxu0 %v7529
    %10846 = vmatprep.subr.bf16.mxu0 %v7534
    %10847 = vmatpush1.bf16.msra.mxu0 %v7533
    %10848 = vmatprep.subr.bf16.mxu0 %v7538
    %10849 = vmatpush1.bf16.msra.mxu0 %v7537
    %10850 = vmatprep.mubr.bf16.mxu0 %v180
    %10851 = vmatmul.mubr.bf16.gmra.mrb[0].mxu0 %v179
    %v10852 = vpop.f32.mrb[0].mxu0
    %v10853 = vadd.f32 %v10812, %v10852
    %v10854 = vpop.f32.mrb[0].mxu0
    %v10855 = vadd.f32 %v10814, %v10854
    %v10856 = vpop.f32.mrb[0].mxu0
    %v10857 = vpop.f32.mrb[0].mxu0
    %10858 = vdwg.mxu0
    %10859 = vmatprep.subr.bf16.mxu0 %v7542
    %10860 = vmatpush1.bf16.msra.mxu0 %v7541
    %10861 = vmatprep.subr.bf16.mxu0 %v7546
    %10862 = vmatpush1.bf16.msra.mxu0 %v7545
    %10863 = vmatprep.subr.bf16.mxu0 %v7550
    %10864 = vmatpush1.bf16.msra.mxu0 %v7549
    %10865 = vmatprep.subr.bf16.mxu0 %v7554
    %10866 = vmatpush1.bf16.msra.mxu0 %v7553
    %10867 = vmatprep.subr.bf16.mxu0 %v7558
    %10868 = vmatpush1.bf16.msra.mxu0 %v7557
    %10869 = vmatprep.subr.bf16.mxu0 %v7562
    %10870 = vmatpush1.bf16.msra.mxu0 %v7561
    %10871 = vmatprep.subr.bf16.mxu0 %v7566
    %10872 = vmatpush1.bf16.msra.mxu0 %v7565
    %10873 = vmatprep.subr.bf16.mxu0 %v7570
    %10874 = vmatpush1.bf16.msra.mxu0 %v7569
    %10875 = vmatprep.subr.bf16.mxu0 %v7574
    %10876 = vmatpush1.bf16.msra.mxu0 %v7573
    %10877 = vmatprep.subr.bf16.mxu0 %v7578
    %10878 = vmatpush1.bf16.msra.mxu0 %v7577
    %10879 = vmatprep.subr.bf16.mxu0 %v7582
    %10880 = vmatpush1.bf16.msra.mxu0 %v7581
    %10881 = vmatprep.subr.bf16.mxu0 %v7586
    %10882 = vmatpush1.bf16.msra.mxu0 %v7585
    %10883 = vmatprep.subr.bf16.mxu0 %v7590
    %10884 = vmatpush1.bf16.msra.mxu0 %v7589
    %10885 = vmatprep.subr.bf16.mxu0 %v7594
    %10886 = vmatpush1.bf16.msra.mxu0 %v7593
    %10887 = vmatprep.subr.bf16.mxu0 %v7598
    %10888 = vmatpush1.bf16.msra.mxu0 %v7597
    %10889 = vmatprep.subr.bf16.mxu0 %v7602
    %10890 = vmatpush1.bf16.msra.mxu0 %v7601
    %10891 = vmatprep.mubr.bf16.mxu0 %v182
    %10892 = vmatmul.mubr.bf16.gmra.mrb[0].mxu0 %v181
    %v10893 = vpop.f32.mrb[0].mxu0
    %v10894 = vadd.f32 %v10853, %v10893
    %v10895 = vpop.f32.mrb[0].mxu0
    %v10896 = vadd.f32 %v10855, %v10895
    %v10897 = vpop.f32.mrb[0].mxu0
    %v10898 = vpop.f32.mrb[0].mxu0
    %10899 = vdwg.mxu0
    %10900 = vmatprep.subr.bf16.mxu0 %v7606
    %10901 = vmatpush1.bf16.msra.mxu0 %v7605
    %10902 = vmatprep.subr.bf16.mxu0 %v7610
    %10903 = vmatpush1.bf16.msra.mxu0 %v7609
    %10904 = vmatprep.subr.bf16.mxu0 %v7614
    %10905 = vmatpush1.bf16.msra.mxu0 %v7613
    %10906 = vmatprep.subr.bf16.mxu0 %v7618
    %10907 = vmatpush1.bf16.msra.mxu0 %v7617
    %10908 = vmatprep.subr.bf16.mxu0 %v7622
    %10909 = vmatpush1.bf16.msra.mxu0 %v7621
    %10910 = vmatprep.subr.bf16.mxu0 %v7626
    %10911 = vmatpush1.bf16.msra.mxu0 %v7625
    %10912 = vmatprep.subr.bf16.mxu0 %v7630
    %10913 = vmatpush1.bf16.msra.mxu0 %v7629
    %10914 = vmatprep.subr.bf16.mxu0 %v7634
    %10915 = vmatpush1.bf16.msra.mxu0 %v7633
    %10916 = vmatprep.subr.bf16.mxu0 %v7638
    %10917 = vmatpush1.bf16.msra.mxu0 %v7637
    %10918 = vmatprep.subr.bf16.mxu0 %v7642
    %10919 = vmatpush1.bf16.msra.mxu0 %v7641
    %10920 = vmatprep.subr.bf16.mxu0 %v7646
    %10921 = vmatpush1.bf16.msra.mxu0 %v7645
    %10922 = vmatprep.subr.bf16.mxu0 %v7650
    %10923 = vmatpush1.bf16.msra.mxu0 %v7649
    %10924 = vmatprep.subr.bf16.mxu0 %v7654
    %10925 = vmatpush1.bf16.msra.mxu0 %v7653
    %10926 = vmatprep.subr.bf16.mxu0 %v7658
    %10927 = vmatpush1.bf16.msra.mxu0 %v7657
    %10928 = vmatprep.subr.bf16.mxu0 %v7662
    %10929 = vmatpush1.bf16.msra.mxu0 %v7661
    %10930 = vmatprep.subr.bf16.mxu0 %v7666
    %10931 = vmatpush1.bf16.msra.mxu0 %v7665
    %10932 = vmatprep.mubr.bf16.mxu0 %v184
    %10933 = vmatmul.mubr.bf16.gmra.mrb[0].mxu0 %v183
    %v10934 = vpop.f32.mrb[0].mxu0
    %v10935 = vadd.f32 %v10894, %v10934
    %v10936 = vpop.f32.mrb[0].mxu0
    %v10937 = vadd.f32 %v10896, %v10936
    %v10938 = vpop.f32.mrb[0].mxu0
    %v10939 = vpop.f32.mrb[0].mxu0
    %10940 = vdwg.mxu0
    %10941 = vmatprep.subr.bf16.mxu0 %v7670
    %10942 = vmatpush1.bf16.msra.mxu0 %v7669
    %10943 = vmatprep.subr.bf16.mxu0 %v7674
    %10944 = vmatpush1.bf16.msra.mxu0 %v7673
    %10945 = vmatprep.subr.bf16.mxu0 %v7678
    %10946 = vmatpush1.bf16.msra.mxu0 %v7677
    %10947 = vmatprep.subr.bf16.mxu0 %v7682
    %10948 = vmatpush1.bf16.msra.mxu0 %v7681
    %10949 = vmatprep.subr.bf16.mxu0 %v7686
    %10950 = vmatpush1.bf16.msra.mxu0 %v7685
    %10951 = vmatprep.subr.bf16.mxu0 %v7690
    %10952 = vmatpush1.bf16.msra.mxu0 %v7689
    %10953 = vmatprep.subr.bf16.mxu0 %v7694
    %10954 = vmatpush1.bf16.msra.mxu0 %v7693
    %10955 = vmatprep.subr.bf16.mxu0 %v7698
    %10956 = vmatpush1.bf16.msra.mxu0 %v7697
    %10957 = vmatprep.subr.bf16.mxu0 %v7702
    %10958 = vmatpush1.bf16.msra.mxu0 %v7701
    %10959 = vmatprep.subr.bf16.mxu0 %v7706
    %10960 = vmatpush1.bf16.msra.mxu0 %v7705
    %10961 = vmatprep.subr.bf16.mxu0 %v7710
    %10962 = vmatpush1.bf16.msra.mxu0 %v7709
    %10963 = vmatprep.subr.bf16.mxu0 %v7714
    %10964 = vmatpush1.bf16.msra.mxu0 %v7713
    %10965 = vmatprep.subr.bf16.mxu0 %v7718
    %10966 = vmatpush1.bf16.msra.mxu0 %v7717
    %10967 = vmatprep.subr.bf16.mxu0 %v7722
    %10968 = vmatpush1.bf16.msra.mxu0 %v7721
    %10969 = vmatprep.subr.bf16.mxu0 %v7726
    %10970 = vmatpush1.bf16.msra.mxu0 %v7725
    %10971 = vmatprep.subr.bf16.mxu0 %v7730
    %10972 = vmatpush1.bf16.msra.mxu0 %v7729
    %10973 = vmatprep.mubr.bf16.mxu0 %v186
    %10974 = vmatmul.mubr.bf16.gmra.mrb[0].mxu0 %v185
    %v10975 = vpop.f32.mrb[0].mxu0
    %v10976 = vadd.f32 %v10935, %v10975
    %v10977 = vpop.f32.mrb[0].mxu0
    %v10978 = vadd.f32 %v10937, %v10977
    %v10979 = vpop.f32.mrb[0].mxu0
    %v10980 = vpop.f32.mrb[0].mxu0
    %10981 = vdwg.mxu0
    %10982 = vmatprep.subr.bf16.mxu0 %v7734
    %10983 = vmatpush1.bf16.msra.mxu0 %v7733
    %10984 = vmatprep.subr.bf16.mxu0 %v7738
    %10985 = vmatpush1.bf16.msra.mxu0 %v7737
    %10986 = vmatprep.subr.bf16.mxu0 %v7742
    %10987 = vmatpush1.bf16.msra.mxu0 %v7741
    %10988 = vmatprep.subr.bf16.mxu0 %v7746
    %10989 = vmatpush1.bf16.msra.mxu0 %v7745
    %10990 = vmatprep.subr.bf16.mxu0 %v7750
    %10991 = vmatpush1.bf16.msra.mxu0 %v7749
    %10992 = vmatprep.subr.bf16.mxu0 %v7754
    %10993 = vmatpush1.bf16.msra.mxu0 %v7753
    %10994 = vmatprep.subr.bf16.mxu0 %v7758
    %10995 = vmatpush1.bf16.msra.mxu0 %v7757
    %10996 = vmatprep.subr.bf16.mxu0 %v7762
    %10997 = vmatpush1.bf16.msra.mxu0 %v7761
    %10998 = vmatprep.subr.bf16.mxu0 %v7766
    %10999 = vmatpush1.bf16.msra.mxu0 %v7765
    %11000 = vmatprep.subr.bf16.mxu0 %v7770
    %11001 = vmatpush1.bf16.msra.mxu0 %v7769
    %11002 = vmatprep.subr.bf16.mxu0 %v7774
    %11003 = vmatpush1.bf16.msra.mxu0 %v7773
    %11004 = vmatprep.subr.bf16.mxu0 %v7778
    %11005 = vmatpush1.bf16.msra.mxu0 %v7777
    %11006 = vmatprep.subr.bf16.mxu0 %v7782
    %11007 = vmatpush1.bf16.msra.mxu0 %v7781
    %11008 = vmatprep.subr.bf16.mxu0 %v7786
    %11009 = vmatpush1.bf16.msra.mxu0 %v7785
    %11010 = vmatprep.subr.bf16.mxu0 %v7790
    %11011 = vmatpush1.bf16.msra.mxu0 %v7789
    %11012 = vmatprep.subr.bf16.mxu0 %v7794
    %11013 = vmatpush1.bf16.msra.mxu0 %v7793
    %11014 = vmatprep.mubr.bf16.mxu0 %v188
    %11015 = vmatmul.mubr.bf16.gmra.mrb[0].mxu0 %v187
    %v11016 = vpop.f32.mrb[0].mxu0
    %v11017 = vadd.f32 %v10976, %v11016
    %v11018 = vpop.f32.mrb[0].mxu0
    %v11019 = vadd.f32 %v10978, %v11018
    %v11020 = vpop.f32.mrb[0].mxu0
    %v11021 = vpop.f32.mrb[0].mxu0
    %11022 = vdwg.mxu0
    %11023 = vmatprep.subr.bf16.mxu0 %v7798
    %11024 = vmatpush1.bf16.msra.mxu0 %v7797
    %11025 = vmatprep.subr.bf16.mxu0 %v7802
    %11026 = vmatpush1.bf16.msra.mxu0 %v7801
    %11027 = vmatprep.subr.bf16.mxu0 %v7806
    %11028 = vmatpush1.bf16.msra.mxu0 %v7805
    %11029 = vmatprep.subr.bf16.mxu0 %v7810
    %11030 = vmatpush1.bf16.msra.mxu0 %v7809
    %11031 = vmatprep.subr.bf16.mxu0 %v7814
    %11032 = vmatpush1.bf16.msra.mxu0 %v7813
    %11033 = vmatprep.subr.bf16.mxu0 %v7818
    %11034 = vmatpush1.bf16.msra.mxu0 %v7817
    %11035 = vmatprep.subr.bf16.mxu0 %v7822
    %11036 = vmatpush1.bf16.msra.mxu0 %v7821
    %11037 = vmatprep.subr.bf16.mxu0 %v7826
    %11038 = vmatpush1.bf16.msra.mxu0 %v7825
    %11039 = vmatprep.subr.bf16.mxu0 %v7830
    %11040 = vmatpush1.bf16.msra.mxu0 %v7829
    %11041 = vmatprep.subr.bf16.mxu0 %v7834
    %11042 = vmatpush1.bf16.msra.mxu0 %v7833
    %11043 = vmatprep.subr.bf16.mxu0 %v7838
    %11044 = vmatpush1.bf16.msra.mxu0 %v7837
    %11045 = vmatprep.subr.bf16.mxu0 %v7842
    %11046 = vmatpush1.bf16.msra.mxu0 %v7841
    %11047 = vmatprep.subr.bf16.mxu0 %v7846
    %11048 = vmatpush1.bf16.msra.mxu0 %v7845
    %11049 = vmatprep.subr.bf16.mxu0 %v7850
    %11050 = vmatpush1.bf16.msra.mxu0 %v7849
    %11051 = vmatprep.subr.bf16.mxu0 %v7854
    %11052 = vmatpush1.bf16.msra.mxu0 %v7853
    %11053 = vmatprep.subr.bf16.mxu0 %v7858
    %11054 = vmatpush1.bf16.msra.mxu0 %v7857
    %11055 = vmatprep.mubr.bf16.mxu0 %v190
    %11056 = vmatmul.mubr.bf16.gmra.mrb[0].mxu0 %v189
    %v11057 = vpop.f32.mrb[0].mxu0
    %v11058 = vadd.f32 %v11017, %v11057
    %v11059 = vpop.f32.mrb[0].mxu0
    %v11060 = vadd.f32 %v11019, %v11059
    %v11061 = vpop.f32.mrb[0].mxu0
    %v11062 = vpop.f32.mrb[0].mxu0
    %11063 = vdwg.mxu0
    %11064 = vmatprep.subr.bf16.mxu0 %v7862
    %11065 = vmatpush1.bf16.msra.mxu0 %v7861
    %11066 = vmatprep.subr.bf16.mxu0 %v7866
    %11067 = vmatpush1.bf16.msra.mxu0 %v7865
    %11068 = vmatprep.subr.bf16.mxu0 %v7870
    %11069 = vmatpush1.bf16.msra.mxu0 %v7869
    %11070 = vmatprep.subr.bf16.mxu0 %v7874
    %11071 = vmatpush1.bf16.msra.mxu0 %v7873
    %11072 = vmatprep.subr.bf16.mxu0 %v7878
    %11073 = vmatpush1.bf16.msra.mxu0 %v7877
    %11074 = vmatprep.subr.bf16.mxu0 %v7882
    %11075 = vmatpush1.bf16.msra.mxu0 %v7881
    %11076 = vmatprep.subr.bf16.mxu0 %v7886
    %11077 = vmatpush1.bf16.msra.mxu0 %v7885
    %11078 = vmatprep.subr.bf16.mxu0 %v7890
    %11079 = vmatpush1.bf16.msra.mxu0 %v7889
    %11080 = vmatprep.subr.bf16.mxu0 %v7894
    %11081 = vmatpush1.bf16.msra.mxu0 %v7893
    %11082 = vmatprep.subr.bf16.mxu0 %v7898
    %11083 = vmatpush1.bf16.msra.mxu0 %v7897
    %11084 = vmatprep.subr.bf16.mxu0 %v7902
    %11085 = vmatpush1.bf16.msra.mxu0 %v7901
    %11086 = vmatprep.subr.bf16.mxu0 %v7906
    %11087 = vmatpush1.bf16.msra.mxu0 %v7905
    %11088 = vmatprep.subr.bf16.mxu0 %v7910
    %11089 = vmatpush1.bf16.msra.mxu0 %v7909
    %11090 = vmatprep.subr.bf16.mxu0 %v7914
    %11091 = vmatpush1.bf16.msra.mxu0 %v7913
    %11092 = vmatprep.subr.bf16.mxu0 %v7918
    %11093 = vmatpush1.bf16.msra.mxu0 %v7917
    %11094 = vmatprep.subr.bf16.mxu0 %v7922
    %11095 = vmatpush1.bf16.msra.mxu0 %v7921
    %11096 = vmatprep.mubr.bf16.mxu0 %v192
    %11097 = vmatmul.mubr.bf16.gmra.mrb[0].mxu0 %v191
    %v11098 = vpop.f32.mrb[0].mxu0
    %v11099 = vadd.f32 %v11058, %v11098
    %v11100 = vpop.f32.mrb[0].mxu0
    %v11101 = vadd.f32 %v11060, %v11100
    %v11102 = vpop.f32.mrb[0].mxu0
    %v11103 = vpop.f32.mrb[0].mxu0
    %11104 = vdwg.mxu0
    %11105 = vmatprep.subr.bf16.mxu0 %v7926
    %11106 = vmatpush1.bf16.msra.mxu0 %v7925
    %11107 = vmatprep.subr.bf16.mxu0 %v7930
    %11108 = vmatpush1.bf16.msra.mxu0 %v7929
    %11109 = vmatprep.subr.bf16.mxu0 %v7934
    %11110 = vmatpush1.bf16.msra.mxu0 %v7933
    %11111 = vmatprep.subr.bf16.mxu0 %v7938
    %11112 = vmatpush1.bf16.msra.mxu0 %v7937
    %11113 = vmatprep.subr.bf16.mxu0 %v7942
    %11114 = vmatpush1.bf16.msra.mxu0 %v7941
    %11115 = vmatprep.subr.bf16.mxu0 %v7946
    %11116 = vmatpush1.bf16.msra.mxu0 %v7945
    %11117 = vmatprep.subr.bf16.mxu0 %v7950
    %11118 = vmatpush1.bf16.msra.mxu0 %v7949
    %11119 = vmatprep.subr.bf16.mxu0 %v7954
    %11120 = vmatpush1.bf16.msra.mxu0 %v7953
    %11121 = vmatprep.subr.bf16.mxu0 %v7958
    %11122 = vmatpush1.bf16.msra.mxu0 %v7957
    %11123 = vmatprep.subr.bf16.mxu0 %v7962
    %11124 = vmatpush1.bf16.msra.mxu0 %v7961
    %11125 = vmatprep.subr.bf16.mxu0 %v7966
    %11126 = vmatpush1.bf16.msra.mxu0 %v7965
    %11127 = vmatprep.subr.bf16.mxu0 %v7970
    %11128 = vmatpush1.bf16.msra.mxu0 %v7969
    %11129 = vmatprep.subr.bf16.mxu0 %v7974
    %11130 = vmatpush1.bf16.msra.mxu0 %v7973
    %11131 = vmatprep.subr.bf16.mxu0 %v7978
    %11132 = vmatpush1.bf16.msra.mxu0 %v7977
    %11133 = vmatprep.subr.bf16.mxu0 %v7982
    %11134 = vmatpush1.bf16.msra.mxu0 %v7981
    %11135 = vmatprep.subr.bf16.mxu0 %v7986
    %11136 = vmatpush1.bf16.msra.mxu0 %v7985
    %11137 = vmatprep.mubr.bf16.mxu0 %v194
    %11138 = vmatmul.mubr.bf16.gmra.mrb[0].mxu0 %v193
    %v11139 = vpop.f32.mrb[0].mxu0
    %v11140 = vadd.f32 %v11099, %v11139
    %v11141 = vpop.f32.mrb[0].mxu0
    %v11142 = vadd.f32 %v11101, %v11141
    %v11143 = vpop.f32.mrb[0].mxu0
    %v11144 = vpop.f32.mrb[0].mxu0
    %11145 = vdwg.mxu0
    %11146 = vmatprep.subr.bf16.mxu0 %v7990
    %11147 = vmatpush1.bf16.msra.mxu0 %v7989
    %11148 = vmatprep.subr.bf16.mxu0 %v7994
    %11149 = vmatpush1.bf16.msra.mxu0 %v7993
    %11150 = vmatprep.subr.bf16.mxu0 %v7998
    %11151 = vmatpush1.bf16.msra.mxu0 %v7997
    %11152 = vmatprep.subr.bf16.mxu0 %v8002
    %11153 = vmatpush1.bf16.msra.mxu0 %v8001
    %11154 = vmatprep.subr.bf16.mxu0 %v8006
    %11155 = vmatpush1.bf16.msra.mxu0 %v8005
    %11156 = vmatprep.subr.bf16.mxu0 %v8010
    %11157 = vmatpush1.bf16.msra.mxu0 %v8009
    %11158 = vmatprep.subr.bf16.mxu0 %v8014
    %11159 = vmatpush1.bf16.msra.mxu0 %v8013
    %11160 = vmatprep.subr.bf16.mxu0 %v8018
    %11161 = vmatpush1.bf16.msra.mxu0 %v8017
    %11162 = vmatprep.subr.bf16.mxu0 %v8022
    %11163 = vmatpush1.bf16.msra.mxu0 %v8021
    %11164 = vmatprep.subr.bf16.mxu0 %v8026
    %11165 = vmatpush1.bf16.msra.mxu0 %v8025
    %11166 = vmatprep.subr.bf16.mxu0 %v8030
    %11167 = vmatpush1.bf16.msra.mxu0 %v8029
    %11168 = vmatprep.subr.bf16.mxu0 %v8034
    %11169 = vmatpush1.bf16.msra.mxu0 %v8033
    %11170 = vmatprep.subr.bf16.mxu0 %v8038
    %11171 = vmatpush1.bf16.msra.mxu0 %v8037
    %11172 = vmatprep.subr.bf16.mxu0 %v8042
    %11173 = vmatpush1.bf16.msra.mxu0 %v8041
    %11174 = vmatprep.subr.bf16.mxu0 %v8046
    %11175 = vmatpush1.bf16.msra.mxu0 %v8045
    %11176 = vmatprep.subr.bf16.mxu0 %v8050
    %11177 = vmatpush1.bf16.msra.mxu0 %v8049
    %11178 = vmatprep.mubr.bf16.mxu0 %v196
    %11179 = vmatmul.mubr.bf16.gmra.mrb[0].mxu0 %v195
    %v11180 = vpop.f32.mrb[0].mxu0
    %v11181 = vadd.f32 %v11140, %v11180
    %v11182 = vpop.f32.mrb[0].mxu0
    %v11183 = vadd.f32 %v11142, %v11182
    %v11184 = vpop.f32.mrb[0].mxu0
    %v11185 = vpop.f32.mrb[0].mxu0
    %11186 = vdwg.mxu0
    %11187 = vmatprep.subr.bf16.mxu0 %v8054
    %11188 = vmatpush1.bf16.msra.mxu0 %v8053
    %11189 = vmatprep.subr.bf16.mxu0 %v8058
    %11190 = vmatpush1.bf16.msra.mxu0 %v8057
    %11191 = vmatprep.subr.bf16.mxu0 %v8062
    %11192 = vmatpush1.bf16.msra.mxu0 %v8061
    %11193 = vmatprep.subr.bf16.mxu0 %v8066
    %11194 = vmatpush1.bf16.msra.mxu0 %v8065
    %11195 = vmatprep.subr.bf16.mxu0 %v8070
    %11196 = vmatpush1.bf16.msra.mxu0 %v8069
    %11197 = vmatprep.subr.bf16.mxu0 %v8074
    %11198 = vmatpush1.bf16.msra.mxu0 %v8073
    %11199 = vmatprep.subr.bf16.mxu0 %v8078
    %11200 = vmatpush1.bf16.msra.mxu0 %v8077
    %11201 = vmatprep.subr.bf16.mxu0 %v8082
    %11202 = vmatpush1.bf16.msra.mxu0 %v8081
    %11203 = vmatprep.subr.bf16.mxu0 %v8086
    %11204 = vmatpush1.bf16.msra.mxu0 %v8085
    %11205 = vmatprep.subr.bf16.mxu0 %v8090
    %11206 = vmatpush1.bf16.msra.mxu0 %v8089
    %11207 = vmatprep.subr.bf16.mxu0 %v8094
    %11208 = vmatpush1.bf16.msra.mxu0 %v8093
    %11209 = vmatprep.subr.bf16.mxu0 %v8098
    %11210 = vmatpush1.bf16.msra.mxu0 %v8097
    %11211 = vmatprep.subr.bf16.mxu0 %v8102
    %11212 = vmatpush1.bf16.msra.mxu0 %v8101
    %11213 = vmatprep.subr.bf16.mxu0 %v8106
    %11214 = vmatpush1.bf16.msra.mxu0 %v8105
    %11215 = vmatprep.subr.bf16.mxu0 %v8110
    %11216 = vmatpush1.bf16.msra.mxu0 %v8109
    %11217 = vmatprep.subr.bf16.mxu0 %v8114
    %11218 = vmatpush1.bf16.msra.mxu0 %v8113
    %11219 = vmatprep.mubr.bf16.mxu0 %v198
    %11220 = vmatmul.mubr.bf16.gmra.mrb[0].mxu0 %v197
    %v11221 = vpop.f32.mrb[0].mxu0
    %v11222 = vadd.f32 %v11181, %v11221
    %v11223 = vpop.f32.mrb[0].mxu0
    %v11224 = vadd.f32 %v11183, %v11223
    %v11225 = vpop.f32.mrb[0].mxu0
    %v11226 = vpop.f32.mrb[0].mxu0
    %11227 = vdwg.mxu0
    %11228 = vmatprep.subr.bf16.mxu0 %v8118
    %11229 = vmatpush1.bf16.msra.mxu0 %v8117
    %11230 = vmatprep.subr.bf16.mxu0 %v8122
    %11231 = vmatpush1.bf16.msra.mxu0 %v8121
    %11232 = vmatprep.subr.bf16.mxu0 %v8126
    %11233 = vmatpush1.bf16.msra.mxu0 %v8125
    %11234 = vmatprep.subr.bf16.mxu0 %v8130
    %11235 = vmatpush1.bf16.msra.mxu0 %v8129
    %11236 = vmatprep.subr.bf16.mxu0 %v8134
    %11237 = vmatpush1.bf16.msra.mxu0 %v8133
    %11238 = vmatprep.subr.bf16.mxu0 %v8138
    %11239 = vmatpush1.bf16.msra.mxu0 %v8137
    %11240 = vmatprep.subr.bf16.mxu0 %v8142
    %11241 = vmatpush1.bf16.msra.mxu0 %v8141
    %11242 = vmatprep.subr.bf16.mxu0 %v8146
    %11243 = vmatpush1.bf16.msra.mxu0 %v8145
    %11244 = vmatprep.subr.bf16.mxu0 %v8150
    %11245 = vmatpush1.bf16.msra.mxu0 %v8149
    %11246 = vmatprep.subr.bf16.mxu0 %v8154
    %11247 = vmatpush1.bf16.msra.mxu0 %v8153
    %11248 = vmatprep.subr.bf16.mxu0 %v8158
    %11249 = vmatpush1.bf16.msra.mxu0 %v8157
    %11250 = vmatprep.subr.bf16.mxu0 %v8162
    %11251 = vmatpush1.bf16.msra.mxu0 %v8161
    %11252 = vmatprep.subr.bf16.mxu0 %v8166
    %11253 = vmatpush1.bf16.msra.mxu0 %v8165
    %11254 = vmatprep.subr.bf16.mxu0 %v8170
    %11255 = vmatpush1.bf16.msra.mxu0 %v8169
    %11256 = vmatprep.subr.bf16.mxu0 %v8174
    %11257 = vmatpush1.bf16.msra.mxu0 %v8173
    %11258 = vmatprep.subr.bf16.mxu0 %v8178
    %11259 = vmatpush1.bf16.msra.mxu0 %v8177
    %11260 = vmatprep.mubr.bf16.mxu0 %v200
    %11261 = vmatmul.mubr.bf16.gmra.mrb[0].mxu0 %v199
    %v11262 = vpop.f32.mrb[0].mxu0
    %v11263 = vadd.f32 %v11222, %v11262
    %v11264 = vpop.f32.mrb[0].mxu0
    %v11265 = vadd.f32 %v11224, %v11264
    %v11266 = vpop.f32.mrb[0].mxu0
    %v11267 = vpop.f32.mrb[0].mxu0
    %11268 = vdwg.mxu0
    %11269 = vmatprep.subr.bf16.mxu0 %v8182
    %11270 = vmatpush1.bf16.msra.mxu0 %v8181
    %11271 = vmatprep.subr.bf16.mxu0 %v8186
    %11272 = vmatpush1.bf16.msra.mxu0 %v8185
    %11273 = vmatprep.subr.bf16.mxu0 %v8190
    %11274 = vmatpush1.bf16.msra.mxu0 %v8189
    %11275 = vmatprep.subr.bf16.mxu0 %v8194
    %11276 = vmatpush1.bf16.msra.mxu0 %v8193
    %11277 = vmatprep.subr.bf16.mxu0 %v8198
    %11278 = vmatpush1.bf16.msra.mxu0 %v8197
    %11279 = vmatprep.subr.bf16.mxu0 %v8202
    %11280 = vmatpush1.bf16.msra.mxu0 %v8201
    %11281 = vmatprep.subr.bf16.mxu0 %v8206
    %11282 = vmatpush1.bf16.msra.mxu0 %v8205
    %11283 = vmatprep.subr.bf16.mxu0 %v8210
    %11284 = vmatpush1.bf16.msra.mxu0 %v8209
    %11285 = vmatprep.subr.bf16.mxu0 %v8214
    %11286 = vmatpush1.bf16.msra.mxu0 %v8213
    %11287 = vmatprep.subr.bf16.mxu0 %v8218
    %11288 = vmatpush1.bf16.msra.mxu0 %v8217
    %11289 = vmatprep.subr.bf16.mxu0 %v8222
    %11290 = vmatpush1.bf16.msra.mxu0 %v8221
    %11291 = vmatprep.subr.bf16.mxu0 %v8226
    %11292 = vmatpush1.bf16.msra.mxu0 %v8225
    %11293 = vmatprep.subr.bf16.mxu0 %v8230
    %11294 = vmatpush1.bf16.msra.mxu0 %v8229
    %11295 = vmatprep.subr.bf16.mxu0 %v8234
    %11296 = vmatpush1.bf16.msra.mxu0 %v8233
    %11297 = vmatprep.subr.bf16.mxu0 %v8238
    %11298 = vmatpush1.bf16.msra.mxu0 %v8237
    %11299 = vmatprep.subr.bf16.mxu0 %v8242
    %11300 = vmatpush1.bf16.msra.mxu0 %v8241
    %11301 = vmatprep.mubr.bf16.mxu0 %v202
    %11302 = vmatmul.mubr.bf16.gmra.mrb[0].mxu0 %v201
    %v11303 = vpop.f32.mrb[0].mxu0
    %v11304 = vadd.f32 %v11263, %v11303
    %v11305 = vpop.f32.mrb[0].mxu0
    %v11306 = vadd.f32 %v11265, %v11305
    %v11307 = vpop.f32.mrb[0].mxu0
    %v11308 = vpop.f32.mrb[0].mxu0
    %11309 = vdwg.mxu0
    %11310 = vmatprep.subr.bf16.mxu0 %v8246
    %11311 = vmatpush1.bf16.msra.mxu0 %v8245
    %11312 = vmatprep.subr.bf16.mxu0 %v8250
    %11313 = vmatpush1.bf16.msra.mxu0 %v8249
    %11314 = vmatprep.subr.bf16.mxu0 %v8254
    %11315 = vmatpush1.bf16.msra.mxu0 %v8253
    %11316 = vmatprep.subr.bf16.mxu0 %v8258
    %11317 = vmatpush1.bf16.msra.mxu0 %v8257
    %11318 = vmatprep.subr.bf16.mxu0 %v8262
    %11319 = vmatpush1.bf16.msra.mxu0 %v8261
    %11320 = vmatprep.subr.bf16.mxu0 %v8266
    %11321 = vmatpush1.bf16.msra.mxu0 %v8265
    %11322 = vmatprep.subr.bf16.mxu0 %v8270
    %11323 = vmatpush1.bf16.msra.mxu0 %v8269
    %11324 = vmatprep.subr.bf16.mxu0 %v8274
    %11325 = vmatpush1.bf16.msra.mxu0 %v8273
    %11326 = vmatprep.subr.bf16.mxu0 %v8278
    %11327 = vmatpush1.bf16.msra.mxu0 %v8277
    %11328 = vmatprep.subr.bf16.mxu0 %v8282
    %11329 = vmatpush1.bf16.msra.mxu0 %v8281
    %11330 = vmatprep.subr.bf16.mxu0 %v8286
    %11331 = vmatpush1.bf16.msra.mxu0 %v8285
    %11332 = vmatprep.subr.bf16.mxu0 %v8290
    %11333 = vmatpush1.bf16.msra.mxu0 %v8289
    %11334 = vmatprep.subr.bf16.mxu0 %v8294
    %11335 = vmatpush1.bf16.msra.mxu0 %v8293
    %11336 = vmatprep.subr.bf16.mxu0 %v8298
    %11337 = vmatpush1.bf16.msra.mxu0 %v8297
    %11338 = vmatprep.subr.bf16.mxu0 %v8302
    %11339 = vmatpush1.bf16.msra.mxu0 %v8301
    %11340 = vmatprep.subr.bf16.mxu0 %v8306
    %11341 = vmatpush1.bf16.msra.mxu0 %v8305
    %11342 = vmatprep.mubr.bf16.mxu0 %v204
    %11343 = vmatmul.mubr.bf16.gmra.mrb[0].mxu0 %v203
    %v11344 = vpop.f32.mrb[0].mxu0
    %v11345 = vadd.f32 %v11304, %v11344
    %v11346 = vpop.f32.mrb[0].mxu0
    %v11347 = vadd.f32 %v11306, %v11346
    %v11348 = vpop.f32.mrb[0].mxu0
    %v11349 = vpop.f32.mrb[0].mxu0
    %11350 = vdwg.mxu0
    %11351 = vmatprep.subr.bf16.mxu0 %v8310
    %11352 = vmatpush1.bf16.msra.mxu0 %v8309
    %11353 = vmatprep.subr.bf16.mxu0 %v8314
    %11354 = vmatpush1.bf16.msra.mxu0 %v8313
    %11355 = vmatprep.subr.bf16.mxu0 %v8318
    %11356 = vmatpush1.bf16.msra.mxu0 %v8317
    %11357 = vmatprep.subr.bf16.mxu0 %v8322
    %11358 = vmatpush1.bf16.msra.mxu0 %v8321
    %11359 = vmatprep.subr.bf16.mxu0 %v8326
    %11360 = vmatpush1.bf16.msra.mxu0 %v8325
    %11361 = vmatprep.subr.bf16.mxu0 %v8330
    %11362 = vmatpush1.bf16.msra.mxu0 %v8329
    %11363 = vmatprep.subr.bf16.mxu0 %v8334
    %11364 = vmatpush1.bf16.msra.mxu0 %v8333
    %11365 = vmatprep.subr.bf16.mxu0 %v8338
    %11366 = vmatpush1.bf16.msra.mxu0 %v8337
    %11367 = vmatprep.subr.bf16.mxu0 %v8342
    %11368 = vmatpush1.bf16.msra.mxu0 %v8341
    %11369 = vmatprep.subr.bf16.mxu0 %v8346
    %11370 = vmatpush1.bf16.msra.mxu0 %v8345
    %11371 = vmatprep.subr.bf16.mxu0 %v8350
    %11372 = vmatpush1.bf16.msra.mxu0 %v8349
    %11373 = vmatprep.subr.bf16.mxu0 %v8354
    %11374 = vmatpush1.bf16.msra.mxu0 %v8353
    %11375 = vmatprep.subr.bf16.mxu0 %v8358
    %11376 = vmatpush1.bf16.msra.mxu0 %v8357
    %11377 = vmatprep.subr.bf16.mxu0 %v8362
    %11378 = vmatpush1.bf16.msra.mxu0 %v8361
    %11379 = vmatprep.subr.bf16.mxu0 %v8366
    %11380 = vmatpush1.bf16.msra.mxu0 %v8365
    %11381 = vmatprep.subr.bf16.mxu0 %v8370
    %11382 = vmatpush1.bf16.msra.mxu0 %v8369
    %11383 = vmatprep.mubr.bf16.mxu0 %v206
    %11384 = vmatmul.mubr.bf16.gmra.mrb[0].mxu0 %v205
    %v11385 = vpop.f32.mrb[0].mxu0
    %v11386 = vadd.f32 %v11345, %v11385
    %v11387 = vpop.f32.mrb[0].mxu0
    %v11388 = vadd.f32 %v11347, %v11387
    %v11389 = vpop.f32.mrb[0].mxu0
    %v11390 = vpop.f32.mrb[0].mxu0
    %11391 = vdwg.mxu0
    %11392 = vmatprep.subr.bf16.mxu0 %v8374
    %11393 = vmatpush1.bf16.msra.mxu0 %v8373
    %11394 = vmatprep.subr.bf16.mxu0 %v8378
    %11395 = vmatpush1.bf16.msra.mxu0 %v8377
    %11396 = vmatprep.subr.bf16.mxu0 %v8382
    %11397 = vmatpush1.bf16.msra.mxu0 %v8381
    %11398 = vmatprep.subr.bf16.mxu0 %v8386
    %11399 = vmatpush1.bf16.msra.mxu0 %v8385
    %11400 = vmatprep.subr.bf16.mxu0 %v8390
    %11401 = vmatpush1.bf16.msra.mxu0 %v8389
    %11402 = vmatprep.subr.bf16.mxu0 %v8394
    %11403 = vmatpush1.bf16.msra.mxu0 %v8393
    %11404 = vmatprep.subr.bf16.mxu0 %v8398
    %11405 = vmatpush1.bf16.msra.mxu0 %v8397
    %11406 = vmatprep.subr.bf16.mxu0 %v8402
    %11407 = vmatpush1.bf16.msra.mxu0 %v8401
    %11408 = vmatprep.subr.bf16.mxu0 %v8406
    %11409 = vmatpush1.bf16.msra.mxu0 %v8405
    %11410 = vmatprep.subr.bf16.mxu0 %v8410
    %11411 = vmatpush1.bf16.msra.mxu0 %v8409
    %11412 = vmatprep.subr.bf16.mxu0 %v8414
    %11413 = vmatpush1.bf16.msra.mxu0 %v8413
    %11414 = vmatprep.subr.bf16.mxu0 %v8418
    %11415 = vmatpush1.bf16.msra.mxu0 %v8417
    %11416 = vmatprep.subr.bf16.mxu0 %v8422
    %11417 = vmatpush1.bf16.msra.mxu0 %v8421
    %11418 = vmatprep.subr.bf16.mxu0 %v8426
    %11419 = vmatpush1.bf16.msra.mxu0 %v8425
    %11420 = vmatprep.subr.bf16.mxu0 %v8430
    %11421 = vmatpush1.bf16.msra.mxu0 %v8429
    %11422 = vmatprep.subr.bf16.mxu0 %v8434
    %11423 = vmatpush1.bf16.msra.mxu0 %v8433
    %11424 = vmatprep.mubr.bf16.mxu0 %v208
    %11425 = vmatmul.mubr.bf16.gmra.mrb[0].mxu0 %v207
    %v11426 = vpop.f32.mrb[0].mxu0
    %v11427 = vadd.f32 %v11386, %v11426
    %v11428 = vpop.f32.mrb[0].mxu0
    %v11429 = vadd.f32 %v11388, %v11428
    %v11430 = vpop.f32.mrb[0].mxu0
    %v11431 = vpop.f32.mrb[0].mxu0
    %11432 = vdwg.mxu0
    %11433 = vmatprep.subr.bf16.mxu0 %v8438
    %11434 = vmatpush1.bf16.msra.mxu0 %v8437
    %11435 = vmatprep.subr.bf16.mxu0 %v8442
    %11436 = vmatpush1.bf16.msra.mxu0 %v8441
    %11437 = vmatprep.subr.bf16.mxu0 %v8446
    %11438 = vmatpush1.bf16.msra.mxu0 %v8445
    %11439 = vmatprep.subr.bf16.mxu0 %v8450
    %11440 = vmatpush1.bf16.msra.mxu0 %v8449
    %11441 = vmatprep.subr.bf16.mxu0 %v8454
    %11442 = vmatpush1.bf16.msra.mxu0 %v8453
    %11443 = vmatprep.subr.bf16.mxu0 %v8458
    %11444 = vmatpush1.bf16.msra.mxu0 %v8457
    %11445 = vmatprep.subr.bf16.mxu0 %v8462
    %11446 = vmatpush1.bf16.msra.mxu0 %v8461
    %11447 = vmatprep.subr.bf16.mxu0 %v8466
    %11448 = vmatpush1.bf16.msra.mxu0 %v8465
    %11449 = vmatprep.subr.bf16.mxu0 %v8470
    %11450 = vmatpush1.bf16.msra.mxu0 %v8469
    %11451 = vmatprep.subr.bf16.mxu0 %v8474
    %11452 = vmatpush1.bf16.msra.mxu0 %v8473
    %11453 = vmatprep.subr.bf16.mxu0 %v8478
    %11454 = vmatpush1.bf16.msra.mxu0 %v8477
    %11455 = vmatprep.subr.bf16.mxu0 %v8482
    %11456 = vmatpush1.bf16.msra.mxu0 %v8481
    %11457 = vmatprep.subr.bf16.mxu0 %v8486
    %11458 = vmatpush1.bf16.msra.mxu0 %v8485
    %11459 = vmatprep.subr.bf16.mxu0 %v8490
    %11460 = vmatpush1.bf16.msra.mxu0 %v8489
    %11461 = vmatprep.subr.bf16.mxu0 %v8494
    %11462 = vmatpush1.bf16.msra.mxu0 %v8493
    %11463 = vmatprep.subr.bf16.mxu0 %v8498
    %11464 = vmatpush1.bf16.msra.mxu0 %v8497
    %11465 = vmatprep.mubr.bf16.mxu0 %v210
    %11466 = vmatmul.mubr.bf16.gmra.mrb[0].mxu0 %v209
    %v11467 = vpop.f32.mrb[0].mxu0
    %v11468 = vadd.f32 %v11427, %v11467
    %v11469 = vpop.f32.mrb[0].mxu0
    %v11470 = vadd.f32 %v11429, %v11469
    %v11471 = vpop.f32.mrb[0].mxu0
    %v11472 = vpop.f32.mrb[0].mxu0
    %11473 = vdwg.mxu0
    %11474 = vmatprep.subr.bf16.mxu0 %v8502
    %11475 = vmatpush1.bf16.msra.mxu0 %v8501
    %11476 = vmatprep.subr.bf16.mxu0 %v8506
    %11477 = vmatpush1.bf16.msra.mxu0 %v8505
    %11478 = vmatprep.subr.bf16.mxu0 %v8510
    %11479 = vmatpush1.bf16.msra.mxu0 %v8509
    %11480 = vmatprep.subr.bf16.mxu0 %v8514
    %11481 = vmatpush1.bf16.msra.mxu0 %v8513
    %11482 = vmatprep.subr.bf16.mxu0 %v8518
    %11483 = vmatpush1.bf16.msra.mxu0 %v8517
    %11484 = vmatprep.subr.bf16.mxu0 %v8522
    %11485 = vmatpush1.bf16.msra.mxu0 %v8521
    %11486 = vmatprep.subr.bf16.mxu0 %v8526
    %11487 = vmatpush1.bf16.msra.mxu0 %v8525
    %11488 = vmatprep.subr.bf16.mxu0 %v8530
    %11489 = vmatpush1.bf16.msra.mxu0 %v8529
    %11490 = vmatprep.subr.bf16.mxu0 %v8534
    %11491 = vmatpush1.bf16.msra.mxu0 %v8533
    %11492 = vmatprep.subr.bf16.mxu0 %v8538
    %11493 = vmatpush1.bf16.msra.mxu0 %v8537
    %11494 = vmatprep.subr.bf16.mxu0 %v8542
    %11495 = vmatpush1.bf16.msra.mxu0 %v8541
    %11496 = vmatprep.subr.bf16.mxu0 %v8546
    %11497 = vmatpush1.bf16.msra.mxu0 %v8545
    %11498 = vmatprep.subr.bf16.mxu0 %v8550
    %11499 = vmatpush1.bf16.msra.mxu0 %v8549
    %11500 = vmatprep.subr.bf16.mxu0 %v8554
    %11501 = vmatpush1.bf16.msra.mxu0 %v8553
    %11502 = vmatprep.subr.bf16.mxu0 %v8558
    %11503 = vmatpush1.bf16.msra.mxu0 %v8557
    %11504 = vmatprep.subr.bf16.mxu0 %v8562
    %11505 = vmatpush1.bf16.msra.mxu0 %v8561
    %11506 = vmatprep.mubr.bf16.mxu0 %v212
    %11507 = vmatmul.mubr.bf16.gmra.mrb[0].mxu0 %v211
    %v11508 = vpop.f32.mrb[0].mxu0
    %v11509 = vadd.f32 %v11468, %v11508
    %v11510 = vpop.f32.mrb[0].mxu0
    %v11511 = vadd.f32 %v11470, %v11510
    %v11512 = vpop.f32.mrb[0].mxu0
    %v11513 = vpop.f32.mrb[0].mxu0
    %11514 = vdwg.mxu0
    %11515 = vmatprep.subr.bf16.mxu0 %v8566
    %11516 = vmatpush1.bf16.msra.mxu0 %v8565
    %11517 = vmatprep.subr.bf16.mxu0 %v8570
    %11518 = vmatpush1.bf16.msra.mxu0 %v8569
    %11519 = vmatprep.subr.bf16.mxu0 %v8574
    %11520 = vmatpush1.bf16.msra.mxu0 %v8573
    %11521 = vmatprep.subr.bf16.mxu0 %v8578
    %11522 = vmatpush1.bf16.msra.mxu0 %v8577
    %11523 = vmatprep.subr.bf16.mxu0 %v8582
    %11524 = vmatpush1.bf16.msra.mxu0 %v8581
    %11525 = vmatprep.subr.bf16.mxu0 %v8586
    %11526 = vmatpush1.bf16.msra.mxu0 %v8585
    %11527 = vmatprep.subr.bf16.mxu0 %v8590
    %11528 = vmatpush1.bf16.msra.mxu0 %v8589
    %11529 = vmatprep.subr.bf16.mxu0 %v8594
    %11530 = vmatpush1.bf16.msra.mxu0 %v8593
    %11531 = vmatprep.subr.bf16.mxu0 %v8598
    %11532 = vmatpush1.bf16.msra.mxu0 %v8597
    %11533 = vmatprep.subr.bf16.mxu0 %v8602
    %11534 = vmatpush1.bf16.msra.mxu0 %v8601
    %11535 = vmatprep.subr.bf16.mxu0 %v8606
    %11536 = vmatpush1.bf16.msra.mxu0 %v8605
    %11537 = vmatprep.subr.bf16.mxu0 %v8610
    %11538 = vmatpush1.bf16.msra.mxu0 %v8609
    %11539 = vmatprep.subr.bf16.mxu0 %v8614
    %11540 = vmatpush1.bf16.msra.mxu0 %v8613
    %11541 = vmatprep.subr.bf16.mxu0 %v8618
    %11542 = vmatpush1.bf16.msra.mxu0 %v8617
    %11543 = vmatprep.subr.bf16.mxu0 %v8622
    %11544 = vmatpush1.bf16.msra.mxu0 %v8621
    %11545 = vmatprep.subr.bf16.mxu0 %v8626
    %11546 = vmatpush1.bf16.msra.mxu0 %v8625
    %11547 = vmatprep.mubr.bf16.mxu0 %v214
    %11548 = vmatmul.mubr.bf16.gmra.mrb[0].mxu0 %v213
    %v11549 = vpop.f32.mrb[0].mxu0
    %v11550 = vadd.f32 %v11509, %v11549
    %v11551 = vpop.f32.mrb[0].mxu0
    %v11552 = vadd.f32 %v11511, %v11551
    %v11553 = vpop.f32.mrb[0].mxu0
    %v11554 = vpop.f32.mrb[0].mxu0
    %11555 = vdwg.mxu0
    %11556 = vmatprep.subr.bf16.mxu0 %v8630
    %11557 = vmatpush1.bf16.msra.mxu0 %v8629
    %11558 = vmatprep.subr.bf16.mxu0 %v8634
    %11559 = vmatpush1.bf16.msra.mxu0 %v8633
    %11560 = vmatprep.subr.bf16.mxu0 %v8638
    %11561 = vmatpush1.bf16.msra.mxu0 %v8637
    %11562 = vmatprep.subr.bf16.mxu0 %v8642
    %11563 = vmatpush1.bf16.msra.mxu0 %v8641
    %11564 = vmatprep.subr.bf16.mxu0 %v8646
    %11565 = vmatpush1.bf16.msra.mxu0 %v8645
    %11566 = vmatprep.subr.bf16.mxu0 %v8650
    %11567 = vmatpush1.bf16.msra.mxu0 %v8649
    %11568 = vmatprep.subr.bf16.mxu0 %v8654
    %11569 = vmatpush1.bf16.msra.mxu0 %v8653
    %11570 = vmatprep.subr.bf16.mxu0 %v8658
    %11571 = vmatpush1.bf16.msra.mxu0 %v8657
    %11572 = vmatprep.subr.bf16.mxu0 %v8662
    %11573 = vmatpush1.bf16.msra.mxu0 %v8661
    %11574 = vmatprep.subr.bf16.mxu0 %v8666
    %11575 = vmatpush1.bf16.msra.mxu0 %v8665
    %11576 = vmatprep.subr.bf16.mxu0 %v8670
    %11577 = vmatpush1.bf16.msra.mxu0 %v8669
    %11578 = vmatprep.subr.bf16.mxu0 %v8674
    %11579 = vmatpush1.bf16.msra.mxu0 %v8673
    %11580 = vmatprep.subr.bf16.mxu0 %v8678
    %11581 = vmatpush1.bf16.msra.mxu0 %v8677
    %11582 = vmatprep.subr.bf16.mxu0 %v8682
    %11583 = vmatpush1.bf16.msra.mxu0 %v8681
    %11584 = vmatprep.subr.bf16.mxu0 %v8686
    %11585 = vmatpush1.bf16.msra.mxu0 %v8685
    %11586 = vmatprep.subr.bf16.mxu0 %v8690
    %11587 = vmatpush1.bf16.msra.mxu0 %v8689
    %11588 = vmatprep.mubr.bf16.mxu0 %v216
    %11589 = vmatmul.mubr.bf16.gmra.mrb[0].mxu0 %v215
    %v11590 = vpop.f32.mrb[0].mxu0
    %v11591 = vadd.f32 %v11550, %v11590
    %v11592 = vpop.f32.mrb[0].mxu0
    %v11593 = vadd.f32 %v11552, %v11592
    %v11594 = vpop.f32.mrb[0].mxu0
    %v11595 = vpop.f32.mrb[0].mxu0
    %11596 = vdwg.mxu0
    %11597 = vmatprep.subr.bf16.mxu0 %v8694
    %11598 = vmatpush1.bf16.msra.mxu0 %v8693
    %11599 = vmatprep.subr.bf16.mxu0 %v8698
    %11600 = vmatpush1.bf16.msra.mxu0 %v8697
    %11601 = vmatprep.subr.bf16.mxu0 %v8702
    %11602 = vmatpush1.bf16.msra.mxu0 %v8701
    %11603 = vmatprep.subr.bf16.mxu0 %v8706
    %11604 = vmatpush1.bf16.msra.mxu0 %v8705
    %11605 = vmatprep.subr.bf16.mxu0 %v8710
    %11606 = vmatpush1.bf16.msra.mxu0 %v8709
    %11607 = vmatprep.subr.bf16.mxu0 %v8714
    %11608 = vmatpush1.bf16.msra.mxu0 %v8713
    %11609 = vmatprep.subr.bf16.mxu0 %v8718
    %11610 = vmatpush1.bf16.msra.mxu0 %v8717
    %11611 = vmatprep.subr.bf16.mxu0 %v8722
    %11612 = vmatpush1.bf16.msra.mxu0 %v8721
    %11613 = vmatprep.subr.bf16.mxu0 %v8726
    %11614 = vmatpush1.bf16.msra.mxu0 %v8725
    %11615 = vmatprep.subr.bf16.mxu0 %v8730
    %11616 = vmatpush1.bf16.msra.mxu0 %v8729
    %11617 = vmatprep.subr.bf16.mxu0 %v8734
    %11618 = vmatpush1.bf16.msra.mxu0 %v8733
    %11619 = vmatprep.subr.bf16.mxu0 %v8738
    %11620 = vmatpush1.bf16.msra.mxu0 %v8737
    %11621 = vmatprep.subr.bf16.mxu0 %v8742
    %11622 = vmatpush1.bf16.msra.mxu0 %v8741
    %11623 = vmatprep.subr.bf16.mxu0 %v8746
    %11624 = vmatpush1.bf16.msra.mxu0 %v8745
    %11625 = vmatprep.subr.bf16.mxu0 %v8750
    %11626 = vmatpush1.bf16.msra.mxu0 %v8749
    %11627 = vmatprep.subr.bf16.mxu0 %v8754
    %11628 = vmatpush1.bf16.msra.mxu0 %v8753
    %11629 = vmatprep.mubr.bf16.mxu0 %v218
    %11630 = vmatmul.mubr.bf16.gmra.mrb[0].mxu0 %v217
    %v11631 = vpop.f32.mrb[0].mxu0
    %v11632 = vadd.f32 %v11591, %v11631
    %v11633 = vpop.f32.mrb[0].mxu0
    %v11634 = vadd.f32 %v11593, %v11633
    %v11635 = vpop.f32.mrb[0].mxu0
    %v11636 = vpop.f32.mrb[0].mxu0
    %11637 = vdwg.mxu0
    %11638 = vmatprep.subr.bf16.mxu0 %v8758
    %11639 = vmatpush1.bf16.msra.mxu0 %v8757
    %11640 = vmatprep.subr.bf16.mxu0 %v8762
    %11641 = vmatpush1.bf16.msra.mxu0 %v8761
    %11642 = vmatprep.subr.bf16.mxu0 %v8766
    %11643 = vmatpush1.bf16.msra.mxu0 %v8765
    %11644 = vmatprep.subr.bf16.mxu0 %v8770
    %11645 = vmatpush1.bf16.msra.mxu0 %v8769
    %11646 = vmatprep.subr.bf16.mxu0 %v8774
    %11647 = vmatpush1.bf16.msra.mxu0 %v8773
    %11648 = vmatprep.subr.bf16.mxu0 %v8778
    %11649 = vmatpush1.bf16.msra.mxu0 %v8777
    %11650 = vmatprep.subr.bf16.mxu0 %v8782
    %11651 = vmatpush1.bf16.msra.mxu0 %v8781
    %11652 = vmatprep.subr.bf16.mxu0 %v8786
    %11653 = vmatpush1.bf16.msra.mxu0 %v8785
    %11654 = vmatprep.subr.bf16.mxu0 %v8790
    %11655 = vmatpush1.bf16.msra.mxu0 %v8789
    %11656 = vmatprep.subr.bf16.mxu0 %v8794
    %11657 = vmatpush1.bf16.msra.mxu0 %v8793
    %11658 = vmatprep.subr.bf16.mxu0 %v8798
    %11659 = vmatpush1.bf16.msra.mxu0 %v8797
    %11660 = vmatprep.subr.bf16.mxu0 %v8802
    %11661 = vmatpush1.bf16.msra.mxu0 %v8801
    %11662 = vmatprep.subr.bf16.mxu0 %v8806
    %11663 = vmatpush1.bf16.msra.mxu0 %v8805
    %11664 = vmatprep.subr.bf16.mxu0 %v8810
    %11665 = vmatpush1.bf16.msra.mxu0 %v8809
    %11666 = vmatprep.subr.bf16.mxu0 %v8814
    %11667 = vmatpush1.bf16.msra.mxu0 %v8813
    %11668 = vmatprep.subr.bf16.mxu0 %v8818
    %11669 = vmatpush1.bf16.msra.mxu0 %v8817
    %11670 = vmatprep.mubr.bf16.mxu0 %v220
    %11671 = vmatmul.mubr.bf16.gmra.mrb[0].mxu0 %v219
    %v11672 = vpop.f32.mrb[0].mxu0
    %v11673 = vadd.f32 %v11632, %v11672
    %v11674 = vpop.f32.mrb[0].mxu0
    %v11675 = vadd.f32 %v11634, %v11674
    %v11676 = vpop.f32.mrb[0].mxu0
    %v11677 = vpop.f32.mrb[0].mxu0
    %11678 = vdwg.mxu0
    %11679 = vmatprep.subr.bf16.mxu0 %v8822
    %11680 = vmatpush1.bf16.msra.mxu0 %v8821
    %11681 = vmatprep.subr.bf16.mxu0 %v8826
    %11682 = vmatpush1.bf16.msra.mxu0 %v8825
    %11683 = vmatprep.subr.bf16.mxu0 %v8830
    %11684 = vmatpush1.bf16.msra.mxu0 %v8829
    %11685 = vmatprep.subr.bf16.mxu0 %v8834
    %11686 = vmatpush1.bf16.msra.mxu0 %v8833
    %11687 = vmatprep.subr.bf16.mxu0 %v8838
    %11688 = vmatpush1.bf16.msra.mxu0 %v8837
    %11689 = vmatprep.subr.bf16.mxu0 %v8842
    %11690 = vmatpush1.bf16.msra.mxu0 %v8841
    %11691 = vmatprep.subr.bf16.mxu0 %v8846
    %11692 = vmatpush1.bf16.msra.mxu0 %v8845
    %11693 = vmatprep.subr.bf16.mxu0 %v8850
    %11694 = vmatpush1.bf16.msra.mxu0 %v8849
    %11695 = vmatprep.subr.bf16.mxu0 %v8854
    %11696 = vmatpush1.bf16.msra.mxu0 %v8853
    %11697 = vmatprep.subr.bf16.mxu0 %v8858
    %11698 = vmatpush1.bf16.msra.mxu0 %v8857
    %11699 = vmatprep.subr.bf16.mxu0 %v8862
    %11700 = vmatpush1.bf16.msra.mxu0 %v8861
    %11701 = vmatprep.subr.bf16.mxu0 %v8866
    %11702 = vmatpush1.bf16.msra.mxu0 %v8865
    %11703 = vmatprep.subr.bf16.mxu0 %v8870
    %11704 = vmatpush1.bf16.msra.mxu0 %v8869
    %11705 = vmatprep.subr.bf16.mxu0 %v8874
    %11706 = vmatpush1.bf16.msra.mxu0 %v8873
    %11707 = vmatprep.subr.bf16.mxu0 %v8878
    %11708 = vmatpush1.bf16.msra.mxu0 %v8877
    %11709 = vmatprep.subr.bf16.mxu0 %v8882
    %11710 = vmatpush1.bf16.msra.mxu0 %v8881
    %11711 = vmatprep.mubr.bf16.mxu0 %v222
    %11712 = vmatmul.mubr.bf16.gmra.mrb[0].mxu0 %v221
    %v11713 = vpop.f32.mrb[0].mxu0
    %v11714 = vadd.f32 %v11673, %v11713
    %v11715 = vpop.f32.mrb[0].mxu0
    %v11716 = vadd.f32 %v11675, %v11715
    %v11717 = vpop.f32.mrb[0].mxu0
    %v11718 = vpop.f32.mrb[0].mxu0
    %11719 = vdwg.mxu0
    %11720 = vmatprep.subr.bf16.mxu0 %v7160
    %11721 = vmatpush1.bf16.msra.mxu0 %v7159
    %11722 = vmatprep.subr.bf16.mxu0 %v7164
    %11723 = vmatpush1.bf16.msra.mxu0 %v7163
    %11724 = vmatprep.subr.bf16.mxu0 %v7168
    %11725 = vmatpush1.bf16.msra.mxu0 %v7167
    %11726 = vmatprep.subr.bf16.mxu0 %v7172
    %11727 = vmatpush1.bf16.msra.mxu0 %v7171
    %11728 = vmatprep.subr.bf16.mxu0 %v7176
    %11729 = vmatpush1.bf16.msra.mxu0 %v7175
    %11730 = vmatprep.subr.bf16.mxu0 %v7180
    %11731 = vmatpush1.bf16.msra.mxu0 %v7179
    %11732 = vmatprep.subr.bf16.mxu0 %v7184
    %11733 = vmatpush1.bf16.msra.mxu0 %v7183
    %11734 = vmatprep.subr.bf16.mxu0 %v7188
    %11735 = vmatpush1.bf16.msra.mxu0 %v7187
    %11736 = vmatprep.subr.bf16.mxu0 %v7192
    %11737 = vmatpush1.bf16.msra.mxu0 %v7191
    %11738 = vmatprep.subr.bf16.mxu0 %v7196
    %11739 = vmatpush1.bf16.msra.mxu0 %v7195
    %11740 = vmatprep.subr.bf16.mxu0 %v7200
    %11741 = vmatpush1.bf16.msra.mxu0 %v7199
    %11742 = vmatprep.subr.bf16.mxu0 %v7204
    %11743 = vmatpush1.bf16.msra.mxu0 %v7203
    %11744 = vmatprep.subr.bf16.mxu0 %v7208
    %11745 = vmatpush1.bf16.msra.mxu0 %v7207
    %11746 = vmatprep.subr.bf16.mxu0 %v7212
    %11747 = vmatpush1.bf16.msra.mxu0 %v7211
    %11748 = vmatprep.subr.bf16.mxu0 %v7216
    %11749 = vmatpush1.bf16.msra.mxu0 %v7215
    %11750 = vmatprep.subr.bf16.mxu0 %v7220
    %11751 = vmatpush1.bf16.msra.mxu0 %v7219
    %11752 = vmatprep.mubr.bf16.mxu0 %v170
    %11753 = vmatmul.mubr.bf16.gmra.mrb[0].mxu0 %v169
    %v11754 = vpop.f32.mrb[0].mxu0
    %v11755 = vadd.f32 %v1964, %v11754
    %v11756 = vpop.f32.mrb[0].mxu0
    %v11757 = vadd.f32 %v1968, %v11756
    %v11758 = vpop.f32.mrb[0].mxu0
    %v11759 = vpop.f32.mrb[0].mxu0
    %11760 = vdwg.mxu0
    %11761 = vmatprep.subr.bf16.mxu0 %v7224
    %11762 = vmatpush1.bf16.msra.mxu0 %v7223
    %11763 = vmatprep.subr.bf16.mxu0 %v7228
    %11764 = vmatpush1.bf16.msra.mxu0 %v7227
    %11765 = vmatprep.subr.bf16.mxu0 %v7232
    %11766 = vmatpush1.bf16.msra.mxu0 %v7231
    %11767 = vmatprep.subr.bf16.mxu0 %v7236
    %11768 = vmatpush1.bf16.msra.mxu0 %v7235
    %11769 = vmatprep.subr.bf16.mxu0 %v7240
    %11770 = vmatpush1.bf16.msra.mxu0 %v7239
    %11771 = vmatprep.subr.bf16.mxu0 %v7244
    %11772 = vmatpush1.bf16.msra.mxu0 %v7243
    %11773 = vmatprep.subr.bf16.mxu0 %v7248
    %11774 = vmatpush1.bf16.msra.mxu0 %v7247
    %11775 = vmatprep.subr.bf16.mxu0 %v7252
    %11776 = vmatpush1.bf16.msra.mxu0 %v7251
    %11777 = vmatprep.subr.bf16.mxu0 %v7256
    %11778 = vmatpush1.bf16.msra.mxu0 %v7255
    %11779 = vmatprep.subr.bf16.mxu0 %v7260
    %11780 = vmatpush1.bf16.msra.mxu0 %v7259
    %11781 = vmatprep.subr.bf16.mxu0 %v7264
    %11782 = vmatpush1.bf16.msra.mxu0 %v7263
    %11783 = vmatprep.subr.bf16.mxu0 %v7268
    %11784 = vmatpush1.bf16.msra.mxu0 %v7267
    %11785 = vmatprep.subr.bf16.mxu0 %v7272
    %11786 = vmatpush1.bf16.msra.mxu0 %v7271
    %11787 = vmatprep.subr.bf16.mxu0 %v7276
    %11788 = vmatpush1.bf16.msra.mxu0 %v7275
    %11789 = vmatprep.subr.bf16.mxu0 %v7280
    %11790 = vmatpush1.bf16.msra.mxu0 %v7279
    %11791 = vmatprep.subr.bf16.mxu0 %v7284
    %11792 = vmatpush1.bf16.msra.mxu0 %v7283
    %11793 = vmatprep.mubr.bf16.mxu0 %v172
    %11794 = vmatmul.mubr.bf16.gmra.mrb[0].mxu0 %v171
    %v11795 = vpop.f32.mrb[0].mxu0
    %v11796 = vadd.f32 %v11755, %v11795
    %v11797 = vpop.f32.mrb[0].mxu0
    %v11798 = vadd.f32 %v11757, %v11797
    %v11799 = vpop.f32.mrb[0].mxu0
    %v11800 = vpop.f32.mrb[0].mxu0
    %11801 = vdwg.mxu0
    %11802 = vmatprep.subr.bf16.mxu0 %v7288
    %11803 = vmatpush1.bf16.msra.mxu0 %v7287
    %11804 = vmatprep.subr.bf16.mxu0 %v7292
    %11805 = vmatpush1.bf16.msra.mxu0 %v7291
    %11806 = vmatprep.subr.bf16.mxu0 %v7296
    %11807 = vmatpush1.bf16.msra.mxu0 %v7295
    %11808 = vmatprep.subr.bf16.mxu0 %v7300
    %11809 = vmatpush1.bf16.msra.mxu0 %v7299
    %11810 = vmatprep.subr.bf16.mxu0 %v7304
    %11811 = vmatpush1.bf16.msra.mxu0 %v7303
    %11812 = vmatprep.subr.bf16.mxu0 %v7308
    %11813 = vmatpush1.bf16.msra.mxu0 %v7307
    %11814 = vmatprep.subr.bf16.mxu0 %v7312
    %11815 = vmatpush1.bf16.msra.mxu0 %v7311
    %11816 = vmatprep.subr.bf16.mxu0 %v7316
    %11817 = vmatpush1.bf16.msra.mxu0 %v7315
    %11818 = vmatprep.subr.bf16.mxu0 %v7320
    %11819 = vmatpush1.bf16.msra.mxu0 %v7319
    %11820 = vmatprep.subr.bf16.mxu0 %v7324
    %11821 = vmatpush1.bf16.msra.mxu0 %v7323
    %11822 = vmatprep.subr.bf16.mxu0 %v7328
    %11823 = vmatpush1.bf16.msra.mxu0 %v7327
    %11824 = vmatprep.subr.bf16.mxu0 %v7332
    %11825 = vmatpush1.bf16.msra.mxu0 %v7331
    %11826 = vmatprep.subr.bf16.mxu0 %v7336
    %11827 = vmatpush1.bf16.msra.mxu0 %v7335
    %11828 = vmatprep.subr.bf16.mxu0 %v7340
    %11829 = vmatpush1.bf16.msra.mxu0 %v7339
    %11830 = vmatprep.subr.bf16.mxu0 %v7344
    %11831 = vmatpush1.bf16.msra.mxu0 %v7343
    %11832 = vmatprep.subr.bf16.mxu0 %v7348
    %11833 = vmatpush1.bf16.msra.mxu0 %v7347
    %11834 = vmatprep.mubr.bf16.mxu0 %v174
    %11835 = vmatmul.mubr.bf16.gmra.mrb[0].mxu0 %v173
    %v11836 = vpop.f32.mrb[0].mxu0
    %v11837 = vadd.f32 %v11796, %v11836
    %v11838 = vpop.f32.mrb[0].mxu0
    %v11839 = vadd.f32 %v11798, %v11838
    %v11840 = vpop.f32.mrb[0].mxu0
    %v11841 = vpop.f32.mrb[0].mxu0
    %11842 = vdwg.mxu0
    %11843 = vmatprep.subr.bf16.mxu0 %v7352
    %11844 = vmatpush1.bf16.msra.mxu0 %v7351
    %11845 = vmatprep.subr.bf16.mxu0 %v7356
    %11846 = vmatpush1.bf16.msra.mxu0 %v7355
    %11847 = vmatprep.subr.bf16.mxu0 %v7360
    %11848 = vmatpush1.bf16.msra.mxu0 %v7359
    %11849 = vmatprep.subr.bf16.mxu0 %v7364
    %11850 = vmatpush1.bf16.msra.mxu0 %v7363
    %11851 = vmatprep.subr.bf16.mxu0 %v7368
    %11852 = vmatpush1.bf16.msra.mxu0 %v7367
    %11853 = vmatprep.subr.bf16.mxu0 %v7372
    %11854 = vmatpush1.bf16.msra.mxu0 %v7371
    %11855 = vmatprep.subr.bf16.mxu0 %v7376
    %11856 = vmatpush1.bf16.msra.mxu0 %v7375
    %11857 = vmatprep.subr.bf16.mxu0 %v7380
    %11858 = vmatpush1.bf16.msra.mxu0 %v7379
    %11859 = vmatprep.subr.bf16.mxu0 %v7384
    %11860 = vmatpush1.bf16.msra.mxu0 %v7383
    %11861 = vmatprep.subr.bf16.mxu0 %v7388
    %11862 = vmatpush1.bf16.msra.mxu0 %v7387
    %11863 = vmatprep.subr.bf16.mxu0 %v7392
    %11864 = vmatpush1.bf16.msra.mxu0 %v7391
    %11865 = vmatprep.subr.bf16.mxu0 %v7396
    %11866 = vmatpush1.bf16.msra.mxu0 %v7395
    %11867 = vmatprep.subr.bf16.mxu0 %v7400
    %11868 = vmatpush1.bf16.msra.mxu0 %v7399
    %11869 = vmatprep.subr.bf16.mxu0 %v7404
    %11870 = vmatpush1.bf16.msra.mxu0 %v7403
    %11871 = vmatprep.subr.bf16.mxu0 %v7408
    %11872 = vmatpush1.bf16.msra.mxu0 %v7407
    %11873 = vmatprep.subr.bf16.mxu0 %v7412
    %11874 = vmatpush1.bf16.msra.mxu0 %v7411
    %11875 = vmatprep.mubr.bf16.mxu0 %v176
    %11876 = vmatmul.mubr.bf16.gmra.mrb[0].mxu0 %v175
    %v11877 = vpop.f32.mrb[0].mxu0
    %v11878 = vadd.f32 %v11837, %v11877
    %v11879 = vpop.f32.mrb[0].mxu0
    %v11880 = vadd.f32 %v11839, %v11879
    %v11881 = vpop.f32.mrb[0].mxu0
    %v11882 = vpop.f32.mrb[0].mxu0
    %11883 = vdwg.mxu0
    %11884 = vmatprep.subr.bf16.mxu0 %v7416
    %11885 = vmatpush1.bf16.msra.mxu0 %v7415
    %11886 = vmatprep.subr.bf16.mxu0 %v7420
    %11887 = vmatpush1.bf16.msra.mxu0 %v7419
    %11888 = vmatprep.subr.bf16.mxu0 %v7424
    %11889 = vmatpush1.bf16.msra.mxu0 %v7423
    %11890 = vmatprep.subr.bf16.mxu0 %v7428
    %11891 = vmatpush1.bf16.msra.mxu0 %v7427
    %11892 = vmatprep.subr.bf16.mxu0 %v7432
    %11893 = vmatpush1.bf16.msra.mxu0 %v7431
    %11894 = vmatprep.subr.bf16.mxu0 %v7436
    %11895 = vmatpush1.bf16.msra.mxu0 %v7435
    %11896 = vmatprep.subr.bf16.mxu0 %v7440
    %11897 = vmatpush1.bf16.msra.mxu0 %v7439
    %11898 = vmatprep.subr.bf16.mxu0 %v7444
    %11899 = vmatpush1.bf16.msra.mxu0 %v7443
    %11900 = vmatprep.subr.bf16.mxu0 %v7448
    %11901 = vmatpush1.bf16.msra.mxu0 %v7447
    %11902 = vmatprep.subr.bf16.mxu0 %v7452
    %11903 = vmatpush1.bf16.msra.mxu0 %v7451
    %11904 = vmatprep.subr.bf16.mxu0 %v7456
    %11905 = vmatpush1.bf16.msra.mxu0 %v7455
    %11906 = vmatprep.subr.bf16.mxu0 %v7460
    %11907 = vmatpush1.bf16.msra.mxu0 %v7459
    %11908 = vmatprep.subr.bf16.mxu0 %v7464
    %11909 = vmatpush1.bf16.msra.mxu0 %v7463
    %11910 = vmatprep.subr.bf16.mxu0 %v7468
    %11911 = vmatpush1.bf16.msra.mxu0 %v7467
    %11912 = vmatprep.subr.bf16.mxu0 %v7472
    %11913 = vmatpush1.bf16.msra.mxu0 %v7471
    %11914 = vmatprep.subr.bf16.mxu0 %v7476
    %11915 = vmatpush1.bf16.msra.mxu0 %v7475
    %11916 = vmatprep.mubr.bf16.mxu0 %v178
    %11917 = vmatmul.mubr.bf16.gmra.mrb[0].mxu0 %v177
    %v11918 = vpop.f32.mrb[0].mxu0
    %v11919 = vadd.f32 %v11878, %v11918
    %v11920 = vpop.f32.mrb[0].mxu0
    %v11921 = vadd.f32 %v11880, %v11920
    %v11922 = vpop.f32.mrb[0].mxu0
    %v11923 = vpop.f32.mrb[0].mxu0
    %11924 = vdwg.mxu0
    %11925 = vmatprep.subr.bf16.mxu0 %v7480
    %11926 = vmatpush1.bf16.msra.mxu0 %v7479
    %11927 = vmatprep.subr.bf16.mxu0 %v7484
    %11928 = vmatpush1.bf16.msra.mxu0 %v7483
    %11929 = vmatprep.subr.bf16.mxu0 %v7488
    %11930 = vmatpush1.bf16.msra.mxu0 %v7487
    %11931 = vmatprep.subr.bf16.mxu0 %v7492
    %11932 = vmatpush1.bf16.msra.mxu0 %v7491
    %11933 = vmatprep.subr.bf16.mxu0 %v7496
    %11934 = vmatpush1.bf16.msra.mxu0 %v7495
    %11935 = vmatprep.subr.bf16.mxu0 %v7500
    %11936 = vmatpush1.bf16.msra.mxu0 %v7499
    %11937 = vmatprep.subr.bf16.mxu0 %v7504
    %11938 = vmatpush1.bf16.msra.mxu0 %v7503
    %11939 = vmatprep.subr.bf16.mxu0 %v7508
    %11940 = vmatpush1.bf16.msra.mxu0 %v7507
    %11941 = vmatprep.subr.bf16.mxu0 %v7512
    %11942 = vmatpush1.bf16.msra.mxu0 %v7511
    %11943 = vmatprep.subr.bf16.mxu0 %v7516
    %11944 = vmatpush1.bf16.msra.mxu0 %v7515
    %11945 = vmatprep.subr.bf16.mxu0 %v7520
    %11946 = vmatpush1.bf16.msra.mxu0 %v7519
    %11947 = vmatprep.subr.bf16.mxu0 %v7524
    %11948 = vmatpush1.bf16.msra.mxu0 %v7523
    %11949 = vmatprep.subr.bf16.mxu0 %v7528
    %11950 = vmatpush1.bf16.msra.mxu0 %v7527
    %11951 = vmatprep.subr.bf16.mxu0 %v7532
    %11952 = vmatpush1.bf16.msra.mxu0 %v7531
    %11953 = vmatprep.subr.bf16.mxu0 %v7536
    %11954 = vmatpush1.bf16.msra.mxu0 %v7535
    %11955 = vmatprep.subr.bf16.mxu0 %v7540
    %11956 = vmatpush1.bf16.msra.mxu0 %v7539
    %11957 = vmatprep.mubr.bf16.mxu0 %v180
    %11958 = vmatmul.mubr.bf16.gmra.mrb[0].mxu0 %v179
    %v11959 = vpop.f32.mrb[0].mxu0
    %v11960 = vadd.f32 %v11919, %v11959
    %v11961 = vpop.f32.mrb[0].mxu0
    %v11962 = vadd.f32 %v11921, %v11961
    %v11963 = vpop.f32.mrb[0].mxu0
    %v11964 = vpop.f32.mrb[0].mxu0
    %11965 = vdwg.mxu0
    %11966 = vmatprep.subr.bf16.mxu0 %v7544
    %11967 = vmatpush1.bf16.msra.mxu0 %v7543
    %11968 = vmatprep.subr.bf16.mxu0 %v7548
    %11969 = vmatpush1.bf16.msra.mxu0 %v7547
    %11970 = vmatprep.subr.bf16.mxu0 %v7552
    %11971 = vmatpush1.bf16.msra.mxu0 %v7551
    %11972 = vmatprep.subr.bf16.mxu0 %v7556
    %11973 = vmatpush1.bf16.msra.mxu0 %v7555
    %11974 = vmatprep.subr.bf16.mxu0 %v7560
    %11975 = vmatpush1.bf16.msra.mxu0 %v7559
    %11976 = vmatprep.subr.bf16.mxu0 %v7564
    %11977 = vmatpush1.bf16.msra.mxu0 %v7563
    %11978 = vmatprep.subr.bf16.mxu0 %v7568
    %11979 = vmatpush1.bf16.msra.mxu0 %v7567
    %11980 = vmatprep.subr.bf16.mxu0 %v7572
    %11981 = vmatpush1.bf16.msra.mxu0 %v7571
    %11982 = vmatprep.subr.bf16.mxu0 %v7576
    %11983 = vmatpush1.bf16.msra.mxu0 %v7575
    %11984 = vmatprep.subr.bf16.mxu0 %v7580
    %11985 = vmatpush1.bf16.msra.mxu0 %v7579
    %11986 = vmatprep.subr.bf16.mxu0 %v7584
    %11987 = vmatpush1.bf16.msra.mxu0 %v7583
    %11988 = vmatprep.subr.bf16.mxu0 %v7588
    %11989 = vmatpush1.bf16.msra.mxu0 %v7587
    %11990 = vmatprep.subr.bf16.mxu0 %v7592
    %11991 = vmatpush1.bf16.msra.mxu0 %v7591
    %11992 = vmatprep.subr.bf16.mxu0 %v7596
    %11993 = vmatpush1.bf16.msra.mxu0 %v7595
    %11994 = vmatprep.subr.bf16.mxu0 %v7600
    %11995 = vmatpush1.bf16.msra.mxu0 %v7599
    %11996 = vmatprep.subr.bf16.mxu0 %v7604
    %11997 = vmatpush1.bf16.msra.mxu0 %v7603
    %11998 = vmatprep.mubr.bf16.mxu0 %v182
    %11999 = vmatmul.mubr.bf16.gmra.mrb[0].mxu0 %v181
    %v12000 = vpop.f32.mrb[0].mxu0
    %v12001 = vadd.f32 %v11960, %v12000
    %v12002 = vpop.f32.mrb[0].mxu0
    %v12003 = vadd.f32 %v11962, %v12002
    %v12004 = vpop.f32.mrb[0].mxu0
    %v12005 = vpop.f32.mrb[0].mxu0
    %12006 = vdwg.mxu0
    %12007 = vmatprep.subr.bf16.mxu0 %v7608
    %12008 = vmatpush1.bf16.msra.mxu0 %v7607
    %12009 = vmatprep.subr.bf16.mxu0 %v7612
    %12010 = vmatpush1.bf16.msra.mxu0 %v7611
    %12011 = vmatprep.subr.bf16.mxu0 %v7616
    %12012 = vmatpush1.bf16.msra.mxu0 %v7615
    %12013 = vmatprep.subr.bf16.mxu0 %v7620
    %12014 = vmatpush1.bf16.msra.mxu0 %v7619
    %12015 = vmatprep.subr.bf16.mxu0 %v7624
    %12016 = vmatpush1.bf16.msra.mxu0 %v7623
    %12017 = vmatprep.subr.bf16.mxu0 %v7628
    %12018 = vmatpush1.bf16.msra.mxu0 %v7627
    %12019 = vmatprep.subr.bf16.mxu0 %v7632
    %12020 = vmatpush1.bf16.msra.mxu0 %v7631
    %12021 = vmatprep.subr.bf16.mxu0 %v7636
    %12022 = vmatpush1.bf16.msra.mxu0 %v7635
    %12023 = vmatprep.subr.bf16.mxu0 %v7640
    %12024 = vmatpush1.bf16.msra.mxu0 %v7639
    %12025 = vmatprep.subr.bf16.mxu0 %v7644
    %12026 = vmatpush1.bf16.msra.mxu0 %v7643
    %12027 = vmatprep.subr.bf16.mxu0 %v7648
    %12028 = vmatpush1.bf16.msra.mxu0 %v7647
    %12029 = vmatprep.subr.bf16.mxu0 %v7652
    %12030 = vmatpush1.bf16.msra.mxu0 %v7651
    %12031 = vmatprep.subr.bf16.mxu0 %v7656
    %12032 = vmatpush1.bf16.msra.mxu0 %v7655
    %12033 = vmatprep.subr.bf16.mxu0 %v7660
    %12034 = vmatpush1.bf16.msra.mxu0 %v7659
    %12035 = vmatprep.subr.bf16.mxu0 %v7664
    %12036 = vmatpush1.bf16.msra.mxu0 %v7663
    %12037 = vmatprep.subr.bf16.mxu0 %v7668
    %12038 = vmatpush1.bf16.msra.mxu0 %v7667
    %12039 = vmatprep.mubr.bf16.mxu0 %v184
    %12040 = vmatmul.mubr.bf16.gmra.mrb[0].mxu0 %v183
    %v12041 = vpop.f32.mrb[0].mxu0
    %v12042 = vadd.f32 %v12001, %v12041
    %v12043 = vpop.f32.mrb[0].mxu0
    %v12044 = vadd.f32 %v12003, %v12043
    %v12045 = vpop.f32.mrb[0].mxu0
    %v12046 = vpop.f32.mrb[0].mxu0
    %12047 = vdwg.mxu0
    %12048 = vmatprep.subr.bf16.mxu0 %v7672
    %12049 = vmatpush1.bf16.msra.mxu0 %v7671
    %12050 = vmatprep.subr.bf16.mxu0 %v7676
    %12051 = vmatpush1.bf16.msra.mxu0 %v7675
    %12052 = vmatprep.subr.bf16.mxu0 %v7680
    %12053 = vmatpush1.bf16.msra.mxu0 %v7679
    %12054 = vmatprep.subr.bf16.mxu0 %v7684
    %12055 = vmatpush1.bf16.msra.mxu0 %v7683
    %12056 = vmatprep.subr.bf16.mxu0 %v7688
    %12057 = vmatpush1.bf16.msra.mxu0 %v7687
    %12058 = vmatprep.subr.bf16.mxu0 %v7692
    %12059 = vmatpush1.bf16.msra.mxu0 %v7691
    %12060 = vmatprep.subr.bf16.mxu0 %v7696
    %12061 = vmatpush1.bf16.msra.mxu0 %v7695
    %12062 = vmatprep.subr.bf16.mxu0 %v7700
    %12063 = vmatpush1.bf16.msra.mxu0 %v7699
    %12064 = vmatprep.subr.bf16.mxu0 %v7704
    %12065 = vmatpush1.bf16.msra.mxu0 %v7703
    %12066 = vmatprep.subr.bf16.mxu0 %v7708
    %12067 = vmatpush1.bf16.msra.mxu0 %v7707
    %12068 = vmatprep.subr.bf16.mxu0 %v7712
    %12069 = vmatpush1.bf16.msra.mxu0 %v7711
    %12070 = vmatprep.subr.bf16.mxu0 %v7716
    %12071 = vmatpush1.bf16.msra.mxu0 %v7715
    %12072 = vmatprep.subr.bf16.mxu0 %v7720
    %12073 = vmatpush1.bf16.msra.mxu0 %v7719
    %12074 = vmatprep.subr.bf16.mxu0 %v7724
    %12075 = vmatpush1.bf16.msra.mxu0 %v7723
    %12076 = vmatprep.subr.bf16.mxu0 %v7728
    %12077 = vmatpush1.bf16.msra.mxu0 %v7727
    %12078 = vmatprep.subr.bf16.mxu0 %v7732
    %12079 = vmatpush1.bf16.msra.mxu0 %v7731
    %12080 = vmatprep.mubr.bf16.mxu0 %v186
    %12081 = vmatmul.mubr.bf16.gmra.mrb[0].mxu0 %v185
    %v12082 = vpop.f32.mrb[0].mxu0
    %v12083 = vadd.f32 %v12042, %v12082
    %v12084 = vpop.f32.mrb[0].mxu0
    %v12085 = vadd.f32 %v12044, %v12084
    %v12086 = vpop.f32.mrb[0].mxu0
    %v12087 = vpop.f32.mrb[0].mxu0
    %12088 = vdwg.mxu0
    %12089 = vmatprep.subr.bf16.mxu0 %v7736
    %12090 = vmatpush1.bf16.msra.mxu0 %v7735
    %12091 = vmatprep.subr.bf16.mxu0 %v7740
    %12092 = vmatpush1.bf16.msra.mxu0 %v7739
    %12093 = vmatprep.subr.bf16.mxu0 %v7744
    %12094 = vmatpush1.bf16.msra.mxu0 %v7743
    %12095 = vmatprep.subr.bf16.mxu0 %v7748
    %12096 = vmatpush1.bf16.msra.mxu0 %v7747
    %12097 = vmatprep.subr.bf16.mxu0 %v7752
    %12098 = vmatpush1.bf16.msra.mxu0 %v7751
    %12099 = vmatprep.subr.bf16.mxu0 %v7756
    %12100 = vmatpush1.bf16.msra.mxu0 %v7755
    %12101 = vmatprep.subr.bf16.mxu0 %v7760
    %12102 = vmatpush1.bf16.msra.mxu0 %v7759
    %12103 = vmatprep.subr.bf16.mxu0 %v7764
    %12104 = vmatpush1.bf16.msra.mxu0 %v7763
    %12105 = vmatprep.subr.bf16.mxu0 %v7768
    %12106 = vmatpush1.bf16.msra.mxu0 %v7767
    %12107 = vmatprep.subr.bf16.mxu0 %v7772
    %12108 = vmatpush1.bf16.msra.mxu0 %v7771
    %12109 = vmatprep.subr.bf16.mxu0 %v7776
    %12110 = vmatpush1.bf16.msra.mxu0 %v7775
    %12111 = vmatprep.subr.bf16.mxu0 %v7780
    %12112 = vmatpush1.bf16.msra.mxu0 %v7779
    %12113 = vmatprep.subr.bf16.mxu0 %v7784
    %12114 = vmatpush1.bf16.msra.mxu0 %v7783
    %12115 = vmatprep.subr.bf16.mxu0 %v7788
    %12116 = vmatpush1.bf16.msra.mxu0 %v7787
    %12117 = vmatprep.subr.bf16.mxu0 %v7792
    %12118 = vmatpush1.bf16.msra.mxu0 %v7791
    %12119 = vmatprep.subr.bf16.mxu0 %v7796
    %12120 = vmatpush1.bf16.msra.mxu0 %v7795
    %12121 = vmatprep.mubr.bf16.mxu0 %v188
    %12122 = vmatmul.mubr.bf16.gmra.mrb[0].mxu0 %v187
    %v12123 = vpop.f32.mrb[0].mxu0
    %v12124 = vadd.f32 %v12083, %v12123
    %v12125 = vpop.f32.mrb[0].mxu0
    %v12126 = vadd.f32 %v12085, %v12125
    %v12127 = vpop.f32.mrb[0].mxu0
    %v12128 = vpop.f32.mrb[0].mxu0
    %12129 = vdwg.mxu0
    %12130 = vmatprep.subr.bf16.mxu0 %v7800
    %12131 = vmatpush1.bf16.msra.mxu0 %v7799
    %12132 = vmatprep.subr.bf16.mxu0 %v7804
    %12133 = vmatpush1.bf16.msra.mxu0 %v7803
    %12134 = vmatprep.subr.bf16.mxu0 %v7808
    %12135 = vmatpush1.bf16.msra.mxu0 %v7807
    %12136 = vmatprep.subr.bf16.mxu0 %v7812
    %12137 = vmatpush1.bf16.msra.mxu0 %v7811
    %12138 = vmatprep.subr.bf16.mxu0 %v7816
    %12139 = vmatpush1.bf16.msra.mxu0 %v7815
    %12140 = vmatprep.subr.bf16.mxu0 %v7820
    %12141 = vmatpush1.bf16.msra.mxu0 %v7819
    %12142 = vmatprep.subr.bf16.mxu0 %v7824
    %12143 = vmatpush1.bf16.msra.mxu0 %v7823
    %12144 = vmatprep.subr.bf16.mxu0 %v7828
    %12145 = vmatpush1.bf16.msra.mxu0 %v7827
    %12146 = vmatprep.subr.bf16.mxu0 %v7832
    %12147 = vmatpush1.bf16.msra.mxu0 %v7831
    %12148 = vmatprep.subr.bf16.mxu0 %v7836
    %12149 = vmatpush1.bf16.msra.mxu0 %v7835
    %12150 = vmatprep.subr.bf16.mxu0 %v7840
    %12151 = vmatpush1.bf16.msra.mxu0 %v7839
    %12152 = vmatprep.subr.bf16.mxu0 %v7844
    %12153 = vmatpush1.bf16.msra.mxu0 %v7843
    %12154 = vmatprep.subr.bf16.mxu0 %v7848
    %12155 = vmatpush1.bf16.msra.mxu0 %v7847
    %12156 = vmatprep.subr.bf16.mxu0 %v7852
    %12157 = vmatpush1.bf16.msra.mxu0 %v7851
    %12158 = vmatprep.subr.bf16.mxu0 %v7856
    %12159 = vmatpush1.bf16.msra.mxu0 %v7855
    %12160 = vmatprep.subr.bf16.mxu0 %v7860
    %12161 = vmatpush1.bf16.msra.mxu0 %v7859
    %12162 = vmatprep.mubr.bf16.mxu0 %v190
    %12163 = vmatmul.mubr.bf16.gmra.mrb[0].mxu0 %v189
    %v12164 = vpop.f32.mrb[0].mxu0
    %v12165 = vadd.f32 %v12124, %v12164
    %v12166 = vpop.f32.mrb[0].mxu0
    %v12167 = vadd.f32 %v12126, %v12166
    %v12168 = vpop.f32.mrb[0].mxu0
    %v12169 = vpop.f32.mrb[0].mxu0
    %12170 = vdwg.mxu0
    %12171 = vmatprep.subr.bf16.mxu0 %v7864
    %12172 = vmatpush1.bf16.msra.mxu0 %v7863
    %12173 = vmatprep.subr.bf16.mxu0 %v7868
    %12174 = vmatpush1.bf16.msra.mxu0 %v7867
    %12175 = vmatprep.subr.bf16.mxu0 %v7872
    %12176 = vmatpush1.bf16.msra.mxu0 %v7871
    %12177 = vmatprep.subr.bf16.mxu0 %v7876
    %12178 = vmatpush1.bf16.msra.mxu0 %v7875
    %12179 = vmatprep.subr.bf16.mxu0 %v7880
    %12180 = vmatpush1.bf16.msra.mxu0 %v7879
    %12181 = vmatprep.subr.bf16.mxu0 %v7884
    %12182 = vmatpush1.bf16.msra.mxu0 %v7883
    %12183 = vmatprep.subr.bf16.mxu0 %v7888
    %12184 = vmatpush1.bf16.msra.mxu0 %v7887
    %12185 = vmatprep.subr.bf16.mxu0 %v7892
    %12186 = vmatpush1.bf16.msra.mxu0 %v7891
    %12187 = vmatprep.subr.bf16.mxu0 %v7896
    %12188 = vmatpush1.bf16.msra.mxu0 %v7895
    %12189 = vmatprep.subr.bf16.mxu0 %v7900
    %12190 = vmatpush1.bf16.msra.mxu0 %v7899
    %12191 = vmatprep.subr.bf16.mxu0 %v7904
    %12192 = vmatpush1.bf16.msra.mxu0 %v7903
    %12193 = vmatprep.subr.bf16.mxu0 %v7908
    %12194 = vmatpush1.bf16.msra.mxu0 %v7907
    %12195 = vmatprep.subr.bf16.mxu0 %v7912
    %12196 = vmatpush1.bf16.msra.mxu0 %v7911
    %12197 = vmatprep.subr.bf16.mxu0 %v7916
    %12198 = vmatpush1.bf16.msra.mxu0 %v7915
    %12199 = vmatprep.subr.bf16.mxu0 %v7920
    %12200 = vmatpush1.bf16.msra.mxu0 %v7919
    %12201 = vmatprep.subr.bf16.mxu0 %v7924
    %12202 = vmatpush1.bf16.msra.mxu0 %v7923
    %12203 = vmatprep.mubr.bf16.mxu0 %v192
    %12204 = vmatmul.mubr.bf16.gmra.mrb[0].mxu0 %v191
    %v12205 = vpop.f32.mrb[0].mxu0
    %v12206 = vadd.f32 %v12165, %v12205
    %v12207 = vpop.f32.mrb[0].mxu0
    %v12208 = vadd.f32 %v12167, %v12207
    %v12209 = vpop.f32.mrb[0].mxu0
    %v12210 = vpop.f32.mrb[0].mxu0
    %12211 = vdwg.mxu0
    %12212 = vmatprep.subr.bf16.mxu0 %v7928
    %12213 = vmatpush1.bf16.msra.mxu0 %v7927
    %12214 = vmatprep.subr.bf16.mxu0 %v7932
    %12215 = vmatpush1.bf16.msra.mxu0 %v7931
    %12216 = vmatprep.subr.bf16.mxu0 %v7936
    %12217 = vmatpush1.bf16.msra.mxu0 %v7935
    %12218 = vmatprep.subr.bf16.mxu0 %v7940
    %12219 = vmatpush1.bf16.msra.mxu0 %v7939
    %12220 = vmatprep.subr.bf16.mxu0 %v7944
    %12221 = vmatpush1.bf16.msra.mxu0 %v7943
    %12222 = vmatprep.subr.bf16.mxu0 %v7948
    %12223 = vmatpush1.bf16.msra.mxu0 %v7947
    %12224 = vmatprep.subr.bf16.mxu0 %v7952
    %12225 = vmatpush1.bf16.msra.mxu0 %v7951
    %12226 = vmatprep.subr.bf16.mxu0 %v7956
    %12227 = vmatpush1.bf16.msra.mxu0 %v7955
    %12228 = vmatprep.subr.bf16.mxu0 %v7960
    %12229 = vmatpush1.bf16.msra.mxu0 %v7959
    %12230 = vmatprep.subr.bf16.mxu0 %v7964
    %12231 = vmatpush1.bf16.msra.mxu0 %v7963
    %12232 = vmatprep.subr.bf16.mxu0 %v7968
    %12233 = vmatpush1.bf16.msra.mxu0 %v7967
    %12234 = vmatprep.subr.bf16.mxu0 %v7972
    %12235 = vmatpush1.bf16.msra.mxu0 %v7971
    %12236 = vmatprep.subr.bf16.mxu0 %v7976
    %12237 = vmatpush1.bf16.msra.mxu0 %v7975
    %12238 = vmatprep.subr.bf16.mxu0 %v7980
    %12239 = vmatpush1.bf16.msra.mxu0 %v7979
    %12240 = vmatprep.subr.bf16.mxu0 %v7984
    %12241 = vmatpush1.bf16.msra.mxu0 %v7983
    %12242 = vmatprep.subr.bf16.mxu0 %v7988
    %12243 = vmatpush1.bf16.msra.mxu0 %v7987
    %12244 = vmatprep.mubr.bf16.mxu0 %v194
    %12245 = vmatmul.mubr.bf16.gmra.mrb[0].mxu0 %v193
    %v12246 = vpop.f32.mrb[0].mxu0
    %v12247 = vadd.f32 %v12206, %v12246
    %v12248 = vpop.f32.mrb[0].mxu0
    %v12249 = vadd.f32 %v12208, %v12248
    %v12250 = vpop.f32.mrb[0].mxu0
    %v12251 = vpop.f32.mrb[0].mxu0
    %12252 = vdwg.mxu0
    %12253 = vmatprep.subr.bf16.mxu0 %v7992
    %12254 = vmatpush1.bf16.msra.mxu0 %v7991
    %12255 = vmatprep.subr.bf16.mxu0 %v7996
    %12256 = vmatpush1.bf16.msra.mxu0 %v7995
    %12257 = vmatprep.subr.bf16.mxu0 %v8000
    %12258 = vmatpush1.bf16.msra.mxu0 %v7999
    %12259 = vmatprep.subr.bf16.mxu0 %v8004
    %12260 = vmatpush1.bf16.msra.mxu0 %v8003
    %12261 = vmatprep.subr.bf16.mxu0 %v8008
    %12262 = vmatpush1.bf16.msra.mxu0 %v8007
    %12263 = vmatprep.subr.bf16.mxu0 %v8012
    %12264 = vmatpush1.bf16.msra.mxu0 %v8011
    %12265 = vmatprep.subr.bf16.mxu0 %v8016
    %12266 = vmatpush1.bf16.msra.mxu0 %v8015
    %12267 = vmatprep.subr.bf16.mxu0 %v8020
    %12268 = vmatpush1.bf16.msra.mxu0 %v8019
    %12269 = vmatprep.subr.bf16.mxu0 %v8024
    %12270 = vmatpush1.bf16.msra.mxu0 %v8023
    %12271 = vmatprep.subr.bf16.mxu0 %v8028
    %12272 = vmatpush1.bf16.msra.mxu0 %v8027
    %12273 = vmatprep.subr.bf16.mxu0 %v8032
    %12274 = vmatpush1.bf16.msra.mxu0 %v8031
    %12275 = vmatprep.subr.bf16.mxu0 %v8036
    %12276 = vmatpush1.bf16.msra.mxu0 %v8035
    %12277 = vmatprep.subr.bf16.mxu0 %v8040
    %12278 = vmatpush1.bf16.msra.mxu0 %v8039
    %12279 = vmatprep.subr.bf16.mxu0 %v8044
    %12280 = vmatpush1.bf16.msra.mxu0 %v8043
    %12281 = vmatprep.subr.bf16.mxu0 %v8048
    %12282 = vmatpush1.bf16.msra.mxu0 %v8047
    %12283 = vmatprep.subr.bf16.mxu0 %v8052
    %12284 = vmatpush1.bf16.msra.mxu0 %v8051
    %12285 = vmatprep.mubr.bf16.mxu0 %v196
    %12286 = vmatmul.mubr.bf16.gmra.mrb[0].mxu0 %v195
    %v12287 = vpop.f32.mrb[0].mxu0
    %v12288 = vadd.f32 %v12247, %v12287
    %v12289 = vpop.f32.mrb[0].mxu0
    %v12290 = vadd.f32 %v12249, %v12289
    %v12291 = vpop.f32.mrb[0].mxu0
    %v12292 = vpop.f32.mrb[0].mxu0
    %12293 = vdwg.mxu0
    %12294 = vmatprep.subr.bf16.mxu0 %v8056
    %12295 = vmatpush1.bf16.msra.mxu0 %v8055
    %12296 = vmatprep.subr.bf16.mxu0 %v8060
    %12297 = vmatpush1.bf16.msra.mxu0 %v8059
    %12298 = vmatprep.subr.bf16.mxu0 %v8064
    %12299 = vmatpush1.bf16.msra.mxu0 %v8063
    %12300 = vmatprep.subr.bf16.mxu0 %v8068
    %12301 = vmatpush1.bf16.msra.mxu0 %v8067
    %12302 = vmatprep.subr.bf16.mxu0 %v8072
    %12303 = vmatpush1.bf16.msra.mxu0 %v8071
    %12304 = vmatprep.subr.bf16.mxu0 %v8076
    %12305 = vmatpush1.bf16.msra.mxu0 %v8075
    %12306 = vmatprep.subr.bf16.mxu0 %v8080
    %12307 = vmatpush1.bf16.msra.mxu0 %v8079
    %12308 = vmatprep.subr.bf16.mxu0 %v8084
    %12309 = vmatpush1.bf16.msra.mxu0 %v8083
    %12310 = vmatprep.subr.bf16.mxu0 %v8088
    %12311 = vmatpush1.bf16.msra.mxu0 %v8087
    %12312 = vmatprep.subr.bf16.mxu0 %v8092
    %12313 = vmatpush1.bf16.msra.mxu0 %v8091
    %12314 = vmatprep.subr.bf16.mxu0 %v8096
    %12315 = vmatpush1.bf16.msra.mxu0 %v8095
    %12316 = vmatprep.subr.bf16.mxu0 %v8100
    %12317 = vmatpush1.bf16.msra.mxu0 %v8099
    %12318 = vmatprep.subr.bf16.mxu0 %v8104
    %12319 = vmatpush1.bf16.msra.mxu0 %v8103
    %12320 = vmatprep.subr.bf16.mxu0 %v8108
    %12321 = vmatpush1.bf16.msra.mxu0 %v8107
    %12322 = vmatprep.subr.bf16.mxu0 %v8112
    %12323 = vmatpush1.bf16.msra.mxu0 %v8111
    %12324 = vmatprep.subr.bf16.mxu0 %v8116
    %12325 = vmatpush1.bf16.msra.mxu0 %v8115
    %12326 = vmatprep.mubr.bf16.mxu0 %v198
    %12327 = vmatmul.mubr.bf16.gmra.mrb[0].mxu0 %v197
    %v12328 = vpop.f32.mrb[0].mxu0
    %v12329 = vadd.f32 %v12288, %v12328
    %v12330 = vpop.f32.mrb[0].mxu0
    %v12331 = vadd.f32 %v12290, %v12330
    %v12332 = vpop.f32.mrb[0].mxu0
    %v12333 = vpop.f32.mrb[0].mxu0
    %12334 = vdwg.mxu0
    %12335 = vmatprep.subr.bf16.mxu0 %v8120
    %12336 = vmatpush1.bf16.msra.mxu0 %v8119
    %12337 = vmatprep.subr.bf16.mxu0 %v8124
    %12338 = vmatpush1.bf16.msra.mxu0 %v8123
    %12339 = vmatprep.subr.bf16.mxu0 %v8128
    %12340 = vmatpush1.bf16.msra.mxu0 %v8127
    %12341 = vmatprep.subr.bf16.mxu0 %v8132
    %12342 = vmatpush1.bf16.msra.mxu0 %v8131
    %12343 = vmatprep.subr.bf16.mxu0 %v8136
    %12344 = vmatpush1.bf16.msra.mxu0 %v8135
    %12345 = vmatprep.subr.bf16.mxu0 %v8140
    %12346 = vmatpush1.bf16.msra.mxu0 %v8139
    %12347 = vmatprep.subr.bf16.mxu0 %v8144
    %12348 = vmatpush1.bf16.msra.mxu0 %v8143
    %12349 = vmatprep.subr.bf16.mxu0 %v8148
    %12350 = vmatpush1.bf16.msra.mxu0 %v8147
    %12351 = vmatprep.subr.bf16.mxu0 %v8152
    %12352 = vmatpush1.bf16.msra.mxu0 %v8151
    %12353 = vmatprep.subr.bf16.mxu0 %v8156
    %12354 = vmatpush1.bf16.msra.mxu0 %v8155
    %12355 = vmatprep.subr.bf16.mxu0 %v8160
    %12356 = vmatpush1.bf16.msra.mxu0 %v8159
    %12357 = vmatprep.subr.bf16.mxu0 %v8164
    %12358 = vmatpush1.bf16.msra.mxu0 %v8163
    %12359 = vmatprep.subr.bf16.mxu0 %v8168
    %12360 = vmatpush1.bf16.msra.mxu0 %v8167
    %12361 = vmatprep.subr.bf16.mxu0 %v8172
    %12362 = vmatpush1.bf16.msra.mxu0 %v8171
    %12363 = vmatprep.subr.bf16.mxu0 %v8176
    %12364 = vmatpush1.bf16.msra.mxu0 %v8175
    %12365 = vmatprep.subr.bf16.mxu0 %v8180
    %12366 = vmatpush1.bf16.msra.mxu0 %v8179
    %12367 = vmatprep.mubr.bf16.mxu0 %v200
    %12368 = vmatmul.mubr.bf16.gmra.mrb[0].mxu0 %v199
    %v12369 = vpop.f32.mrb[0].mxu0
    %v12370 = vadd.f32 %v12329, %v12369
    %v12371 = vpop.f32.mrb[0].mxu0
    %v12372 = vadd.f32 %v12331, %v12371
    %v12373 = vpop.f32.mrb[0].mxu0
    %v12374 = vpop.f32.mrb[0].mxu0
    %12375 = vdwg.mxu0
    %12376 = vmatprep.subr.bf16.mxu0 %v8184
    %12377 = vmatpush1.bf16.msra.mxu0 %v8183
    %12378 = vmatprep.subr.bf16.mxu0 %v8188
    %12379 = vmatpush1.bf16.msra.mxu0 %v8187
    %12380 = vmatprep.subr.bf16.mxu0 %v8192
    %12381 = vmatpush1.bf16.msra.mxu0 %v8191
    %12382 = vmatprep.subr.bf16.mxu0 %v8196
    %12383 = vmatpush1.bf16.msra.mxu0 %v8195
    %12384 = vmatprep.subr.bf16.mxu0 %v8200
    %12385 = vmatpush1.bf16.msra.mxu0 %v8199
    %12386 = vmatprep.subr.bf16.mxu0 %v8204
    %12387 = vmatpush1.bf16.msra.mxu0 %v8203
    %12388 = vmatprep.subr.bf16.mxu0 %v8208
    %12389 = vmatpush1.bf16.msra.mxu0 %v8207
    %12390 = vmatprep.subr.bf16.mxu0 %v8212
    %12391 = vmatpush1.bf16.msra.mxu0 %v8211
    %12392 = vmatprep.subr.bf16.mxu0 %v8216
    %12393 = vmatpush1.bf16.msra.mxu0 %v8215
    %12394 = vmatprep.subr.bf16.mxu0 %v8220
    %12395 = vmatpush1.bf16.msra.mxu0 %v8219
    %12396 = vmatprep.subr.bf16.mxu0 %v8224
    %12397 = vmatpush1.bf16.msra.mxu0 %v8223
    %12398 = vmatprep.subr.bf16.mxu0 %v8228
    %12399 = vmatpush1.bf16.msra.mxu0 %v8227
    %12400 = vmatprep.subr.bf16.mxu0 %v8232
    %12401 = vmatpush1.bf16.msra.mxu0 %v8231
    %12402 = vmatprep.subr.bf16.mxu0 %v8236
    %12403 = vmatpush1.bf16.msra.mxu0 %v8235
    %12404 = vmatprep.subr.bf16.mxu0 %v8240
    %12405 = vmatpush1.bf16.msra.mxu0 %v8239
    %12406 = vmatprep.subr.bf16.mxu0 %v8244
    %12407 = vmatpush1.bf16.msra.mxu0 %v8243
    %12408 = vmatprep.mubr.bf16.mxu0 %v202
    %12409 = vmatmul.mubr.bf16.gmra.mrb[0].mxu0 %v201
    %v12410 = vpop.f32.mrb[0].mxu0
    %v12411 = vadd.f32 %v12370, %v12410
    %v12412 = vpop.f32.mrb[0].mxu0
    %v12413 = vadd.f32 %v12372, %v12412
    %v12414 = vpop.f32.mrb[0].mxu0
    %v12415 = vpop.f32.mrb[0].mxu0
    %12416 = vdwg.mxu0
    %12417 = vmatprep.subr.bf16.mxu0 %v8248
    %12418 = vmatpush1.bf16.msra.mxu0 %v8247
    %12419 = vmatprep.subr.bf16.mxu0 %v8252
    %12420 = vmatpush1.bf16.msra.mxu0 %v8251
    %12421 = vmatprep.subr.bf16.mxu0 %v8256
    %12422 = vmatpush1.bf16.msra.mxu0 %v8255
    %12423 = vmatprep.subr.bf16.mxu0 %v8260
    %12424 = vmatpush1.bf16.msra.mxu0 %v8259
    %12425 = vmatprep.subr.bf16.mxu0 %v8264
    %12426 = vmatpush1.bf16.msra.mxu0 %v8263
    %12427 = vmatprep.subr.bf16.mxu0 %v8268
    %12428 = vmatpush1.bf16.msra.mxu0 %v8267
    %12429 = vmatprep.subr.bf16.mxu0 %v8272
    %12430 = vmatpush1.bf16.msra.mxu0 %v8271
    %12431 = vmatprep.subr.bf16.mxu0 %v8276
    %12432 = vmatpush1.bf16.msra.mxu0 %v8275
    %12433 = vmatprep.subr.bf16.mxu0 %v8280
    %12434 = vmatpush1.bf16.msra.mxu0 %v8279
    %12435 = vmatprep.subr.bf16.mxu0 %v8284
    %12436 = vmatpush1.bf16.msra.mxu0 %v8283
    %12437 = vmatprep.subr.bf16.mxu0 %v8288
    %12438 = vmatpush1.bf16.msra.mxu0 %v8287
    %12439 = vmatprep.subr.bf16.mxu0 %v8292
    %12440 = vmatpush1.bf16.msra.mxu0 %v8291
    %12441 = vmatprep.subr.bf16.mxu0 %v8296
    %12442 = vmatpush1.bf16.msra.mxu0 %v8295
    %12443 = vmatprep.subr.bf16.mxu0 %v8300
    %12444 = vmatpush1.bf16.msra.mxu0 %v8299
    %12445 = vmatprep.subr.bf16.mxu0 %v8304
    %12446 = vmatpush1.bf16.msra.mxu0 %v8303
    %12447 = vmatprep.subr.bf16.mxu0 %v8308
    %12448 = vmatpush1.bf16.msra.mxu0 %v8307
    %12449 = vmatprep.mubr.bf16.mxu0 %v204
    %12450 = vmatmul.mubr.bf16.gmra.mrb[0].mxu0 %v203
    %v12451 = vpop.f32.mrb[0].mxu0
    %v12452 = vadd.f32 %v12411, %v12451
    %v12453 = vpop.f32.mrb[0].mxu0
    %v12454 = vadd.f32 %v12413, %v12453
    %v12455 = vpop.f32.mrb[0].mxu0
    %v12456 = vpop.f32.mrb[0].mxu0
    %12457 = vdwg.mxu0
    %12458 = vmatprep.subr.bf16.mxu0 %v8312
    %12459 = vmatpush1.bf16.msra.mxu0 %v8311
    %12460 = vmatprep.subr.bf16.mxu0 %v8316
    %12461 = vmatpush1.bf16.msra.mxu0 %v8315
    %12462 = vmatprep.subr.bf16.mxu0 %v8320
    %12463 = vmatpush1.bf16.msra.mxu0 %v8319
    %12464 = vmatprep.subr.bf16.mxu0 %v8324
    %12465 = vmatpush1.bf16.msra.mxu0 %v8323
    %12466 = vmatprep.subr.bf16.mxu0 %v8328
    %12467 = vmatpush1.bf16.msra.mxu0 %v8327
    %12468 = vmatprep.subr.bf16.mxu0 %v8332
    %12469 = vmatpush1.bf16.msra.mxu0 %v8331
    %12470 = vmatprep.subr.bf16.mxu0 %v8336
    %12471 = vmatpush1.bf16.msra.mxu0 %v8335
    %12472 = vmatprep.subr.bf16.mxu0 %v8340
    %12473 = vmatpush1.bf16.msra.mxu0 %v8339
    %12474 = vmatprep.subr.bf16.mxu0 %v8344
    %12475 = vmatpush1.bf16.msra.mxu0 %v8343
    %12476 = vmatprep.subr.bf16.mxu0 %v8348
    %12477 = vmatpush1.bf16.msra.mxu0 %v8347
    %12478 = vmatprep.subr.bf16.mxu0 %v8352
    %12479 = vmatpush1.bf16.msra.mxu0 %v8351
    %12480 = vmatprep.subr.bf16.mxu0 %v8356
    %12481 = vmatpush1.bf16.msra.mxu0 %v8355
    %12482 = vmatprep.subr.bf16.mxu0 %v8360
    %12483 = vmatpush1.bf16.msra.mxu0 %v8359
    %12484 = vmatprep.subr.bf16.mxu0 %v8364
    %12485 = vmatpush1.bf16.msra.mxu0 %v8363
    %12486 = vmatprep.subr.bf16.mxu0 %v8368
    %12487 = vmatpush1.bf16.msra.mxu0 %v8367
    %12488 = vmatprep.subr.bf16.mxu0 %v8372
    %12489 = vmatpush1.bf16.msra.mxu0 %v8371
    %12490 = vmatprep.mubr.bf16.mxu0 %v206
    %12491 = vmatmul.mubr.bf16.gmra.mrb[0].mxu0 %v205
    %v12492 = vpop.f32.mrb[0].mxu0
    %v12493 = vadd.f32 %v12452, %v12492
    %v12494 = vpop.f32.mrb[0].mxu0
    %v12495 = vadd.f32 %v12454, %v12494
    %v12496 = vpop.f32.mrb[0].mxu0
    %v12497 = vpop.f32.mrb[0].mxu0
    %12498 = vdwg.mxu0
    %12499 = vmatprep.subr.bf16.mxu0 %v8376
    %12500 = vmatpush1.bf16.msra.mxu0 %v8375
    %12501 = vmatprep.subr.bf16.mxu0 %v8380
    %12502 = vmatpush1.bf16.msra.mxu0 %v8379
    %12503 = vmatprep.subr.bf16.mxu0 %v8384
    %12504 = vmatpush1.bf16.msra.mxu0 %v8383
    %12505 = vmatprep.subr.bf16.mxu0 %v8388
    %12506 = vmatpush1.bf16.msra.mxu0 %v8387
    %12507 = vmatprep.subr.bf16.mxu0 %v8392
    %12508 = vmatpush1.bf16.msra.mxu0 %v8391
    %12509 = vmatprep.subr.bf16.mxu0 %v8396
    %12510 = vmatpush1.bf16.msra.mxu0 %v8395
    %12511 = vmatprep.subr.bf16.mxu0 %v8400
    %12512 = vmatpush1.bf16.msra.mxu0 %v8399
    %12513 = vmatprep.subr.bf16.mxu0 %v8404
    %12514 = vmatpush1.bf16.msra.mxu0 %v8403
    %12515 = vmatprep.subr.bf16.mxu0 %v8408
    %12516 = vmatpush1.bf16.msra.mxu0 %v8407
    %12517 = vmatprep.subr.bf16.mxu0 %v8412
    %12518 = vmatpush1.bf16.msra.mxu0 %v8411
    %12519 = vmatprep.subr.bf16.mxu0 %v8416
    %12520 = vmatpush1.bf16.msra.mxu0 %v8415
    %12521 = vmatprep.subr.bf16.mxu0 %v8420
    %12522 = vmatpush1.bf16.msra.mxu0 %v8419
    %12523 = vmatprep.subr.bf16.mxu0 %v8424
    %12524 = vmatpush1.bf16.msra.mxu0 %v8423
    %12525 = vmatprep.subr.bf16.mxu0 %v8428
    %12526 = vmatpush1.bf16.msra.mxu0 %v8427
    %12527 = vmatprep.subr.bf16.mxu0 %v8432
    %12528 = vmatpush1.bf16.msra.mxu0 %v8431
    %12529 = vmatprep.subr.bf16.mxu0 %v8436
    %12530 = vmatpush1.bf16.msra.mxu0 %v8435
    %12531 = vmatprep.mubr.bf16.mxu0 %v208
    %12532 = vmatmul.mubr.bf16.gmra.mrb[0].mxu0 %v207
    %v12533 = vpop.f32.mrb[0].mxu0
    %v12534 = vadd.f32 %v12493, %v12533
    %v12535 = vpop.f32.mrb[0].mxu0
    %v12536 = vadd.f32 %v12495, %v12535
    %v12537 = vpop.f32.mrb[0].mxu0
    %v12538 = vpop.f32.mrb[0].mxu0
    %12539 = vdwg.mxu0
    %12540 = vmatprep.subr.bf16.mxu0 %v8440
    %12541 = vmatpush1.bf16.msra.mxu0 %v8439
    %12542 = vmatprep.subr.bf16.mxu0 %v8444
    %12543 = vmatpush1.bf16.msra.mxu0 %v8443
    %12544 = vmatprep.subr.bf16.mxu0 %v8448
    %12545 = vmatpush1.bf16.msra.mxu0 %v8447
    %12546 = vmatprep.subr.bf16.mxu0 %v8452
    %12547 = vmatpush1.bf16.msra.mxu0 %v8451
    %12548 = vmatprep.subr.bf16.mxu0 %v8456
    %12549 = vmatpush1.bf16.msra.mxu0 %v8455
    %12550 = vmatprep.subr.bf16.mxu0 %v8460
    %12551 = vmatpush1.bf16.msra.mxu0 %v8459
    %12552 = vmatprep.subr.bf16.mxu0 %v8464
    %12553 = vmatpush1.bf16.msra.mxu0 %v8463
    %12554 = vmatprep.subr.bf16.mxu0 %v8468
    %12555 = vmatpush1.bf16.msra.mxu0 %v8467
    %12556 = vmatprep.subr.bf16.mxu0 %v8472
    %12557 = vmatpush1.bf16.msra.mxu0 %v8471
    %12558 = vmatprep.subr.bf16.mxu0 %v8476
    %12559 = vmatpush1.bf16.msra.mxu0 %v8475
    %12560 = vmatprep.subr.bf16.mxu0 %v8480
    %12561 = vmatpush1.bf16.msra.mxu0 %v8479
    %12562 = vmatprep.subr.bf16.mxu0 %v8484
    %12563 = vmatpush1.bf16.msra.mxu0 %v8483
    %12564 = vmatprep.subr.bf16.mxu0 %v8488
    %12565 = vmatpush1.bf16.msra.mxu0 %v8487
    %12566 = vmatprep.subr.bf16.mxu0 %v8492
    %12567 = vmatpush1.bf16.msra.mxu0 %v8491
    %12568 = vmatprep.subr.bf16.mxu0 %v8496
    %12569 = vmatpush1.bf16.msra.mxu0 %v8495
    %12570 = vmatprep.subr.bf16.mxu0 %v8500
    %12571 = vmatpush1.bf16.msra.mxu0 %v8499
    %12572 = vmatprep.mubr.bf16.mxu0 %v210
    %12573 = vmatmul.mubr.bf16.gmra.mrb[0].mxu0 %v209
    %v12574 = vpop.f32.mrb[0].mxu0
    %v12575 = vadd.f32 %v12534, %v12574
    %v12576 = vpop.f32.mrb[0].mxu0
    %v12577 = vadd.f32 %v12536, %v12576
    %v12578 = vpop.f32.mrb[0].mxu0
    %v12579 = vpop.f32.mrb[0].mxu0
    %12580 = vdwg.mxu0
    %12581 = vmatprep.subr.bf16.mxu0 %v8504
    %12582 = vmatpush1.bf16.msra.mxu0 %v8503
    %12583 = vmatprep.subr.bf16.mxu0 %v8508
    %12584 = vmatpush1.bf16.msra.mxu0 %v8507
    %12585 = vmatprep.subr.bf16.mxu0 %v8512
    %12586 = vmatpush1.bf16.msra.mxu0 %v8511
    %12587 = vmatprep.subr.bf16.mxu0 %v8516
    %12588 = vmatpush1.bf16.msra.mxu0 %v8515
    %12589 = vmatprep.subr.bf16.mxu0 %v8520
    %12590 = vmatpush1.bf16.msra.mxu0 %v8519
    %12591 = vmatprep.subr.bf16.mxu0 %v8524
    %12592 = vmatpush1.bf16.msra.mxu0 %v8523
    %12593 = vmatprep.subr.bf16.mxu0 %v8528
    %12594 = vmatpush1.bf16.msra.mxu0 %v8527
    %12595 = vmatprep.subr.bf16.mxu0 %v8532
    %12596 = vmatpush1.bf16.msra.mxu0 %v8531
    %12597 = vmatprep.subr.bf16.mxu0 %v8536
    %12598 = vmatpush1.bf16.msra.mxu0 %v8535
    %12599 = vmatprep.subr.bf16.mxu0 %v8540
    %12600 = vmatpush1.bf16.msra.mxu0 %v8539
    %12601 = vmatprep.subr.bf16.mxu0 %v8544
    %12602 = vmatpush1.bf16.msra.mxu0 %v8543
    %12603 = vmatprep.subr.bf16.mxu0 %v8548
    %12604 = vmatpush1.bf16.msra.mxu0 %v8547
    %12605 = vmatprep.subr.bf16.mxu0 %v8552
    %12606 = vmatpush1.bf16.msra.mxu0 %v8551
    %12607 = vmatprep.subr.bf16.mxu0 %v8556
    %12608 = vmatpush1.bf16.msra.mxu0 %v8555
    %12609 = vmatprep.subr.bf16.mxu0 %v8560
    %12610 = vmatpush1.bf16.msra.mxu0 %v8559
    %12611 = vmatprep.subr.bf16.mxu0 %v8564
    %12612 = vmatpush1.bf16.msra.mxu0 %v8563
    %12613 = vmatprep.mubr.bf16.mxu0 %v212
    %12614 = vmatmul.mubr.bf16.gmra.mrb[0].mxu0 %v211
    %v12615 = vpop.f32.mrb[0].mxu0
    %v12616 = vadd.f32 %v12575, %v12615
    %v12617 = vpop.f32.mrb[0].mxu0
    %v12618 = vadd.f32 %v12577, %v12617
    %v12619 = vpop.f32.mrb[0].mxu0
    %v12620 = vpop.f32.mrb[0].mxu0
    %12621 = vdwg.mxu0
    %12622 = vmatprep.subr.bf16.mxu0 %v8568
    %12623 = vmatpush1.bf16.msra.mxu0 %v8567
    %12624 = vmatprep.subr.bf16.mxu0 %v8572
    %12625 = vmatpush1.bf16.msra.mxu0 %v8571
    %12626 = vmatprep.subr.bf16.mxu0 %v8576
    %12627 = vmatpush1.bf16.msra.mxu0 %v8575
    %12628 = vmatprep.subr.bf16.mxu0 %v8580
    %12629 = vmatpush1.bf16.msra.mxu0 %v8579
    %12630 = vmatprep.subr.bf16.mxu0 %v8584
    %12631 = vmatpush1.bf16.msra.mxu0 %v8583
    %12632 = vmatprep.subr.bf16.mxu0 %v8588
    %12633 = vmatpush1.bf16.msra.mxu0 %v8587
    %12634 = vmatprep.subr.bf16.mxu0 %v8592
    %12635 = vmatpush1.bf16.msra.mxu0 %v8591
    %12636 = vmatprep.subr.bf16.mxu0 %v8596
    %12637 = vmatpush1.bf16.msra.mxu0 %v8595
    %12638 = vmatprep.subr.bf16.mxu0 %v8600
    %12639 = vmatpush1.bf16.msra.mxu0 %v8599
    %12640 = vmatprep.subr.bf16.mxu0 %v8604
    %12641 = vmatpush1.bf16.msra.mxu0 %v8603
    %12642 = vmatprep.subr.bf16.mxu0 %v8608
    %12643 = vmatpush1.bf16.msra.mxu0 %v8607
    %12644 = vmatprep.subr.bf16.mxu0 %v8612
    %12645 = vmatpush1.bf16.msra.mxu0 %v8611
    %12646 = vmatprep.subr.bf16.mxu0 %v8616
    %12647 = vmatpush1.bf16.msra.mxu0 %v8615
    %12648 = vmatprep.subr.bf16.mxu0 %v8620
    %12649 = vmatpush1.bf16.msra.mxu0 %v8619
    %12650 = vmatprep.subr.bf16.mxu0 %v8624
    %12651 = vmatpush1.bf16.msra.mxu0 %v8623
    %12652 = vmatprep.subr.bf16.mxu0 %v8628
    %12653 = vmatpush1.bf16.msra.mxu0 %v8627
    %12654 = vmatprep.mubr.bf16.mxu0 %v214
    %12655 = vmatmul.mubr.bf16.gmra.mrb[0].mxu0 %v213
    %v12656 = vpop.f32.mrb[0].mxu0
    %v12657 = vadd.f32 %v12616, %v12656
    %v12658 = vpop.f32.mrb[0].mxu0
    %v12659 = vadd.f32 %v12618, %v12658
    %v12660 = vpop.f32.mrb[0].mxu0
    %v12661 = vpop.f32.mrb[0].mxu0
    %12662 = vdwg.mxu0
    %12663 = vmatprep.subr.bf16.mxu0 %v8632
    %12664 = vmatpush1.bf16.msra.mxu0 %v8631
    %12665 = vmatprep.subr.bf16.mxu0 %v8636
    %12666 = vmatpush1.bf16.msra.mxu0 %v8635
    %12667 = vmatprep.subr.bf16.mxu0 %v8640
    %12668 = vmatpush1.bf16.msra.mxu0 %v8639
    %12669 = vmatprep.subr.bf16.mxu0 %v8644
    %12670 = vmatpush1.bf16.msra.mxu0 %v8643
    %12671 = vmatprep.subr.bf16.mxu0 %v8648
    %12672 = vmatpush1.bf16.msra.mxu0 %v8647
    %12673 = vmatprep.subr.bf16.mxu0 %v8652
    %12674 = vmatpush1.bf16.msra.mxu0 %v8651
    %12675 = vmatprep.subr.bf16.mxu0 %v8656
    %12676 = vmatpush1.bf16.msra.mxu0 %v8655
    %12677 = vmatprep.subr.bf16.mxu0 %v8660
    %12678 = vmatpush1.bf16.msra.mxu0 %v8659
    %12679 = vmatprep.subr.bf16.mxu0 %v8664
    %12680 = vmatpush1.bf16.msra.mxu0 %v8663
    %12681 = vmatprep.subr.bf16.mxu0 %v8668
    %12682 = vmatpush1.bf16.msra.mxu0 %v8667
    %12683 = vmatprep.subr.bf16.mxu0 %v8672
    %12684 = vmatpush1.bf16.msra.mxu0 %v8671
    %12685 = vmatprep.subr.bf16.mxu0 %v8676
    %12686 = vmatpush1.bf16.msra.mxu0 %v8675
    %12687 = vmatprep.subr.bf16.mxu0 %v8680
    %12688 = vmatpush1.bf16.msra.mxu0 %v8679
    %12689 = vmatprep.subr.bf16.mxu0 %v8684
    %12690 = vmatpush1.bf16.msra.mxu0 %v8683
    %12691 = vmatprep.subr.bf16.mxu0 %v8688
    %12692 = vmatpush1.bf16.msra.mxu0 %v8687
    %12693 = vmatprep.subr.bf16.mxu0 %v8692
    %12694 = vmatpush1.bf16.msra.mxu0 %v8691
    %12695 = vmatprep.mubr.bf16.mxu0 %v216
    %12696 = vmatmul.mubr.bf16.gmra.mrb[0].mxu0 %v215
    %v12697 = vpop.f32.mrb[0].mxu0
    %v12698 = vadd.f32 %v12657, %v12697
    %v12699 = vpop.f32.mrb[0].mxu0
    %v12700 = vadd.f32 %v12659, %v12699
    %v12701 = vpop.f32.mrb[0].mxu0
    %v12702 = vpop.f32.mrb[0].mxu0
    %12703 = vdwg.mxu0
    %12704 = vmatprep.subr.bf16.mxu0 %v8696
    %12705 = vmatpush1.bf16.msra.mxu0 %v8695
    %12706 = vmatprep.subr.bf16.mxu0 %v8700
    %12707 = vmatpush1.bf16.msra.mxu0 %v8699
    %12708 = vmatprep.subr.bf16.mxu0 %v8704
    %12709 = vmatpush1.bf16.msra.mxu0 %v8703
    %12710 = vmatprep.subr.bf16.mxu0 %v8708
    %12711 = vmatpush1.bf16.msra.mxu0 %v8707
    %12712 = vmatprep.subr.bf16.mxu0 %v8712
    %12713 = vmatpush1.bf16.msra.mxu0 %v8711
    %12714 = vmatprep.subr.bf16.mxu0 %v8716
    %12715 = vmatpush1.bf16.msra.mxu0 %v8715
    %12716 = vmatprep.subr.bf16.mxu0 %v8720
    %12717 = vmatpush1.bf16.msra.mxu0 %v8719
    %12718 = vmatprep.subr.bf16.mxu0 %v8724
    %12719 = vmatpush1.bf16.msra.mxu0 %v8723
    %12720 = vmatprep.subr.bf16.mxu0 %v8728
    %12721 = vmatpush1.bf16.msra.mxu0 %v8727
    %12722 = vmatprep.subr.bf16.mxu0 %v8732
    %12723 = vmatpush1.bf16.msra.mxu0 %v8731
    %12724 = vmatprep.subr.bf16.mxu0 %v8736
    %12725 = vmatpush1.bf16.msra.mxu0 %v8735
    %12726 = vmatprep.subr.bf16.mxu0 %v8740
    %12727 = vmatpush1.bf16.msra.mxu0 %v8739
    %12728 = vmatprep.subr.bf16.mxu0 %v8744
    %12729 = vmatpush1.bf16.msra.mxu0 %v8743
    %12730 = vmatprep.subr.bf16.mxu0 %v8748
    %12731 = vmatpush1.bf16.msra.mxu0 %v8747
    %12732 = vmatprep.subr.bf16.mxu0 %v8752
    %12733 = vmatpush1.bf16.msra.mxu0 %v8751
    %12734 = vmatprep.subr.bf16.mxu0 %v8756
    %12735 = vmatpush1.bf16.msra.mxu0 %v8755
    %12736 = vmatprep.mubr.bf16.mxu0 %v218
    %12737 = vmatmul.mubr.bf16.gmra.mrb[0].mxu0 %v217
    %v12738 = vpop.f32.mrb[0].mxu0
    %v12739 = vadd.f32 %v12698, %v12738
    %v12740 = vpop.f32.mrb[0].mxu0
    %v12741 = vadd.f32 %v12700, %v12740
    %v12742 = vpop.f32.mrb[0].mxu0
    %v12743 = vpop.f32.mrb[0].mxu0
    %12744 = vdwg.mxu0
    %12745 = vmatprep.subr.bf16.mxu0 %v8760
    %12746 = vmatpush1.bf16.msra.mxu0 %v8759
    %12747 = vmatprep.subr.bf16.mxu0 %v8764
    %12748 = vmatpush1.bf16.msra.mxu0 %v8763
    %12749 = vmatprep.subr.bf16.mxu0 %v8768
    %12750 = vmatpush1.bf16.msra.mxu0 %v8767
    %12751 = vmatprep.subr.bf16.mxu0 %v8772
    %12752 = vmatpush1.bf16.msra.mxu0 %v8771
    %12753 = vmatprep.subr.bf16.mxu0 %v8776
    %12754 = vmatpush1.bf16.msra.mxu0 %v8775
    %12755 = vmatprep.subr.bf16.mxu0 %v8780
    %12756 = vmatpush1.bf16.msra.mxu0 %v8779
    %12757 = vmatprep.subr.bf16.mxu0 %v8784
    %12758 = vmatpush1.bf16.msra.mxu0 %v8783
    %12759 = vmatprep.subr.bf16.mxu0 %v8788
    %12760 = vmatpush1.bf16.msra.mxu0 %v8787
    %12761 = vmatprep.subr.bf16.mxu0 %v8792
    %12762 = vmatpush1.bf16.msra.mxu0 %v8791
    %12763 = vmatprep.subr.bf16.mxu0 %v8796
    %12764 = vmatpush1.bf16.msra.mxu0 %v8795
    %12765 = vmatprep.subr.bf16.mxu0 %v8800
    %12766 = vmatpush1.bf16.msra.mxu0 %v8799
    %12767 = vmatprep.subr.bf16.mxu0 %v8804
    %12768 = vmatpush1.bf16.msra.mxu0 %v8803
    %12769 = vmatprep.subr.bf16.mxu0 %v8808
    %12770 = vmatpush1.bf16.msra.mxu0 %v8807
    %12771 = vmatprep.subr.bf16.mxu0 %v8812
    %12772 = vmatpush1.bf16.msra.mxu0 %v8811
    %12773 = vmatprep.subr.bf16.mxu0 %v8816
    %12774 = vmatpush1.bf16.msra.mxu0 %v8815
    %12775 = vmatprep.subr.bf16.mxu0 %v8820
    %12776 = vmatpush1.bf16.msra.mxu0 %v8819
    %12777 = vmatprep.mubr.bf16.mxu0 %v220
    %12778 = vmatmul.mubr.bf16.gmra.mrb[0].mxu0 %v219
    %v12779 = vpop.f32.mrb[0].mxu0
    %v12780 = vadd.f32 %v12739, %v12779
    %v12781 = vpop.f32.mrb[0].mxu0
    %v12782 = vadd.f32 %v12741, %v12781
    %v12783 = vpop.f32.mrb[0].mxu0
    %v12784 = vpop.f32.mrb[0].mxu0
    %12785 = vdwg.mxu0
    %12786 = vmatprep.subr.bf16.mxu0 %v8824
    %12787 = vmatpush1.bf16.msra.mxu0 %v8823
    %12788 = vmatprep.subr.bf16.mxu0 %v8828
    %12789 = vmatpush1.bf16.msra.mxu0 %v8827
    %12790 = vmatprep.subr.bf16.mxu0 %v8832
    %12791 = vmatpush1.bf16.msra.mxu0 %v8831
    %12792 = vmatprep.subr.bf16.mxu0 %v8836
    %12793 = vmatpush1.bf16.msra.mxu0 %v8835
    %12794 = vmatprep.subr.bf16.mxu0 %v8840
    %12795 = vmatpush1.bf16.msra.mxu0 %v8839
    %12796 = vmatprep.subr.bf16.mxu0 %v8844
    %12797 = vmatpush1.bf16.msra.mxu0 %v8843
    %12798 = vmatprep.subr.bf16.mxu0 %v8848
    %12799 = vmatpush1.bf16.msra.mxu0 %v8847
    %12800 = vmatprep.subr.bf16.mxu0 %v8852
    %12801 = vmatpush1.bf16.msra.mxu0 %v8851
    %12802 = vmatprep.subr.bf16.mxu0 %v8856
    %12803 = vmatpush1.bf16.msra.mxu0 %v8855
    %12804 = vmatprep.subr.bf16.mxu0 %v8860
    %12805 = vmatpush1.bf16.msra.mxu0 %v8859
    %12806 = vmatprep.subr.bf16.mxu0 %v8864
    %12807 = vmatpush1.bf16.msra.mxu0 %v8863
    %12808 = vmatprep.subr.bf16.mxu0 %v8868
    %12809 = vmatpush1.bf16.msra.mxu0 %v8867
    %12810 = vmatprep.subr.bf16.mxu0 %v8872
    %12811 = vmatpush1.bf16.msra.mxu0 %v8871
    %12812 = vmatprep.subr.bf16.mxu0 %v8876
    %12813 = vmatpush1.bf16.msra.mxu0 %v8875
    %12814 = vmatprep.subr.bf16.mxu0 %v8880
    %12815 = vmatpush1.bf16.msra.mxu0 %v8879
    %12816 = vmatprep.subr.bf16.mxu0 %v8884
    %12817 = vmatpush1.bf16.msra.mxu0 %v8883
    %12818 = vmatprep.mubr.bf16.mxu0 %v222
    %12819 = vmatmul.mubr.bf16.gmra.mrb[0].mxu0 %v221
    %v12820 = vpop.f32.mrb[0].mxu0
    %v12821 = vadd.f32 %v12780, %v12820
    %v12822 = vpop.f32.mrb[0].mxu0
    %v12823 = vadd.f32 %v12782, %v12822
    %v12824 = vpop.f32.mrb[0].mxu0
    %v12825 = vpop.f32.mrb[0].mxu0
    %12826 = vdwg.mxu0
    %v12827 = vmax.f32 %v11714, 0.0
    %v12828 = vmax.f32 %v11716, 0.0
    %v12829 = vmax.f32 %v12821, 0.0
    %v12830 = vmax.f32 %v12823, 0.0
    %v12831 = vpack.c.bf16 %v12827, %v12827
    %v12832 = vpack.c.bf16 %v12828, %v12828
    %v12833 = vpack.c.bf16 %v12829, %v12829
    %v12834 = vpack.c.bf16 %v12830, %v12830
    %v12835 = vld [vmem:[#allocation8] sm:$0xf]
    %v12836 = vld [vmem:[#allocation8 + $0x4] sm:$0xf]
    %v12837 = vld [vmem:[#allocation8 + $0x8] sm:$0xf]
    %v12838 = vld [vmem:[#allocation8 + $0xc] sm:$0xf]
    %v12839 = vld [vmem:[#allocation8 + $0x10] sm:$0xf]
    %v12840 = vld [vmem:[#allocation8 + $0x14] sm:$0xf]
    %v12841 = vld [vmem:[#allocation8 + $0x18] sm:$0xf]
    %v12842 = vld [vmem:[#allocation8 + $0x1c] sm:$0xf]
    %v12843 = vld [vmem:[#allocation8 + $0x20] sm:$0xf]
    %v12844 = vld [vmem:[#allocation8 + $0x24] sm:$0xf]
    %v12845 = vld [vmem:[#allocation8 + $0x28] sm:$0xf]
    %v12846 = vld [vmem:[#allocation8 + $0x2c] sm:$0xf]
    %v12847 = vld [vmem:[#allocation8 + $0x30] sm:$0xf]
    %v12848 = vld [vmem:[#allocation8 + $0x34] sm:$0xf]
    %v12849 = vld [vmem:[#allocation8 + $0x38] sm:$0xf]
    %v12850 = vld [vmem:[#allocation8 + $0x3c] sm:$0xf]
    %v12851 = vld [vmem:[#allocation8 + $0x40] sm:$0xf]
    %v12852 = vld [vmem:[#allocation8 + $0x44] sm:$0xf]
    %v12853 = vld [vmem:[#allocation8 + $0x48] sm:$0xf]
    %v12854 = vld [vmem:[#allocation8 + $0x4c] sm:$0xf]
    %v12855 = vld [vmem:[#allocation8 + $0x50] sm:$0xf]
    %v12856 = vld [vmem:[#allocation8 + $0x54] sm:$0xf]
    %v12857 = vld [vmem:[#allocation8 + $0x58] sm:$0xf]
    %v12858 = vld [vmem:[#allocation8 + $0x5c] sm:$0xf]
    %v12859 = vld [vmem:[#allocation8 + $0x60] sm:$0xf]
    %v12860 = vld [vmem:[#allocation8 + $0x64] sm:$0xf]
    %v12861 = vld [vmem:[#allocation8 + $0x68] sm:$0xf]
    %v12862 = vld [vmem:[#allocation8 + $0x6c] sm:$0xf]
    %v12863 = vld [vmem:[#allocation8 + $0x70] sm:$0xf]
    %v12864 = vld [vmem:[#allocation8 + $0x74] sm:$0xf]
    %v12865 = vld [vmem:[#allocation8 + $0x78] sm:$0xf]
    %v12866 = vld [vmem:[#allocation8 + $0x7c] sm:$0xf]
    %v12867 = vld [vmem:[#allocation8 + $0x80] sm:$0xf]
    %v12868 = vld [vmem:[#allocation8 + $0x84] sm:$0xf]
    %v12869 = vld [vmem:[#allocation8 + $0x88] sm:$0xf]
    %v12870 = vld [vmem:[#allocation8 + $0x8c] sm:$0xf]
    %v12871 = vld [vmem:[#allocation8 + $0x90] sm:$0xf]
    %v12872 = vld [vmem:[#allocation8 + $0x94] sm:$0xf]
    %v12873 = vld [vmem:[#allocation8 + $0x98] sm:$0xf]
    %v12874 = vld [vmem:[#allocation8 + $0x9c] sm:$0xf]
    %v12875 = vld [vmem:[#allocation8 + $0xa0] sm:$0xf]
    %v12876 = vld [vmem:[#allocation8 + $0xa4] sm:$0xf]
    %v12877 = vld [vmem:[#allocation8 + $0xa8] sm:$0xf]
    %v12878 = vld [vmem:[#allocation8 + $0xac] sm:$0xf]
    %v12879 = vld [vmem:[#allocation8 + $0xb0] sm:$0xf]
    %v12880 = vld [vmem:[#allocation8 + $0xb4] sm:$0xf]
    %v12881 = vld [vmem:[#allocation8 + $0xb8] sm:$0xf]
    %v12882 = vld [vmem:[#allocation8 + $0xbc] sm:$0xf]
    %v12883 = vld [vmem:[#allocation8 + $0xc0] sm:$0xf]
    %v12884 = vld [vmem:[#allocation8 + $0xc4] sm:$0xf]
    %v12885 = vld [vmem:[#allocation8 + $0xc8] sm:$0xf]
    %v12886 = vld [vmem:[#allocation8 + $0xcc] sm:$0xf]
    %v12887 = vld [vmem:[#allocation8 + $0xd0] sm:$0xf]
    %v12888 = vld [vmem:[#allocation8 + $0xd4] sm:$0xf]
    %v12889 = vld [vmem:[#allocation8 + $0xd8] sm:$0xf]
    %v12890 = vld [vmem:[#allocation8 + $0xdc] sm:$0xf]
    %v12891 = vld [vmem:[#allocation8 + $0xe0] sm:$0xf]
    %v12892 = vld [vmem:[#allocation8 + $0xe4] sm:$0xf]
    %v12893 = vld [vmem:[#allocation8 + $0xe8] sm:$0xf]
    %v12894 = vld [vmem:[#allocation8 + $0xec] sm:$0xf]
    %v12895 = vld [vmem:[#allocation8 + $0xf0] sm:$0xf]
    %v12896 = vld [vmem:[#allocation8 + $0xf4] sm:$0xf]
    %v12897 = vld [vmem:[#allocation8 + $0xf8] sm:$0xf]
    %v12898 = vld [vmem:[#allocation8 + $0xfc] sm:$0xf]
    %v12899 = vld [vmem:[#allocation10] sm:$0x1]
    %v12901 = vlaneseq
    %v12902 = vshrl.u32 %v12901, 7
    %v12903 = vsub.s32 0, %v12902
    %v12904 = vrot.slane %v12899, %v12903
    %v12970 = vunpack.c.l.b16 %v12835
    %v12971 = vunpack.c.l.b16 %v12836
    %v12972 = vunpack.c.l.b16 %v12837
    %v12973 = vunpack.c.l.b16 %v12838
    %v12974 = vunpack.c.l.b16 %v12839
    %v12975 = vunpack.c.l.b16 %v12840
    %v12976 = vunpack.c.l.b16 %v12841
    %v12977 = vunpack.c.l.b16 %v12842
    %v12978 = vunpack.c.l.b16 %v12843
    %v12979 = vunpack.c.l.b16 %v12844
    %v12980 = vunpack.c.l.b16 %v12845
    %v12981 = vunpack.c.l.b16 %v12846
    %v12982 = vunpack.c.l.b16 %v12847
    %v12983 = vunpack.c.l.b16 %v12848
    %v12984 = vunpack.c.l.b16 %v12849
    %v12985 = vunpack.c.l.b16 %v12850
    %v12986 = vunpack.c.l.b16 %v12851
    %v12987 = vunpack.c.l.b16 %v12852
    %v12988 = vunpack.c.l.b16 %v12853
    %v12989 = vunpack.c.l.b16 %v12854
    %v12990 = vunpack.c.l.b16 %v12855
    %v12991 = vunpack.c.l.b16 %v12856
    %v12992 = vunpack.c.l.b16 %v12857
    %v12993 = vunpack.c.l.b16 %v12858
    %v12994 = vunpack.c.l.b16 %v12859
    %v12995 = vunpack.c.l.b16 %v12860
    %v12996 = vunpack.c.l.b16 %v12861
    %v12997 = vunpack.c.l.b16 %v12862
    %v12998 = vunpack.c.l.b16 %v12863
    %v12999 = vunpack.c.l.b16 %v12864
    %v13000 = vunpack.c.l.b16 %v12865
    %v13001 = vunpack.c.l.b16 %v12866
    %v13002 = vunpack.c.l.b16 %v12867
    %v13003 = vunpack.c.l.b16 %v12868
    %v13004 = vunpack.c.l.b16 %v12869
    %v13005 = vunpack.c.l.b16 %v12870
    %v13006 = vunpack.c.l.b16 %v12871
    %v13007 = vunpack.c.l.b16 %v12872
    %v13008 = vunpack.c.l.b16 %v12873
    %v13009 = vunpack.c.l.b16 %v12874
    %v13010 = vunpack.c.l.b16 %v12875
    %v13011 = vunpack.c.l.b16 %v12876
    %v13012 = vunpack.c.l.b16 %v12877
    %v13013 = vunpack.c.l.b16 %v12878
    %v13014 = vunpack.c.l.b16 %v12879
    %v13015 = vunpack.c.l.b16 %v12880
    %v13016 = vunpack.c.l.b16 %v12881
    %v13017 = vunpack.c.l.b16 %v12882
    %v13018 = vunpack.c.l.b16 %v12883
    %v13019 = vunpack.c.l.b16 %v12884
    %v13020 = vunpack.c.l.b16 %v12885
    %v13021 = vunpack.c.l.b16 %v12886
    %v13022 = vunpack.c.l.b16 %v12887
    %v13023 = vunpack.c.l.b16 %v12888
    %v13024 = vunpack.c.l.b16 %v12889
    %v13025 = vunpack.c.l.b16 %v12890
    %v13026 = vunpack.c.l.b16 %v12891
    %v13027 = vunpack.c.l.b16 %v12892
    %v13028 = vunpack.c.l.b16 %v12893
    %v13029 = vunpack.c.l.b16 %v12894
    %v13030 = vunpack.c.l.b16 %v12895
    %v13031 = vunpack.c.l.b16 %v12896
    %v13032 = vunpack.c.l.b16 %v12897
    %v13033 = vunpack.c.l.b16 %v12898
    %v13034 = vpack.c.b16 %v12971, %v12970
    %v13035 = vpack.c.b16 %v12973, %v12972
    %v13036 = vpack.c.b16 %v12975, %v12974
    %v13037 = vpack.c.b16 %v12977, %v12976
    %v13038 = vpack.c.b16 %v12979, %v12978
    %v13039 = vpack.c.b16 %v12981, %v12980
    %v13040 = vpack.c.b16 %v12983, %v12982
    %v13041 = vpack.c.b16 %v12985, %v12984
    %v13042 = vpack.c.b16 %v12987, %v12986
    %v13043 = vpack.c.b16 %v12989, %v12988
    %v13044 = vpack.c.b16 %v12991, %v12990
    %v13045 = vpack.c.b16 %v12993, %v12992
    %v13046 = vpack.c.b16 %v12995, %v12994
    %v13047 = vpack.c.b16 %v12997, %v12996
    %v13048 = vpack.c.b16 %v12999, %v12998
    %v13049 = vpack.c.b16 %v13001, %v13000
    %v13050 = vpack.c.b16 %v13003, %v13002
    %v13051 = vpack.c.b16 %v13005, %v13004
    %v13052 = vpack.c.b16 %v13007, %v13006
    %v13053 = vpack.c.b16 %v13009, %v13008
    %v13054 = vpack.c.b16 %v13011, %v13010
    %v13055 = vpack.c.b16 %v13013, %v13012
    %v13056 = vpack.c.b16 %v13015, %v13014
    %v13057 = vpack.c.b16 %v13017, %v13016
    %v13058 = vpack.c.b16 %v13019, %v13018
    %v13059 = vpack.c.b16 %v13021, %v13020
    %v13060 = vpack.c.b16 %v13023, %v13022
    %v13061 = vpack.c.b16 %v13025, %v13024
    %v13062 = vpack.c.b16 %v13027, %v13026
    %v13063 = vpack.c.b16 %v13029, %v13028
    %v13064 = vpack.c.b16 %v13031, %v13030
    %v13065 = vpack.c.b16 %v13033, %v13032
    %13098 = vmatprep.subr.bf16.mxu0 0
    %13099 = vmatpush1.bf16.msra.mxu0 %v13034
    %13100 = vmatprep.subr.bf16.mxu0 0
    %13101 = vmatpush1.bf16.msra.mxu0 %v13035
    %13102 = vmatprep.subr.bf16.mxu0 0
    %13103 = vmatpush1.bf16.msra.mxu0 %v13036
    %13104 = vmatprep.subr.bf16.mxu0 0
    %13105 = vmatpush1.bf16.msra.mxu0 %v13037
    %13106 = vmatprep.subr.bf16.mxu0 0
    %13107 = vmatpush1.bf16.msra.mxu0 %v13038
    %13108 = vmatprep.subr.bf16.mxu0 0
    %13109 = vmatpush1.bf16.msra.mxu0 %v13039
    %13110 = vmatprep.subr.bf16.mxu0 0
    %13111 = vmatpush1.bf16.msra.mxu0 %v13040
    %13112 = vmatprep.subr.bf16.mxu0 0
    %13113 = vmatpush1.bf16.msra.mxu0 %v13041
    %13114 = vmatprep.subr.bf16.mxu0 0
    %13115 = vmatpush1.bf16.msra.mxu0 %v13042
    %13116 = vmatprep.subr.bf16.mxu0 0
    %13117 = vmatpush1.bf16.msra.mxu0 %v13043
    %13118 = vmatprep.subr.bf16.mxu0 0
    %13119 = vmatpush1.bf16.msra.mxu0 %v13044
    %13120 = vmatprep.subr.bf16.mxu0 0
    %13121 = vmatpush1.bf16.msra.mxu0 %v13045
    %13122 = vmatprep.subr.bf16.mxu0 0
    %13123 = vmatpush1.bf16.msra.mxu0 %v13046
    %13124 = vmatprep.subr.bf16.mxu0 0
    %13125 = vmatpush1.bf16.msra.mxu0 %v13047
    %13126 = vmatprep.subr.bf16.mxu0 0
    %13127 = vmatpush1.bf16.msra.mxu0 %v13048
    %13128 = vmatprep.subr.bf16.mxu0 0
    %13129 = vmatpush1.bf16.msra.mxu0 %v13049
    %13130 = vmatprep.mubr.bf16.mxu0 %v12832
    %13131 = vmatmul.mubr.bf16.gmra.mrb[0].mxu0 %v12831
    %v13132 = vpop.f32.mrb[0].mxu0
    %v13133 = vadd.f32 %v12904, %v13132
    %v13134 = vpop.f32.mrb[0].mxu0
    %v13135 = vpop.f32.mrb[0].mxu0
    %v13136 = vpop.f32.mrb[0].mxu0
    %13137 = vdwg.mxu0
    %13138 = vmatprep.subr.bf16.mxu0 0
    %13139 = vmatpush1.bf16.msra.mxu0 %v13050
    %13140 = vmatprep.subr.bf16.mxu0 0
    %13141 = vmatpush1.bf16.msra.mxu0 %v13051
    %13142 = vmatprep.subr.bf16.mxu0 0
    %13143 = vmatpush1.bf16.msra.mxu0 %v13052
    %13144 = vmatprep.subr.bf16.mxu0 0
    %13145 = vmatpush1.bf16.msra.mxu0 %v13053
    %13146 = vmatprep.subr.bf16.mxu0 0
    %13147 = vmatpush1.bf16.msra.mxu0 %v13054
    %13148 = vmatprep.subr.bf16.mxu0 0
    %13149 = vmatpush1.bf16.msra.mxu0 %v13055
    %13150 = vmatprep.subr.bf16.mxu0 0
    %13151 = vmatpush1.bf16.msra.mxu0 %v13056
    %13152 = vmatprep.subr.bf16.mxu0 0
    %13153 = vmatpush1.bf16.msra.mxu0 %v13057
    %13154 = vmatprep.subr.bf16.mxu0 0
    %13155 = vmatpush1.bf16.msra.mxu0 %v13058
    %13156 = vmatprep.subr.bf16.mxu0 0
    %13157 = vmatpush1.bf16.msra.mxu0 %v13059
    %13158 = vmatprep.subr.bf16.mxu0 0
    %13159 = vmatpush1.bf16.msra.mxu0 %v13060
    %13160 = vmatprep.subr.bf16.mxu0 0
    %13161 = vmatpush1.bf16.msra.mxu0 %v13061
    %13162 = vmatprep.subr.bf16.mxu0 0
    %13163 = vmatpush1.bf16.msra.mxu0 %v13062
    %13164 = vmatprep.subr.bf16.mxu0 0
    %13165 = vmatpush1.bf16.msra.mxu0 %v13063
    %13166 = vmatprep.subr.bf16.mxu0 0
    %13167 = vmatpush1.bf16.msra.mxu0 %v13064
    %13168 = vmatprep.subr.bf16.mxu0 0
    %13169 = vmatpush1.bf16.msra.mxu0 %v13065
    %13170 = vmatprep.mubr.bf16.mxu0 %v12834
    %13171 = vmatmul.mubr.bf16.gmra.mrb[0].mxu0 %v12833
    %v13172 = vpop.f32.mrb[0].mxu0
    %v13173 = vadd.f32 %v13133, %v13172
    %v13174 = vpop.f32.mrb[0].mxu0
    %v13175 = vpop.f32.mrb[0].mxu0
    %v13176 = vpop.f32.mrb[0].mxu0
    %13177 = vdwg.mxu0
    %v13178 = vmax.f32 %v13173, 0.0
    %v13179 = vpack.c.bf16 %v13178, %v13178
    %v13180 = vld [vmem:[#allocation11] sm:$0xf]
    %v13181 = vld [vmem:[#allocation11 + $0x4] sm:$0xf]
    %v13182 = vld [vmem:[#allocation11 + $0x8] sm:$0xf]
    %v13183 = vld [vmem:[#allocation11 + $0xc] sm:$0xf]
    %v13184 = vld [vmem:[#allocation11 + $0x10] sm:$0xf]
    %v13185 = vld [vmem:[#allocation11 + $0x14] sm:$0xf]
    %v13186 = vld [vmem:[#allocation11 + $0x18] sm:$0xf]
    %v13187 = vld [vmem:[#allocation11 + $0x1c] sm:$0xf]
    %v13188 = vld [vmem:[#allocation11 + $0x20] sm:$0xf]
    %v13189 = vld [vmem:[#allocation11 + $0x24] sm:$0xf]
    %v13190 = vld [vmem:[#allocation11 + $0x28] sm:$0xf]
    %v13191 = vld [vmem:[#allocation11 + $0x2c] sm:$0xf]
    %v13192 = vld [vmem:[#allocation11 + $0x30] sm:$0xf]
    %v13193 = vld [vmem:[#allocation11 + $0x34] sm:$0xf]
    %v13194 = vld [vmem:[#allocation11 + $0x38] sm:$0xf]
    %v13195 = vld [vmem:[#allocation11 + $0x3c] sm:$0xf]
    %v13196 = vld [vmem:[#allocation13] sm:$0x1]
    %v13198 = vlaneseq
    %v13199 = vshrl.u32 %v13198, 7
    %v13200 = vsub.s32 0, %v13199
    %v13201 = vrot.slane %v13196, %v13200
    %v13219 = vunpack.c.l.b16 %v13180
    %v13220 = vunpack.c.l.b16 %v13181
    %v13221 = vunpack.c.l.b16 %v13182
    %v13222 = vunpack.c.l.b16 %v13183
    %v13223 = vunpack.c.l.b16 %v13184
    %v13224 = vunpack.c.l.b16 %v13185
    %v13225 = vunpack.c.l.b16 %v13186
    %v13226 = vunpack.c.l.b16 %v13187
    %v13227 = vunpack.c.l.b16 %v13188
    %v13228 = vunpack.c.l.b16 %v13189
    %v13229 = vunpack.c.l.b16 %v13190
    %v13230 = vunpack.c.l.b16 %v13191
    %v13231 = vunpack.c.l.b16 %v13192
    %v13232 = vunpack.c.l.b16 %v13193
    %v13233 = vunpack.c.l.b16 %v13194
    %v13234 = vunpack.c.l.b16 %v13195
    %v13235 = vpack.c.b16 %v13220, %v13219
    %v13236 = vpack.c.b16 %v13222, %v13221
    %v13237 = vpack.c.b16 %v13224, %v13223
    %v13238 = vpack.c.b16 %v13226, %v13225
    %v13239 = vpack.c.b16 %v13228, %v13227
    %v13240 = vpack.c.b16 %v13230, %v13229
    %v13241 = vpack.c.b16 %v13232, %v13231
    %v13242 = vpack.c.b16 %v13234, %v13233
    %13251 = vmatprep.subr.bf16.mxu0 0
    %13252 = vmatpush1.bf16.msra.mxu0 %v13235
    %13253 = vmatprep.subr.bf16.mxu0 0
    %13254 = vmatpush1.bf16.msra.mxu0 %v13236
    %13255 = vmatprep.subr.bf16.mxu0 0
    %13256 = vmatpush1.bf16.msra.mxu0 %v13237
    %13257 = vmatprep.subr.bf16.mxu0 0
    %13258 = vmatpush1.bf16.msra.mxu0 %v13238
    %13259 = vmatprep.subr.bf16.mxu0 0
    %13260 = vmatpush1.bf16.msra.mxu0 %v13239
    %13261 = vmatprep.subr.bf16.mxu0 0
    %13262 = vmatpush1.bf16.msra.mxu0 %v13240
    %13263 = vmatprep.subr.bf16.mxu0 0
    %13264 = vmatpush1.bf16.msra.mxu0 %v13241
    %13265 = vmatprep.subr.bf16.mxu0 0
    %13266 = vmatpush1.bf16.msra.mxu0 %v13242
    %13267 = vmatprep.subr.bf16.mxu0 0
    %13268 = vmatpush1.bf16.msra.mxu0 0
    %13269 = vmatprep.subr.bf16.mxu0 0
    %13270 = vmatpush1.bf16.msra.mxu0 0
    %13271 = vmatprep.subr.bf16.mxu0 0
    %13272 = vmatpush1.bf16.msra.mxu0 0
    %13273 = vmatprep.subr.bf16.mxu0 0
    %13274 = vmatpush1.bf16.msra.mxu0 0
    %13275 = vmatprep.subr.bf16.mxu0 0
    %13276 = vmatpush1.bf16.msra.mxu0 0
    %13277 = vmatprep.subr.bf16.mxu0 0
    %13278 = vmatpush1.bf16.msra.mxu0 0
    %13279 = vmatprep.subr.bf16.mxu0 0
    %13280 = vmatpush1.bf16.msra.mxu0 0
    %13281 = vmatprep.subr.bf16.mxu0 0
    %13282 = vmatpush1.bf16.msra.mxu0 0
    %13283 = vmatprep.mubr.bf16.mxu0 0
    %13284 = vmatmul.mubr.bf16.gmra.mrb[0].mxu0 %v13179
    %v13285 = vpop.f32.mrb[0].mxu0
    %v13286 = vadd.f32 %v13201, %v13285
    %v13287 = vpop.f32.mrb[0].mxu0
    %v13288 = vpop.f32.mrb[0].mxu0
    %v13289 = vpop.f32.mrb[0].mxu0
    %13290 = vdwg.mxu0
    %13291 = vst [vmem:[#allocation14] sm:$0xff] %v13286
    // Predicated region
    $region58: #{tpu_custom_call.1} parent=1 // pred_check
      _
    $region59: #{tpu_custom_call.1} parent=1 // pred_check_branch
      %13293 = sbr.rel (0) target = $region61
    $region60: #{tpu_custom_call.1} parent=1 // pred_region
      %s13295 = ssub.s32 128, 128
      %13296 = vsyncadd [#allocation4], %s13295
      %s13298 = sshll.u32 [#allocation14], 4
      %s13299 = int_to_ptr.vmem [resolvable:$true] %s13298
      %13301 = dma.vmem_to_hbm [thread:$0]  %s13299, 128, %s7, [#allocation4]
    $region61: #{tpu_custom_call.1} parent=1 // pred_fallthru
      _
    // Predicated region
    $region62: #{tpu_custom_call.1} parent=1 // pred_check
      _
    $region63: #{tpu_custom_call.1} parent=1 // pred_check_branch
      %13303 = sbr.rel (0) target = $region65
    $region64: #{tpu_custom_call.1} parent=1 // pred_region
      %13304 = dma.done [#allocation4], 128
    $region65: #{tpu_custom_call.1} parent=1 // pred_fallthru
      _
    %13305 = vsyncpa [#allocation3], 1
    %13306 = vsyncpa [#allocation6], 1
    %13307 = vsyncpa [#allocation9], 1
    %13308 = vsyncpa [#allocation12], 1
    %13309 = vsyncpa [#allocation4], 1

</llo_original>
